<compile_context>
chip_gen: v7x
topology: tpu7x:2x2x1
jax: 0.10.0
libtpu: 0.0.40
codegen_flags: <defaults>
</compile_context>

<pallas_src>
import jax
import jax.numpy as jnp
from jax.experimental import pallas as pl
from jax.experimental.pallas import tpu as pltpu


# ----------------------------------------------------------------------------
# Kernel
# ----------------------------------------------------------------------------
def _make_drqn_kernel(gru_layers: int, n_fc: int):
    """Fused kernel: `gru_layers` GRU layers + `n_fc` Linear layers, whole sequence."""

    def kernel(*refs):
        idx = 0
        x_ref = refs[idx]; idx += 1          # (SL, Np, D)   time-major padded state
        h0_ref = refs[idx]; idx += 1         # (L, Np, H)    initial hidden state
        gru_w = []
        for _ in range(gru_layers):
            # (W_i (3, D_in, H), W_h (3, H, H), b_i (3, 1, H), b_h (3, 1, H))
            gru_w.append(tuple(refs[idx:idx + 4]))
            idx += 4
        fc_w = []
        for _ in range(n_fc):
            fc_w.append(tuple(refs[idx:idx + 2]))    # (W (in, out), b (1, out))
            idx += 2
        q_ref = refs[idx]; idx += 1          # (SL, Np, A)
        hout_ref = refs[idx]; idx += 1       # (L, Np, H)
        gi_r = refs[idx]; idx += 1           # VMEM scratch (SL, Np, H)
        gi_z = refs[idx]; idx += 1           # VMEM scratch (SL, Np, H)
        gi_n = refs[idx]; idx += 1           # VMEM scratch (SL, Np, H)
        y_buf = refs[idx]; idx += 1          # VMEM scratch (SL, Np, H)  per-layer output seq

        SL, Np, D = x_ref.shape
        H = h0_ref.shape[-1]
        unroll = True if SL <= 16 else 4

        # ---- stacked GRU layers (PyTorch gate ordering: r, z, n) ----
        for l, (wi_ref, wh_ref, bi_ref, bh_ref) in enumerate(gru_w):
            # Batched input projections over the whole sequence (one MXU dot per gate).
            if l == 0:
                inp = x_ref[...].reshape(SL * Np, D)
            else:
                inp = y_buf[...].reshape(SL * Np, H)
            gi_r[...] = (jnp.dot(inp, wi_ref[0], preferred_element_type=jnp.float32)
                         + bi_ref[0]).reshape(SL, Np, H)
            gi_z[...] = (jnp.dot(inp, wi_ref[1], preferred_element_type=jnp.float32)
                         + bi_ref[1]).reshape(SL, Np, H)
            gi_n[...] = (jnp.dot(inp, wi_ref[2], preferred_element_type=jnp.float32)
                         + bi_ref[2]).reshape(SL, Np, H)

            # Hoist hidden weights / broadcast biases out of the time loop.
            whr = wh_ref[0]
            whz = wh_ref[1]
            whn = wh_ref[2]
            bhr = jnp.broadcast_to(bh_ref[0], (Np, H))
            bhz = jnp.broadcast_to(bh_ref[1], (Np, H))
            bhn = jnp.broadcast_to(bh_ref[2], (Np, H))

            def step(t, h, _whr=whr, _whz=whz, _whn=whn,
                     _bhr=bhr, _bhz=bhz, _bhn=bhn):
                hr = jnp.dot(h, _whr, preferred_element_type=jnp.float32) + _bhr
                hz = jnp.dot(h, _whz, preferred_element_type=jnp.float32) + _bhz
                hn = jnp.dot(h, _whn, preferred_element_type=jnp.float32) + _bhn
                r = jax.nn.sigmoid(gi_r[t] + hr)
                z = jax.nn.sigmoid(gi_z[t] + hz)
                n = jnp.tanh(gi_n[t] + r * hn)
                h_new = (1.0 - z) * n + z * h
                y_buf[t] = h_new
                return h_new

            h_fin = jax.lax.fori_loop(0, SL, step, h0_ref[l], unroll=unroll)
            hout_ref[l] = h_fin

        # ---- FC head, batched over all timesteps; single lane-dense q store ----
        y = y_buf[...].reshape(SL * Np, H)
        for i, (w_ref, b_ref) in enumerate(fc_w):
            y = jnp.dot(y, w_ref[...], preferred_element_type=jnp.float32) + b_ref[...]
            if i < n_fc - 1:
                y = jnp.maximum(y, 0.0)
        q_ref[...] = y.reshape(q_ref.shape)

    return kernel


def _full_block_spec(shape):
    zeros = (0,) * len(shape)
    return pl.BlockSpec(tuple(shape), lambda i, _z=zeros: _z)


# ----------------------------------------------------------------------------
# Wrapper
# ----------------------------------------------------------------------------
def drqn_forward(state, h0, gru_params, fc_params):
    """
    state      : (N, SL, state_dims) float32
    h0         : (L, N, H) float32
    gru_params : list of (W_ih (3H, D_in), W_hh (3H, H), b_ih (1, 3H), b_hh (1, 3H))
                 (PyTorch layout, gate order r, z, n)
    fc_params  : list of (W (out, in), b (1, out))
    returns (q (N, SL, n_actions), h (L, N, H))
    """
    N, SL, D = state.shape
    L, _, H = h0.shape
    A = fc_params[-1][0].shape[0]

    # Pad batch to a full f32 sublane group.
    Np = max(8, ((N + 7) // 8) * 8)
    pad_n = Np - N

    state_tm = jnp.transpose(state, (1, 0, 2))          # (SL, N, D) time-major
    if pad_n:
        state_tm = jnp.pad(state_tm, ((0, 0), (0, pad_n), (0, 0)))
        h0_p = jnp.pad(h0, ((0, 0), (0, pad_n), (0, 0)))
    else:
        h0_p = h0

    # Repack GRU weights: per-gate split, transposed to (in, out), stacked on axis 0.
    packed_gru = []
    for (wi, wh, bi, bh) in gru_params:
        d_in = wi.shape[1]
        wi3 = jnp.transpose(wi.reshape(3, H, d_in), (0, 2, 1))   # (3, D_in, H)
        wh3 = jnp.transpose(wh.reshape(3, H, H), (0, 2, 1))      # (3, H, H)
        bi3 = bi.reshape(3, 1, H)                                # (3, 1, H)
        bh3 = bh.reshape(3, 1, H)                                # (3, 1, H)
        packed_gru.append((wi3, wh3, bi3, bh3))

    # FC weights pre-transposed to (in, out).
    packed_fc = [(jnp.transpose(w), b) for (w, b) in fc_params]

    kernel = _make_drqn_kernel(len(gru_params), len(fc_params))

    flat_inputs = [state_tm, h0_p]
    in_specs = [_full_block_spec(state_tm.shape), _full_block_spec(h0_p.shape)]
    for layer in packed_gru:
        for arr in layer:
            flat_inputs.append(arr)
            in_specs.append(_full_block_spec(arr.shape))
    for (w, b) in packed_fc:
        flat_inputs += [w, b]
        in_specs += [_full_block_spec(w.shape), _full_block_spec(b.shape)]

    out_shapes = (
        jax.ShapeDtypeStruct((SL, Np, A), jnp.float32),   # q (time-major, padded)
        jax.ShapeDtypeStruct((L, Np, H), jnp.float32),    # final hidden state (padded)
    )
    out_specs = (
        _full_block_spec((SL, Np, A)),
        _full_block_spec((L, Np, H)),
    )

    scratch_shapes = [
        pltpu.VMEM((SL, Np, H), jnp.float32),   # gi_r
        pltpu.VMEM((SL, Np, H), jnp.float32),   # gi_z
        pltpu.VMEM((SL, Np, H), jnp.float32),   # gi_n
        pltpu.VMEM((SL, Np, H), jnp.float32),   # y_buf (per-layer output sequence)
    ]

    q_tm, h_out = pl.pallas_call(
        kernel,
        out_shape=out_shapes,
        grid_spec=pltpu.PrefetchScalarGridSpec(
            num_scalar_prefetch=0,
            grid=(1,),                                    # whole problem in one step
            in_specs=in_specs,
            out_specs=out_specs,
            scratch_shapes=scratch_shapes,
        ),
        compiler_params=pltpu.CompilerParams(
            dimension_semantics=("arbitrary",),
        ),
    )(*flat_inputs)

    q = jnp.transpose(q_tm[:, :N, :], (1, 0, 2))          # (N, SL, A)
    h = h_out[:, :N, :]
    return q, h


# ----------------------------------------------------------------------------
# Pure-JAX reference (for correctness check)
# ----------------------------------------------------------------------------
def drqn_reference(state, h0, gru_params, fc_params):
    N, SL, D = state.shape
    L, _, H = h0.shape
    h = [h0[l] for l in range(L)]
    q_list = []
    for t in range(SL):
        x = state[:, t, :]
        for l, (wi, wh, bi, bh) in enumerate(gru_params):
            gx = x @ wi.T + bi[0]
            gh = h[l] @ wh.T + bh[0]
            r = jax.nn.sigmoid(gx[:, 0:H] + gh[:, 0:H])
            z = jax.nn.sigmoid(gx[:, H:2 * H] + gh[:, H:2 * H])
            n = jnp.tanh(gx[:, 2 * H:3 * H] + r * gh[:, 2 * H:3 * H])
            h[l] = (1.0 - z) * n + z * h[l]
            x = h[l]
        y = x
        for i, (w, b) in enumerate(fc_params):
            y = y @ w.T + b[0]
            if i < len(fc_params) - 1:
                y = jnp.maximum(y, 0.0)
        q_list.append(y)
    q = jnp.stack(q_list, axis=1)
    return q, jnp.stack(h, axis=0)


# ----------------------------------------------------------------------------
# Main
# ----------------------------------------------------------------------------
if __name__ == "__main__":
    # Small shapes consistent with the module's forward signature.
    N, SL = 2, 8                  # batch, sequence length
    state_dims = 16
    gru_dims = 32
    gru_layers = 2
    hidden_dims = [32, 32]        # hidden_dims[0] == gru_dims (required by fc_model)
    n_actions = 4

    key = jax.random.PRNGKey(0)
    keys = iter(jax.random.split(key, 64))

    def uniform(shape, scale):
        return jax.random.uniform(next(keys), shape, jnp.float32, -scale, scale)

    # GRU parameters (PyTorch layout: weight_ih (3H, D_in), weight_hh (3H, H),
    # biases (3H,) reshaped to (1, 3H); init ~ U(-1/sqrt(H), 1/sqrt(H))).
    k = 1.0 / jnp.sqrt(gru_dims)
    gru_params = []
    for l in range(gru_layers):
        d_in = state_dims if l == 0 else gru_dims
        gru_params.append((
            uniform((3 * gru_dims, d_in), k),
            uniform((3 * gru_dims, gru_dims), k),
            uniform((1, 3 * gru_dims), k),
            uniform((1, 3 * gru_dims), k),
        ))

    # FC head: Linear(hidden[i], hidden[i+1]) + ReLU ..., then Linear(hidden[-1], n_actions).
    fc_dims = list(hidden_dims) + [n_actions]
    fc_params = []
    for i in range(len(fc_dims) - 1):
        kf = 1.0 / jnp.sqrt(fc_dims[i])
        fc_params.append((
            uniform((fc_dims[i + 1], fc_dims[i]), kf),
            uniform((1, fc_dims[i + 1]), kf),
        ))

    state = jax.random.normal(next(keys), (N, SL, state_dims), jnp.float32)
    h0 = jnp.zeros((gru_layers, N, gru_dims), jnp.float32)   # forward's default h

    q, h = drqn_forward(state, h0, gru_params, fc_params)
    q = jax.block_until_ready(q)
    h = jax.block_until_ready(h)

    q_ref, h_ref = drqn_reference(state, h0, gru_params, fc_params)
    assert q.shape == (N, SL, n_actions) and h.shape == (gru_layers, N, gru_dims)
    assert jnp.allclose(q, q_ref, atol=1e-5, rtol=1e-5), "q mismatch vs reference"
    assert jnp.allclose(h, h_ref, atol=1e-5, rtol=1e-5), "h mismatch vs reference"

    print("KERNEL_OK")
</pallas_src>

<mosaic_0001>
module attributes {stable_mosaic.version = 11 : i64} {
  func.func @kernel(%arg0: i32, %arg1: memref<8x8x16xf32, #tpu.memory_space<vmem>>, %arg2: memref<2x8x32xf32, #tpu.memory_space<vmem>>, %arg3: memref<3x16x32xf32, #tpu.memory_space<vmem>>, %arg4: memref<3x32x32xf32, #tpu.memory_space<vmem>>, %arg5: memref<3x1x32xf32, #tpu.memory_space<vmem>>, %arg6: memref<3x1x32xf32, #tpu.memory_space<vmem>>, %arg7: memref<3x32x32xf32, #tpu.memory_space<vmem>>, %arg8: memref<3x32x32xf32, #tpu.memory_space<vmem>>, %arg9: memref<3x1x32xf32, #tpu.memory_space<vmem>>, %arg10: memref<3x1x32xf32, #tpu.memory_space<vmem>>, %arg11: memref<32x32xf32, #tpu.memory_space<vmem>>, %arg12: memref<1x32xf32, #tpu.memory_space<vmem>>, %arg13: memref<32x4xf32, #tpu.memory_space<vmem>>, %arg14: memref<1x4xf32, #tpu.memory_space<vmem>>, %arg15: memref<8x8x4xf32, #tpu.memory_space<vmem>>, %arg16: memref<2x8x32xf32, #tpu.memory_space<vmem>>, %arg17: memref<8x8x32xf32, #tpu.memory_space<vmem>>, %arg18: memref<8x8x32xf32, #tpu.memory_space<vmem>>, %arg19: memref<8x8x32xf32, #tpu.memory_space<vmem>>, %arg20: memref<8x8x32xf32, #tpu.memory_space<vmem>>) attributes {dimension_semantics = [#tpu.dimension_semantics<arbitrary>], iteration_bounds = array<i64: 1>, scalar_prefetch = 0 : i64, scratch_operands = 4 : i64, tpu.core_type = #tpu.core_type<tc>, window_params = [{pipeline_mode = #tpu.pipeline_mode<synchronous>, transform_indices = @transform_0, window_bounds = array<i64: 8, 8, 16>}, {pipeline_mode = #tpu.pipeline_mode<synchronous>, transform_indices = @transform_1, window_bounds = array<i64: 2, 8, 32>}, {pipeline_mode = #tpu.pipeline_mode<synchronous>, transform_indices = @transform_2, window_bounds = array<i64: 3, 16, 32>}, {pipeline_mode = #tpu.pipeline_mode<synchronous>, transform_indices = @transform_3, window_bounds = array<i64: 3, 32, 32>}, {pipeline_mode = #tpu.pipeline_mode<synchronous>, transform_indices = @transform_4, window_bounds = array<i64: 3, 1, 32>}, {pipeline_mode = #tpu.pipeline_mode<synchronous>, transform_indices = @transform_5, window_bounds = array<i64: 3, 1, 32>}, {pipeline_mode = #tpu.pipeline_mode<synchronous>, transform_indices = @transform_6, window_bounds = array<i64: 3, 32, 32>}, {pipeline_mode = #tpu.pipeline_mode<synchronous>, transform_indices = @transform_7, window_bounds = array<i64: 3, 32, 32>}, {pipeline_mode = #tpu.pipeline_mode<synchronous>, transform_indices = @transform_8, window_bounds = array<i64: 3, 1, 32>}, {pipeline_mode = #tpu.pipeline_mode<synchronous>, transform_indices = @transform_9, window_bounds = array<i64: 3, 1, 32>}, {pipeline_mode = #tpu.pipeline_mode<synchronous>, transform_indices = @transform_10, window_bounds = array<i64: 32, 32>}, {pipeline_mode = #tpu.pipeline_mode<synchronous>, transform_indices = @transform_11, window_bounds = array<i64: 1, 32>}, {pipeline_mode = #tpu.pipeline_mode<synchronous>, transform_indices = @transform_12, window_bounds = array<i64: 32, 4>}, {pipeline_mode = #tpu.pipeline_mode<synchronous>, transform_indices = @transform_13, window_bounds = array<i64: 1, 4>}, {pipeline_mode = #tpu.pipeline_mode<synchronous>, transform_indices = @transform_14, window_bounds = array<i64: 8, 8, 4>}, {pipeline_mode = #tpu.pipeline_mode<synchronous>, transform_indices = @transform_15, window_bounds = array<i64: 2, 8, 32>}]} {
    %c0 = arith.constant 0 : index
    %c0_0 = arith.constant 0 : index
    %c0_1 = arith.constant 0 : index
    %0 = vector.load %arg1[%c0, %c0_0, %c0_1] : memref<8x8x16xf32, #tpu.memory_space<vmem>>, vector<8x8x16xf32>
    %1 = vector.shape_cast %0 : vector<8x8x16xf32> to vector<64x16xf32>
    %c0_2 = arith.constant 0 : index
    %c0_3 = arith.constant 0 : index
    %c0_4 = arith.constant 0 : index
    %2 = vector.load %arg3[%c0_2, %c0_3, %c0_4] : memref<3x16x32xf32, #tpu.memory_space<vmem>>, vector<1x16x32xf32>
    %3 = vector.shape_cast %2 : vector<1x16x32xf32> to vector<16x32xf32>
    %cst = arith.constant dense<0.000000e+00> : vector<64x32xf32>
    %4 = tpu.matmul %1, %3, %cst {dimension_numbers = #tpu.dot_dimension_numbers<[1], [0], [0], [1], [0, 0, 1, 1], [], []>} : vector<64x16xf32>, vector<16x32xf32>, vector<64x32xf32> -> vector<64x32xf32>
    %c0_5 = arith.constant 0 : index
    %c0_6 = arith.constant 0 : index
    %c0_7 = arith.constant 0 : index
    %5 = vector.load %arg5[%c0_5, %c0_6, %c0_7] : memref<3x1x32xf32, #tpu.memory_space<vmem>>, vector<1x1x32xf32>
    %6 = vector.shape_cast %5 : vector<1x1x32xf32> to vector<1x32xf32>
    %7 = vector.broadcast %6 : vector<1x32xf32> to vector<64x32xf32>
    %8 = arith.addf %4, %7 : vector<64x32xf32>
    %9 = vector.shape_cast %8 : vector<64x32xf32> to vector<8x8x32xf32>
    %c0_8 = arith.constant 0 : index
    %c0_9 = arith.constant 0 : index
    %c0_10 = arith.constant 0 : index
    %10 = vector.load %arg17[%c0_8, %c0_9, %c0_10] : memref<8x8x32xf32, #tpu.memory_space<vmem>>, vector<8x8x32xf32>
    tpu.vector_store %arg17[%c0_8, %c0_9, %c0_10], %9 {strides = array<i32>} : memref<8x8x32xf32, #tpu.memory_space<vmem>>, vector<8x8x32xf32>,
    %c1 = arith.constant 1 : index
    %c0_11 = arith.constant 0 : index
    %c0_12 = arith.constant 0 : index
    %11 = vector.load %arg3[%c1, %c0_11, %c0_12] : memref<3x16x32xf32, #tpu.memory_space<vmem>>, vector<1x16x32xf32>
    %12 = vector.shape_cast %11 : vector<1x16x32xf32> to vector<16x32xf32>
    %cst_13 = arith.constant dense<0.000000e+00> : vector<64x32xf32>
    %13 = tpu.matmul %1, %12, %cst_13 {dimension_numbers = #tpu.dot_dimension_numbers<[1], [0], [0], [1], [0, 0, 1, 1], [], []>} : vector<64x16xf32>, vector<16x32xf32>, vector<64x32xf32> -> vector<64x32xf32>
    %c1_14 = arith.constant 1 : index
    %c0_15 = arith.constant 0 : index
    %c0_16 = arith.constant 0 : index
    %14 = vector.load %arg5[%c1_14, %c0_15, %c0_16] : memref<3x1x32xf32, #tpu.memory_space<vmem>>, vector<1x1x32xf32>
    %15 = vector.shape_cast %14 : vector<1x1x32xf32> to vector<1x32xf32>
    %16 = vector.broadcast %15 : vector<1x32xf32> to vector<64x32xf32>
    %17 = arith.addf %13, %16 : vector<64x32xf32>
    %18 = vector.shape_cast %17 : vector<64x32xf32> to vector<8x8x32xf32>
    %c0_17 = arith.constant 0 : index
    %c0_18 = arith.constant 0 : index
    %c0_19 = arith.constant 0 : index
    %19 = vector.load %arg18[%c0_17, %c0_18, %c0_19] : memref<8x8x32xf32, #tpu.memory_space<vmem>>, vector<8x8x32xf32>
    tpu.vector_store %arg18[%c0_17, %c0_18, %c0_19], %18 {strides = array<i32>} : memref<8x8x32xf32, #tpu.memory_space<vmem>>, vector<8x8x32xf32>,
    %c2 = arith.constant 2 : index
    %c0_20 = arith.constant 0 : index
    %c0_21 = arith.constant 0 : index
    %20 = vector.load %arg3[%c2, %c0_20, %c0_21] : memref<3x16x32xf32, #tpu.memory_space<vmem>>, vector<1x16x32xf32>
    %21 = vector.shape_cast %20 : vector<1x16x32xf32> to vector<16x32xf32>
    %cst_22 = arith.constant dense<0.000000e+00> : vector<64x32xf32>
    %22 = tpu.matmul %1, %21, %cst_22 {dimension_numbers = #tpu.dot_dimension_numbers<[1], [0], [0], [1], [0, 0, 1, 1], [], []>} : vector<64x16xf32>, vector<16x32xf32>, vector<64x32xf32> -> vector<64x32xf32>
    %c2_23 = arith.constant 2 : index
    %c0_24 = arith.constant 0 : index
    %c0_25 = arith.constant 0 : index
    %23 = vector.load %arg5[%c2_23, %c0_24, %c0_25] : memref<3x1x32xf32, #tpu.memory_space<vmem>>, vector<1x1x32xf32>
    %24 = vector.shape_cast %23 : vector<1x1x32xf32> to vector<1x32xf32>
    %25 = vector.broadcast %24 : vector<1x32xf32> to vector<64x32xf32>
    %26 = arith.addf %22, %25 : vector<64x32xf32>
    %27 = vector.shape_cast %26 : vector<64x32xf32> to vector<8x8x32xf32>
    %c0_26 = arith.constant 0 : index
    %c0_27 = arith.constant 0 : index
    %c0_28 = arith.constant 0 : index
    %28 = vector.load %arg19[%c0_26, %c0_27, %c0_28] : memref<8x8x32xf32, #tpu.memory_space<vmem>>, vector<8x8x32xf32>
    tpu.vector_store %arg19[%c0_26, %c0_27, %c0_28], %27 {strides = array<i32>} : memref<8x8x32xf32, #tpu.memory_space<vmem>>, vector<8x8x32xf32>,
    %c0_29 = arith.constant 0 : index
    %c0_30 = arith.constant 0 : index
    %c0_31 = arith.constant 0 : index
    %29 = vector.load %arg4[%c0_29, %c0_30, %c0_31] : memref<3x32x32xf32, #tpu.memory_space<vmem>>, vector<1x32x32xf32>
    %30 = vector.shape_cast %29 : vector<1x32x32xf32> to vector<32x32xf32>
    %c1_32 = arith.constant 1 : index
    %c0_33 = arith.constant 0 : index
    %c0_34 = arith.constant 0 : index
    %31 = vector.load %arg4[%c1_32, %c0_33, %c0_34] : memref<3x32x32xf32, #tpu.memory_space<vmem>>, vector<1x32x32xf32>
    %32 = vector.shape_cast %31 : vector<1x32x32xf32> to vector<32x32xf32>
    %c2_35 = arith.constant 2 : index
    %c0_36 = arith.constant 0 : index
    %c0_37 = arith.constant 0 : index
    %33 = vector.load %arg4[%c2_35, %c0_36, %c0_37] : memref<3x32x32xf32, #tpu.memory_space<vmem>>, vector<1x32x32xf32>
    %34 = vector.shape_cast %33 : vector<1x32x32xf32> to vector<32x32xf32>
    %c0_38 = arith.constant 0 : index
    %c0_39 = arith.constant 0 : index
    %c0_40 = arith.constant 0 : index
    %35 = vector.load %arg6[%c0_38, %c0_39, %c0_40] : memref<3x1x32xf32, #tpu.memory_space<vmem>>, vector<1x1x32xf32>
    %36 = vector.shape_cast %35 : vector<1x1x32xf32> to vector<1x32xf32>
    %37 = vector.shape_cast %36 : vector<1x32xf32> to vector<1x32xf32>
    %38 = vector.broadcast %37 : vector<1x32xf32> to vector<8x32xf32>
    %c1_41 = arith.constant 1 : index
    %c0_42 = arith.constant 0 : index
    %c0_43 = arith.constant 0 : index
    %39 = vector.load %arg6[%c1_41, %c0_42, %c0_43] : memref<3x1x32xf32, #tpu.memory_space<vmem>>, vector<1x1x32xf32>
    %40 = vector.shape_cast %39 : vector<1x1x32xf32> to vector<1x32xf32>
    %41 = vector.shape_cast %40 : vector<1x32xf32> to vector<1x32xf32>
    %42 = vector.broadcast %41 : vector<1x32xf32> to vector<8x32xf32>
    %c2_44 = arith.constant 2 : index
    %c0_45 = arith.constant 0 : index
    %c0_46 = arith.constant 0 : index
    %43 = vector.load %arg6[%c2_44, %c0_45, %c0_46] : memref<3x1x32xf32, #tpu.memory_space<vmem>>, vector<1x1x32xf32>
    %44 = vector.shape_cast %43 : vector<1x1x32xf32> to vector<1x32xf32>
    %45 = vector.shape_cast %44 : vector<1x32xf32> to vector<1x32xf32>
    %46 = vector.broadcast %45 : vector<1x32xf32> to vector<8x32xf32>
    %c0_47 = arith.constant 0 : index
    %c0_48 = arith.constant 0 : index
    %c0_49 = arith.constant 0 : index
    %47 = vector.load %arg2[%c0_47, %c0_48, %c0_49] : memref<2x8x32xf32, #tpu.memory_space<vmem>>, vector<1x8x32xf32>
    %48 = vector.shape_cast %47 : vector<1x8x32xf32> to vector<8x32xf32>
    %c0_i32 = arith.constant 0 : i32
    %cst_50 = arith.constant dense<0.000000e+00> : vector<8x32xf32>
    %49 = tpu.matmul %48, %30, %cst_50 {dimension_numbers = #tpu.dot_dimension_numbers<[1], [0], [0], [1], [0, 0, 1, 1], [], []>} : vector<8x32xf32>, vector<32x32xf32>, vector<8x32xf32> -> vector<8x32xf32>
    %50 = arith.addf %49, %38 : vector<8x32xf32>
    %cst_51 = arith.constant dense<0.000000e+00> : vector<8x32xf32>
    %51 = tpu.matmul %48, %32, %cst_51 {dimension_numbers = #tpu.dot_dimension_numbers<[1], [0], [0], [1], [0, 0, 1, 1], [], []>} : vector<8x32xf32>, vector<32x32xf32>, vector<8x32xf32> -> vector<8x32xf32>
    %52 = arith.addf %51, %42 : vector<8x32xf32>
    %cst_52 = arith.constant dense<0.000000e+00> : vector<8x32xf32>
    %53 = tpu.matmul %48, %34, %cst_52 {dimension_numbers = #tpu.dot_dimension_numbers<[1], [0], [0], [1], [0, 0, 1, 1], [], []>} : vector<8x32xf32>, vector<32x32xf32>, vector<8x32xf32> -> vector<8x32xf32>
    %54 = arith.addf %53, %46 : vector<8x32xf32>
    %55 = arith.index_cast %c0_i32 : i32 to index
    %c0_53 = arith.constant 0 : index
    %c0_54 = arith.constant 0 : index
    %56 = vector.load %arg17[%55, %c0_53, %c0_54] : memref<8x8x32xf32, #tpu.memory_space<vmem>>, vector<1x8x32xf32>
    %57 = vector.shape_cast %56 : vector<1x8x32xf32> to vector<8x32xf32>
    %58 = arith.addf %57, %50 : vector<8x32xf32>
    %59 = arith.negf %58 : vector<8x32xf32>
    %60 = math.exp %59 : vector<8x32xf32>
    %cst_55 = arith.constant 1.000000e+00 : f32
    %61 = vector.broadcast %cst_55 : f32 to vector<8x32xf32>
    %62 = arith.addf %61, %60 : vector<8x32xf32>
    %63 = arith.divf %61, %62 : vector<8x32xf32>
    %64 = arith.index_cast %c0_i32 : i32 to index
    %c0_56 = arith.constant 0 : index
    %c0_57 = arith.constant 0 : index
    %65 = vector.load %arg18[%64, %c0_56, %c0_57] : memref<8x8x32xf32, #tpu.memory_space<vmem>>, vector<1x8x32xf32>
    %66 = vector.shape_cast %65 : vector<1x8x32xf32> to vector<8x32xf32>
    %67 = arith.addf %66, %52 : vector<8x32xf32>
    %68 = arith.negf %67 : vector<8x32xf32>
    %69 = math.exp %68 : vector<8x32xf32>
    %cst_58 = arith.constant 1.000000e+00 : f32
    %70 = vector.broadcast %cst_58 : f32 to vector<8x32xf32>
    %71 = arith.addf %70, %69 : vector<8x32xf32>
    %72 = arith.divf %70, %71 : vector<8x32xf32>
    %73 = arith.index_cast %c0_i32 : i32 to index
    %c0_59 = arith.constant 0 : index
    %c0_60 = arith.constant 0 : index
    %74 = vector.load %arg19[%73, %c0_59, %c0_60] : memref<8x8x32xf32, #tpu.memory_space<vmem>>, vector<1x8x32xf32>
    %75 = vector.shape_cast %74 : vector<1x8x32xf32> to vector<8x32xf32>
    %76 = arith.mulf %63, %54 : vector<8x32xf32>
    %77 = arith.addf %75, %76 : vector<8x32xf32>
    %78 = math.tanh %77 : vector<8x32xf32>
    %cst_61 = arith.constant 1.000000e+00 : f32
    %79 = vector.broadcast %cst_61 : f32 to vector<8x32xf32>
    %80 = arith.subf %79, %72 : vector<8x32xf32>
    %81 = arith.mulf %80, %78 : vector<8x32xf32>
    %82 = arith.mulf %72, %48 : vector<8x32xf32>
    %83 = arith.addf %81, %82 : vector<8x32xf32>
    %84 = arith.index_cast %c0_i32 : i32 to index
    %c0_62 = arith.constant 0 : index
    %c0_63 = arith.constant 0 : index
    %85 = vector.load %arg20[%84, %c0_62, %c0_63] : memref<8x8x32xf32, #tpu.memory_space<vmem>>, vector<1x8x32xf32>
    %86 = vector.shape_cast %85 : vector<1x8x32xf32> to vector<8x32xf32>
    %87 = vector.shape_cast %83 : vector<8x32xf32> to vector<1x8x32xf32>
    tpu.vector_store %arg20[%84, %c0_62, %c0_63], %87 {strides = array<i32>} : memref<8x8x32xf32, #tpu.memory_space<vmem>>, vector<1x8x32xf32>,
    %c1_i32 = arith.constant 1 : i32
    %cst_64 = arith.constant dense<0.000000e+00> : vector<8x32xf32>
    %88 = tpu.matmul %83, %30, %cst_64 {dimension_numbers = #tpu.dot_dimension_numbers<[1], [0], [0], [1], [0, 0, 1, 1], [], []>} : vector<8x32xf32>, vector<32x32xf32>, vector<8x32xf32> -> vector<8x32xf32>
    %89 = arith.addf %88, %38 : vector<8x32xf32>
    %cst_65 = arith.constant dense<0.000000e+00> : vector<8x32xf32>
    %90 = tpu.matmul %83, %32, %cst_65 {dimension_numbers = #tpu.dot_dimension_numbers<[1], [0], [0], [1], [0, 0, 1, 1], [], []>} : vector<8x32xf32>, vector<32x32xf32>, vector<8x32xf32> -> vector<8x32xf32>
    %91 = arith.addf %90, %42 : vector<8x32xf32>
    %cst_66 = arith.constant dense<0.000000e+00> : vector<8x32xf32>
    %92 = tpu.matmul %83, %34, %cst_66 {dimension_numbers = #tpu.dot_dimension_numbers<[1], [0], [0], [1], [0, 0, 1, 1], [], []>} : vector<8x32xf32>, vector<32x32xf32>, vector<8x32xf32> -> vector<8x32xf32>
    %93 = arith.addf %92, %46 : vector<8x32xf32>
    %94 = arith.index_cast %c1_i32 : i32 to index
    %c0_67 = arith.constant 0 : index
    %c0_68 = arith.constant 0 : index
    %95 = vector.load %arg17[%94, %c0_67, %c0_68] : memref<8x8x32xf32, #tpu.memory_space<vmem>>, vector<1x8x32xf32>
    %96 = vector.shape_cast %95 : vector<1x8x32xf32> to vector<8x32xf32>
    %97 = arith.addf %96, %89 : vector<8x32xf32>
    %98 = arith.negf %97 : vector<8x32xf32>
    %99 = math.exp %98 : vector<8x32xf32>
    %cst_69 = arith.constant 1.000000e+00 : f32
    %100 = vector.broadcast %cst_69 : f32 to vector<8x32xf32>
    %101 = arith.addf %100, %99 : vector<8x32xf32>
    %102 = arith.divf %100, %101 : vector<8x32xf32>
    %103 = arith.index_cast %c1_i32 : i32 to index
    %c0_70 = arith.constant 0 : index
    %c0_71 = arith.constant 0 : index
    %104 = vector.load %arg18[%103, %c0_70, %c0_71] : memref<8x8x32xf32, #tpu.memory_space<vmem>>, vector<1x8x32xf32>
    %105 = vector.shape_cast %104 : vector<1x8x32xf32> to vector<8x32xf32>
    %106 = arith.addf %105, %91 : vector<8x32xf32>
    %107 = arith.negf %106 : vector<8x32xf32>
    %108 = math.exp %107 : vector<8x32xf32>
    %cst_72 = arith.constant 1.000000e+00 : f32
    %109 = vector.broadcast %cst_72 : f32 to vector<8x32xf32>
    %110 = arith.addf %109, %108 : vector<8x32xf32>
    %111 = arith.divf %109, %110 : vector<8x32xf32>
    %112 = arith.index_cast %c1_i32 : i32 to index
    %c0_73 = arith.constant 0 : index
    %c0_74 = arith.constant 0 : index
    %113 = vector.load %arg19[%112, %c0_73, %c0_74] : memref<8x8x32xf32, #tpu.memory_space<vmem>>, vector<1x8x32xf32>
    %114 = vector.shape_cast %113 : vector<1x8x32xf32> to vector<8x32xf32>
    %115 = arith.mulf %102, %93 : vector<8x32xf32>
    %116 = arith.addf %114, %115 : vector<8x32xf32>
    %117 = math.tanh %116 : vector<8x32xf32>
    %cst_75 = arith.constant 1.000000e+00 : f32
    %118 = vector.broadcast %cst_75 : f32 to vector<8x32xf32>
    %119 = arith.subf %118, %111 : vector<8x32xf32>
    %120 = arith.mulf %119, %117 : vector<8x32xf32>
    %121 = arith.mulf %111, %83 : vector<8x32xf32>
    %122 = arith.addf %120, %121 : vector<8x32xf32>
    %123 = arith.index_cast %c1_i32 : i32 to index
    %c0_76 = arith.constant 0 : index
    %c0_77 = arith.constant 0 : index
    %124 = vector.load %arg20[%123, %c0_76, %c0_77] : memref<8x8x32xf32, #tpu.memory_space<vmem>>, vector<1x8x32xf32>
    %125 = vector.shape_cast %124 : vector<1x8x32xf32> to vector<8x32xf32>
    %126 = vector.shape_cast %122 : vector<8x32xf32> to vector<1x8x32xf32>
    tpu.vector_store %arg20[%123, %c0_76, %c0_77], %126 {strides = array<i32>} : memref<8x8x32xf32, #tpu.memory_space<vmem>>, vector<1x8x32xf32>,
    %c2_i32 = arith.constant 2 : i32
    %cst_78 = arith.constant dense<0.000000e+00> : vector<8x32xf32>
    %127 = tpu.matmul %122, %30, %cst_78 {dimension_numbers = #tpu.dot_dimension_numbers<[1], [0], [0], [1], [0, 0, 1, 1], [], []>} : vector<8x32xf32>, vector<32x32xf32>, vector<8x32xf32> -> vector<8x32xf32>
    %128 = arith.addf %127, %38 : vector<8x32xf32>
    %cst_79 = arith.constant dense<0.000000e+00> : vector<8x32xf32>
    %129 = tpu.matmul %122, %32, %cst_79 {dimension_numbers = #tpu.dot_dimension_numbers<[1], [0], [0], [1], [0, 0, 1, 1], [], []>} : vector<8x32xf32>, vector<32x32xf32>, vector<8x32xf32> -> vector<8x32xf32>
    %130 = arith.addf %129, %42 : vector<8x32xf32>
    %cst_80 = arith.constant dense<0.000000e+00> : vector<8x32xf32>
    %131 = tpu.matmul %122, %34, %cst_80 {dimension_numbers = #tpu.dot_dimension_numbers<[1], [0], [0], [1], [0, 0, 1, 1], [], []>} : vector<8x32xf32>, vector<32x32xf32>, vector<8x32xf32> -> vector<8x32xf32>
    %132 = arith.addf %131, %46 : vector<8x32xf32>
    %133 = arith.index_cast %c2_i32 : i32 to index
    %c0_81 = arith.constant 0 : index
    %c0_82 = arith.constant 0 : index
    %134 = vector.load %arg17[%133, %c0_81, %c0_82] : memref<8x8x32xf32, #tpu.memory_space<vmem>>, vector<1x8x32xf32>
    %135 = vector.shape_cast %134 : vector<1x8x32xf32> to vector<8x32xf32>
    %136 = arith.addf %135, %128 : vector<8x32xf32>
    %137 = arith.negf %136 : vector<8x32xf32>
    %138 = math.exp %137 : vector<8x32xf32>
    %cst_83 = arith.constant 1.000000e+00 : f32
    %139 = vector.broadcast %cst_83 : f32 to vector<8x32xf32>
    %140 = arith.addf %139, %138 : vector<8x32xf32>
    %141 = arith.divf %139, %140 : vector<8x32xf32>
    %142 = arith.index_cast %c2_i32 : i32 to index
    %c0_84 = arith.constant 0 : index
    %c0_85 = arith.constant 0 : index
    %143 = vector.load %arg18[%142, %c0_84, %c0_85] : memref<8x8x32xf32, #tpu.memory_space<vmem>>, vector<1x8x32xf32>
    %144 = vector.shape_cast %143 : vector<1x8x32xf32> to vector<8x32xf32>
    %145 = arith.addf %144, %130 : vector<8x32xf32>
    %146 = arith.negf %145 : vector<8x32xf32>
    %147 = math.exp %146 : vector<8x32xf32>
    %cst_86 = arith.constant 1.000000e+00 : f32
    %148 = vector.broadcast %cst_86 : f32 to vector<8x32xf32>
    %149 = arith.addf %148, %147 : vector<8x32xf32>
    %150 = arith.divf %148, %149 : vector<8x32xf32>
    %151 = arith.index_cast %c2_i32 : i32 to index
    %c0_87 = arith.constant 0 : index
    %c0_88 = arith.constant 0 : index
    %152 = vector.load %arg19[%151, %c0_87, %c0_88] : memref<8x8x32xf32, #tpu.memory_space<vmem>>, vector<1x8x32xf32>
    %153 = vector.shape_cast %152 : vector<1x8x32xf32> to vector<8x32xf32>
    %154 = arith.mulf %141, %132 : vector<8x32xf32>
    %155 = arith.addf %153, %154 : vector<8x32xf32>
    %156 = math.tanh %155 : vector<8x32xf32>
    %cst_89 = arith.constant 1.000000e+00 : f32
    %157 = vector.broadcast %cst_89 : f32 to vector<8x32xf32>
    %158 = arith.subf %157, %150 : vector<8x32xf32>
    %159 = arith.mulf %158, %156 : vector<8x32xf32>
    %160 = arith.mulf %150, %122 : vector<8x32xf32>
    %161 = arith.addf %159, %160 : vector<8x32xf32>
    %162 = arith.index_cast %c2_i32 : i32 to index
    %c0_90 = arith.constant 0 : index
    %c0_91 = arith.constant 0 : index
    %163 = vector.load %arg20[%162, %c0_90, %c0_91] : memref<8x8x32xf32, #tpu.memory_space<vmem>>, vector<1x8x32xf32>
    %164 = vector.shape_cast %163 : vector<1x8x32xf32> to vector<8x32xf32>
    %165 = vector.shape_cast %161 : vector<8x32xf32> to vector<1x8x32xf32>
    tpu.vector_store %arg20[%162, %c0_90, %c0_91], %165 {strides = array<i32>} : memref<8x8x32xf32, #tpu.memory_space<vmem>>, vector<1x8x32xf32>,
    %c3_i32 = arith.constant 3 : i32
    %cst_92 = arith.constant dense<0.000000e+00> : vector<8x32xf32>
    %166 = tpu.matmul %161, %30, %cst_92 {dimension_numbers = #tpu.dot_dimension_numbers<[1], [0], [0], [1], [0, 0, 1, 1], [], []>} : vector<8x32xf32>, vector<32x32xf32>, vector<8x32xf32> -> vector<8x32xf32>
    %167 = arith.addf %166, %38 : vector<8x32xf32>
    %cst_93 = arith.constant dense<0.000000e+00> : vector<8x32xf32>
    %168 = tpu.matmul %161, %32, %cst_93 {dimension_numbers = #tpu.dot_dimension_numbers<[1], [0], [0], [1], [0, 0, 1, 1], [], []>} : vector<8x32xf32>, vector<32x32xf32>, vector<8x32xf32> -> vector<8x32xf32>
    %169 = arith.addf %168, %42 : vector<8x32xf32>
    %cst_94 = arith.constant dense<0.000000e+00> : vector<8x32xf32>
    %170 = tpu.matmul %161, %34, %cst_94 {dimension_numbers = #tpu.dot_dimension_numbers<[1], [0], [0], [1], [0, 0, 1, 1], [], []>} : vector<8x32xf32>, vector<32x32xf32>, vector<8x32xf32> -> vector<8x32xf32>
    %171 = arith.addf %170, %46 : vector<8x32xf32>
    %172 = arith.index_cast %c3_i32 : i32 to index
    %c0_95 = arith.constant 0 : index
    %c0_96 = arith.constant 0 : index
    %173 = vector.load %arg17[%172, %c0_95, %c0_96] : memref<8x8x32xf32, #tpu.memory_space<vmem>>, vector<1x8x32xf32>
    %174 = vector.shape_cast %173 : vector<1x8x32xf32> to vector<8x32xf32>
    %175 = arith.addf %174, %167 : vector<8x32xf32>
    %176 = arith.negf %175 : vector<8x32xf32>
    %177 = math.exp %176 : vector<8x32xf32>
    %cst_97 = arith.constant 1.000000e+00 : f32
    %178 = vector.broadcast %cst_97 : f32 to vector<8x32xf32>
    %179 = arith.addf %178, %177 : vector<8x32xf32>
    %180 = arith.divf %178, %179 : vector<8x32xf32>
    %181 = arith.index_cast %c3_i32 : i32 to index
    %c0_98 = arith.constant 0 : index
    %c0_99 = arith.constant 0 : index
    %182 = vector.load %arg18[%181, %c0_98, %c0_99] : memref<8x8x32xf32, #tpu.memory_space<vmem>>, vector<1x8x32xf32>
    %183 = vector.shape_cast %182 : vector<1x8x32xf32> to vector<8x32xf32>
    %184 = arith.addf %183, %169 : vector<8x32xf32>
    %185 = arith.negf %184 : vector<8x32xf32>
    %186 = math.exp %185 : vector<8x32xf32>
    %cst_100 = arith.constant 1.000000e+00 : f32
    %187 = vector.broadcast %cst_100 : f32 to vector<8x32xf32>
    %188 = arith.addf %187, %186 : vector<8x32xf32>
    %189 = arith.divf %187, %188 : vector<8x32xf32>
    %190 = arith.index_cast %c3_i32 : i32 to index
    %c0_101 = arith.constant 0 : index
    %c0_102 = arith.constant 0 : index
    %191 = vector.load %arg19[%190, %c0_101, %c0_102] : memref<8x8x32xf32, #tpu.memory_space<vmem>>, vector<1x8x32xf32>
    %192 = vector.shape_cast %191 : vector<1x8x32xf32> to vector<8x32xf32>
    %193 = arith.mulf %180, %171 : vector<8x32xf32>
    %194 = arith.addf %192, %193 : vector<8x32xf32>
    %195 = math.tanh %194 : vector<8x32xf32>
    %cst_103 = arith.constant 1.000000e+00 : f32
    %196 = vector.broadcast %cst_103 : f32 to vector<8x32xf32>
    %197 = arith.subf %196, %189 : vector<8x32xf32>
    %198 = arith.mulf %197, %195 : vector<8x32xf32>
    %199 = arith.mulf %189, %161 : vector<8x32xf32>
    %200 = arith.addf %198, %199 : vector<8x32xf32>
    %201 = arith.index_cast %c3_i32 : i32 to index
    %c0_104 = arith.constant 0 : index
    %c0_105 = arith.constant 0 : index
    %202 = vector.load %arg20[%201, %c0_104, %c0_105] : memref<8x8x32xf32, #tpu.memory_space<vmem>>, vector<1x8x32xf32>
    %203 = vector.shape_cast %202 : vector<1x8x32xf32> to vector<8x32xf32>
    %204 = vector.shape_cast %200 : vector<8x32xf32> to vector<1x8x32xf32>
    tpu.vector_store %arg20[%201, %c0_104, %c0_105], %204 {strides = array<i32>} : memref<8x8x32xf32, #tpu.memory_space<vmem>>, vector<1x8x32xf32>,
    %c4_i32 = arith.constant 4 : i32
    %cst_106 = arith.constant dense<0.000000e+00> : vector<8x32xf32>
    %205 = tpu.matmul %200, %30, %cst_106 {dimension_numbers = #tpu.dot_dimension_numbers<[1], [0], [0], [1], [0, 0, 1, 1], [], []>} : vector<8x32xf32>, vector<32x32xf32>, vector<8x32xf32> -> vector<8x32xf32>
    %206 = arith.addf %205, %38 : vector<8x32xf32>
    %cst_107 = arith.constant dense<0.000000e+00> : vector<8x32xf32>
    %207 = tpu.matmul %200, %32, %cst_107 {dimension_numbers = #tpu.dot_dimension_numbers<[1], [0], [0], [1], [0, 0, 1, 1], [], []>} : vector<8x32xf32>, vector<32x32xf32>, vector<8x32xf32> -> vector<8x32xf32>
    %208 = arith.addf %207, %42 : vector<8x32xf32>
    %cst_108 = arith.constant dense<0.000000e+00> : vector<8x32xf32>
    %209 = tpu.matmul %200, %34, %cst_108 {dimension_numbers = #tpu.dot_dimension_numbers<[1], [0], [0], [1], [0, 0, 1, 1], [], []>} : vector<8x32xf32>, vector<32x32xf32>, vector<8x32xf32> -> vector<8x32xf32>
    %210 = arith.addf %209, %46 : vector<8x32xf32>
    %211 = arith.index_cast %c4_i32 : i32 to index
    %c0_109 = arith.constant 0 : index
    %c0_110 = arith.constant 0 : index
    %212 = vector.load %arg17[%211, %c0_109, %c0_110] : memref<8x8x32xf32, #tpu.memory_space<vmem>>, vector<1x8x32xf32>
    %213 = vector.shape_cast %212 : vector<1x8x32xf32> to vector<8x32xf32>
    %214 = arith.addf %213, %206 : vector<8x32xf32>
    %215 = arith.negf %214 : vector<8x32xf32>
    %216 = math.exp %215 : vector<8x32xf32>
    %cst_111 = arith.constant 1.000000e+00 : f32
    %217 = vector.broadcast %cst_111 : f32 to vector<8x32xf32>
    %218 = arith.addf %217, %216 : vector<8x32xf32>
    %219 = arith.divf %217, %218 : vector<8x32xf32>
    %220 = arith.index_cast %c4_i32 : i32 to index
    %c0_112 = arith.constant 0 : index
    %c0_113 = arith.constant 0 : index
    %221 = vector.load %arg18[%220, %c0_112, %c0_113] : memref<8x8x32xf32, #tpu.memory_space<vmem>>, vector<1x8x32xf32>
    %222 = vector.shape_cast %221 : vector<1x8x32xf32> to vector<8x32xf32>
    %223 = arith.addf %222, %208 : vector<8x32xf32>
    %224 = arith.negf %223 : vector<8x32xf32>
    %225 = math.exp %224 : vector<8x32xf32>
    %cst_114 = arith.constant 1.000000e+00 : f32
    %226 = vector.broadcast %cst_114 : f32 to vector<8x32xf32>
    %227 = arith.addf %226, %225 : vector<8x32xf32>
    %228 = arith.divf %226, %227 : vector<8x32xf32>
    %229 = arith.index_cast %c4_i32 : i32 to index
    %c0_115 = arith.constant 0 : index
    %c0_116 = arith.constant 0 : index
    %230 = vector.load %arg19[%229, %c0_115, %c0_116] : memref<8x8x32xf32, #tpu.memory_space<vmem>>, vector<1x8x32xf32>
    %231 = vector.shape_cast %230 : vector<1x8x32xf32> to vector<8x32xf32>
    %232 = arith.mulf %219, %210 : vector<8x32xf32>
    %233 = arith.addf %231, %232 : vector<8x32xf32>
    %234 = math.tanh %233 : vector<8x32xf32>
    %cst_117 = arith.constant 1.000000e+00 : f32
    %235 = vector.broadcast %cst_117 : f32 to vector<8x32xf32>
    %236 = arith.subf %235, %228 : vector<8x32xf32>
    %237 = arith.mulf %236, %234 : vector<8x32xf32>
    %238 = arith.mulf %228, %200 : vector<8x32xf32>
    %239 = arith.addf %237, %238 : vector<8x32xf32>
    %240 = arith.index_cast %c4_i32 : i32 to index
    %c0_118 = arith.constant 0 : index
    %c0_119 = arith.constant 0 : index
    %241 = vector.load %arg20[%240, %c0_118, %c0_119] : memref<8x8x32xf32, #tpu.memory_space<vmem>>, vector<1x8x32xf32>
    %242 = vector.shape_cast %241 : vector<1x8x32xf32> to vector<8x32xf32>
    %243 = vector.shape_cast %239 : vector<8x32xf32> to vector<1x8x32xf32>
    tpu.vector_store %arg20[%240, %c0_118, %c0_119], %243 {strides = array<i32>} : memref<8x8x32xf32, #tpu.memory_space<vmem>>, vector<1x8x32xf32>,
    %c5_i32 = arith.constant 5 : i32
    %cst_120 = arith.constant dense<0.000000e+00> : vector<8x32xf32>
    %244 = tpu.matmul %239, %30, %cst_120 {dimension_numbers = #tpu.dot_dimension_numbers<[1], [0], [0], [1], [0, 0, 1, 1], [], []>} : vector<8x32xf32>, vector<32x32xf32>, vector<8x32xf32> -> vector<8x32xf32>
    %245 = arith.addf %244, %38 : vector<8x32xf32>
    %cst_121 = arith.constant dense<0.000000e+00> : vector<8x32xf32>
    %246 = tpu.matmul %239, %32, %cst_121 {dimension_numbers = #tpu.dot_dimension_numbers<[1], [0], [0], [1], [0, 0, 1, 1], [], []>} : vector<8x32xf32>, vector<32x32xf32>, vector<8x32xf32> -> vector<8x32xf32>
    %247 = arith.addf %246, %42 : vector<8x32xf32>
    %cst_122 = arith.constant dense<0.000000e+00> : vector<8x32xf32>
    %248 = tpu.matmul %239, %34, %cst_122 {dimension_numbers = #tpu.dot_dimension_numbers<[1], [0], [0], [1], [0, 0, 1, 1], [], []>} : vector<8x32xf32>, vector<32x32xf32>, vector<8x32xf32> -> vector<8x32xf32>
    %249 = arith.addf %248, %46 : vector<8x32xf32>
    %250 = arith.index_cast %c5_i32 : i32 to index
    %c0_123 = arith.constant 0 : index
    %c0_124 = arith.constant 0 : index
    %251 = vector.load %arg17[%250, %c0_123, %c0_124] : memref<8x8x32xf32, #tpu.memory_space<vmem>>, vector<1x8x32xf32>
    %252 = vector.shape_cast %251 : vector<1x8x32xf32> to vector<8x32xf32>
    %253 = arith.addf %252, %245 : vector<8x32xf32>
    %254 = arith.negf %253 : vector<8x32xf32>
    %255 = math.exp %254 : vector<8x32xf32>
    %cst_125 = arith.constant 1.000000e+00 : f32
    %256 = vector.broadcast %cst_125 : f32 to vector<8x32xf32>
    %257 = arith.addf %256, %255 : vector<8x32xf32>
    %258 = arith.divf %256, %257 : vector<8x32xf32>
    %259 = arith.index_cast %c5_i32 : i32 to index
    %c0_126 = arith.constant 0 : index
    %c0_127 = arith.constant 0 : index
    %260 = vector.load %arg18[%259, %c0_126, %c0_127] : memref<8x8x32xf32, #tpu.memory_space<vmem>>, vector<1x8x32xf32>
    %261 = vector.shape_cast %260 : vector<1x8x32xf32> to vector<8x32xf32>
    %262 = arith.addf %261, %247 : vector<8x32xf32>
    %263 = arith.negf %262 : vector<8x32xf32>
    %264 = math.exp %263 : vector<8x32xf32>
    %cst_128 = arith.constant 1.000000e+00 : f32
    %265 = vector.broadcast %cst_128 : f32 to vector<8x32xf32>
    %266 = arith.addf %265, %264 : vector<8x32xf32>
    %267 = arith.divf %265, %266 : vector<8x32xf32>
    %268 = arith.index_cast %c5_i32 : i32 to index
    %c0_129 = arith.constant 0 : index
    %c0_130 = arith.constant 0 : index
    %269 = vector.load %arg19[%268, %c0_129, %c0_130] : memref<8x8x32xf32, #tpu.memory_space<vmem>>, vector<1x8x32xf32>
    %270 = vector.shape_cast %269 : vector<1x8x32xf32> to vector<8x32xf32>
    %271 = arith.mulf %258, %249 : vector<8x32xf32>
    %272 = arith.addf %270, %271 : vector<8x32xf32>
    %273 = math.tanh %272 : vector<8x32xf32>
    %cst_131 = arith.constant 1.000000e+00 : f32
    %274 = vector.broadcast %cst_131 : f32 to vector<8x32xf32>
    %275 = arith.subf %274, %267 : vector<8x32xf32>
    %276 = arith.mulf %275, %273 : vector<8x32xf32>
    %277 = arith.mulf %267, %239 : vector<8x32xf32>
    %278 = arith.addf %276, %277 : vector<8x32xf32>
    %279 = arith.index_cast %c5_i32 : i32 to index
    %c0_132 = arith.constant 0 : index
    %c0_133 = arith.constant 0 : index
    %280 = vector.load %arg20[%279, %c0_132, %c0_133] : memref<8x8x32xf32, #tpu.memory_space<vmem>>, vector<1x8x32xf32>
    %281 = vector.shape_cast %280 : vector<1x8x32xf32> to vector<8x32xf32>
    %282 = vector.shape_cast %278 : vector<8x32xf32> to vector<1x8x32xf32>
    tpu.vector_store %arg20[%279, %c0_132, %c0_133], %282 {strides = array<i32>} : memref<8x8x32xf32, #tpu.memory_space<vmem>>, vector<1x8x32xf32>,
    %c6_i32 = arith.constant 6 : i32
    %cst_134 = arith.constant dense<0.000000e+00> : vector<8x32xf32>
    %283 = tpu.matmul %278, %30, %cst_134 {dimension_numbers = #tpu.dot_dimension_numbers<[1], [0], [0], [1], [0, 0, 1, 1], [], []>} : vector<8x32xf32>, vector<32x32xf32>, vector<8x32xf32> -> vector<8x32xf32>
    %284 = arith.addf %283, %38 : vector<8x32xf32>
    %cst_135 = arith.constant dense<0.000000e+00> : vector<8x32xf32>
    %285 = tpu.matmul %278, %32, %cst_135 {dimension_numbers = #tpu.dot_dimension_numbers<[1], [0], [0], [1], [0, 0, 1, 1], [], []>} : vector<8x32xf32>, vector<32x32xf32>, vector<8x32xf32> -> vector<8x32xf32>
    %286 = arith.addf %285, %42 : vector<8x32xf32>
    %cst_136 = arith.constant dense<0.000000e+00> : vector<8x32xf32>
    %287 = tpu.matmul %278, %34, %cst_136 {dimension_numbers = #tpu.dot_dimension_numbers<[1], [0], [0], [1], [0, 0, 1, 1], [], []>} : vector<8x32xf32>, vector<32x32xf32>, vector<8x32xf32> -> vector<8x32xf32>
    %288 = arith.addf %287, %46 : vector<8x32xf32>
    %289 = arith.index_cast %c6_i32 : i32 to index
    %c0_137 = arith.constant 0 : index
    %c0_138 = arith.constant 0 : index
    %290 = vector.load %arg17[%289, %c0_137, %c0_138] : memref<8x8x32xf32, #tpu.memory_space<vmem>>, vector<1x8x32xf32>
    %291 = vector.shape_cast %290 : vector<1x8x32xf32> to vector<8x32xf32>
    %292 = arith.addf %291, %284 : vector<8x32xf32>
    %293 = arith.negf %292 : vector<8x32xf32>
    %294 = math.exp %293 : vector<8x32xf32>
    %cst_139 = arith.constant 1.000000e+00 : f32
    %295 = vector.broadcast %cst_139 : f32 to vector<8x32xf32>
    %296 = arith.addf %295, %294 : vector<8x32xf32>
    %297 = arith.divf %295, %296 : vector<8x32xf32>
    %298 = arith.index_cast %c6_i32 : i32 to index
    %c0_140 = arith.constant 0 : index
    %c0_141 = arith.constant 0 : index
    %299 = vector.load %arg18[%298, %c0_140, %c0_141] : memref<8x8x32xf32, #tpu.memory_space<vmem>>, vector<1x8x32xf32>
    %300 = vector.shape_cast %299 : vector<1x8x32xf32> to vector<8x32xf32>
    %301 = arith.addf %300, %286 : vector<8x32xf32>
    %302 = arith.negf %301 : vector<8x32xf32>
    %303 = math.exp %302 : vector<8x32xf32>
    %cst_142 = arith.constant 1.000000e+00 : f32
    %304 = vector.broadcast %cst_142 : f32 to vector<8x32xf32>
    %305 = arith.addf %304, %303 : vector<8x32xf32>
    %306 = arith.divf %304, %305 : vector<8x32xf32>
    %307 = arith.index_cast %c6_i32 : i32 to index
    %c0_143 = arith.constant 0 : index
    %c0_144 = arith.constant 0 : index
    %308 = vector.load %arg19[%307, %c0_143, %c0_144] : memref<8x8x32xf32, #tpu.memory_space<vmem>>, vector<1x8x32xf32>
    %309 = vector.shape_cast %308 : vector<1x8x32xf32> to vector<8x32xf32>
    %310 = arith.mulf %297, %288 : vector<8x32xf32>
    %311 = arith.addf %309, %310 : vector<8x32xf32>
    %312 = math.tanh %311 : vector<8x32xf32>
    %cst_145 = arith.constant 1.000000e+00 : f32
    %313 = vector.broadcast %cst_145 : f32 to vector<8x32xf32>
    %314 = arith.subf %313, %306 : vector<8x32xf32>
    %315 = arith.mulf %314, %312 : vector<8x32xf32>
    %316 = arith.mulf %306, %278 : vector<8x32xf32>
    %317 = arith.addf %315, %316 : vector<8x32xf32>
    %318 = arith.index_cast %c6_i32 : i32 to index
    %c0_146 = arith.constant 0 : index
    %c0_147 = arith.constant 0 : index
    %319 = vector.load %arg20[%318, %c0_146, %c0_147] : memref<8x8x32xf32, #tpu.memory_space<vmem>>, vector<1x8x32xf32>
    %320 = vector.shape_cast %319 : vector<1x8x32xf32> to vector<8x32xf32>
    %321 = vector.shape_cast %317 : vector<8x32xf32> to vector<1x8x32xf32>
    tpu.vector_store %arg20[%318, %c0_146, %c0_147], %321 {strides = array<i32>} : memref<8x8x32xf32, #tpu.memory_space<vmem>>, vector<1x8x32xf32>,
    %c7_i32 = arith.constant 7 : i32
    %cst_148 = arith.constant dense<0.000000e+00> : vector<8x32xf32>
    %322 = tpu.matmul %317, %30, %cst_148 {dimension_numbers = #tpu.dot_dimension_numbers<[1], [0], [0], [1], [0, 0, 1, 1], [], []>} : vector<8x32xf32>, vector<32x32xf32>, vector<8x32xf32> -> vector<8x32xf32>
    %323 = arith.addf %322, %38 : vector<8x32xf32>
    %cst_149 = arith.constant dense<0.000000e+00> : vector<8x32xf32>
    %324 = tpu.matmul %317, %32, %cst_149 {dimension_numbers = #tpu.dot_dimension_numbers<[1], [0], [0], [1], [0, 0, 1, 1], [], []>} : vector<8x32xf32>, vector<32x32xf32>, vector<8x32xf32> -> vector<8x32xf32>
    %325 = arith.addf %324, %42 : vector<8x32xf32>
    %cst_150 = arith.constant dense<0.000000e+00> : vector<8x32xf32>
    %326 = tpu.matmul %317, %34, %cst_150 {dimension_numbers = #tpu.dot_dimension_numbers<[1], [0], [0], [1], [0, 0, 1, 1], [], []>} : vector<8x32xf32>, vector<32x32xf32>, vector<8x32xf32> -> vector<8x32xf32>
    %327 = arith.addf %326, %46 : vector<8x32xf32>
    %328 = arith.index_cast %c7_i32 : i32 to index
    %c0_151 = arith.constant 0 : index
    %c0_152 = arith.constant 0 : index
    %329 = vector.load %arg17[%328, %c0_151, %c0_152] : memref<8x8x32xf32, #tpu.memory_space<vmem>>, vector<1x8x32xf32>
    %330 = vector.shape_cast %329 : vector<1x8x32xf32> to vector<8x32xf32>
    %331 = arith.addf %330, %323 : vector<8x32xf32>
    %332 = arith.negf %331 : vector<8x32xf32>
    %333 = math.exp %332 : vector<8x32xf32>
    %cst_153 = arith.constant 1.000000e+00 : f32
    %334 = vector.broadcast %cst_153 : f32 to vector<8x32xf32>
    %335 = arith.addf %334, %333 : vector<8x32xf32>
    %336 = arith.divf %334, %335 : vector<8x32xf32>
    %337 = arith.index_cast %c7_i32 : i32 to index
    %c0_154 = arith.constant 0 : index
    %c0_155 = arith.constant 0 : index
    %338 = vector.load %arg18[%337, %c0_154, %c0_155] : memref<8x8x32xf32, #tpu.memory_space<vmem>>, vector<1x8x32xf32>
    %339 = vector.shape_cast %338 : vector<1x8x32xf32> to vector<8x32xf32>
    %340 = arith.addf %339, %325 : vector<8x32xf32>
    %341 = arith.negf %340 : vector<8x32xf32>
    %342 = math.exp %341 : vector<8x32xf32>
    %cst_156 = arith.constant 1.000000e+00 : f32
    %343 = vector.broadcast %cst_156 : f32 to vector<8x32xf32>
    %344 = arith.addf %343, %342 : vector<8x32xf32>
    %345 = arith.divf %343, %344 : vector<8x32xf32>
    %346 = arith.index_cast %c7_i32 : i32 to index
    %c0_157 = arith.constant 0 : index
    %c0_158 = arith.constant 0 : index
    %347 = vector.load %arg19[%346, %c0_157, %c0_158] : memref<8x8x32xf32, #tpu.memory_space<vmem>>, vector<1x8x32xf32>
    %348 = vector.shape_cast %347 : vector<1x8x32xf32> to vector<8x32xf32>
    %349 = arith.mulf %336, %327 : vector<8x32xf32>
    %350 = arith.addf %348, %349 : vector<8x32xf32>
    %351 = math.tanh %350 : vector<8x32xf32>
    %cst_159 = arith.constant 1.000000e+00 : f32
    %352 = vector.broadcast %cst_159 : f32 to vector<8x32xf32>
    %353 = arith.subf %352, %345 : vector<8x32xf32>
    %354 = arith.mulf %353, %351 : vector<8x32xf32>
    %355 = arith.mulf %345, %317 : vector<8x32xf32>
    %356 = arith.addf %354, %355 : vector<8x32xf32>
    %357 = arith.index_cast %c7_i32 : i32 to index
    %c0_160 = arith.constant 0 : index
    %c0_161 = arith.constant 0 : index
    %358 = vector.load %arg20[%357, %c0_160, %c0_161] : memref<8x8x32xf32, #tpu.memory_space<vmem>>, vector<1x8x32xf32>
    %359 = vector.shape_cast %358 : vector<1x8x32xf32> to vector<8x32xf32>
    %360 = vector.shape_cast %356 : vector<8x32xf32> to vector<1x8x32xf32>
    tpu.vector_store %arg20[%357, %c0_160, %c0_161], %360 {strides = array<i32>} : memref<8x8x32xf32, #tpu.memory_space<vmem>>, vector<1x8x32xf32>,
    %c8_i32 = arith.constant 8 : i32
    %c0_162 = arith.constant 0 : index
    %c0_163 = arith.constant 0 : index
    %c0_164 = arith.constant 0 : index
    %361 = vector.load %arg16[%c0_162, %c0_163, %c0_164] : memref<2x8x32xf32, #tpu.memory_space<vmem>>, vector<1x8x32xf32>
    %362 = vector.shape_cast %361 : vector<1x8x32xf32> to vector<8x32xf32>
    %363 = vector.shape_cast %356 : vector<8x32xf32> to vector<1x8x32xf32>
    tpu.vector_store %arg16[%c0_162, %c0_163, %c0_164], %363 {strides = array<i32>} : memref<2x8x32xf32, #tpu.memory_space<vmem>>, vector<1x8x32xf32>,
    %c0_165 = arith.constant 0 : index
    %c0_166 = arith.constant 0 : index
    %c0_167 = arith.constant 0 : index
    %364 = vector.load %arg20[%c0_165, %c0_166, %c0_167] : memref<8x8x32xf32, #tpu.memory_space<vmem>>, vector<8x8x32xf32>
    %365 = vector.shape_cast %364 : vector<8x8x32xf32> to vector<64x32xf32>
    %c0_168 = arith.constant 0 : index
    %c0_169 = arith.constant 0 : index
    %c0_170 = arith.constant 0 : index
    %366 = vector.load %arg7[%c0_168, %c0_169, %c0_170] : memref<3x32x32xf32, #tpu.memory_space<vmem>>, vector<1x32x32xf32>
    %367 = vector.shape_cast %366 : vector<1x32x32xf32> to vector<32x32xf32>
    %cst_171 = arith.constant dense<0.000000e+00> : vector<64x32xf32>
    %368 = tpu.matmul %365, %367, %cst_171 {dimension_numbers = #tpu.dot_dimension_numbers<[1], [0], [0], [1], [0, 0, 1, 1], [], []>} : vector<64x32xf32>, vector<32x32xf32>, vector<64x32xf32> -> vector<64x32xf32>
    %c0_172 = arith.constant 0 : index
    %c0_173 = arith.constant 0 : index
    %c0_174 = arith.constant 0 : index
    %369 = vector.load %arg9[%c0_172, %c0_173, %c0_174] : memref<3x1x32xf32, #tpu.memory_space<vmem>>, vector<1x1x32xf32>
    %370 = vector.shape_cast %369 : vector<1x1x32xf32> to vector<1x32xf32>
    %371 = vector.broadcast %370 : vector<1x32xf32> to vector<64x32xf32>
    %372 = arith.addf %368, %371 : vector<64x32xf32>
    %373 = vector.shape_cast %372 : vector<64x32xf32> to vector<8x8x32xf32>
    %c0_175 = arith.constant 0 : index
    %c0_176 = arith.constant 0 : index
    %c0_177 = arith.constant 0 : index
    %374 = vector.load %arg17[%c0_175, %c0_176, %c0_177] : memref<8x8x32xf32, #tpu.memory_space<vmem>>, vector<8x8x32xf32>
    tpu.vector_store %arg17[%c0_175, %c0_176, %c0_177], %373 {strides = array<i32>} : memref<8x8x32xf32, #tpu.memory_space<vmem>>, vector<8x8x32xf32>,
    %c1_178 = arith.constant 1 : index
    %c0_179 = arith.constant 0 : index
    %c0_180 = arith.constant 0 : index
    %375 = vector.load %arg7[%c1_178, %c0_179, %c0_180] : memref<3x32x32xf32, #tpu.memory_space<vmem>>, vector<1x32x32xf32>
    %376 = vector.shape_cast %375 : vector<1x32x32xf32> to vector<32x32xf32>
    %cst_181 = arith.constant dense<0.000000e+00> : vector<64x32xf32>
    %377 = tpu.matmul %365, %376, %cst_181 {dimension_numbers = #tpu.dot_dimension_numbers<[1], [0], [0], [1], [0, 0, 1, 1], [], []>} : vector<64x32xf32>, vector<32x32xf32>, vector<64x32xf32> -> vector<64x32xf32>
    %c1_182 = arith.constant 1 : index
    %c0_183 = arith.constant 0 : index
    %c0_184 = arith.constant 0 : index
    %378 = vector.load %arg9[%c1_182, %c0_183, %c0_184] : memref<3x1x32xf32, #tpu.memory_space<vmem>>, vector<1x1x32xf32>
    %379 = vector.shape_cast %378 : vector<1x1x32xf32> to vector<1x32xf32>
    %380 = vector.broadcast %379 : vector<1x32xf32> to vector<64x32xf32>
    %381 = arith.addf %377, %380 : vector<64x32xf32>
    %382 = vector.shape_cast %381 : vector<64x32xf32> to vector<8x8x32xf32>
    %c0_185 = arith.constant 0 : index
    %c0_186 = arith.constant 0 : index
    %c0_187 = arith.constant 0 : index
    %383 = vector.load %arg18[%c0_185, %c0_186, %c0_187] : memref<8x8x32xf32, #tpu.memory_space<vmem>>, vector<8x8x32xf32>
    tpu.vector_store %arg18[%c0_185, %c0_186, %c0_187], %382 {strides = array<i32>} : memref<8x8x32xf32, #tpu.memory_space<vmem>>, vector<8x8x32xf32>,
    %c2_188 = arith.constant 2 : index
    %c0_189 = arith.constant 0 : index
    %c0_190 = arith.constant 0 : index
    %384 = vector.load %arg7[%c2_188, %c0_189, %c0_190] : memref<3x32x32xf32, #tpu.memory_space<vmem>>, vector<1x32x32xf32>
    %385 = vector.shape_cast %384 : vector<1x32x32xf32> to vector<32x32xf32>
    %cst_191 = arith.constant dense<0.000000e+00> : vector<64x32xf32>
    %386 = tpu.matmul %365, %385, %cst_191 {dimension_numbers = #tpu.dot_dimension_numbers<[1], [0], [0], [1], [0, 0, 1, 1], [], []>} : vector<64x32xf32>, vector<32x32xf32>, vector<64x32xf32> -> vector<64x32xf32>
    %c2_192 = arith.constant 2 : index
    %c0_193 = arith.constant 0 : index
    %c0_194 = arith.constant 0 : index
    %387 = vector.load %arg9[%c2_192, %c0_193, %c0_194] : memref<3x1x32xf32, #tpu.memory_space<vmem>>, vector<1x1x32xf32>
    %388 = vector.shape_cast %387 : vector<1x1x32xf32> to vector<1x32xf32>
    %389 = vector.broadcast %388 : vector<1x32xf32> to vector<64x32xf32>
    %390 = arith.addf %386, %389 : vector<64x32xf32>
    %391 = vector.shape_cast %390 : vector<64x32xf32> to vector<8x8x32xf32>
    %c0_195 = arith.constant 0 : index
    %c0_196 = arith.constant 0 : index
    %c0_197 = arith.constant 0 : index
    %392 = vector.load %arg19[%c0_195, %c0_196, %c0_197] : memref<8x8x32xf32, #tpu.memory_space<vmem>>, vector<8x8x32xf32>
    tpu.vector_store %arg19[%c0_195, %c0_196, %c0_197], %391 {strides = array<i32>} : memref<8x8x32xf32, #tpu.memory_space<vmem>>, vector<8x8x32xf32>,
    %c0_198 = arith.constant 0 : index
    %c0_199 = arith.constant 0 : index
    %c0_200 = arith.constant 0 : index
    %393 = vector.load %arg8[%c0_198, %c0_199, %c0_200] : memref<3x32x32xf32, #tpu.memory_space<vmem>>, vector<1x32x32xf32>
    %394 = vector.shape_cast %393 : vector<1x32x32xf32> to vector<32x32xf32>
    %c1_201 = arith.constant 1 : index
    %c0_202 = arith.constant 0 : index
    %c0_203 = arith.constant 0 : index
    %395 = vector.load %arg8[%c1_201, %c0_202, %c0_203] : memref<3x32x32xf32, #tpu.memory_space<vmem>>, vector<1x32x32xf32>
    %396 = vector.shape_cast %395 : vector<1x32x32xf32> to vector<32x32xf32>
    %c2_204 = arith.constant 2 : index
    %c0_205 = arith.constant 0 : index
    %c0_206 = arith.constant 0 : index
    %397 = vector.load %arg8[%c2_204, %c0_205, %c0_206] : memref<3x32x32xf32, #tpu.memory_space<vmem>>, vector<1x32x32xf32>
    %398 = vector.shape_cast %397 : vector<1x32x32xf32> to vector<32x32xf32>
    %c0_207 = arith.constant 0 : index
    %c0_208 = arith.constant 0 : index
    %c0_209 = arith.constant 0 : index
    %399 = vector.load %arg10[%c0_207, %c0_208, %c0_209] : memref<3x1x32xf32, #tpu.memory_space<vmem>>, vector<1x1x32xf32>
    %400 = vector.shape_cast %399 : vector<1x1x32xf32> to vector<1x32xf32>
    %401 = vector.shape_cast %400 : vector<1x32xf32> to vector<1x32xf32>
    %402 = vector.broadcast %401 : vector<1x32xf32> to vector<8x32xf32>
    %c1_210 = arith.constant 1 : index
    %c0_211 = arith.constant 0 : index
    %c0_212 = arith.constant 0 : index
    %403 = vector.load %arg10[%c1_210, %c0_211, %c0_212] : memref<3x1x32xf32, #tpu.memory_space<vmem>>, vector<1x1x32xf32>
    %404 = vector.shape_cast %403 : vector<1x1x32xf32> to vector<1x32xf32>
    %405 = vector.shape_cast %404 : vector<1x32xf32> to vector<1x32xf32>
    %406 = vector.broadcast %405 : vector<1x32xf32> to vector<8x32xf32>
    %c2_213 = arith.constant 2 : index
    %c0_214 = arith.constant 0 : index
    %c0_215 = arith.constant 0 : index
    %407 = vector.load %arg10[%c2_213, %c0_214, %c0_215] : memref<3x1x32xf32, #tpu.memory_space<vmem>>, vector<1x1x32xf32>
    %408 = vector.shape_cast %407 : vector<1x1x32xf32> to vector<1x32xf32>
    %409 = vector.shape_cast %408 : vector<1x32xf32> to vector<1x32xf32>
    %410 = vector.broadcast %409 : vector<1x32xf32> to vector<8x32xf32>
    %c1_216 = arith.constant 1 : index
    %c0_217 = arith.constant 0 : index
    %c0_218 = arith.constant 0 : index
    %411 = vector.load %arg2[%c1_216, %c0_217, %c0_218] : memref<2x8x32xf32, #tpu.memory_space<vmem>>, vector<1x8x32xf32>
    %412 = vector.shape_cast %411 : vector<1x8x32xf32> to vector<8x32xf32>
    %c0_i32_219 = arith.constant 0 : i32
    %cst_220 = arith.constant dense<0.000000e+00> : vector<8x32xf32>
    %413 = tpu.matmul %412, %394, %cst_220 {dimension_numbers = #tpu.dot_dimension_numbers<[1], [0], [0], [1], [0, 0, 1, 1], [], []>} : vector<8x32xf32>, vector<32x32xf32>, vector<8x32xf32> -> vector<8x32xf32>
    %414 = arith.addf %413, %402 : vector<8x32xf32>
    %cst_221 = arith.constant dense<0.000000e+00> : vector<8x32xf32>
    %415 = tpu.matmul %412, %396, %cst_221 {dimension_numbers = #tpu.dot_dimension_numbers<[1], [0], [0], [1], [0, 0, 1, 1], [], []>} : vector<8x32xf32>, vector<32x32xf32>, vector<8x32xf32> -> vector<8x32xf32>
    %416 = arith.addf %415, %406 : vector<8x32xf32>
    %cst_222 = arith.constant dense<0.000000e+00> : vector<8x32xf32>
    %417 = tpu.matmul %412, %398, %cst_222 {dimension_numbers = #tpu.dot_dimension_numbers<[1], [0], [0], [1], [0, 0, 1, 1], [], []>} : vector<8x32xf32>, vector<32x32xf32>, vector<8x32xf32> -> vector<8x32xf32>
    %418 = arith.addf %417, %410 : vector<8x32xf32>
    %419 = arith.index_cast %c0_i32_219 : i32 to index
    %c0_223 = arith.constant 0 : index
    %c0_224 = arith.constant 0 : index
    %420 = vector.load %arg17[%419, %c0_223, %c0_224] : memref<8x8x32xf32, #tpu.memory_space<vmem>>, vector<1x8x32xf32>
    %421 = vector.shape_cast %420 : vector<1x8x32xf32> to vector<8x32xf32>
    %422 = arith.addf %421, %414 : vector<8x32xf32>
    %423 = arith.negf %422 : vector<8x32xf32>
    %424 = math.exp %423 : vector<8x32xf32>
    %cst_225 = arith.constant 1.000000e+00 : f32
    %425 = vector.broadcast %cst_225 : f32 to vector<8x32xf32>
    %426 = arith.addf %425, %424 : vector<8x32xf32>
    %427 = arith.divf %425, %426 : vector<8x32xf32>
    %428 = arith.index_cast %c0_i32_219 : i32 to index
    %c0_226 = arith.constant 0 : index
    %c0_227 = arith.constant 0 : index
    %429 = vector.load %arg18[%428, %c0_226, %c0_227] : memref<8x8x32xf32, #tpu.memory_space<vmem>>, vector<1x8x32xf32>
    %430 = vector.shape_cast %429 : vector<1x8x32xf32> to vector<8x32xf32>
    %431 = arith.addf %430, %416 : vector<8x32xf32>
    %432 = arith.negf %431 : vector<8x32xf32>
    %433 = math.exp %432 : vector<8x32xf32>
    %cst_228 = arith.constant 1.000000e+00 : f32
    %434 = vector.broadcast %cst_228 : f32 to vector<8x32xf32>
    %435 = arith.addf %434, %433 : vector<8x32xf32>
    %436 = arith.divf %434, %435 : vector<8x32xf32>
    %437 = arith.index_cast %c0_i32_219 : i32 to index
    %c0_229 = arith.constant 0 : index
    %c0_230 = arith.constant 0 : index
    %438 = vector.load %arg19[%437, %c0_229, %c0_230] : memref<8x8x32xf32, #tpu.memory_space<vmem>>, vector<1x8x32xf32>
    %439 = vector.shape_cast %438 : vector<1x8x32xf32> to vector<8x32xf32>
    %440 = arith.mulf %427, %418 : vector<8x32xf32>
    %441 = arith.addf %439, %440 : vector<8x32xf32>
    %442 = math.tanh %441 : vector<8x32xf32>
    %cst_231 = arith.constant 1.000000e+00 : f32
    %443 = vector.broadcast %cst_231 : f32 to vector<8x32xf32>
    %444 = arith.subf %443, %436 : vector<8x32xf32>
    %445 = arith.mulf %444, %442 : vector<8x32xf32>
    %446 = arith.mulf %436, %412 : vector<8x32xf32>
    %447 = arith.addf %445, %446 : vector<8x32xf32>
    %448 = arith.index_cast %c0_i32_219 : i32 to index
    %c0_232 = arith.constant 0 : index
    %c0_233 = arith.constant 0 : index
    %449 = vector.load %arg20[%448, %c0_232, %c0_233] : memref<8x8x32xf32, #tpu.memory_space<vmem>>, vector<1x8x32xf32>
    %450 = vector.shape_cast %449 : vector<1x8x32xf32> to vector<8x32xf32>
    %451 = vector.shape_cast %447 : vector<8x32xf32> to vector<1x8x32xf32>
    tpu.vector_store %arg20[%448, %c0_232, %c0_233], %451 {strides = array<i32>} : memref<8x8x32xf32, #tpu.memory_space<vmem>>, vector<1x8x32xf32>,
    %c1_i32_234 = arith.constant 1 : i32
    %cst_235 = arith.constant dense<0.000000e+00> : vector<8x32xf32>
    %452 = tpu.matmul %447, %394, %cst_235 {dimension_numbers = #tpu.dot_dimension_numbers<[1], [0], [0], [1], [0, 0, 1, 1], [], []>} : vector<8x32xf32>, vector<32x32xf32>, vector<8x32xf32> -> vector<8x32xf32>
    %453 = arith.addf %452, %402 : vector<8x32xf32>
    %cst_236 = arith.constant dense<0.000000e+00> : vector<8x32xf32>
    %454 = tpu.matmul %447, %396, %cst_236 {dimension_numbers = #tpu.dot_dimension_numbers<[1], [0], [0], [1], [0, 0, 1, 1], [], []>} : vector<8x32xf32>, vector<32x32xf32>, vector<8x32xf32> -> vector<8x32xf32>
    %455 = arith.addf %454, %406 : vector<8x32xf32>
    %cst_237 = arith.constant dense<0.000000e+00> : vector<8x32xf32>
    %456 = tpu.matmul %447, %398, %cst_237 {dimension_numbers = #tpu.dot_dimension_numbers<[1], [0], [0], [1], [0, 0, 1, 1], [], []>} : vector<8x32xf32>, vector<32x32xf32>, vector<8x32xf32> -> vector<8x32xf32>
    %457 = arith.addf %456, %410 : vector<8x32xf32>
    %458 = arith.index_cast %c1_i32_234 : i32 to index
    %c0_238 = arith.constant 0 : index
    %c0_239 = arith.constant 0 : index
    %459 = vector.load %arg17[%458, %c0_238, %c0_239] : memref<8x8x32xf32, #tpu.memory_space<vmem>>, vector<1x8x32xf32>
    %460 = vector.shape_cast %459 : vector<1x8x32xf32> to vector<8x32xf32>
    %461 = arith.addf %460, %453 : vector<8x32xf32>
    %462 = arith.negf %461 : vector<8x32xf32>
    %463 = math.exp %462 : vector<8x32xf32>
    %cst_240 = arith.constant 1.000000e+00 : f32
    %464 = vector.broadcast %cst_240 : f32 to vector<8x32xf32>
    %465 = arith.addf %464, %463 : vector<8x32xf32>
    %466 = arith.divf %464, %465 : vector<8x32xf32>
    %467 = arith.index_cast %c1_i32_234 : i32 to index
    %c0_241 = arith.constant 0 : index
    %c0_242 = arith.constant 0 : index
    %468 = vector.load %arg18[%467, %c0_241, %c0_242] : memref<8x8x32xf32, #tpu.memory_space<vmem>>, vector<1x8x32xf32>
    %469 = vector.shape_cast %468 : vector<1x8x32xf32> to vector<8x32xf32>
    %470 = arith.addf %469, %455 : vector<8x32xf32>
    %471 = arith.negf %470 : vector<8x32xf32>
    %472 = math.exp %471 : vector<8x32xf32>
    %cst_243 = arith.constant 1.000000e+00 : f32
    %473 = vector.broadcast %cst_243 : f32 to vector<8x32xf32>
    %474 = arith.addf %473, %472 : vector<8x32xf32>
    %475 = arith.divf %473, %474 : vector<8x32xf32>
    %476 = arith.index_cast %c1_i32_234 : i32 to index
    %c0_244 = arith.constant 0 : index
    %c0_245 = arith.constant 0 : index
    %477 = vector.load %arg19[%476, %c0_244, %c0_245] : memref<8x8x32xf32, #tpu.memory_space<vmem>>, vector<1x8x32xf32>
    %478 = vector.shape_cast %477 : vector<1x8x32xf32> to vector<8x32xf32>
    %479 = arith.mulf %466, %457 : vector<8x32xf32>
    %480 = arith.addf %478, %479 : vector<8x32xf32>
    %481 = math.tanh %480 : vector<8x32xf32>
    %cst_246 = arith.constant 1.000000e+00 : f32
    %482 = vector.broadcast %cst_246 : f32 to vector<8x32xf32>
    %483 = arith.subf %482, %475 : vector<8x32xf32>
    %484 = arith.mulf %483, %481 : vector<8x32xf32>
    %485 = arith.mulf %475, %447 : vector<8x32xf32>
    %486 = arith.addf %484, %485 : vector<8x32xf32>
    %487 = arith.index_cast %c1_i32_234 : i32 to index
    %c0_247 = arith.constant 0 : index
    %c0_248 = arith.constant 0 : index
    %488 = vector.load %arg20[%487, %c0_247, %c0_248] : memref<8x8x32xf32, #tpu.memory_space<vmem>>, vector<1x8x32xf32>
    %489 = vector.shape_cast %488 : vector<1x8x32xf32> to vector<8x32xf32>
    %490 = vector.shape_cast %486 : vector<8x32xf32> to vector<1x8x32xf32>
    tpu.vector_store %arg20[%487, %c0_247, %c0_248], %490 {strides = array<i32>} : memref<8x8x32xf32, #tpu.memory_space<vmem>>, vector<1x8x32xf32>,
    %c2_i32_249 = arith.constant 2 : i32
    %cst_250 = arith.constant dense<0.000000e+00> : vector<8x32xf32>
    %491 = tpu.matmul %486, %394, %cst_250 {dimension_numbers = #tpu.dot_dimension_numbers<[1], [0], [0], [1], [0, 0, 1, 1], [], []>} : vector<8x32xf32>, vector<32x32xf32>, vector<8x32xf32> -> vector<8x32xf32>
    %492 = arith.addf %491, %402 : vector<8x32xf32>
    %cst_251 = arith.constant dense<0.000000e+00> : vector<8x32xf32>
    %493 = tpu.matmul %486, %396, %cst_251 {dimension_numbers = #tpu.dot_dimension_numbers<[1], [0], [0], [1], [0, 0, 1, 1], [], []>} : vector<8x32xf32>, vector<32x32xf32>, vector<8x32xf32> -> vector<8x32xf32>
    %494 = arith.addf %493, %406 : vector<8x32xf32>
    %cst_252 = arith.constant dense<0.000000e+00> : vector<8x32xf32>
    %495 = tpu.matmul %486, %398, %cst_252 {dimension_numbers = #tpu.dot_dimension_numbers<[1], [0], [0], [1], [0, 0, 1, 1], [], []>} : vector<8x32xf32>, vector<32x32xf32>, vector<8x32xf32> -> vector<8x32xf32>
    %496 = arith.addf %495, %410 : vector<8x32xf32>
    %497 = arith.index_cast %c2_i32_249 : i32 to index
    %c0_253 = arith.constant 0 : index
    %c0_254 = arith.constant 0 : index
    %498 = vector.load %arg17[%497, %c0_253, %c0_254] : memref<8x8x32xf32, #tpu.memory_space<vmem>>, vector<1x8x32xf32>
    %499 = vector.shape_cast %498 : vector<1x8x32xf32> to vector<8x32xf32>
    %500 = arith.addf %499, %492 : vector<8x32xf32>
    %501 = arith.negf %500 : vector<8x32xf32>
    %502 = math.exp %501 : vector<8x32xf32>
    %cst_255 = arith.constant 1.000000e+00 : f32
    %503 = vector.broadcast %cst_255 : f32 to vector<8x32xf32>
    %504 = arith.addf %503, %502 : vector<8x32xf32>
    %505 = arith.divf %503, %504 : vector<8x32xf32>
    %506 = arith.index_cast %c2_i32_249 : i32 to index
    %c0_256 = arith.constant 0 : index
    %c0_257 = arith.constant 0 : index
    %507 = vector.load %arg18[%506, %c0_256, %c0_257] : memref<8x8x32xf32, #tpu.memory_space<vmem>>, vector<1x8x32xf32>
    %508 = vector.shape_cast %507 : vector<1x8x32xf32> to vector<8x32xf32>
    %509 = arith.addf %508, %494 : vector<8x32xf32>
    %510 = arith.negf %509 : vector<8x32xf32>
    %511 = math.exp %510 : vector<8x32xf32>
    %cst_258 = arith.constant 1.000000e+00 : f32
    %512 = vector.broadcast %cst_258 : f32 to vector<8x32xf32>
    %513 = arith.addf %512, %511 : vector<8x32xf32>
    %514 = arith.divf %512, %513 : vector<8x32xf32>
    %515 = arith.index_cast %c2_i32_249 : i32 to index
    %c0_259 = arith.constant 0 : index
    %c0_260 = arith.constant 0 : index
    %516 = vector.load %arg19[%515, %c0_259, %c0_260] : memref<8x8x32xf32, #tpu.memory_space<vmem>>, vector<1x8x32xf32>
    %517 = vector.shape_cast %516 : vector<1x8x32xf32> to vector<8x32xf32>
    %518 = arith.mulf %505, %496 : vector<8x32xf32>
    %519 = arith.addf %517, %518 : vector<8x32xf32>
    %520 = math.tanh %519 : vector<8x32xf32>
    %cst_261 = arith.constant 1.000000e+00 : f32
    %521 = vector.broadcast %cst_261 : f32 to vector<8x32xf32>
    %522 = arith.subf %521, %514 : vector<8x32xf32>
    %523 = arith.mulf %522, %520 : vector<8x32xf32>
    %524 = arith.mulf %514, %486 : vector<8x32xf32>
    %525 = arith.addf %523, %524 : vector<8x32xf32>
    %526 = arith.index_cast %c2_i32_249 : i32 to index
    %c0_262 = arith.constant 0 : index
    %c0_263 = arith.constant 0 : index
    %527 = vector.load %arg20[%526, %c0_262, %c0_263] : memref<8x8x32xf32, #tpu.memory_space<vmem>>, vector<1x8x32xf32>
    %528 = vector.shape_cast %527 : vector<1x8x32xf32> to vector<8x32xf32>
    %529 = vector.shape_cast %525 : vector<8x32xf32> to vector<1x8x32xf32>
    tpu.vector_store %arg20[%526, %c0_262, %c0_263], %529 {strides = array<i32>} : memref<8x8x32xf32, #tpu.memory_space<vmem>>, vector<1x8x32xf32>,
    %c3_i32_264 = arith.constant 3 : i32
    %cst_265 = arith.constant dense<0.000000e+00> : vector<8x32xf32>
    %530 = tpu.matmul %525, %394, %cst_265 {dimension_numbers = #tpu.dot_dimension_numbers<[1], [0], [0], [1], [0, 0, 1, 1], [], []>} : vector<8x32xf32>, vector<32x32xf32>, vector<8x32xf32> -> vector<8x32xf32>
    %531 = arith.addf %530, %402 : vector<8x32xf32>
    %cst_266 = arith.constant dense<0.000000e+00> : vector<8x32xf32>
    %532 = tpu.matmul %525, %396, %cst_266 {dimension_numbers = #tpu.dot_dimension_numbers<[1], [0], [0], [1], [0, 0, 1, 1], [], []>} : vector<8x32xf32>, vector<32x32xf32>, vector<8x32xf32> -> vector<8x32xf32>
    %533 = arith.addf %532, %406 : vector<8x32xf32>
    %cst_267 = arith.constant dense<0.000000e+00> : vector<8x32xf32>
    %534 = tpu.matmul %525, %398, %cst_267 {dimension_numbers = #tpu.dot_dimension_numbers<[1], [0], [0], [1], [0, 0, 1, 1], [], []>} : vector<8x32xf32>, vector<32x32xf32>, vector<8x32xf32> -> vector<8x32xf32>
    %535 = arith.addf %534, %410 : vector<8x32xf32>
    %536 = arith.index_cast %c3_i32_264 : i32 to index
    %c0_268 = arith.constant 0 : index
    %c0_269 = arith.constant 0 : index
    %537 = vector.load %arg17[%536, %c0_268, %c0_269] : memref<8x8x32xf32, #tpu.memory_space<vmem>>, vector<1x8x32xf32>
    %538 = vector.shape_cast %537 : vector<1x8x32xf32> to vector<8x32xf32>
    %539 = arith.addf %538, %531 : vector<8x32xf32>
    %540 = arith.negf %539 : vector<8x32xf32>
    %541 = math.exp %540 : vector<8x32xf32>
    %cst_270 = arith.constant 1.000000e+00 : f32
    %542 = vector.broadcast %cst_270 : f32 to vector<8x32xf32>
    %543 = arith.addf %542, %541 : vector<8x32xf32>
    %544 = arith.divf %542, %543 : vector<8x32xf32>
    %545 = arith.index_cast %c3_i32_264 : i32 to index
    %c0_271 = arith.constant 0 : index
    %c0_272 = arith.constant 0 : index
    %546 = vector.load %arg18[%545, %c0_271, %c0_272] : memref<8x8x32xf32, #tpu.memory_space<vmem>>, vector<1x8x32xf32>
    %547 = vector.shape_cast %546 : vector<1x8x32xf32> to vector<8x32xf32>
    %548 = arith.addf %547, %533 : vector<8x32xf32>
    %549 = arith.negf %548 : vector<8x32xf32>
    %550 = math.exp %549 : vector<8x32xf32>
    %cst_273 = arith.constant 1.000000e+00 : f32
    %551 = vector.broadcast %cst_273 : f32 to vector<8x32xf32>
    %552 = arith.addf %551, %550 : vector<8x32xf32>
    %553 = arith.divf %551, %552 : vector<8x32xf32>
    %554 = arith.index_cast %c3_i32_264 : i32 to index
    %c0_274 = arith.constant 0 : index
    %c0_275 = arith.constant 0 : index
    %555 = vector.load %arg19[%554, %c0_274, %c0_275] : memref<8x8x32xf32, #tpu.memory_space<vmem>>, vector<1x8x32xf32>
    %556 = vector.shape_cast %555 : vector<1x8x32xf32> to vector<8x32xf32>
    %557 = arith.mulf %544, %535 : vector<8x32xf32>
    %558 = arith.addf %556, %557 : vector<8x32xf32>
    %559 = math.tanh %558 : vector<8x32xf32>
    %cst_276 = arith.constant 1.000000e+00 : f32
    %560 = vector.broadcast %cst_276 : f32 to vector<8x32xf32>
    %561 = arith.subf %560, %553 : vector<8x32xf32>
    %562 = arith.mulf %561, %559 : vector<8x32xf32>
    %563 = arith.mulf %553, %525 : vector<8x32xf32>
    %564 = arith.addf %562, %563 : vector<8x32xf32>
    %565 = arith.index_cast %c3_i32_264 : i32 to index
    %c0_277 = arith.constant 0 : index
    %c0_278 = arith.constant 0 : index
    %566 = vector.load %arg20[%565, %c0_277, %c0_278] : memref<8x8x32xf32, #tpu.memory_space<vmem>>, vector<1x8x32xf32>
    %567 = vector.shape_cast %566 : vector<1x8x32xf32> to vector<8x32xf32>
    %568 = vector.shape_cast %564 : vector<8x32xf32> to vector<1x8x32xf32>
    tpu.vector_store %arg20[%565, %c0_277, %c0_278], %568 {strides = array<i32>} : memref<8x8x32xf32, #tpu.memory_space<vmem>>, vector<1x8x32xf32>,
    %c4_i32_279 = arith.constant 4 : i32
    %cst_280 = arith.constant dense<0.000000e+00> : vector<8x32xf32>
    %569 = tpu.matmul %564, %394, %cst_280 {dimension_numbers = #tpu.dot_dimension_numbers<[1], [0], [0], [1], [0, 0, 1, 1], [], []>} : vector<8x32xf32>, vector<32x32xf32>, vector<8x32xf32> -> vector<8x32xf32>
    %570 = arith.addf %569, %402 : vector<8x32xf32>
    %cst_281 = arith.constant dense<0.000000e+00> : vector<8x32xf32>
    %571 = tpu.matmul %564, %396, %cst_281 {dimension_numbers = #tpu.dot_dimension_numbers<[1], [0], [0], [1], [0, 0, 1, 1], [], []>} : vector<8x32xf32>, vector<32x32xf32>, vector<8x32xf32> -> vector<8x32xf32>
    %572 = arith.addf %571, %406 : vector<8x32xf32>
    %cst_282 = arith.constant dense<0.000000e+00> : vector<8x32xf32>
    %573 = tpu.matmul %564, %398, %cst_282 {dimension_numbers = #tpu.dot_dimension_numbers<[1], [0], [0], [1], [0, 0, 1, 1], [], []>} : vector<8x32xf32>, vector<32x32xf32>, vector<8x32xf32> -> vector<8x32xf32>
    %574 = arith.addf %573, %410 : vector<8x32xf32>
    %575 = arith.index_cast %c4_i32_279 : i32 to index
    %c0_283 = arith.constant 0 : index
    %c0_284 = arith.constant 0 : index
    %576 = vector.load %arg17[%575, %c0_283, %c0_284] : memref<8x8x32xf32, #tpu.memory_space<vmem>>, vector<1x8x32xf32>
    %577 = vector.shape_cast %576 : vector<1x8x32xf32> to vector<8x32xf32>
    %578 = arith.addf %577, %570 : vector<8x32xf32>
    %579 = arith.negf %578 : vector<8x32xf32>
    %580 = math.exp %579 : vector<8x32xf32>
    %cst_285 = arith.constant 1.000000e+00 : f32
    %581 = vector.broadcast %cst_285 : f32 to vector<8x32xf32>
    %582 = arith.addf %581, %580 : vector<8x32xf32>
    %583 = arith.divf %581, %582 : vector<8x32xf32>
    %584 = arith.index_cast %c4_i32_279 : i32 to index
    %c0_286 = arith.constant 0 : index
    %c0_287 = arith.constant 0 : index
    %585 = vector.load %arg18[%584, %c0_286, %c0_287] : memref<8x8x32xf32, #tpu.memory_space<vmem>>, vector<1x8x32xf32>
    %586 = vector.shape_cast %585 : vector<1x8x32xf32> to vector<8x32xf32>
    %587 = arith.addf %586, %572 : vector<8x32xf32>
    %588 = arith.negf %587 : vector<8x32xf32>
    %589 = math.exp %588 : vector<8x32xf32>
    %cst_288 = arith.constant 1.000000e+00 : f32
    %590 = vector.broadcast %cst_288 : f32 to vector<8x32xf32>
    %591 = arith.addf %590, %589 : vector<8x32xf32>
    %592 = arith.divf %590, %591 : vector<8x32xf32>
    %593 = arith.index_cast %c4_i32_279 : i32 to index
    %c0_289 = arith.constant 0 : index
    %c0_290 = arith.constant 0 : index
    %594 = vector.load %arg19[%593, %c0_289, %c0_290] : memref<8x8x32xf32, #tpu.memory_space<vmem>>, vector<1x8x32xf32>
    %595 = vector.shape_cast %594 : vector<1x8x32xf32> to vector<8x32xf32>
    %596 = arith.mulf %583, %574 : vector<8x32xf32>
    %597 = arith.addf %595, %596 : vector<8x32xf32>
    %598 = math.tanh %597 : vector<8x32xf32>
    %cst_291 = arith.constant 1.000000e+00 : f32
    %599 = vector.broadcast %cst_291 : f32 to vector<8x32xf32>
    %600 = arith.subf %599, %592 : vector<8x32xf32>
    %601 = arith.mulf %600, %598 : vector<8x32xf32>
    %602 = arith.mulf %592, %564 : vector<8x32xf32>
    %603 = arith.addf %601, %602 : vector<8x32xf32>
    %604 = arith.index_cast %c4_i32_279 : i32 to index
    %c0_292 = arith.constant 0 : index
    %c0_293 = arith.constant 0 : index
    %605 = vector.load %arg20[%604, %c0_292, %c0_293] : memref<8x8x32xf32, #tpu.memory_space<vmem>>, vector<1x8x32xf32>
    %606 = vector.shape_cast %605 : vector<1x8x32xf32> to vector<8x32xf32>
    %607 = vector.shape_cast %603 : vector<8x32xf32> to vector<1x8x32xf32>
    tpu.vector_store %arg20[%604, %c0_292, %c0_293], %607 {strides = array<i32>} : memref<8x8x32xf32, #tpu.memory_space<vmem>>, vector<1x8x32xf32>,
    %c5_i32_294 = arith.constant 5 : i32
    %cst_295 = arith.constant dense<0.000000e+00> : vector<8x32xf32>
    %608 = tpu.matmul %603, %394, %cst_295 {dimension_numbers = #tpu.dot_dimension_numbers<[1], [0], [0], [1], [0, 0, 1, 1], [], []>} : vector<8x32xf32>, vector<32x32xf32>, vector<8x32xf32> -> vector<8x32xf32>
    %609 = arith.addf %608, %402 : vector<8x32xf32>
    %cst_296 = arith.constant dense<0.000000e+00> : vector<8x32xf32>
    %610 = tpu.matmul %603, %396, %cst_296 {dimension_numbers = #tpu.dot_dimension_numbers<[1], [0], [0], [1], [0, 0, 1, 1], [], []>} : vector<8x32xf32>, vector<32x32xf32>, vector<8x32xf32> -> vector<8x32xf32>
    %611 = arith.addf %610, %406 : vector<8x32xf32>
    %cst_297 = arith.constant dense<0.000000e+00> : vector<8x32xf32>
    %612 = tpu.matmul %603, %398, %cst_297 {dimension_numbers = #tpu.dot_dimension_numbers<[1], [0], [0], [1], [0, 0, 1, 1], [], []>} : vector<8x32xf32>, vector<32x32xf32>, vector<8x32xf32> -> vector<8x32xf32>
    %613 = arith.addf %612, %410 : vector<8x32xf32>
    %614 = arith.index_cast %c5_i32_294 : i32 to index
    %c0_298 = arith.constant 0 : index
    %c0_299 = arith.constant 0 : index
    %615 = vector.load %arg17[%614, %c0_298, %c0_299] : memref<8x8x32xf32, #tpu.memory_space<vmem>>, vector<1x8x32xf32>
    %616 = vector.shape_cast %615 : vector<1x8x32xf32> to vector<8x32xf32>
    %617 = arith.addf %616, %609 : vector<8x32xf32>
    %618 = arith.negf %617 : vector<8x32xf32>
    %619 = math.exp %618 : vector<8x32xf32>
    %cst_300 = arith.constant 1.000000e+00 : f32
    %620 = vector.broadcast %cst_300 : f32 to vector<8x32xf32>
    %621 = arith.addf %620, %619 : vector<8x32xf32>
    %622 = arith.divf %620, %621 : vector<8x32xf32>
    %623 = arith.index_cast %c5_i32_294 : i32 to index
    %c0_301 = arith.constant 0 : index
    %c0_302 = arith.constant 0 : index
    %624 = vector.load %arg18[%623, %c0_301, %c0_302] : memref<8x8x32xf32, #tpu.memory_space<vmem>>, vector<1x8x32xf32>
    %625 = vector.shape_cast %624 : vector<1x8x32xf32> to vector<8x32xf32>
    %626 = arith.addf %625, %611 : vector<8x32xf32>
    %627 = arith.negf %626 : vector<8x32xf32>
    %628 = math.exp %627 : vector<8x32xf32>
    %cst_303 = arith.constant 1.000000e+00 : f32
    %629 = vector.broadcast %cst_303 : f32 to vector<8x32xf32>
    %630 = arith.addf %629, %628 : vector<8x32xf32>
    %631 = arith.divf %629, %630 : vector<8x32xf32>
    %632 = arith.index_cast %c5_i32_294 : i32 to index
    %c0_304 = arith.constant 0 : index
    %c0_305 = arith.constant 0 : index
    %633 = vector.load %arg19[%632, %c0_304, %c0_305] : memref<8x8x32xf32, #tpu.memory_space<vmem>>, vector<1x8x32xf32>
    %634 = vector.shape_cast %633 : vector<1x8x32xf32> to vector<8x32xf32>
    %635 = arith.mulf %622, %613 : vector<8x32xf32>
    %636 = arith.addf %634, %635 : vector<8x32xf32>
    %637 = math.tanh %636 : vector<8x32xf32>
    %cst_306 = arith.constant 1.000000e+00 : f32
    %638 = vector.broadcast %cst_306 : f32 to vector<8x32xf32>
    %639 = arith.subf %638, %631 : vector<8x32xf32>
    %640 = arith.mulf %639, %637 : vector<8x32xf32>
    %641 = arith.mulf %631, %603 : vector<8x32xf32>
    %642 = arith.addf %640, %641 : vector<8x32xf32>
    %643 = arith.index_cast %c5_i32_294 : i32 to index
    %c0_307 = arith.constant 0 : index
    %c0_308 = arith.constant 0 : index
    %644 = vector.load %arg20[%643, %c0_307, %c0_308] : memref<8x8x32xf32, #tpu.memory_space<vmem>>, vector<1x8x32xf32>
    %645 = vector.shape_cast %644 : vector<1x8x32xf32> to vector<8x32xf32>
    %646 = vector.shape_cast %642 : vector<8x32xf32> to vector<1x8x32xf32>
    tpu.vector_store %arg20[%643, %c0_307, %c0_308], %646 {strides = array<i32>} : memref<8x8x32xf32, #tpu.memory_space<vmem>>, vector<1x8x32xf32>,
    %c6_i32_309 = arith.constant 6 : i32
    %cst_310 = arith.constant dense<0.000000e+00> : vector<8x32xf32>
    %647 = tpu.matmul %642, %394, %cst_310 {dimension_numbers = #tpu.dot_dimension_numbers<[1], [0], [0], [1], [0, 0, 1, 1], [], []>} : vector<8x32xf32>, vector<32x32xf32>, vector<8x32xf32> -> vector<8x32xf32>
    %648 = arith.addf %647, %402 : vector<8x32xf32>
    %cst_311 = arith.constant dense<0.000000e+00> : vector<8x32xf32>
    %649 = tpu.matmul %642, %396, %cst_311 {dimension_numbers = #tpu.dot_dimension_numbers<[1], [0], [0], [1], [0, 0, 1, 1], [], []>} : vector<8x32xf32>, vector<32x32xf32>, vector<8x32xf32> -> vector<8x32xf32>
    %650 = arith.addf %649, %406 : vector<8x32xf32>
    %cst_312 = arith.constant dense<0.000000e+00> : vector<8x32xf32>
    %651 = tpu.matmul %642, %398, %cst_312 {dimension_numbers = #tpu.dot_dimension_numbers<[1], [0], [0], [1], [0, 0, 1, 1], [], []>} : vector<8x32xf32>, vector<32x32xf32>, vector<8x32xf32> -> vector<8x32xf32>
    %652 = arith.addf %651, %410 : vector<8x32xf32>
    %653 = arith.index_cast %c6_i32_309 : i32 to index
    %c0_313 = arith.constant 0 : index
    %c0_314 = arith.constant 0 : index
    %654 = vector.load %arg17[%653, %c0_313, %c0_314] : memref<8x8x32xf32, #tpu.memory_space<vmem>>, vector<1x8x32xf32>
    %655 = vector.shape_cast %654 : vector<1x8x32xf32> to vector<8x32xf32>
    %656 = arith.addf %655, %648 : vector<8x32xf32>
    %657 = arith.negf %656 : vector<8x32xf32>
    %658 = math.exp %657 : vector<8x32xf32>
    %cst_315 = arith.constant 1.000000e+00 : f32
    %659 = vector.broadcast %cst_315 : f32 to vector<8x32xf32>
    %660 = arith.addf %659, %658 : vector<8x32xf32>
    %661 = arith.divf %659, %660 : vector<8x32xf32>
    %662 = arith.index_cast %c6_i32_309 : i32 to index
    %c0_316 = arith.constant 0 : index
    %c0_317 = arith.constant 0 : index
    %663 = vector.load %arg18[%662, %c0_316, %c0_317] : memref<8x8x32xf32, #tpu.memory_space<vmem>>, vector<1x8x32xf32>
    %664 = vector.shape_cast %663 : vector<1x8x32xf32> to vector<8x32xf32>
    %665 = arith.addf %664, %650 : vector<8x32xf32>
    %666 = arith.negf %665 : vector<8x32xf32>
    %667 = math.exp %666 : vector<8x32xf32>
    %cst_318 = arith.constant 1.000000e+00 : f32
    %668 = vector.broadcast %cst_318 : f32 to vector<8x32xf32>
    %669 = arith.addf %668, %667 : vector<8x32xf32>
    %670 = arith.divf %668, %669 : vector<8x32xf32>
    %671 = arith.index_cast %c6_i32_309 : i32 to index
    %c0_319 = arith.constant 0 : index
    %c0_320 = arith.constant 0 : index
    %672 = vector.load %arg19[%671, %c0_319, %c0_320] : memref<8x8x32xf32, #tpu.memory_space<vmem>>, vector<1x8x32xf32>
    %673 = vector.shape_cast %672 : vector<1x8x32xf32> to vector<8x32xf32>
    %674 = arith.mulf %661, %652 : vector<8x32xf32>
    %675 = arith.addf %673, %674 : vector<8x32xf32>
    %676 = math.tanh %675 : vector<8x32xf32>
    %cst_321 = arith.constant 1.000000e+00 : f32
    %677 = vector.broadcast %cst_321 : f32 to vector<8x32xf32>
    %678 = arith.subf %677, %670 : vector<8x32xf32>
    %679 = arith.mulf %678, %676 : vector<8x32xf32>
    %680 = arith.mulf %670, %642 : vector<8x32xf32>
    %681 = arith.addf %679, %680 : vector<8x32xf32>
    %682 = arith.index_cast %c6_i32_309 : i32 to index
    %c0_322 = arith.constant 0 : index
    %c0_323 = arith.constant 0 : index
    %683 = vector.load %arg20[%682, %c0_322, %c0_323] : memref<8x8x32xf32, #tpu.memory_space<vmem>>, vector<1x8x32xf32>
    %684 = vector.shape_cast %683 : vector<1x8x32xf32> to vector<8x32xf32>
    %685 = vector.shape_cast %681 : vector<8x32xf32> to vector<1x8x32xf32>
    tpu.vector_store %arg20[%682, %c0_322, %c0_323], %685 {strides = array<i32>} : memref<8x8x32xf32, #tpu.memory_space<vmem>>, vector<1x8x32xf32>,
    %c7_i32_324 = arith.constant 7 : i32
    %cst_325 = arith.constant dense<0.000000e+00> : vector<8x32xf32>
    %686 = tpu.matmul %681, %394, %cst_325 {dimension_numbers = #tpu.dot_dimension_numbers<[1], [0], [0], [1], [0, 0, 1, 1], [], []>} : vector<8x32xf32>, vector<32x32xf32>, vector<8x32xf32> -> vector<8x32xf32>
    %687 = arith.addf %686, %402 : vector<8x32xf32>
    %cst_326 = arith.constant dense<0.000000e+00> : vector<8x32xf32>
    %688 = tpu.matmul %681, %396, %cst_326 {dimension_numbers = #tpu.dot_dimension_numbers<[1], [0], [0], [1], [0, 0, 1, 1], [], []>} : vector<8x32xf32>, vector<32x32xf32>, vector<8x32xf32> -> vector<8x32xf32>
    %689 = arith.addf %688, %406 : vector<8x32xf32>
    %cst_327 = arith.constant dense<0.000000e+00> : vector<8x32xf32>
    %690 = tpu.matmul %681, %398, %cst_327 {dimension_numbers = #tpu.dot_dimension_numbers<[1], [0], [0], [1], [0, 0, 1, 1], [], []>} : vector<8x32xf32>, vector<32x32xf32>, vector<8x32xf32> -> vector<8x32xf32>
    %691 = arith.addf %690, %410 : vector<8x32xf32>
    %692 = arith.index_cast %c7_i32_324 : i32 to index
    %c0_328 = arith.constant 0 : index
    %c0_329 = arith.constant 0 : index
    %693 = vector.load %arg17[%692, %c0_328, %c0_329] : memref<8x8x32xf32, #tpu.memory_space<vmem>>, vector<1x8x32xf32>
    %694 = vector.shape_cast %693 : vector<1x8x32xf32> to vector<8x32xf32>
    %695 = arith.addf %694, %687 : vector<8x32xf32>
    %696 = arith.negf %695 : vector<8x32xf32>
    %697 = math.exp %696 : vector<8x32xf32>
    %cst_330 = arith.constant 1.000000e+00 : f32
    %698 = vector.broadcast %cst_330 : f32 to vector<8x32xf32>
    %699 = arith.addf %698, %697 : vector<8x32xf32>
    %700 = arith.divf %698, %699 : vector<8x32xf32>
    %701 = arith.index_cast %c7_i32_324 : i32 to index
    %c0_331 = arith.constant 0 : index
    %c0_332 = arith.constant 0 : index
    %702 = vector.load %arg18[%701, %c0_331, %c0_332] : memref<8x8x32xf32, #tpu.memory_space<vmem>>, vector<1x8x32xf32>
    %703 = vector.shape_cast %702 : vector<1x8x32xf32> to vector<8x32xf32>
    %704 = arith.addf %703, %689 : vector<8x32xf32>
    %705 = arith.negf %704 : vector<8x32xf32>
    %706 = math.exp %705 : vector<8x32xf32>
    %cst_333 = arith.constant 1.000000e+00 : f32
    %707 = vector.broadcast %cst_333 : f32 to vector<8x32xf32>
    %708 = arith.addf %707, %706 : vector<8x32xf32>
    %709 = arith.divf %707, %708 : vector<8x32xf32>
    %710 = arith.index_cast %c7_i32_324 : i32 to index
    %c0_334 = arith.constant 0 : index
    %c0_335 = arith.constant 0 : index
    %711 = vector.load %arg19[%710, %c0_334, %c0_335] : memref<8x8x32xf32, #tpu.memory_space<vmem>>, vector<1x8x32xf32>
    %712 = vector.shape_cast %711 : vector<1x8x32xf32> to vector<8x32xf32>
    %713 = arith.mulf %700, %691 : vector<8x32xf32>
    %714 = arith.addf %712, %713 : vector<8x32xf32>
    %715 = math.tanh %714 : vector<8x32xf32>
    %cst_336 = arith.constant 1.000000e+00 : f32
    %716 = vector.broadcast %cst_336 : f32 to vector<8x32xf32>
    %717 = arith.subf %716, %709 : vector<8x32xf32>
    %718 = arith.mulf %717, %715 : vector<8x32xf32>
    %719 = arith.mulf %709, %681 : vector<8x32xf32>
    %720 = arith.addf %718, %719 : vector<8x32xf32>
    %721 = arith.index_cast %c7_i32_324 : i32 to index
    %c0_337 = arith.constant 0 : index
    %c0_338 = arith.constant 0 : index
    %722 = vector.load %arg20[%721, %c0_337, %c0_338] : memref<8x8x32xf32, #tpu.memory_space<vmem>>, vector<1x8x32xf32>
    %723 = vector.shape_cast %722 : vector<1x8x32xf32> to vector<8x32xf32>
    %724 = vector.shape_cast %720 : vector<8x32xf32> to vector<1x8x32xf32>
    tpu.vector_store %arg20[%721, %c0_337, %c0_338], %724 {strides = array<i32>} : memref<8x8x32xf32, #tpu.memory_space<vmem>>, vector<1x8x32xf32>,
    %c8_i32_339 = arith.constant 8 : i32
    %c1_340 = arith.constant 1 : index
    %c0_341 = arith.constant 0 : index
    %c0_342 = arith.constant 0 : index
    %725 = vector.load %arg16[%c1_340, %c0_341, %c0_342] : memref<2x8x32xf32, #tpu.memory_space<vmem>>, vector<1x8x32xf32>
    %726 = vector.shape_cast %725 : vector<1x8x32xf32> to vector<8x32xf32>
    %727 = vector.shape_cast %720 : vector<8x32xf32> to vector<1x8x32xf32>
    tpu.vector_store %arg16[%c1_340, %c0_341, %c0_342], %727 {strides = array<i32>} : memref<2x8x32xf32, #tpu.memory_space<vmem>>, vector<1x8x32xf32>,
    %c0_343 = arith.constant 0 : index
    %c0_344 = arith.constant 0 : index
    %c0_345 = arith.constant 0 : index
    %728 = vector.load %arg20[%c0_343, %c0_344, %c0_345] : memref<8x8x32xf32, #tpu.memory_space<vmem>>, vector<8x8x32xf32>
    %729 = vector.shape_cast %728 : vector<8x8x32xf32> to vector<64x32xf32>
    %c0_346 = arith.constant 0 : index
    %c0_347 = arith.constant 0 : index
    %730 = vector.load %arg11[%c0_346, %c0_347] : memref<32x32xf32, #tpu.memory_space<vmem>>, vector<32x32xf32>
    %cst_348 = arith.constant dense<0.000000e+00> : vector<64x32xf32>
    %731 = tpu.matmul %729, %730, %cst_348 {dimension_numbers = #tpu.dot_dimension_numbers<[1], [0], [0], [1], [0, 0, 1, 1], [], []>} : vector<64x32xf32>, vector<32x32xf32>, vector<64x32xf32> -> vector<64x32xf32>
    %c0_349 = arith.constant 0 : index
    %c0_350 = arith.constant 0 : index
    %732 = vector.load %arg12[%c0_349, %c0_350] : memref<1x32xf32, #tpu.memory_space<vmem>>, vector<1x32xf32>
    %733 = vector.broadcast %732 : vector<1x32xf32> to vector<64x32xf32>
    %734 = arith.addf %731, %733 : vector<64x32xf32>
    %cst_351 = arith.constant 0.000000e+00 : f32
    %735 = vector.broadcast %cst_351 : f32 to vector<64x32xf32>
    %736 = arith.maximumf %734, %735 : vector<64x32xf32>
    %c0_352 = arith.constant 0 : index
    %c0_353 = arith.constant 0 : index
    %737 = vector.load %arg13[%c0_352, %c0_353] : memref<32x4xf32, #tpu.memory_space<vmem>>, vector<32x4xf32>
    %cst_354 = arith.constant dense<0.000000e+00> : vector<64x4xf32>
    %738 = tpu.matmul %736, %737, %cst_354 {dimension_numbers = #tpu.dot_dimension_numbers<[1], [0], [0], [1], [0, 0, 1, 1], [], []>} : vector<64x32xf32>, vector<32x4xf32>, vector<64x4xf32> -> vector<64x4xf32>
    %c0_355 = arith.constant 0 : index
    %c0_356 = arith.constant 0 : index
    %739 = vector.load %arg14[%c0_355, %c0_356] : memref<1x4xf32, #tpu.memory_space<vmem>>, vector<1x4xf32>
    %740 = vector.broadcast %739 : vector<1x4xf32> to vector<64x4xf32>
    %741 = arith.addf %738, %740 : vector<64x4xf32>
    %742 = vector.shape_cast %741 : vector<64x4xf32> to vector<8x8x4xf32>
    %c0_357 = arith.constant 0 : index
    %c0_358 = arith.constant 0 : index
    %c0_359 = arith.constant 0 : index
    %743 = vector.load %arg15[%c0_357, %c0_358, %c0_359] : memref<8x8x4xf32, #tpu.memory_space<vmem>>, vector<8x8x4xf32>
    tpu.vector_store %arg15[%c0_357, %c0_358, %c0_359], %742 {strides = array<i32>} : memref<8x8x4xf32, #tpu.memory_space<vmem>>, vector<8x8x4xf32>,
    return
  }
  func.func @transform_0(%arg0: i32) -> (i32, i32, i32) {
    %c0_i32 = arith.constant 0 : i32
    %c0_i32_0 = arith.constant 0 : i32
    %c0_i32_1 = arith.constant 0 : i32
    %c0_i32_2 = arith.constant 0 : i32
    return %c0_i32, %c0_i32_0, %c0_i32_1 : i32, i32, i32
  }
  func.func @transform_1(%arg0: i32) -> (i32, i32, i32) {
    %c0_i32 = arith.constant 0 : i32
    %c0_i32_0 = arith.constant 0 : i32
    %c0_i32_1 = arith.constant 0 : i32
    %c0_i32_2 = arith.constant 0 : i32
    return %c0_i32, %c0_i32_0, %c0_i32_1 : i32, i32, i32
  }
  func.func @transform_2(%arg0: i32) -> (i32, i32, i32) {
    %c0_i32 = arith.constant 0 : i32
    %c0_i32_0 = arith.constant 0 : i32
    %c0_i32_1 = arith.constant 0 : i32
    %c0_i32_2 = arith.constant 0 : i32
    return %c0_i32, %c0_i32_0, %c0_i32_1 : i32, i32, i32
  }
  func.func @transform_3(%arg0: i32) -> (i32, i32, i32) {
    %c0_i32 = arith.constant 0 : i32
    %c0_i32_0 = arith.constant 0 : i32
    %c0_i32_1 = arith.constant 0 : i32
    %c0_i32_2 = arith.constant 0 : i32
    return %c0_i32, %c0_i32_0, %c0_i32_1 : i32, i32, i32
  }
  func.func @transform_4(%arg0: i32) -> (i32, i32, i32) {
    %c0_i32 = arith.constant 0 : i32
    %c0_i32_0 = arith.constant 0 : i32
    %c0_i32_1 = arith.constant 0 : i32
    %c0_i32_2 = arith.constant 0 : i32
    return %c0_i32, %c0_i32_0, %c0_i32_1 : i32, i32, i32
  }
  func.func @transform_5(%arg0: i32) -> (i32, i32, i32) {
    %c0_i32 = arith.constant 0 : i32
    %c0_i32_0 = arith.constant 0 : i32
    %c0_i32_1 = arith.constant 0 : i32
    %c0_i32_2 = arith.constant 0 : i32
    return %c0_i32, %c0_i32_0, %c0_i32_1 : i32, i32, i32
  }
  func.func @transform_6(%arg0: i32) -> (i32, i32, i32) {
    %c0_i32 = arith.constant 0 : i32
    %c0_i32_0 = arith.constant 0 : i32
    %c0_i32_1 = arith.constant 0 : i32
    %c0_i32_2 = arith.constant 0 : i32
    return %c0_i32, %c0_i32_0, %c0_i32_1 : i32, i32, i32
  }
  func.func @transform_7(%arg0: i32) -> (i32, i32, i32) {
    %c0_i32 = arith.constant 0 : i32
    %c0_i32_0 = arith.constant 0 : i32
    %c0_i32_1 = arith.constant 0 : i32
    %c0_i32_2 = arith.constant 0 : i32
    return %c0_i32, %c0_i32_0, %c0_i32_1 : i32, i32, i32
  }
  func.func @transform_8(%arg0: i32) -> (i32, i32, i32) {
    %c0_i32 = arith.constant 0 : i32
    %c0_i32_0 = arith.constant 0 : i32
    %c0_i32_1 = arith.constant 0 : i32
    %c0_i32_2 = arith.constant 0 : i32
    return %c0_i32, %c0_i32_0, %c0_i32_1 : i32, i32, i32
  }
  func.func @transform_9(%arg0: i32) -> (i32, i32, i32) {
    %c0_i32 = arith.constant 0 : i32
    %c0_i32_0 = arith.constant 0 : i32
    %c0_i32_1 = arith.constant 0 : i32
    %c0_i32_2 = arith.constant 0 : i32
    return %c0_i32, %c0_i32_0, %c0_i32_1 : i32, i32, i32
  }
  func.func @transform_10(%arg0: i32) -> (i32, i32) {
    %c0_i32 = arith.constant 0 : i32
    %c0_i32_0 = arith.constant 0 : i32
    %c0_i32_1 = arith.constant 0 : i32
    return %c0_i32, %c0_i32_0 : i32, i32
  }
  func.func @transform_11(%arg0: i32) -> (i32, i32) {
    %c0_i32 = arith.constant 0 : i32
    %c0_i32_0 = arith.constant 0 : i32
    %c0_i32_1 = arith.constant 0 : i32
    return %c0_i32, %c0_i32_0 : i32, i32
  }
  func.func @transform_12(%arg0: i32) -> (i32, i32) {
    %c0_i32 = arith.constant 0 : i32
    %c0_i32_0 = arith.constant 0 : i32
    %c0_i32_1 = arith.constant 0 : i32
    return %c0_i32, %c0_i32_0 : i32, i32
  }
  func.func @transform_13(%arg0: i32) -> (i32, i32) {
    %c0_i32 = arith.constant 0 : i32
    %c0_i32_0 = arith.constant 0 : i32
    %c0_i32_1 = arith.constant 0 : i32
    return %c0_i32, %c0_i32_0 : i32, i32
  }
  func.func @transform_14(%arg0: i32) -> (i32, i32, i32) {
    %c0_i32 = arith.constant 0 : i32
    %c0_i32_0 = arith.constant 0 : i32
    %c0_i32_1 = arith.constant 0 : i32
    %c0_i32_2 = arith.constant 0 : i32
    return %c0_i32, %c0_i32_0, %c0_i32_1 : i32, i32, i32
  }
  func.func @transform_15(%arg0: i32) -> (i32, i32, i32) {
    %c0_i32 = arith.constant 0 : i32
    %c0_i32_0 = arith.constant 0 : i32
    %c0_i32_1 = arith.constant 0 : i32
    %c0_i32_2 = arith.constant 0 : i32
    return %c0_i32, %c0_i32_0, %c0_i32_1 : i32, i32, i32
  }
}

</mosaic_0001>

<llo_original>
// kernel: tpu_custom_call.1
$region0: #{tpu_custom_call.1}
  #allocation0 [shape = 'u32[]', space=smem, size = 0x4, offset = 0x4, fixed_abs, tag = 'smem constant byte address 0x4 - core index']
  #allocation1 [shape = 'u32[144,128]{1,0:T(1,128)}', space=vmem, size = 0x12000, scoped, tag = 'internal scratch']
  #allocation2 [shape = 'f32[8,8,32]{2,1,0:T(8,128)}', space=vmem, size = 0x8000, scoped, tag = 'scratch operand']
  #allocation3 [shape = 'f32[8,8,32]{2,1,0:T(8,128)}', space=vmem, size = 0x8000, scoped, tag = 'scratch operand']
  #allocation4 [shape = 'f32[8,8,32]{2,1,0:T(8,128)}', space=vmem, size = 0x8000, scoped, tag = 'scratch operand']
  #allocation5 [shape = 'f32[8,8,32]{2,1,0:T(8,128)}', space=vmem, size = 0x8000, scoped, tag = 'scratch operand']
  %s0 = inlined_call_operand.hbm [shape: f32[8,8,16], index: 0, kind: input, shape index: {}]
  %s1 = inlined_call_operand.vmem [shape: f32[2,8,32], index: 1, kind: input, shape index: {}]
  %s2 = inlined_call_operand.hbm [shape: f32[3,16,32], index: 2, kind: input, shape index: {}]
  %s3 = inlined_call_operand.hbm [shape: f32[3,32,32], index: 3, kind: input, shape index: {}]
  %s4 = inlined_call_operand.vmem [shape: f32[3,1,32], index: 4, kind: input, shape index: {}]
  %s5 = inlined_call_operand.vmem [shape: f32[3,1,32], index: 5, kind: input, shape index: {}]
  %s6 = inlined_call_operand.hbm [shape: f32[3,32,32], index: 6, kind: input, shape index: {}]
  %s7 = inlined_call_operand.hbm [shape: f32[3,32,32], index: 7, kind: input, shape index: {}]
  %s8 = inlined_call_operand.vmem [shape: f32[3,1,32], index: 8, kind: input, shape index: {}]
  %s9 = inlined_call_operand.vmem [shape: f32[3,1,32], index: 9, kind: input, shape index: {}]
  %s10 = inlined_call_operand.vmem [shape: f32[32,32], index: 10, kind: input, shape index: {}]
  %s11 = inlined_call_operand.vmem [shape: f32[1,32], index: 11, kind: input, shape index: {}]
  %s12 = inlined_call_operand.vmem [shape: f32[32,4], index: 12, kind: input, shape index: {}]
  %s13 = inlined_call_operand.vmem [shape: f32[1,4], index: 13, kind: input, shape index: {}]
  %s14 = inlined_call_operand.vmem [shape: f32[8,8,4], index: 14, kind: output, shape index: {0}]
  %s15 = inlined_call_operand.hbm [shape: f32[2,8,32], index: 15, kind: output, shape index: {1}]
  %16 = xla_tuple %s14, %s15
  %s17 = sld [smem:[#allocation0]]
  $region94: #{tpu_custom_call.1} parent=0
    _
  %s19 = ssub.s32 1, %s17
  %s20 = scalar_select 0, %s19, %s17
  $region1: #{tpu_custom_call.1} parent=0
    #allocation6 [shape = 'u8[32768]{0}', space=vmem, size = 0x8000, scoped, tag = 'input window, operand 0, single buffered']
    #allocation7 [shape = 's32[1]{0}', space=sflag, size = 0x4, scoped, tag = 'scoped memory for tpu_custom_call.1']
    #allocation8 [shape = 's32[1]{0}', space=sflag, size = 0x4, scoped, tag = 'scoped memory for tpu_custom_call.1']
    #allocation9 [shape = 'u8[24576]{0}', space=vmem, size = 0x6000, scoped, tag = 'input window, operand 2, single buffered']
    #allocation10 [shape = 's32[1]{0}', space=sflag, size = 0x4, scoped, tag = 'scoped memory for tpu_custom_call.1']
    #allocation11 [shape = 'u8[49152]{0}', space=vmem, size = 0xc000, scoped, tag = 'input window, operand 3, single buffered']
    #allocation12 [shape = 'u8[49152]{0}', space=vmem, size = 0xc000, scoped, tag = 'input window, operand 6, single buffered']
    #allocation13 [shape = 's32[1]{0}', space=sflag, size = 0x4, scoped, tag = 'scoped memory for tpu_custom_call.1']
    #allocation14 [shape = 'u8[49152]{0}', space=vmem, size = 0xc000, scoped, tag = 'input window, operand 7, single buffered']
    #allocation15 [shape = 'u8[8192]{0}', space=vmem, size = 0x2000, scoped, tag = 'output window, operand 1, single buffered']
    %21 = vsyncpa [#allocation7], 0
    %22 = vsyncpa [#allocation10], 0
    %23 = vsyncpa [#allocation13], 0
    %24 = vsyncpa [#allocation8], 0
    // Predicated region
    $region2: #{tpu_custom_call.1} parent=1 // pred_check
      _
    $region3: #{tpu_custom_call.1} parent=1 // pred_check_branch
      %26 = sbr.rel (0) target = $region5
    $region4: #{tpu_custom_call.1} parent=1 // pred_region
      %s28 = ssub.s32 1024, 1024
      %29 = vsyncadd [#allocation7], %s28
      %s30 = sshll.u32 [#allocation6], 4
      %s31 = int_to_ptr.vmem [resolvable:$true] %s30
      %36 = dma.hbm_to_vmem [thread:$0]  %s0, 1024, %s31, [#allocation7], 128, 128, 8
    $region5: #{tpu_custom_call.1} parent=1 // pred_fallthru
      _
    // Predicated region
    $region6: #{tpu_custom_call.1} parent=1 // pred_check
      _
    $region7: #{tpu_custom_call.1} parent=1 // pred_check_branch
      %38 = sbr.rel (0) target = $region9
    $region8: #{tpu_custom_call.1} parent=1 // pred_region
      _
    $region9: #{tpu_custom_call.1} parent=1 // pred_fallthru
      _
    // Predicated region
    $region10: #{tpu_custom_call.1} parent=1 // pred_check
      _
    $region11: #{tpu_custom_call.1} parent=1 // pred_check_branch
      %40 = sbr.rel (0) target = $region13
    $region12: #{tpu_custom_call.1} parent=1 // pred_region
      %s42 = ssub.s32 768, 768
      %43 = vsyncadd [#allocation10], %s42
      %s44 = sshll.u32 [#allocation9], 4
      %s45 = int_to_ptr.vmem [resolvable:$true] %s44
      %50 = dma.hbm_to_vmem [thread:$0]  %s2, 768, %s45, [#allocation10], 128, 128, 8
    $region13: #{tpu_custom_call.1} parent=1 // pred_fallthru
      _
    // Predicated region
    $region14: #{tpu_custom_call.1} parent=1 // pred_check
      _
    $region15: #{tpu_custom_call.1} parent=1 // pred_check_branch
      %52 = sbr.rel (0) target = $region17
    $region16: #{tpu_custom_call.1} parent=1 // pred_region
      %s54 = ssub.s32 1536, 1536
      %55 = vsyncadd [#allocation10], %s54
      %s56 = sshll.u32 [#allocation11], 4
      %s57 = int_to_ptr.vmem [resolvable:$true] %s56
      %62 = dma.hbm_to_vmem [thread:$0]  %s3, 1536, %s57, [#allocation10], 128, 128, 8
    $region17: #{tpu_custom_call.1} parent=1 // pred_fallthru
      _
    // Predicated region
    $region18: #{tpu_custom_call.1} parent=1 // pred_check
      _
    $region19: #{tpu_custom_call.1} parent=1 // pred_check_branch
      %64 = sbr.rel (0) target = $region21
    $region20: #{tpu_custom_call.1} parent=1 // pred_region
      _
    $region21: #{tpu_custom_call.1} parent=1 // pred_fallthru
      _
    // Predicated region
    $region22: #{tpu_custom_call.1} parent=1 // pred_check
      _
    $region23: #{tpu_custom_call.1} parent=1 // pred_check_branch
      %66 = sbr.rel (0) target = $region25
    $region24: #{tpu_custom_call.1} parent=1 // pred_region
      _
    $region25: #{tpu_custom_call.1} parent=1 // pred_fallthru
      _
    // Predicated region
    $region26: #{tpu_custom_call.1} parent=1 // pred_check
      _
    $region27: #{tpu_custom_call.1} parent=1 // pred_check_branch
      %68 = sbr.rel (0) target = $region29
    $region28: #{tpu_custom_call.1} parent=1 // pred_region
      %s70 = ssub.s32 1536, 1536
      %71 = vsyncadd [#allocation13], %s70
      %s72 = sshll.u32 [#allocation12], 4
      %s73 = int_to_ptr.vmem [resolvable:$true] %s72
      %78 = dma.hbm_to_vmem [thread:$0]  %s6, 1536, %s73, [#allocation13], 128, 128, 8
    $region29: #{tpu_custom_call.1} parent=1 // pred_fallthru
      _
    // Predicated region
    $region30: #{tpu_custom_call.1} parent=1 // pred_check
      _
    $region31: #{tpu_custom_call.1} parent=1 // pred_check_branch
      %80 = sbr.rel (0) target = $region33
    $region32: #{tpu_custom_call.1} parent=1 // pred_region
      %s82 = ssub.s32 1536, 1536
      %83 = vsyncadd [#allocation13], %s82
      %s84 = sshll.u32 [#allocation14], 4
      %s85 = int_to_ptr.vmem [resolvable:$true] %s84
      %90 = dma.hbm_to_vmem [thread:$0]  %s7, 1536, %s85, [#allocation13], 128, 128, 8
    $region33: #{tpu_custom_call.1} parent=1 // pred_fallthru
      _
    // Predicated region
    $region34: #{tpu_custom_call.1} parent=1 // pred_check
      _
    $region35: #{tpu_custom_call.1} parent=1 // pred_check_branch
      %92 = sbr.rel (0) target = $region37
    $region36: #{tpu_custom_call.1} parent=1 // pred_region
      _
    $region37: #{tpu_custom_call.1} parent=1 // pred_fallthru
      _
    // Predicated region
    $region38: #{tpu_custom_call.1} parent=1 // pred_check
      _
    $region39: #{tpu_custom_call.1} parent=1 // pred_check_branch
      %94 = sbr.rel (0) target = $region41
    $region40: #{tpu_custom_call.1} parent=1 // pred_region
      _
    $region41: #{tpu_custom_call.1} parent=1 // pred_fallthru
      _
    // Predicated region
    $region42: #{tpu_custom_call.1} parent=1 // pred_check
      _
    $region43: #{tpu_custom_call.1} parent=1 // pred_check_branch
      %96 = sbr.rel (0) target = $region45
    $region44: #{tpu_custom_call.1} parent=1 // pred_region
      _
    $region45: #{tpu_custom_call.1} parent=1 // pred_fallthru
      _
    // Predicated region
    $region46: #{tpu_custom_call.1} parent=1 // pred_check
      _
    $region47: #{tpu_custom_call.1} parent=1 // pred_check_branch
      %98 = sbr.rel (0) target = $region49
    $region48: #{tpu_custom_call.1} parent=1 // pred_region
      _
    $region49: #{tpu_custom_call.1} parent=1 // pred_fallthru
      _
    // Predicated region
    $region50: #{tpu_custom_call.1} parent=1 // pred_check
      _
    $region51: #{tpu_custom_call.1} parent=1 // pred_check_branch
      %100 = sbr.rel (0) target = $region53
    $region52: #{tpu_custom_call.1} parent=1 // pred_region
      _
    $region53: #{tpu_custom_call.1} parent=1 // pred_fallthru
      _
    // Predicated region
    $region54: #{tpu_custom_call.1} parent=1 // pred_check
      _
    $region55: #{tpu_custom_call.1} parent=1 // pred_check_branch
      %102 = sbr.rel (0) target = $region57
    $region56: #{tpu_custom_call.1} parent=1 // pred_region
      _
    $region57: #{tpu_custom_call.1} parent=1 // pred_fallthru
      _
    // Predicated region
    $region58: #{tpu_custom_call.1} parent=1 // pred_check
      _
    $region59: #{tpu_custom_call.1} parent=1 // pred_check_branch
      %104 = sbr.rel (0) target = $region61
    $region60: #{tpu_custom_call.1} parent=1 // pred_region
      %105 = dma.done [#allocation7], 1024
    $region61: #{tpu_custom_call.1} parent=1 // pred_fallthru
      _
    // Predicated region
    $region62: #{tpu_custom_call.1} parent=1 // pred_check
      _
    $region63: #{tpu_custom_call.1} parent=1 // pred_check_branch
      %107 = sbr.rel (0) target = $region65
    $region64: #{tpu_custom_call.1} parent=1 // pred_region
      %108 = dma.done [#allocation10], 768
    $region65: #{tpu_custom_call.1} parent=1 // pred_fallthru
      _
    // Predicated region
    $region66: #{tpu_custom_call.1} parent=1 // pred_check
      _
    $region67: #{tpu_custom_call.1} parent=1 // pred_check_branch
      %110 = sbr.rel (0) target = $region69
    $region68: #{tpu_custom_call.1} parent=1 // pred_region
      %111 = dma.done [#allocation10], 1536
    $region69: #{tpu_custom_call.1} parent=1 // pred_fallthru
      _
    // Predicated region
    $region70: #{tpu_custom_call.1} parent=1 // pred_check
      _
    $region71: #{tpu_custom_call.1} parent=1 // pred_check_branch
      %113 = sbr.rel (0) target = $region73
    $region72: #{tpu_custom_call.1} parent=1 // pred_region
      %114 = dma.done [#allocation13], 1536
    $region73: #{tpu_custom_call.1} parent=1 // pred_fallthru
      _
    // Predicated region
    $region74: #{tpu_custom_call.1} parent=1 // pred_check
      _
    $region75: #{tpu_custom_call.1} parent=1 // pred_check_branch
      %116 = sbr.rel (0) target = $region77
    $region76: #{tpu_custom_call.1} parent=1 // pred_region
      %117 = dma.done [#allocation13], 1536
    $region77: #{tpu_custom_call.1} parent=1 // pred_fallthru
      _
    %v118 = vld [vmem:[#allocation6] sm:$0xff]
    %v119 = vld [vmem:[#allocation6 + $0x8] sm:$0xff]
    %v120 = vld [vmem:[#allocation6 + $0x10] sm:$0xff]
    %v121 = vld [vmem:[#allocation6 + $0x18] sm:$0xff]
    %v122 = vld [vmem:[#allocation6 + $0x20] sm:$0xff]
    %v123 = vld [vmem:[#allocation6 + $0x28] sm:$0xff]
    %v124 = vld [vmem:[#allocation6 + $0x30] sm:$0xff]
    %v125 = vld [vmem:[#allocation6 + $0x38] sm:$0xff]
    %v126 = vld [vmem:[#allocation9] sm:$0xff]
    %v127 = vld [vmem:[#allocation9 + $0x8] sm:$0xff]
    %v128 = vld [vmem:[%s4] sm:$0x1]
    %v130 = vlaneseq
    %v131 = vshrl.u32 %v130, 7
    %v132 = vsub.s32 0, %v131
    %v133 = vrot.slane %v128, %v132
    %vm135 = vcmask 130048
    %v137 = vsel %vm135, %v118, 0
    %v140 = vsel %vm135, %v119, 0
    %v143 = vsel %vm135, %v120, 0
    %v146 = vsel %vm135, %v121, 0
    %v149 = vsel %vm135, %v122, 0
    %v152 = vsel %vm135, %v123, 0
    %v155 = vsel %vm135, %v124, 0
    %v158 = vsel %vm135, %v125, 0
    %160 = vmatprep.subr.mxu0 0.0
    %161 = vmatpush1.msra.mxu0 %v126
    %162 = vmatprep.subr.mxu0 0.0
    %163 = vmatpush1.msra.mxu0 %v127
    %164 = vmatprep.subr.mxu0 0.0
    %165 = vmatpush1.msra.mxu0 0.0
    %166 = vmatprep.subr.mxu0 0.0
    %167 = vmatpush1.msra.mxu0 0.0
    %168 = vmatprep.subr.mxu0 0.0
    %169 = vmatpush1.msra.mxu0 0.0
    %170 = vmatprep.subr.mxu0 0.0
    %171 = vmatpush1.msra.mxu0 0.0
    %172 = vmatprep.subr.mxu0 0.0
    %173 = vmatpush1.msra.mxu0 0.0
    %174 = vmatprep.subr.mxu0 0.0
    %175 = vmatpush1.msra.mxu0 0.0
    %176 = vmatprep.subr.mxu0 0.0
    %177 = vmatpush1.msra.mxu0 0.0
    %178 = vmatprep.subr.mxu0 0.0
    %179 = vmatpush1.msra.mxu0 0.0
    %180 = vmatprep.subr.mxu0 0.0
    %181 = vmatpush1.msra.mxu0 0.0
    %182 = vmatprep.subr.mxu0 0.0
    %183 = vmatpush1.msra.mxu0 0.0
    %184 = vmatprep.subr.mxu0 0.0
    %185 = vmatpush1.msra.mxu0 0.0
    %186 = vmatprep.subr.mxu0 0.0
    %187 = vmatpush1.msra.mxu0 0.0
    %188 = vmatprep.subr.mxu0 0.0
    %189 = vmatpush1.msra.mxu0 0.0
    %190 = vmatprep.subr.mxu0 0.0
    %191 = vmatpush1.msra.mxu0 0.0
    %192 = vmatprep.subr.mxu0 0.0
    %193 = vmatpush1.msra.mxu0 0.0
    %194 = vmatprep.subr.mxu0 0.0
    %195 = vmatpush1.msra.mxu0 0.0
    %196 = vmatprep.subr.mxu0 0.0
    %197 = vmatpush1.msra.mxu0 0.0
    %198 = vmatprep.subr.mxu0 0.0
    %199 = vmatpush1.msra.mxu0 0.0
    %200 = vmatprep.subr.mxu0 0.0
    %201 = vmatpush1.msra.mxu0 0.0
    %202 = vmatprep.subr.mxu0 0.0
    %203 = vmatpush1.msra.mxu0 0.0
    %204 = vmatprep.subr.mxu0 0.0
    %205 = vmatpush1.msra.mxu0 0.0
    %206 = vmatprep.subr.mxu0 0.0
    %207 = vmatpush1.msra.mxu0 0.0
    %208 = vmatprep.subr.mxu0 0.0
    %209 = vmatpush1.msra.mxu0 0.0
    %210 = vmatprep.subr.mxu0 0.0
    %211 = vmatpush1.msra.mxu0 0.0
    %212 = vmatprep.subr.mxu0 0.0
    %213 = vmatpush1.msra.mxu0 0.0
    %214 = vmatprep.subr.mxu0 0.0
    %215 = vmatpush1.msra.mxu0 0.0
    %216 = vmatprep.subr.mxu0 0.0
    %217 = vmatpush1.msra.mxu0 0.0
    %218 = vmatprep.subr.mxu0 0.0
    %219 = vmatpush1.msra.mxu0 0.0
    %220 = vmatprep.subr.mxu0 0.0
    %221 = vmatpush1.msra.mxu0 0.0
    %222 = vmatprep.subr.mxu0 0.0
    %223 = vmatpush1.msra.mxu0 0.0
    %224 = vmatprep.mubr.f32.mxu0 0.0
    %225 = vmatmul.mubr.f32.gmra.mrb[0].mxu0 %v137
    %v226 = vpop.f32.mrb[0].mxu0
    %v227 = vadd.f32 %v133, %v226
    %v228 = vpop.f32.mrb[0].mxu0
    %229 = vmatprep.mubr.f32.mxu0 0.0
    %230 = vmatmul.mubr.f32.gmra.mrb[0].mxu0 %v140
    %v231 = vpop.f32.mrb[0].mxu0
    %v232 = vadd.f32 %v133, %v231
    %v233 = vpop.f32.mrb[0].mxu0
    %234 = vmatprep.mubr.f32.mxu0 0.0
    %235 = vmatmul.mubr.f32.gmra.mrb[0].mxu0 %v143
    %v236 = vpop.f32.mrb[0].mxu0
    %v237 = vadd.f32 %v133, %v236
    %v238 = vpop.f32.mrb[0].mxu0
    %239 = vmatprep.mubr.f32.mxu0 0.0
    %240 = vmatmul.mubr.f32.gmra.mrb[0].mxu0 %v146
    %v241 = vpop.f32.mrb[0].mxu0
    %v242 = vadd.f32 %v133, %v241
    %v243 = vpop.f32.mrb[0].mxu0
    %244 = vmatprep.mubr.f32.mxu0 0.0
    %245 = vmatmul.mubr.f32.gmra.mrb[0].mxu0 %v149
    %v246 = vpop.f32.mrb[0].mxu0
    %v247 = vadd.f32 %v133, %v246
    %v248 = vpop.f32.mrb[0].mxu0
    %249 = vmatprep.mubr.f32.mxu0 0.0
    %250 = vmatmul.mubr.f32.gmra.mrb[0].mxu0 %v152
    %v251 = vpop.f32.mrb[0].mxu0
    %v252 = vadd.f32 %v133, %v251
    %v253 = vpop.f32.mrb[0].mxu0
    %254 = vmatprep.mubr.f32.mxu0 0.0
    %255 = vmatmul.mubr.f32.gmra.mrb[0].mxu0 %v155
    %v256 = vpop.f32.mrb[0].mxu0
    %v257 = vadd.f32 %v133, %v256
    %v258 = vpop.f32.mrb[0].mxu0
    %259 = vmatprep.mubr.f32.mxu0 0.0
    %260 = vmatmul.mubr.f32.gmra.mrb[0].mxu0 %v158
    %v261 = vpop.f32.mrb[0].mxu0
    %v262 = vadd.f32 %v133, %v261
    %v263 = vpop.f32.mrb[0].mxu0
    %264 = vdwg.mxu0
    %vm265 = vcmask 261120
    %266 = vst.msk [vmem:[#allocation2] sm:$0xff] %vm265, %v227
    %267 = vst.msk [vmem:[#allocation2 + $0x8] sm:$0xff] %vm265, %v232
    %268 = vst.msk [vmem:[#allocation2 + $0x10] sm:$0xff] %vm265, %v237
    %269 = vst.msk [vmem:[#allocation2 + $0x18] sm:$0xff] %vm265, %v242
    %270 = vst.msk [vmem:[#allocation2 + $0x20] sm:$0xff] %vm265, %v247
    %271 = vst.msk [vmem:[#allocation2 + $0x28] sm:$0xff] %vm265, %v252
    %272 = vst.msk [vmem:[#allocation2 + $0x30] sm:$0xff] %vm265, %v257
    %273 = vst.msk [vmem:[#allocation2 + $0x38] sm:$0xff] %vm265, %v262
    %s274 = scalar_lea.vmem [#allocation9], 16
    %v275 = vld [vmem:[%s274] sm:$0xff]
    %v276 = vld [vmem:[%s274 + $0x8] sm:$0xff]
    %s277 = scalar_lea.vmem %s4, 1
    %v278 = vld [vmem:[%s277] sm:$0x1]
    %v280 = vlaneseq
    %v281 = vshrl.u32 %v280, 7
    %v282 = vsub.s32 0, %v281
    %v283 = vrot.slane %v278, %v282
    %285 = vmatprep.subr.mxu0 0.0
    %286 = vmatpush1.msra.mxu0 %v275
    %287 = vmatprep.subr.mxu0 0.0
    %288 = vmatpush1.msra.mxu0 %v276
    %289 = vmatprep.subr.mxu0 0.0
    %290 = vmatpush1.msra.mxu0 0.0
    %291 = vmatprep.subr.mxu0 0.0
    %292 = vmatpush1.msra.mxu0 0.0
    %293 = vmatprep.subr.mxu0 0.0
    %294 = vmatpush1.msra.mxu0 0.0
    %295 = vmatprep.subr.mxu0 0.0
    %296 = vmatpush1.msra.mxu0 0.0
    %297 = vmatprep.subr.mxu0 0.0
    %298 = vmatpush1.msra.mxu0 0.0
    %299 = vmatprep.subr.mxu0 0.0
    %300 = vmatpush1.msra.mxu0 0.0
    %301 = vmatprep.subr.mxu0 0.0
    %302 = vmatpush1.msra.mxu0 0.0
    %303 = vmatprep.subr.mxu0 0.0
    %304 = vmatpush1.msra.mxu0 0.0
    %305 = vmatprep.subr.mxu0 0.0
    %306 = vmatpush1.msra.mxu0 0.0
    %307 = vmatprep.subr.mxu0 0.0
    %308 = vmatpush1.msra.mxu0 0.0
    %309 = vmatprep.subr.mxu0 0.0
    %310 = vmatpush1.msra.mxu0 0.0
    %311 = vmatprep.subr.mxu0 0.0
    %312 = vmatpush1.msra.mxu0 0.0
    %313 = vmatprep.subr.mxu0 0.0
    %314 = vmatpush1.msra.mxu0 0.0
    %315 = vmatprep.subr.mxu0 0.0
    %316 = vmatpush1.msra.mxu0 0.0
    %317 = vmatprep.subr.mxu0 0.0
    %318 = vmatpush1.msra.mxu0 0.0
    %319 = vmatprep.subr.mxu0 0.0
    %320 = vmatpush1.msra.mxu0 0.0
    %321 = vmatprep.subr.mxu0 0.0
    %322 = vmatpush1.msra.mxu0 0.0
    %323 = vmatprep.subr.mxu0 0.0
    %324 = vmatpush1.msra.mxu0 0.0
    %325 = vmatprep.subr.mxu0 0.0
    %326 = vmatpush1.msra.mxu0 0.0
    %327 = vmatprep.subr.mxu0 0.0
    %328 = vmatpush1.msra.mxu0 0.0
    %329 = vmatprep.subr.mxu0 0.0
    %330 = vmatpush1.msra.mxu0 0.0
    %331 = vmatprep.subr.mxu0 0.0
    %332 = vmatpush1.msra.mxu0 0.0
    %333 = vmatprep.subr.mxu0 0.0
    %334 = vmatpush1.msra.mxu0 0.0
    %335 = vmatprep.subr.mxu0 0.0
    %336 = vmatpush1.msra.mxu0 0.0
    %337 = vmatprep.subr.mxu0 0.0
    %338 = vmatpush1.msra.mxu0 0.0
    %339 = vmatprep.subr.mxu0 0.0
    %340 = vmatpush1.msra.mxu0 0.0
    %341 = vmatprep.subr.mxu0 0.0
    %342 = vmatpush1.msra.mxu0 0.0
    %343 = vmatprep.subr.mxu0 0.0
    %344 = vmatpush1.msra.mxu0 0.0
    %345 = vmatprep.subr.mxu0 0.0
    %346 = vmatpush1.msra.mxu0 0.0
    %347 = vmatprep.subr.mxu0 0.0
    %348 = vmatpush1.msra.mxu0 0.0
    %349 = vmatprep.mubr.f32.mxu0 0.0
    %350 = vmatmul.mubr.f32.gmra.mrb[0].mxu0 %v137
    %v351 = vpop.f32.mrb[0].mxu0
    %v352 = vadd.f32 %v283, %v351
    %v353 = vpop.f32.mrb[0].mxu0
    %354 = vmatprep.mubr.f32.mxu0 0.0
    %355 = vmatmul.mubr.f32.gmra.mrb[0].mxu0 %v140
    %v356 = vpop.f32.mrb[0].mxu0
    %v357 = vadd.f32 %v283, %v356
    %v358 = vpop.f32.mrb[0].mxu0
    %359 = vmatprep.mubr.f32.mxu0 0.0
    %360 = vmatmul.mubr.f32.gmra.mrb[0].mxu0 %v143
    %v361 = vpop.f32.mrb[0].mxu0
    %v362 = vadd.f32 %v283, %v361
    %v363 = vpop.f32.mrb[0].mxu0
    %364 = vmatprep.mubr.f32.mxu0 0.0
    %365 = vmatmul.mubr.f32.gmra.mrb[0].mxu0 %v146
    %v366 = vpop.f32.mrb[0].mxu0
    %v367 = vadd.f32 %v283, %v366
    %v368 = vpop.f32.mrb[0].mxu0
    %369 = vmatprep.mubr.f32.mxu0 0.0
    %370 = vmatmul.mubr.f32.gmra.mrb[0].mxu0 %v149
    %v371 = vpop.f32.mrb[0].mxu0
    %v372 = vadd.f32 %v283, %v371
    %v373 = vpop.f32.mrb[0].mxu0
    %374 = vmatprep.mubr.f32.mxu0 0.0
    %375 = vmatmul.mubr.f32.gmra.mrb[0].mxu0 %v152
    %v376 = vpop.f32.mrb[0].mxu0
    %v377 = vadd.f32 %v283, %v376
    %v378 = vpop.f32.mrb[0].mxu0
    %379 = vmatprep.mubr.f32.mxu0 0.0
    %380 = vmatmul.mubr.f32.gmra.mrb[0].mxu0 %v155
    %v381 = vpop.f32.mrb[0].mxu0
    %v382 = vadd.f32 %v283, %v381
    %v383 = vpop.f32.mrb[0].mxu0
    %384 = vmatprep.mubr.f32.mxu0 0.0
    %385 = vmatmul.mubr.f32.gmra.mrb[0].mxu0 %v158
    %v386 = vpop.f32.mrb[0].mxu0
    %v387 = vadd.f32 %v283, %v386
    %v388 = vpop.f32.mrb[0].mxu0
    %389 = vdwg.mxu0
    %390 = vst.msk [vmem:[#allocation3] sm:$0xff] %vm265, %v352
    %391 = vst.msk [vmem:[#allocation3 + $0x8] sm:$0xff] %vm265, %v357
    %392 = vst.msk [vmem:[#allocation3 + $0x10] sm:$0xff] %vm265, %v362
    %393 = vst.msk [vmem:[#allocation3 + $0x18] sm:$0xff] %vm265, %v367
    %394 = vst.msk [vmem:[#allocation3 + $0x20] sm:$0xff] %vm265, %v372
    %395 = vst.msk [vmem:[#allocation3 + $0x28] sm:$0xff] %vm265, %v377
    %396 = vst.msk [vmem:[#allocation3 + $0x30] sm:$0xff] %vm265, %v382
    %397 = vst.msk [vmem:[#allocation3 + $0x38] sm:$0xff] %vm265, %v387
    %s398 = scalar_lea.vmem [#allocation9], 32
    %v399 = vld [vmem:[%s398] sm:$0xff]
    %v400 = vld [vmem:[%s398 + $0x8] sm:$0xff]
    %s401 = scalar_lea.vmem %s4, 2
    %v402 = vld [vmem:[%s401] sm:$0x1]
    %v404 = vlaneseq
    %v405 = vshrl.u32 %v404, 7
    %v406 = vsub.s32 0, %v405
    %v407 = vrot.slane %v402, %v406
    %409 = vmatprep.subr.mxu0 0.0
    %410 = vmatpush1.msra.mxu0 %v399
    %411 = vmatprep.subr.mxu0 0.0
    %412 = vmatpush1.msra.mxu0 %v400
    %413 = vmatprep.subr.mxu0 0.0
    %414 = vmatpush1.msra.mxu0 0.0
    %415 = vmatprep.subr.mxu0 0.0
    %416 = vmatpush1.msra.mxu0 0.0
    %417 = vmatprep.subr.mxu0 0.0
    %418 = vmatpush1.msra.mxu0 0.0
    %419 = vmatprep.subr.mxu0 0.0
    %420 = vmatpush1.msra.mxu0 0.0
    %421 = vmatprep.subr.mxu0 0.0
    %422 = vmatpush1.msra.mxu0 0.0
    %423 = vmatprep.subr.mxu0 0.0
    %424 = vmatpush1.msra.mxu0 0.0
    %425 = vmatprep.subr.mxu0 0.0
    %426 = vmatpush1.msra.mxu0 0.0
    %427 = vmatprep.subr.mxu0 0.0
    %428 = vmatpush1.msra.mxu0 0.0
    %429 = vmatprep.subr.mxu0 0.0
    %430 = vmatpush1.msra.mxu0 0.0
    %431 = vmatprep.subr.mxu0 0.0
    %432 = vmatpush1.msra.mxu0 0.0
    %433 = vmatprep.subr.mxu0 0.0
    %434 = vmatpush1.msra.mxu0 0.0
    %435 = vmatprep.subr.mxu0 0.0
    %436 = vmatpush1.msra.mxu0 0.0
    %437 = vmatprep.subr.mxu0 0.0
    %438 = vmatpush1.msra.mxu0 0.0
    %439 = vmatprep.subr.mxu0 0.0
    %440 = vmatpush1.msra.mxu0 0.0
    %441 = vmatprep.subr.mxu0 0.0
    %442 = vmatpush1.msra.mxu0 0.0
    %443 = vmatprep.subr.mxu0 0.0
    %444 = vmatpush1.msra.mxu0 0.0
    %445 = vmatprep.subr.mxu0 0.0
    %446 = vmatpush1.msra.mxu0 0.0
    %447 = vmatprep.subr.mxu0 0.0
    %448 = vmatpush1.msra.mxu0 0.0
    %449 = vmatprep.subr.mxu0 0.0
    %450 = vmatpush1.msra.mxu0 0.0
    %451 = vmatprep.subr.mxu0 0.0
    %452 = vmatpush1.msra.mxu0 0.0
    %453 = vmatprep.subr.mxu0 0.0
    %454 = vmatpush1.msra.mxu0 0.0
    %455 = vmatprep.subr.mxu0 0.0
    %456 = vmatpush1.msra.mxu0 0.0
    %457 = vmatprep.subr.mxu0 0.0
    %458 = vmatpush1.msra.mxu0 0.0
    %459 = vmatprep.subr.mxu0 0.0
    %460 = vmatpush1.msra.mxu0 0.0
    %461 = vmatprep.subr.mxu0 0.0
    %462 = vmatpush1.msra.mxu0 0.0
    %463 = vmatprep.subr.mxu0 0.0
    %464 = vmatpush1.msra.mxu0 0.0
    %465 = vmatprep.subr.mxu0 0.0
    %466 = vmatpush1.msra.mxu0 0.0
    %467 = vmatprep.subr.mxu0 0.0
    %468 = vmatpush1.msra.mxu0 0.0
    %469 = vmatprep.subr.mxu0 0.0
    %470 = vmatpush1.msra.mxu0 0.0
    %471 = vmatprep.subr.mxu0 0.0
    %472 = vmatpush1.msra.mxu0 0.0
    %473 = vmatprep.mubr.f32.mxu0 0.0
    %474 = vmatmul.mubr.f32.gmra.mrb[0].mxu0 %v137
    %v475 = vpop.f32.mrb[0].mxu0
    %v476 = vadd.f32 %v407, %v475
    %v477 = vpop.f32.mrb[0].mxu0
    %478 = vmatprep.mubr.f32.mxu0 0.0
    %479 = vmatmul.mubr.f32.gmra.mrb[0].mxu0 %v140
    %v480 = vpop.f32.mrb[0].mxu0
    %v481 = vadd.f32 %v407, %v480
    %v482 = vpop.f32.mrb[0].mxu0
    %483 = vmatprep.mubr.f32.mxu0 0.0
    %484 = vmatmul.mubr.f32.gmra.mrb[0].mxu0 %v143
    %v485 = vpop.f32.mrb[0].mxu0
    %v486 = vadd.f32 %v407, %v485
    %v487 = vpop.f32.mrb[0].mxu0
    %488 = vmatprep.mubr.f32.mxu0 0.0
    %489 = vmatmul.mubr.f32.gmra.mrb[0].mxu0 %v146
    %v490 = vpop.f32.mrb[0].mxu0
    %v491 = vadd.f32 %v407, %v490
    %v492 = vpop.f32.mrb[0].mxu0
    %493 = vmatprep.mubr.f32.mxu0 0.0
    %494 = vmatmul.mubr.f32.gmra.mrb[0].mxu0 %v149
    %v495 = vpop.f32.mrb[0].mxu0
    %v496 = vadd.f32 %v407, %v495
    %v497 = vpop.f32.mrb[0].mxu0
    %498 = vmatprep.mubr.f32.mxu0 0.0
    %499 = vmatmul.mubr.f32.gmra.mrb[0].mxu0 %v152
    %v500 = vpop.f32.mrb[0].mxu0
    %v501 = vadd.f32 %v407, %v500
    %v502 = vpop.f32.mrb[0].mxu0
    %503 = vmatprep.mubr.f32.mxu0 0.0
    %504 = vmatmul.mubr.f32.gmra.mrb[0].mxu0 %v155
    %v505 = vpop.f32.mrb[0].mxu0
    %v506 = vadd.f32 %v407, %v505
    %v507 = vpop.f32.mrb[0].mxu0
    %508 = vmatprep.mubr.f32.mxu0 0.0
    %509 = vmatmul.mubr.f32.gmra.mrb[0].mxu0 %v158
    %v510 = vpop.f32.mrb[0].mxu0
    %v511 = vadd.f32 %v407, %v510
    %v512 = vpop.f32.mrb[0].mxu0
    %513 = vdwg.mxu0
    %514 = vst.msk [vmem:[#allocation4] sm:$0xff] %vm265, %v476
    %515 = vst.msk [vmem:[#allocation4 + $0x8] sm:$0xff] %vm265, %v481
    %516 = vst.msk [vmem:[#allocation4 + $0x10] sm:$0xff] %vm265, %v486
    %517 = vst.msk [vmem:[#allocation4 + $0x18] sm:$0xff] %vm265, %v491
    %518 = vst.msk [vmem:[#allocation4 + $0x20] sm:$0xff] %vm265, %v496
    %519 = vst.msk [vmem:[#allocation4 + $0x28] sm:$0xff] %vm265, %v501
    %520 = vst.msk [vmem:[#allocation4 + $0x30] sm:$0xff] %vm265, %v506
    %521 = vst.msk [vmem:[#allocation4 + $0x38] sm:$0xff] %vm265, %v511
    %v522 = vld [vmem:[#allocation11] sm:$0xff]
    %v523 = vld [vmem:[#allocation11 + $0x8] sm:$0xff]
    %v524 = vld [vmem:[#allocation11 + $0x10] sm:$0xff]
    %v525 = vld [vmem:[#allocation11 + $0x18] sm:$0xff]
    %s526 = scalar_lea.vmem [#allocation11], 32
    %v527 = vld [vmem:[%s526] sm:$0xff]
    %v528 = vld [vmem:[%s526 + $0x8] sm:$0xff]
    %v529 = vld [vmem:[%s526 + $0x10] sm:$0xff]
    %v530 = vld [vmem:[%s526 + $0x18] sm:$0xff]
    %s531 = scalar_lea.vmem [#allocation11], 64
    %v532 = vld [vmem:[%s531] sm:$0xff]
    %v533 = vld [vmem:[%s531 + $0x8] sm:$0xff]
    %v534 = vld [vmem:[%s531 + $0x10] sm:$0xff]
    %v535 = vld [vmem:[%s531 + $0x18] sm:$0xff]
    %v536 = vld [vmem:[%s5] sm:$0x1]
    %v538 = vlaneseq
    %v539 = vshrl.u32 %v538, 7
    %v540 = vsub.s32 0, %v539
    %v541 = vrot.slane %v536, %v540
    %s543 = scalar_lea.vmem %s5, 1
    %v544 = vld [vmem:[%s543] sm:$0x1]
    %v546 = vlaneseq
    %v547 = vshrl.u32 %v546, 7
    %v548 = vsub.s32 0, %v547
    %v549 = vrot.slane %v544, %v548
    %s551 = scalar_lea.vmem %s5, 2
    %v552 = vld [vmem:[%s551] sm:$0x1]
    %v554 = vlaneseq
    %v555 = vshrl.u32 %v554, 7
    %v556 = vsub.s32 0, %v555
    %v557 = vrot.slane %v552, %v556
    %v559 = vld [vmem:[%s1] sm:$0xff]
    %v561 = vsel %vm265, %v559, 0
    %563 = vmatprep.subr.mxu0 0.0
    %564 = vmatpush1.msra.mxu0 %v522
    %565 = vmatprep.subr.mxu0 0.0
    %566 = vmatpush1.msra.mxu0 %v523
    %567 = vmatprep.subr.mxu0 0.0
    %568 = vmatpush1.msra.mxu0 %v524
    %569 = vmatprep.subr.mxu0 0.0
    %570 = vmatpush1.msra.mxu0 %v525
    %571 = vmatprep.subr.mxu0 0.0
    %572 = vmatpush1.msra.mxu0 0.0
    %573 = vmatprep.subr.mxu0 0.0
    %574 = vmatpush1.msra.mxu0 0.0
    %575 = vmatprep.subr.mxu0 0.0
    %576 = vmatpush1.msra.mxu0 0.0
    %577 = vmatprep.subr.mxu0 0.0
    %578 = vmatpush1.msra.mxu0 0.0
    %579 = vmatprep.subr.mxu0 0.0
    %580 = vmatpush1.msra.mxu0 0.0
    %581 = vmatprep.subr.mxu0 0.0
    %582 = vmatpush1.msra.mxu0 0.0
    %583 = vmatprep.subr.mxu0 0.0
    %584 = vmatpush1.msra.mxu0 0.0
    %585 = vmatprep.subr.mxu0 0.0
    %586 = vmatpush1.msra.mxu0 0.0
    %587 = vmatprep.subr.mxu0 0.0
    %588 = vmatpush1.msra.mxu0 0.0
    %589 = vmatprep.subr.mxu0 0.0
    %590 = vmatpush1.msra.mxu0 0.0
    %591 = vmatprep.subr.mxu0 0.0
    %592 = vmatpush1.msra.mxu0 0.0
    %593 = vmatprep.subr.mxu0 0.0
    %594 = vmatpush1.msra.mxu0 0.0
    %595 = vmatprep.subr.mxu0 0.0
    %596 = vmatpush1.msra.mxu0 0.0
    %597 = vmatprep.subr.mxu0 0.0
    %598 = vmatpush1.msra.mxu0 0.0
    %599 = vmatprep.subr.mxu0 0.0
    %600 = vmatpush1.msra.mxu0 0.0
    %601 = vmatprep.subr.mxu0 0.0
    %602 = vmatpush1.msra.mxu0 0.0
    %603 = vmatprep.subr.mxu0 0.0
    %604 = vmatpush1.msra.mxu0 0.0
    %605 = vmatprep.subr.mxu0 0.0
    %606 = vmatpush1.msra.mxu0 0.0
    %607 = vmatprep.subr.mxu0 0.0
    %608 = vmatpush1.msra.mxu0 0.0
    %609 = vmatprep.subr.mxu0 0.0
    %610 = vmatpush1.msra.mxu0 0.0
    %611 = vmatprep.subr.mxu0 0.0
    %612 = vmatpush1.msra.mxu0 0.0
    %613 = vmatprep.subr.mxu0 0.0
    %614 = vmatpush1.msra.mxu0 0.0
    %615 = vmatprep.subr.mxu0 0.0
    %616 = vmatpush1.msra.mxu0 0.0
    %617 = vmatprep.subr.mxu0 0.0
    %618 = vmatpush1.msra.mxu0 0.0
    %619 = vmatprep.subr.mxu0 0.0
    %620 = vmatpush1.msra.mxu0 0.0
    %621 = vmatprep.subr.mxu0 0.0
    %622 = vmatpush1.msra.mxu0 0.0
    %623 = vmatprep.subr.mxu0 0.0
    %624 = vmatpush1.msra.mxu0 0.0
    %625 = vmatprep.subr.mxu0 0.0
    %626 = vmatpush1.msra.mxu0 0.0
    %627 = vmatprep.mubr.f32.mxu0 0.0
    %628 = vmatmul.mubr.f32.gmra.mrb[0].mxu0 %v561
    %v629 = vpop.f32.mrb[0].mxu0
    %v630 = vadd.f32 %v541, %v629
    %v631 = vpop.f32.mrb[0].mxu0
    %632 = vdwg.mxu0
    %633 = vmatprep.subr.mxu0 0.0
    %634 = vmatpush1.msra.mxu0 %v527
    %635 = vmatprep.subr.mxu0 0.0
    %636 = vmatpush1.msra.mxu0 %v528
    %637 = vmatprep.subr.mxu0 0.0
    %638 = vmatpush1.msra.mxu0 %v529
    %639 = vmatprep.subr.mxu0 0.0
    %640 = vmatpush1.msra.mxu0 %v530
    %641 = vmatprep.subr.mxu0 0.0
    %642 = vmatpush1.msra.mxu0 0.0
    %643 = vmatprep.subr.mxu0 0.0
    %644 = vmatpush1.msra.mxu0 0.0
    %645 = vmatprep.subr.mxu0 0.0
    %646 = vmatpush1.msra.mxu0 0.0
    %647 = vmatprep.subr.mxu0 0.0
    %648 = vmatpush1.msra.mxu0 0.0
    %649 = vmatprep.subr.mxu0 0.0
    %650 = vmatpush1.msra.mxu0 0.0
    %651 = vmatprep.subr.mxu0 0.0
    %652 = vmatpush1.msra.mxu0 0.0
    %653 = vmatprep.subr.mxu0 0.0
    %654 = vmatpush1.msra.mxu0 0.0
    %655 = vmatprep.subr.mxu0 0.0
    %656 = vmatpush1.msra.mxu0 0.0
    %657 = vmatprep.subr.mxu0 0.0
    %658 = vmatpush1.msra.mxu0 0.0
    %659 = vmatprep.subr.mxu0 0.0
    %660 = vmatpush1.msra.mxu0 0.0
    %661 = vmatprep.subr.mxu0 0.0
    %662 = vmatpush1.msra.mxu0 0.0
    %663 = vmatprep.subr.mxu0 0.0
    %664 = vmatpush1.msra.mxu0 0.0
    %665 = vmatprep.subr.mxu0 0.0
    %666 = vmatpush1.msra.mxu0 0.0
    %667 = vmatprep.subr.mxu0 0.0
    %668 = vmatpush1.msra.mxu0 0.0
    %669 = vmatprep.subr.mxu0 0.0
    %670 = vmatpush1.msra.mxu0 0.0
    %671 = vmatprep.subr.mxu0 0.0
    %672 = vmatpush1.msra.mxu0 0.0
    %673 = vmatprep.subr.mxu0 0.0
    %674 = vmatpush1.msra.mxu0 0.0
    %675 = vmatprep.subr.mxu0 0.0
    %676 = vmatpush1.msra.mxu0 0.0
    %677 = vmatprep.subr.mxu0 0.0
    %678 = vmatpush1.msra.mxu0 0.0
    %679 = vmatprep.subr.mxu0 0.0
    %680 = vmatpush1.msra.mxu0 0.0
    %681 = vmatprep.subr.mxu0 0.0
    %682 = vmatpush1.msra.mxu0 0.0
    %683 = vmatprep.subr.mxu0 0.0
    %684 = vmatpush1.msra.mxu0 0.0
    %685 = vmatprep.subr.mxu0 0.0
    %686 = vmatpush1.msra.mxu0 0.0
    %687 = vmatprep.subr.mxu0 0.0
    %688 = vmatpush1.msra.mxu0 0.0
    %689 = vmatprep.subr.mxu0 0.0
    %690 = vmatpush1.msra.mxu0 0.0
    %691 = vmatprep.subr.mxu0 0.0
    %692 = vmatpush1.msra.mxu0 0.0
    %693 = vmatprep.subr.mxu0 0.0
    %694 = vmatpush1.msra.mxu0 0.0
    %695 = vmatprep.subr.mxu0 0.0
    %696 = vmatpush1.msra.mxu0 0.0
    %697 = vmatprep.mubr.f32.mxu0 0.0
    %698 = vmatmul.mubr.f32.gmra.mrb[0].mxu0 %v561
    %v699 = vpop.f32.mrb[0].mxu0
    %v700 = vadd.f32 %v549, %v699
    %v701 = vpop.f32.mrb[0].mxu0
    %702 = vdwg.mxu0
    %703 = vmatprep.subr.mxu0 0.0
    %704 = vmatpush1.msra.mxu0 %v532
    %705 = vmatprep.subr.mxu0 0.0
    %706 = vmatpush1.msra.mxu0 %v533
    %707 = vmatprep.subr.mxu0 0.0
    %708 = vmatpush1.msra.mxu0 %v534
    %709 = vmatprep.subr.mxu0 0.0
    %710 = vmatpush1.msra.mxu0 %v535
    %711 = vmatprep.subr.mxu0 0.0
    %712 = vmatpush1.msra.mxu0 0.0
    %713 = vmatprep.subr.mxu0 0.0
    %714 = vmatpush1.msra.mxu0 0.0
    %715 = vmatprep.subr.mxu0 0.0
    %716 = vmatpush1.msra.mxu0 0.0
    %717 = vmatprep.subr.mxu0 0.0
    %718 = vmatpush1.msra.mxu0 0.0
    %719 = vmatprep.subr.mxu0 0.0
    %720 = vmatpush1.msra.mxu0 0.0
    %721 = vmatprep.subr.mxu0 0.0
    %722 = vmatpush1.msra.mxu0 0.0
    %723 = vmatprep.subr.mxu0 0.0
    %724 = vmatpush1.msra.mxu0 0.0
    %725 = vmatprep.subr.mxu0 0.0
    %726 = vmatpush1.msra.mxu0 0.0
    %727 = vmatprep.subr.mxu0 0.0
    %728 = vmatpush1.msra.mxu0 0.0
    %729 = vmatprep.subr.mxu0 0.0
    %730 = vmatpush1.msra.mxu0 0.0
    %731 = vmatprep.subr.mxu0 0.0
    %732 = vmatpush1.msra.mxu0 0.0
    %733 = vmatprep.subr.mxu0 0.0
    %734 = vmatpush1.msra.mxu0 0.0
    %735 = vmatprep.subr.mxu0 0.0
    %736 = vmatpush1.msra.mxu0 0.0
    %737 = vmatprep.subr.mxu0 0.0
    %738 = vmatpush1.msra.mxu0 0.0
    %739 = vmatprep.subr.mxu0 0.0
    %740 = vmatpush1.msra.mxu0 0.0
    %741 = vmatprep.subr.mxu0 0.0
    %742 = vmatpush1.msra.mxu0 0.0
    %743 = vmatprep.subr.mxu0 0.0
    %744 = vmatpush1.msra.mxu0 0.0
    %745 = vmatprep.subr.mxu0 0.0
    %746 = vmatpush1.msra.mxu0 0.0
    %747 = vmatprep.subr.mxu0 0.0
    %748 = vmatpush1.msra.mxu0 0.0
    %749 = vmatprep.subr.mxu0 0.0
    %750 = vmatpush1.msra.mxu0 0.0
    %751 = vmatprep.subr.mxu0 0.0
    %752 = vmatpush1.msra.mxu0 0.0
    %753 = vmatprep.subr.mxu0 0.0
    %754 = vmatpush1.msra.mxu0 0.0
    %755 = vmatprep.subr.mxu0 0.0
    %756 = vmatpush1.msra.mxu0 0.0
    %757 = vmatprep.subr.mxu0 0.0
    %758 = vmatpush1.msra.mxu0 0.0
    %759 = vmatprep.subr.mxu0 0.0
    %760 = vmatpush1.msra.mxu0 0.0
    %761 = vmatprep.subr.mxu0 0.0
    %762 = vmatpush1.msra.mxu0 0.0
    %763 = vmatprep.subr.mxu0 0.0
    %764 = vmatpush1.msra.mxu0 0.0
    %765 = vmatprep.subr.mxu0 0.0
    %766 = vmatpush1.msra.mxu0 0.0
    %767 = vmatprep.mubr.f32.mxu0 0.0
    %768 = vmatmul.mubr.f32.gmra.mrb[0].mxu0 %v561
    %v769 = vpop.f32.mrb[0].mxu0
    %v770 = vadd.f32 %v557, %v769
    %v771 = vpop.f32.mrb[0].mxu0
    %772 = vdwg.mxu0
    %v773 = vld [vmem:[#allocation2] sm:$0xff]
    %v774 = vadd.f32 %v773, %v630
    %v775 = vxor.u32 %v774, 2147483648
    %v776 = vmul.f32 %v775, 1.442695
    %v777 = vpow.pop %v776
    %v778 = vadd.f32 %v777, 1.0
    %v779 = vrcp.pop %v778
    %v780 = vmul.f32 1.0, %v779
    %v781 = vld [vmem:[#allocation3] sm:$0xff]
    %v782 = vadd.f32 %v781, %v700
    %v783 = vxor.u32 %v782, 2147483648
    %v784 = vmul.f32 %v783, 1.442695
    %v785 = vpow.pop %v784
    %v786 = vadd.f32 %v785, 1.0
    %v787 = vrcp.pop %v786
    %v788 = vmul.f32 1.0, %v787
    %v789 = vld [vmem:[#allocation4] sm:$0xff]
    %v790 = vmul.f32 %v780, %v770
    %v791 = vadd.f32 %v789, %v790
    %v792 = vtanh.pop %v791
    %v793 = vsub.f32 1.0, %v788
    %v794 = vmul.f32 %v793, %v792
    %v795 = vmul.f32 %v788, %v559
    %v796 = vadd.f32 %v794, %v795
    %797 = vst.msk [vmem:[#allocation5] sm:$0xff] %vm265, %v796
    %v799 = vsel %vm265, %v796, 0
    %801 = vmatprep.subr.mxu0 0.0
    %802 = vmatpush1.msra.mxu0 %v522
    %803 = vmatprep.subr.mxu0 0.0
    %804 = vmatpush1.msra.mxu0 %v523
    %805 = vmatprep.subr.mxu0 0.0
    %806 = vmatpush1.msra.mxu0 %v524
    %807 = vmatprep.subr.mxu0 0.0
    %808 = vmatpush1.msra.mxu0 %v525
    %809 = vmatprep.subr.mxu0 0.0
    %810 = vmatpush1.msra.mxu0 0.0
    %811 = vmatprep.subr.mxu0 0.0
    %812 = vmatpush1.msra.mxu0 0.0
    %813 = vmatprep.subr.mxu0 0.0
    %814 = vmatpush1.msra.mxu0 0.0
    %815 = vmatprep.subr.mxu0 0.0
    %816 = vmatpush1.msra.mxu0 0.0
    %817 = vmatprep.subr.mxu0 0.0
    %818 = vmatpush1.msra.mxu0 0.0
    %819 = vmatprep.subr.mxu0 0.0
    %820 = vmatpush1.msra.mxu0 0.0
    %821 = vmatprep.subr.mxu0 0.0
    %822 = vmatpush1.msra.mxu0 0.0
    %823 = vmatprep.subr.mxu0 0.0
    %824 = vmatpush1.msra.mxu0 0.0
    %825 = vmatprep.subr.mxu0 0.0
    %826 = vmatpush1.msra.mxu0 0.0
    %827 = vmatprep.subr.mxu0 0.0
    %828 = vmatpush1.msra.mxu0 0.0
    %829 = vmatprep.subr.mxu0 0.0
    %830 = vmatpush1.msra.mxu0 0.0
    %831 = vmatprep.subr.mxu0 0.0
    %832 = vmatpush1.msra.mxu0 0.0
    %833 = vmatprep.subr.mxu0 0.0
    %834 = vmatpush1.msra.mxu0 0.0
    %835 = vmatprep.subr.mxu0 0.0
    %836 = vmatpush1.msra.mxu0 0.0
    %837 = vmatprep.subr.mxu0 0.0
    %838 = vmatpush1.msra.mxu0 0.0
    %839 = vmatprep.subr.mxu0 0.0
    %840 = vmatpush1.msra.mxu0 0.0
    %841 = vmatprep.subr.mxu0 0.0
    %842 = vmatpush1.msra.mxu0 0.0
    %843 = vmatprep.subr.mxu0 0.0
    %844 = vmatpush1.msra.mxu0 0.0
    %845 = vmatprep.subr.mxu0 0.0
    %846 = vmatpush1.msra.mxu0 0.0
    %847 = vmatprep.subr.mxu0 0.0
    %848 = vmatpush1.msra.mxu0 0.0
    %849 = vmatprep.subr.mxu0 0.0
    %850 = vmatpush1.msra.mxu0 0.0
    %851 = vmatprep.subr.mxu0 0.0
    %852 = vmatpush1.msra.mxu0 0.0
    %853 = vmatprep.subr.mxu0 0.0
    %854 = vmatpush1.msra.mxu0 0.0
    %855 = vmatprep.subr.mxu0 0.0
    %856 = vmatpush1.msra.mxu0 0.0
    %857 = vmatprep.subr.mxu0 0.0
    %858 = vmatpush1.msra.mxu0 0.0
    %859 = vmatprep.subr.mxu0 0.0
    %860 = vmatpush1.msra.mxu0 0.0
    %861 = vmatprep.subr.mxu0 0.0
    %862 = vmatpush1.msra.mxu0 0.0
    %863 = vmatprep.subr.mxu0 0.0
    %864 = vmatpush1.msra.mxu0 0.0
    %865 = vmatprep.mubr.f32.mxu0 0.0
    %866 = vmatmul.mubr.f32.gmra.mrb[0].mxu0 %v799
    %v867 = vpop.f32.mrb[0].mxu0
    %v868 = vadd.f32 %v541, %v867
    %v869 = vpop.f32.mrb[0].mxu0
    %870 = vdwg.mxu0
    %871 = vmatprep.subr.mxu0 0.0
    %872 = vmatpush1.msra.mxu0 %v527
    %873 = vmatprep.subr.mxu0 0.0
    %874 = vmatpush1.msra.mxu0 %v528
    %875 = vmatprep.subr.mxu0 0.0
    %876 = vmatpush1.msra.mxu0 %v529
    %877 = vmatprep.subr.mxu0 0.0
    %878 = vmatpush1.msra.mxu0 %v530
    %879 = vmatprep.subr.mxu0 0.0
    %880 = vmatpush1.msra.mxu0 0.0
    %881 = vmatprep.subr.mxu0 0.0
    %882 = vmatpush1.msra.mxu0 0.0
    %883 = vmatprep.subr.mxu0 0.0
    %884 = vmatpush1.msra.mxu0 0.0
    %885 = vmatprep.subr.mxu0 0.0
    %886 = vmatpush1.msra.mxu0 0.0
    %887 = vmatprep.subr.mxu0 0.0
    %888 = vmatpush1.msra.mxu0 0.0
    %889 = vmatprep.subr.mxu0 0.0
    %890 = vmatpush1.msra.mxu0 0.0
    %891 = vmatprep.subr.mxu0 0.0
    %892 = vmatpush1.msra.mxu0 0.0
    %893 = vmatprep.subr.mxu0 0.0
    %894 = vmatpush1.msra.mxu0 0.0
    %895 = vmatprep.subr.mxu0 0.0
    %896 = vmatpush1.msra.mxu0 0.0
    %897 = vmatprep.subr.mxu0 0.0
    %898 = vmatpush1.msra.mxu0 0.0
    %899 = vmatprep.subr.mxu0 0.0
    %900 = vmatpush1.msra.mxu0 0.0
    %901 = vmatprep.subr.mxu0 0.0
    %902 = vmatpush1.msra.mxu0 0.0
    %903 = vmatprep.subr.mxu0 0.0
    %904 = vmatpush1.msra.mxu0 0.0
    %905 = vmatprep.subr.mxu0 0.0
    %906 = vmatpush1.msra.mxu0 0.0
    %907 = vmatprep.subr.mxu0 0.0
    %908 = vmatpush1.msra.mxu0 0.0
    %909 = vmatprep.subr.mxu0 0.0
    %910 = vmatpush1.msra.mxu0 0.0
    %911 = vmatprep.subr.mxu0 0.0
    %912 = vmatpush1.msra.mxu0 0.0
    %913 = vmatprep.subr.mxu0 0.0
    %914 = vmatpush1.msra.mxu0 0.0
    %915 = vmatprep.subr.mxu0 0.0
    %916 = vmatpush1.msra.mxu0 0.0
    %917 = vmatprep.subr.mxu0 0.0
    %918 = vmatpush1.msra.mxu0 0.0
    %919 = vmatprep.subr.mxu0 0.0
    %920 = vmatpush1.msra.mxu0 0.0
    %921 = vmatprep.subr.mxu0 0.0
    %922 = vmatpush1.msra.mxu0 0.0
    %923 = vmatprep.subr.mxu0 0.0
    %924 = vmatpush1.msra.mxu0 0.0
    %925 = vmatprep.subr.mxu0 0.0
    %926 = vmatpush1.msra.mxu0 0.0
    %927 = vmatprep.subr.mxu0 0.0
    %928 = vmatpush1.msra.mxu0 0.0
    %929 = vmatprep.subr.mxu0 0.0
    %930 = vmatpush1.msra.mxu0 0.0
    %931 = vmatprep.subr.mxu0 0.0
    %932 = vmatpush1.msra.mxu0 0.0
    %933 = vmatprep.subr.mxu0 0.0
    %934 = vmatpush1.msra.mxu0 0.0
    %935 = vmatprep.mubr.f32.mxu0 0.0
    %936 = vmatmul.mubr.f32.gmra.mrb[0].mxu0 %v799
    %v937 = vpop.f32.mrb[0].mxu0
    %v938 = vadd.f32 %v549, %v937
    %v939 = vpop.f32.mrb[0].mxu0
    %940 = vdwg.mxu0
    %941 = vmatprep.subr.mxu0 0.0
    %942 = vmatpush1.msra.mxu0 %v532
    %943 = vmatprep.subr.mxu0 0.0
    %944 = vmatpush1.msra.mxu0 %v533
    %945 = vmatprep.subr.mxu0 0.0
    %946 = vmatpush1.msra.mxu0 %v534
    %947 = vmatprep.subr.mxu0 0.0
    %948 = vmatpush1.msra.mxu0 %v535
    %949 = vmatprep.subr.mxu0 0.0
    %950 = vmatpush1.msra.mxu0 0.0
    %951 = vmatprep.subr.mxu0 0.0
    %952 = vmatpush1.msra.mxu0 0.0
    %953 = vmatprep.subr.mxu0 0.0
    %954 = vmatpush1.msra.mxu0 0.0
    %955 = vmatprep.subr.mxu0 0.0
    %956 = vmatpush1.msra.mxu0 0.0
    %957 = vmatprep.subr.mxu0 0.0
    %958 = vmatpush1.msra.mxu0 0.0
    %959 = vmatprep.subr.mxu0 0.0
    %960 = vmatpush1.msra.mxu0 0.0
    %961 = vmatprep.subr.mxu0 0.0
    %962 = vmatpush1.msra.mxu0 0.0
    %963 = vmatprep.subr.mxu0 0.0
    %964 = vmatpush1.msra.mxu0 0.0
    %965 = vmatprep.subr.mxu0 0.0
    %966 = vmatpush1.msra.mxu0 0.0
    %967 = vmatprep.subr.mxu0 0.0
    %968 = vmatpush1.msra.mxu0 0.0
    %969 = vmatprep.subr.mxu0 0.0
    %970 = vmatpush1.msra.mxu0 0.0
    %971 = vmatprep.subr.mxu0 0.0
    %972 = vmatpush1.msra.mxu0 0.0
    %973 = vmatprep.subr.mxu0 0.0
    %974 = vmatpush1.msra.mxu0 0.0
    %975 = vmatprep.subr.mxu0 0.0
    %976 = vmatpush1.msra.mxu0 0.0
    %977 = vmatprep.subr.mxu0 0.0
    %978 = vmatpush1.msra.mxu0 0.0
    %979 = vmatprep.subr.mxu0 0.0
    %980 = vmatpush1.msra.mxu0 0.0
    %981 = vmatprep.subr.mxu0 0.0
    %982 = vmatpush1.msra.mxu0 0.0
    %983 = vmatprep.subr.mxu0 0.0
    %984 = vmatpush1.msra.mxu0 0.0
    %985 = vmatprep.subr.mxu0 0.0
    %986 = vmatpush1.msra.mxu0 0.0
    %987 = vmatprep.subr.mxu0 0.0
    %988 = vmatpush1.msra.mxu0 0.0
    %989 = vmatprep.subr.mxu0 0.0
    %990 = vmatpush1.msra.mxu0 0.0
    %991 = vmatprep.subr.mxu0 0.0
    %992 = vmatpush1.msra.mxu0 0.0
    %993 = vmatprep.subr.mxu0 0.0
    %994 = vmatpush1.msra.mxu0 0.0
    %995 = vmatprep.subr.mxu0 0.0
    %996 = vmatpush1.msra.mxu0 0.0
    %997 = vmatprep.subr.mxu0 0.0
    %998 = vmatpush1.msra.mxu0 0.0
    %999 = vmatprep.subr.mxu0 0.0
    %1000 = vmatpush1.msra.mxu0 0.0
    %1001 = vmatprep.subr.mxu0 0.0
    %1002 = vmatpush1.msra.mxu0 0.0
    %1003 = vmatprep.subr.mxu0 0.0
    %1004 = vmatpush1.msra.mxu0 0.0
    %1005 = vmatprep.mubr.f32.mxu0 0.0
    %1006 = vmatmul.mubr.f32.gmra.mrb[0].mxu0 %v799
    %v1007 = vpop.f32.mrb[0].mxu0
    %v1008 = vadd.f32 %v557, %v1007
    %v1009 = vpop.f32.mrb[0].mxu0
    %1010 = vdwg.mxu0
    %s1011 = scalar_lea.vmem [#allocation2], 8
    %v1012 = vld [vmem:[%s1011] sm:$0xff]
    %v1013 = vadd.f32 %v1012, %v868
    %v1014 = vxor.u32 %v1013, 2147483648
    %v1015 = vmul.f32 %v1014, 1.442695
    %v1016 = vpow.pop %v1015
    %v1017 = vadd.f32 %v1016, 1.0
    %v1018 = vrcp.pop %v1017
    %v1019 = vmul.f32 1.0, %v1018
    %s1020 = scalar_lea.vmem [#allocation3], 8
    %v1021 = vld [vmem:[%s1020] sm:$0xff]
    %v1022 = vadd.f32 %v1021, %v938
    %v1023 = vxor.u32 %v1022, 2147483648
    %v1024 = vmul.f32 %v1023, 1.442695
    %v1025 = vpow.pop %v1024
    %v1026 = vadd.f32 %v1025, 1.0
    %v1027 = vrcp.pop %v1026
    %v1028 = vmul.f32 1.0, %v1027
    %s1029 = scalar_lea.vmem [#allocation4], 8
    %v1030 = vld [vmem:[%s1029] sm:$0xff]
    %v1031 = vmul.f32 %v1019, %v1008
    %v1032 = vadd.f32 %v1030, %v1031
    %v1033 = vtanh.pop %v1032
    %v1034 = vsub.f32 1.0, %v1028
    %v1035 = vmul.f32 %v1034, %v1033
    %v1036 = vmul.f32 %v1028, %v796
    %v1037 = vadd.f32 %v1035, %v1036
    %s1038 = scalar_lea.vmem [#allocation5], 8
    %1039 = vst.msk [vmem:[%s1038] sm:$0xff] %vm265, %v1037
    %v1041 = vsel %vm265, %v1037, 0
    %1043 = vmatprep.subr.mxu0 0.0
    %1044 = vmatpush1.msra.mxu0 %v522
    %1045 = vmatprep.subr.mxu0 0.0
    %1046 = vmatpush1.msra.mxu0 %v523
    %1047 = vmatprep.subr.mxu0 0.0
    %1048 = vmatpush1.msra.mxu0 %v524
    %1049 = vmatprep.subr.mxu0 0.0
    %1050 = vmatpush1.msra.mxu0 %v525
    %1051 = vmatprep.subr.mxu0 0.0
    %1052 = vmatpush1.msra.mxu0 0.0
    %1053 = vmatprep.subr.mxu0 0.0
    %1054 = vmatpush1.msra.mxu0 0.0
    %1055 = vmatprep.subr.mxu0 0.0
    %1056 = vmatpush1.msra.mxu0 0.0
    %1057 = vmatprep.subr.mxu0 0.0
    %1058 = vmatpush1.msra.mxu0 0.0
    %1059 = vmatprep.subr.mxu0 0.0
    %1060 = vmatpush1.msra.mxu0 0.0
    %1061 = vmatprep.subr.mxu0 0.0
    %1062 = vmatpush1.msra.mxu0 0.0
    %1063 = vmatprep.subr.mxu0 0.0
    %1064 = vmatpush1.msra.mxu0 0.0
    %1065 = vmatprep.subr.mxu0 0.0
    %1066 = vmatpush1.msra.mxu0 0.0
    %1067 = vmatprep.subr.mxu0 0.0
    %1068 = vmatpush1.msra.mxu0 0.0
    %1069 = vmatprep.subr.mxu0 0.0
    %1070 = vmatpush1.msra.mxu0 0.0
    %1071 = vmatprep.subr.mxu0 0.0
    %1072 = vmatpush1.msra.mxu0 0.0
    %1073 = vmatprep.subr.mxu0 0.0
    %1074 = vmatpush1.msra.mxu0 0.0
    %1075 = vmatprep.subr.mxu0 0.0
    %1076 = vmatpush1.msra.mxu0 0.0
    %1077 = vmatprep.subr.mxu0 0.0
    %1078 = vmatpush1.msra.mxu0 0.0
    %1079 = vmatprep.subr.mxu0 0.0
    %1080 = vmatpush1.msra.mxu0 0.0
    %1081 = vmatprep.subr.mxu0 0.0
    %1082 = vmatpush1.msra.mxu0 0.0
    %1083 = vmatprep.subr.mxu0 0.0
    %1084 = vmatpush1.msra.mxu0 0.0
    %1085 = vmatprep.subr.mxu0 0.0
    %1086 = vmatpush1.msra.mxu0 0.0
    %1087 = vmatprep.subr.mxu0 0.0
    %1088 = vmatpush1.msra.mxu0 0.0
    %1089 = vmatprep.subr.mxu0 0.0
    %1090 = vmatpush1.msra.mxu0 0.0
    %1091 = vmatprep.subr.mxu0 0.0
    %1092 = vmatpush1.msra.mxu0 0.0
    %1093 = vmatprep.subr.mxu0 0.0
    %1094 = vmatpush1.msra.mxu0 0.0
    %1095 = vmatprep.subr.mxu0 0.0
    %1096 = vmatpush1.msra.mxu0 0.0
    %1097 = vmatprep.subr.mxu0 0.0
    %1098 = vmatpush1.msra.mxu0 0.0
    %1099 = vmatprep.subr.mxu0 0.0
    %1100 = vmatpush1.msra.mxu0 0.0
    %1101 = vmatprep.subr.mxu0 0.0
    %1102 = vmatpush1.msra.mxu0 0.0
    %1103 = vmatprep.subr.mxu0 0.0
    %1104 = vmatpush1.msra.mxu0 0.0
    %1105 = vmatprep.subr.mxu0 0.0
    %1106 = vmatpush1.msra.mxu0 0.0
    %1107 = vmatprep.mubr.f32.mxu0 0.0
    %1108 = vmatmul.mubr.f32.gmra.mrb[0].mxu0 %v1041
    %v1109 = vpop.f32.mrb[0].mxu0
    %v1110 = vadd.f32 %v541, %v1109
    %v1111 = vpop.f32.mrb[0].mxu0
    %1112 = vdwg.mxu0
    %1113 = vmatprep.subr.mxu0 0.0
    %1114 = vmatpush1.msra.mxu0 %v527
    %1115 = vmatprep.subr.mxu0 0.0
    %1116 = vmatpush1.msra.mxu0 %v528
    %1117 = vmatprep.subr.mxu0 0.0
    %1118 = vmatpush1.msra.mxu0 %v529
    %1119 = vmatprep.subr.mxu0 0.0
    %1120 = vmatpush1.msra.mxu0 %v530
    %1121 = vmatprep.subr.mxu0 0.0
    %1122 = vmatpush1.msra.mxu0 0.0
    %1123 = vmatprep.subr.mxu0 0.0
    %1124 = vmatpush1.msra.mxu0 0.0
    %1125 = vmatprep.subr.mxu0 0.0
    %1126 = vmatpush1.msra.mxu0 0.0
    %1127 = vmatprep.subr.mxu0 0.0
    %1128 = vmatpush1.msra.mxu0 0.0
    %1129 = vmatprep.subr.mxu0 0.0
    %1130 = vmatpush1.msra.mxu0 0.0
    %1131 = vmatprep.subr.mxu0 0.0
    %1132 = vmatpush1.msra.mxu0 0.0
    %1133 = vmatprep.subr.mxu0 0.0
    %1134 = vmatpush1.msra.mxu0 0.0
    %1135 = vmatprep.subr.mxu0 0.0
    %1136 = vmatpush1.msra.mxu0 0.0
    %1137 = vmatprep.subr.mxu0 0.0
    %1138 = vmatpush1.msra.mxu0 0.0
    %1139 = vmatprep.subr.mxu0 0.0
    %1140 = vmatpush1.msra.mxu0 0.0
    %1141 = vmatprep.subr.mxu0 0.0
    %1142 = vmatpush1.msra.mxu0 0.0
    %1143 = vmatprep.subr.mxu0 0.0
    %1144 = vmatpush1.msra.mxu0 0.0
    %1145 = vmatprep.subr.mxu0 0.0
    %1146 = vmatpush1.msra.mxu0 0.0
    %1147 = vmatprep.subr.mxu0 0.0
    %1148 = vmatpush1.msra.mxu0 0.0
    %1149 = vmatprep.subr.mxu0 0.0
    %1150 = vmatpush1.msra.mxu0 0.0
    %1151 = vmatprep.subr.mxu0 0.0
    %1152 = vmatpush1.msra.mxu0 0.0
    %1153 = vmatprep.subr.mxu0 0.0
    %1154 = vmatpush1.msra.mxu0 0.0
    %1155 = vmatprep.subr.mxu0 0.0
    %1156 = vmatpush1.msra.mxu0 0.0
    %1157 = vmatprep.subr.mxu0 0.0
    %1158 = vmatpush1.msra.mxu0 0.0
    %1159 = vmatprep.subr.mxu0 0.0
    %1160 = vmatpush1.msra.mxu0 0.0
    %1161 = vmatprep.subr.mxu0 0.0
    %1162 = vmatpush1.msra.mxu0 0.0
    %1163 = vmatprep.subr.mxu0 0.0
    %1164 = vmatpush1.msra.mxu0 0.0
    %1165 = vmatprep.subr.mxu0 0.0
    %1166 = vmatpush1.msra.mxu0 0.0
    %1167 = vmatprep.subr.mxu0 0.0
    %1168 = vmatpush1.msra.mxu0 0.0
    %1169 = vmatprep.subr.mxu0 0.0
    %1170 = vmatpush1.msra.mxu0 0.0
    %1171 = vmatprep.subr.mxu0 0.0
    %1172 = vmatpush1.msra.mxu0 0.0
    %1173 = vmatprep.subr.mxu0 0.0
    %1174 = vmatpush1.msra.mxu0 0.0
    %1175 = vmatprep.subr.mxu0 0.0
    %1176 = vmatpush1.msra.mxu0 0.0
    %1177 = vmatprep.mubr.f32.mxu0 0.0
    %1178 = vmatmul.mubr.f32.gmra.mrb[0].mxu0 %v1041
    %v1179 = vpop.f32.mrb[0].mxu0
    %v1180 = vadd.f32 %v549, %v1179
    %v1181 = vpop.f32.mrb[0].mxu0
    %1182 = vdwg.mxu0
    %1183 = vmatprep.subr.mxu0 0.0
    %1184 = vmatpush1.msra.mxu0 %v532
    %1185 = vmatprep.subr.mxu0 0.0
    %1186 = vmatpush1.msra.mxu0 %v533
    %1187 = vmatprep.subr.mxu0 0.0
    %1188 = vmatpush1.msra.mxu0 %v534
    %1189 = vmatprep.subr.mxu0 0.0
    %1190 = vmatpush1.msra.mxu0 %v535
    %1191 = vmatprep.subr.mxu0 0.0
    %1192 = vmatpush1.msra.mxu0 0.0
    %1193 = vmatprep.subr.mxu0 0.0
    %1194 = vmatpush1.msra.mxu0 0.0
    %1195 = vmatprep.subr.mxu0 0.0
    %1196 = vmatpush1.msra.mxu0 0.0
    %1197 = vmatprep.subr.mxu0 0.0
    %1198 = vmatpush1.msra.mxu0 0.0
    %1199 = vmatprep.subr.mxu0 0.0
    %1200 = vmatpush1.msra.mxu0 0.0
    %1201 = vmatprep.subr.mxu0 0.0
    %1202 = vmatpush1.msra.mxu0 0.0
    %1203 = vmatprep.subr.mxu0 0.0
    %1204 = vmatpush1.msra.mxu0 0.0
    %1205 = vmatprep.subr.mxu0 0.0
    %1206 = vmatpush1.msra.mxu0 0.0
    %1207 = vmatprep.subr.mxu0 0.0
    %1208 = vmatpush1.msra.mxu0 0.0
    %1209 = vmatprep.subr.mxu0 0.0
    %1210 = vmatpush1.msra.mxu0 0.0
    %1211 = vmatprep.subr.mxu0 0.0
    %1212 = vmatpush1.msra.mxu0 0.0
    %1213 = vmatprep.subr.mxu0 0.0
    %1214 = vmatpush1.msra.mxu0 0.0
    %1215 = vmatprep.subr.mxu0 0.0
    %1216 = vmatpush1.msra.mxu0 0.0
    %1217 = vmatprep.subr.mxu0 0.0
    %1218 = vmatpush1.msra.mxu0 0.0
    %1219 = vmatprep.subr.mxu0 0.0
    %1220 = vmatpush1.msra.mxu0 0.0
    %1221 = vmatprep.subr.mxu0 0.0
    %1222 = vmatpush1.msra.mxu0 0.0
    %1223 = vmatprep.subr.mxu0 0.0
    %1224 = vmatpush1.msra.mxu0 0.0
    %1225 = vmatprep.subr.mxu0 0.0
    %1226 = vmatpush1.msra.mxu0 0.0
    %1227 = vmatprep.subr.mxu0 0.0
    %1228 = vmatpush1.msra.mxu0 0.0
    %1229 = vmatprep.subr.mxu0 0.0
    %1230 = vmatpush1.msra.mxu0 0.0
    %1231 = vmatprep.subr.mxu0 0.0
    %1232 = vmatpush1.msra.mxu0 0.0
    %1233 = vmatprep.subr.mxu0 0.0
    %1234 = vmatpush1.msra.mxu0 0.0
    %1235 = vmatprep.subr.mxu0 0.0
    %1236 = vmatpush1.msra.mxu0 0.0
    %1237 = vmatprep.subr.mxu0 0.0
    %1238 = vmatpush1.msra.mxu0 0.0
    %1239 = vmatprep.subr.mxu0 0.0
    %1240 = vmatpush1.msra.mxu0 0.0
    %1241 = vmatprep.subr.mxu0 0.0
    %1242 = vmatpush1.msra.mxu0 0.0
    %1243 = vmatprep.subr.mxu0 0.0
    %1244 = vmatpush1.msra.mxu0 0.0
    %1245 = vmatprep.subr.mxu0 0.0
    %1246 = vmatpush1.msra.mxu0 0.0
    %1247 = vmatprep.mubr.f32.mxu0 0.0
    %1248 = vmatmul.mubr.f32.gmra.mrb[0].mxu0 %v1041
    %v1249 = vpop.f32.mrb[0].mxu0
    %v1250 = vadd.f32 %v557, %v1249
    %v1251 = vpop.f32.mrb[0].mxu0
    %1252 = vdwg.mxu0
    %s1253 = scalar_lea.vmem [#allocation2], 16
    %v1254 = vld [vmem:[%s1253] sm:$0xff]
    %v1255 = vadd.f32 %v1254, %v1110
    %v1256 = vxor.u32 %v1255, 2147483648
    %v1257 = vmul.f32 %v1256, 1.442695
    %v1258 = vpow.pop %v1257
    %v1259 = vadd.f32 %v1258, 1.0
    %v1260 = vrcp.pop %v1259
    %v1261 = vmul.f32 1.0, %v1260
    %s1262 = scalar_lea.vmem [#allocation3], 16
    %v1263 = vld [vmem:[%s1262] sm:$0xff]
    %v1264 = vadd.f32 %v1263, %v1180
    %v1265 = vxor.u32 %v1264, 2147483648
    %v1266 = vmul.f32 %v1265, 1.442695
    %v1267 = vpow.pop %v1266
    %v1268 = vadd.f32 %v1267, 1.0
    %v1269 = vrcp.pop %v1268
    %v1270 = vmul.f32 1.0, %v1269
    %s1271 = scalar_lea.vmem [#allocation4], 16
    %v1272 = vld [vmem:[%s1271] sm:$0xff]
    %v1273 = vmul.f32 %v1261, %v1250
    %v1274 = vadd.f32 %v1272, %v1273
    %v1275 = vtanh.pop %v1274
    %v1276 = vsub.f32 1.0, %v1270
    %v1277 = vmul.f32 %v1276, %v1275
    %v1278 = vmul.f32 %v1270, %v1037
    %v1279 = vadd.f32 %v1277, %v1278
    %s1280 = scalar_lea.vmem [#allocation5], 16
    %1281 = vst.msk [vmem:[%s1280] sm:$0xff] %vm265, %v1279
    %v1283 = vsel %vm265, %v1279, 0
    %1285 = vmatprep.subr.mxu0 0.0
    %1286 = vmatpush1.msra.mxu0 %v522
    %1287 = vmatprep.subr.mxu0 0.0
    %1288 = vmatpush1.msra.mxu0 %v523
    %1289 = vmatprep.subr.mxu0 0.0
    %1290 = vmatpush1.msra.mxu0 %v524
    %1291 = vmatprep.subr.mxu0 0.0
    %1292 = vmatpush1.msra.mxu0 %v525
    %1293 = vmatprep.subr.mxu0 0.0
    %1294 = vmatpush1.msra.mxu0 0.0
    %1295 = vmatprep.subr.mxu0 0.0
    %1296 = vmatpush1.msra.mxu0 0.0
    %1297 = vmatprep.subr.mxu0 0.0
    %1298 = vmatpush1.msra.mxu0 0.0
    %1299 = vmatprep.subr.mxu0 0.0
    %1300 = vmatpush1.msra.mxu0 0.0
    %1301 = vmatprep.subr.mxu0 0.0
    %1302 = vmatpush1.msra.mxu0 0.0
    %1303 = vmatprep.subr.mxu0 0.0
    %1304 = vmatpush1.msra.mxu0 0.0
    %1305 = vmatprep.subr.mxu0 0.0
    %1306 = vmatpush1.msra.mxu0 0.0
    %1307 = vmatprep.subr.mxu0 0.0
    %1308 = vmatpush1.msra.mxu0 0.0
    %1309 = vmatprep.subr.mxu0 0.0
    %1310 = vmatpush1.msra.mxu0 0.0
    %1311 = vmatprep.subr.mxu0 0.0
    %1312 = vmatpush1.msra.mxu0 0.0
    %1313 = vmatprep.subr.mxu0 0.0
    %1314 = vmatpush1.msra.mxu0 0.0
    %1315 = vmatprep.subr.mxu0 0.0
    %1316 = vmatpush1.msra.mxu0 0.0
    %1317 = vmatprep.subr.mxu0 0.0
    %1318 = vmatpush1.msra.mxu0 0.0
    %1319 = vmatprep.subr.mxu0 0.0
    %1320 = vmatpush1.msra.mxu0 0.0
    %1321 = vmatprep.subr.mxu0 0.0
    %1322 = vmatpush1.msra.mxu0 0.0
    %1323 = vmatprep.subr.mxu0 0.0
    %1324 = vmatpush1.msra.mxu0 0.0
    %1325 = vmatprep.subr.mxu0 0.0
    %1326 = vmatpush1.msra.mxu0 0.0
    %1327 = vmatprep.subr.mxu0 0.0
    %1328 = vmatpush1.msra.mxu0 0.0
    %1329 = vmatprep.subr.mxu0 0.0
    %1330 = vmatpush1.msra.mxu0 0.0
    %1331 = vmatprep.subr.mxu0 0.0
    %1332 = vmatpush1.msra.mxu0 0.0
    %1333 = vmatprep.subr.mxu0 0.0
    %1334 = vmatpush1.msra.mxu0 0.0
    %1335 = vmatprep.subr.mxu0 0.0
    %1336 = vmatpush1.msra.mxu0 0.0
    %1337 = vmatprep.subr.mxu0 0.0
    %1338 = vmatpush1.msra.mxu0 0.0
    %1339 = vmatprep.subr.mxu0 0.0
    %1340 = vmatpush1.msra.mxu0 0.0
    %1341 = vmatprep.subr.mxu0 0.0
    %1342 = vmatpush1.msra.mxu0 0.0
    %1343 = vmatprep.subr.mxu0 0.0
    %1344 = vmatpush1.msra.mxu0 0.0
    %1345 = vmatprep.subr.mxu0 0.0
    %1346 = vmatpush1.msra.mxu0 0.0
    %1347 = vmatprep.subr.mxu0 0.0
    %1348 = vmatpush1.msra.mxu0 0.0
    %1349 = vmatprep.mubr.f32.mxu0 0.0
    %1350 = vmatmul.mubr.f32.gmra.mrb[0].mxu0 %v1283
    %v1351 = vpop.f32.mrb[0].mxu0
    %v1352 = vadd.f32 %v541, %v1351
    %v1353 = vpop.f32.mrb[0].mxu0
    %1354 = vdwg.mxu0
    %1355 = vmatprep.subr.mxu0 0.0
    %1356 = vmatpush1.msra.mxu0 %v527
    %1357 = vmatprep.subr.mxu0 0.0
    %1358 = vmatpush1.msra.mxu0 %v528
    %1359 = vmatprep.subr.mxu0 0.0
    %1360 = vmatpush1.msra.mxu0 %v529
    %1361 = vmatprep.subr.mxu0 0.0
    %1362 = vmatpush1.msra.mxu0 %v530
    %1363 = vmatprep.subr.mxu0 0.0
    %1364 = vmatpush1.msra.mxu0 0.0
    %1365 = vmatprep.subr.mxu0 0.0
    %1366 = vmatpush1.msra.mxu0 0.0
    %1367 = vmatprep.subr.mxu0 0.0
    %1368 = vmatpush1.msra.mxu0 0.0
    %1369 = vmatprep.subr.mxu0 0.0
    %1370 = vmatpush1.msra.mxu0 0.0
    %1371 = vmatprep.subr.mxu0 0.0
    %1372 = vmatpush1.msra.mxu0 0.0
    %1373 = vmatprep.subr.mxu0 0.0
    %1374 = vmatpush1.msra.mxu0 0.0
    %1375 = vmatprep.subr.mxu0 0.0
    %1376 = vmatpush1.msra.mxu0 0.0
    %1377 = vmatprep.subr.mxu0 0.0
    %1378 = vmatpush1.msra.mxu0 0.0
    %1379 = vmatprep.subr.mxu0 0.0
    %1380 = vmatpush1.msra.mxu0 0.0
    %1381 = vmatprep.subr.mxu0 0.0
    %1382 = vmatpush1.msra.mxu0 0.0
    %1383 = vmatprep.subr.mxu0 0.0
    %1384 = vmatpush1.msra.mxu0 0.0
    %1385 = vmatprep.subr.mxu0 0.0
    %1386 = vmatpush1.msra.mxu0 0.0
    %1387 = vmatprep.subr.mxu0 0.0
    %1388 = vmatpush1.msra.mxu0 0.0
    %1389 = vmatprep.subr.mxu0 0.0
    %1390 = vmatpush1.msra.mxu0 0.0
    %1391 = vmatprep.subr.mxu0 0.0
    %1392 = vmatpush1.msra.mxu0 0.0
    %1393 = vmatprep.subr.mxu0 0.0
    %1394 = vmatpush1.msra.mxu0 0.0
    %1395 = vmatprep.subr.mxu0 0.0
    %1396 = vmatpush1.msra.mxu0 0.0
    %1397 = vmatprep.subr.mxu0 0.0
    %1398 = vmatpush1.msra.mxu0 0.0
    %1399 = vmatprep.subr.mxu0 0.0
    %1400 = vmatpush1.msra.mxu0 0.0
    %1401 = vmatprep.subr.mxu0 0.0
    %1402 = vmatpush1.msra.mxu0 0.0
    %1403 = vmatprep.subr.mxu0 0.0
    %1404 = vmatpush1.msra.mxu0 0.0
    %1405 = vmatprep.subr.mxu0 0.0
    %1406 = vmatpush1.msra.mxu0 0.0
    %1407 = vmatprep.subr.mxu0 0.0
    %1408 = vmatpush1.msra.mxu0 0.0
    %1409 = vmatprep.subr.mxu0 0.0
    %1410 = vmatpush1.msra.mxu0 0.0
    %1411 = vmatprep.subr.mxu0 0.0
    %1412 = vmatpush1.msra.mxu0 0.0
    %1413 = vmatprep.subr.mxu0 0.0
    %1414 = vmatpush1.msra.mxu0 0.0
    %1415 = vmatprep.subr.mxu0 0.0
    %1416 = vmatpush1.msra.mxu0 0.0
    %1417 = vmatprep.subr.mxu0 0.0
    %1418 = vmatpush1.msra.mxu0 0.0
    %1419 = vmatprep.mubr.f32.mxu0 0.0
    %1420 = vmatmul.mubr.f32.gmra.mrb[0].mxu0 %v1283
    %v1421 = vpop.f32.mrb[0].mxu0
    %v1422 = vadd.f32 %v549, %v1421
    %v1423 = vpop.f32.mrb[0].mxu0
    %1424 = vdwg.mxu0
    %1425 = vmatprep.subr.mxu0 0.0
    %1426 = vmatpush1.msra.mxu0 %v532
    %1427 = vmatprep.subr.mxu0 0.0
    %1428 = vmatpush1.msra.mxu0 %v533
    %1429 = vmatprep.subr.mxu0 0.0
    %1430 = vmatpush1.msra.mxu0 %v534
    %1431 = vmatprep.subr.mxu0 0.0
    %1432 = vmatpush1.msra.mxu0 %v535
    %1433 = vmatprep.subr.mxu0 0.0
    %1434 = vmatpush1.msra.mxu0 0.0
    %1435 = vmatprep.subr.mxu0 0.0
    %1436 = vmatpush1.msra.mxu0 0.0
    %1437 = vmatprep.subr.mxu0 0.0
    %1438 = vmatpush1.msra.mxu0 0.0
    %1439 = vmatprep.subr.mxu0 0.0
    %1440 = vmatpush1.msra.mxu0 0.0
    %1441 = vmatprep.subr.mxu0 0.0
    %1442 = vmatpush1.msra.mxu0 0.0
    %1443 = vmatprep.subr.mxu0 0.0
    %1444 = vmatpush1.msra.mxu0 0.0
    %1445 = vmatprep.subr.mxu0 0.0
    %1446 = vmatpush1.msra.mxu0 0.0
    %1447 = vmatprep.subr.mxu0 0.0
    %1448 = vmatpush1.msra.mxu0 0.0
    %1449 = vmatprep.subr.mxu0 0.0
    %1450 = vmatpush1.msra.mxu0 0.0
    %1451 = vmatprep.subr.mxu0 0.0
    %1452 = vmatpush1.msra.mxu0 0.0
    %1453 = vmatprep.subr.mxu0 0.0
    %1454 = vmatpush1.msra.mxu0 0.0
    %1455 = vmatprep.subr.mxu0 0.0
    %1456 = vmatpush1.msra.mxu0 0.0
    %1457 = vmatprep.subr.mxu0 0.0
    %1458 = vmatpush1.msra.mxu0 0.0
    %1459 = vmatprep.subr.mxu0 0.0
    %1460 = vmatpush1.msra.mxu0 0.0
    %1461 = vmatprep.subr.mxu0 0.0
    %1462 = vmatpush1.msra.mxu0 0.0
    %1463 = vmatprep.subr.mxu0 0.0
    %1464 = vmatpush1.msra.mxu0 0.0
    %1465 = vmatprep.subr.mxu0 0.0
    %1466 = vmatpush1.msra.mxu0 0.0
    %1467 = vmatprep.subr.mxu0 0.0
    %1468 = vmatpush1.msra.mxu0 0.0
    %1469 = vmatprep.subr.mxu0 0.0
    %1470 = vmatpush1.msra.mxu0 0.0
    %1471 = vmatprep.subr.mxu0 0.0
    %1472 = vmatpush1.msra.mxu0 0.0
    %1473 = vmatprep.subr.mxu0 0.0
    %1474 = vmatpush1.msra.mxu0 0.0
    %1475 = vmatprep.subr.mxu0 0.0
    %1476 = vmatpush1.msra.mxu0 0.0
    %1477 = vmatprep.subr.mxu0 0.0
    %1478 = vmatpush1.msra.mxu0 0.0
    %1479 = vmatprep.subr.mxu0 0.0
    %1480 = vmatpush1.msra.mxu0 0.0
    %1481 = vmatprep.subr.mxu0 0.0
    %1482 = vmatpush1.msra.mxu0 0.0
    %1483 = vmatprep.subr.mxu0 0.0
    %1484 = vmatpush1.msra.mxu0 0.0
    %1485 = vmatprep.subr.mxu0 0.0
    %1486 = vmatpush1.msra.mxu0 0.0
    %1487 = vmatprep.subr.mxu0 0.0
    %1488 = vmatpush1.msra.mxu0 0.0
    %1489 = vmatprep.mubr.f32.mxu0 0.0
    %1490 = vmatmul.mubr.f32.gmra.mrb[0].mxu0 %v1283
    %v1491 = vpop.f32.mrb[0].mxu0
    %v1492 = vadd.f32 %v557, %v1491
    %v1493 = vpop.f32.mrb[0].mxu0
    %1494 = vdwg.mxu0
    %s1495 = scalar_lea.vmem [#allocation2], 24
    %v1496 = vld [vmem:[%s1495] sm:$0xff]
    %v1497 = vadd.f32 %v1496, %v1352
    %v1498 = vxor.u32 %v1497, 2147483648
    %v1499 = vmul.f32 %v1498, 1.442695
    %v1500 = vpow.pop %v1499
    %v1501 = vadd.f32 %v1500, 1.0
    %v1502 = vrcp.pop %v1501
    %v1503 = vmul.f32 1.0, %v1502
    %s1504 = scalar_lea.vmem [#allocation3], 24
    %v1505 = vld [vmem:[%s1504] sm:$0xff]
    %v1506 = vadd.f32 %v1505, %v1422
    %v1507 = vxor.u32 %v1506, 2147483648
    %v1508 = vmul.f32 %v1507, 1.442695
    %v1509 = vpow.pop %v1508
    %v1510 = vadd.f32 %v1509, 1.0
    %v1511 = vrcp.pop %v1510
    %v1512 = vmul.f32 1.0, %v1511
    %s1513 = scalar_lea.vmem [#allocation4], 24
    %v1514 = vld [vmem:[%s1513] sm:$0xff]
    %v1515 = vmul.f32 %v1503, %v1492
    %v1516 = vadd.f32 %v1514, %v1515
    %v1517 = vtanh.pop %v1516
    %v1518 = vsub.f32 1.0, %v1512
    %v1519 = vmul.f32 %v1518, %v1517
    %v1520 = vmul.f32 %v1512, %v1279
    %v1521 = vadd.f32 %v1519, %v1520
    %s1522 = scalar_lea.vmem [#allocation5], 24
    %1523 = vst.msk [vmem:[%s1522] sm:$0xff] %vm265, %v1521
    %v1525 = vsel %vm265, %v1521, 0
    %1527 = vmatprep.subr.mxu0 0.0
    %1528 = vmatpush1.msra.mxu0 %v522
    %1529 = vmatprep.subr.mxu0 0.0
    %1530 = vmatpush1.msra.mxu0 %v523
    %1531 = vmatprep.subr.mxu0 0.0
    %1532 = vmatpush1.msra.mxu0 %v524
    %1533 = vmatprep.subr.mxu0 0.0
    %1534 = vmatpush1.msra.mxu0 %v525
    %1535 = vmatprep.subr.mxu0 0.0
    %1536 = vmatpush1.msra.mxu0 0.0
    %1537 = vmatprep.subr.mxu0 0.0
    %1538 = vmatpush1.msra.mxu0 0.0
    %1539 = vmatprep.subr.mxu0 0.0
    %1540 = vmatpush1.msra.mxu0 0.0
    %1541 = vmatprep.subr.mxu0 0.0
    %1542 = vmatpush1.msra.mxu0 0.0
    %1543 = vmatprep.subr.mxu0 0.0
    %1544 = vmatpush1.msra.mxu0 0.0
    %1545 = vmatprep.subr.mxu0 0.0
    %1546 = vmatpush1.msra.mxu0 0.0
    %1547 = vmatprep.subr.mxu0 0.0
    %1548 = vmatpush1.msra.mxu0 0.0
    %1549 = vmatprep.subr.mxu0 0.0
    %1550 = vmatpush1.msra.mxu0 0.0
    %1551 = vmatprep.subr.mxu0 0.0
    %1552 = vmatpush1.msra.mxu0 0.0
    %1553 = vmatprep.subr.mxu0 0.0
    %1554 = vmatpush1.msra.mxu0 0.0
    %1555 = vmatprep.subr.mxu0 0.0
    %1556 = vmatpush1.msra.mxu0 0.0
    %1557 = vmatprep.subr.mxu0 0.0
    %1558 = vmatpush1.msra.mxu0 0.0
    %1559 = vmatprep.subr.mxu0 0.0
    %1560 = vmatpush1.msra.mxu0 0.0
    %1561 = vmatprep.subr.mxu0 0.0
    %1562 = vmatpush1.msra.mxu0 0.0
    %1563 = vmatprep.subr.mxu0 0.0
    %1564 = vmatpush1.msra.mxu0 0.0
    %1565 = vmatprep.subr.mxu0 0.0
    %1566 = vmatpush1.msra.mxu0 0.0
    %1567 = vmatprep.subr.mxu0 0.0
    %1568 = vmatpush1.msra.mxu0 0.0
    %1569 = vmatprep.subr.mxu0 0.0
    %1570 = vmatpush1.msra.mxu0 0.0
    %1571 = vmatprep.subr.mxu0 0.0
    %1572 = vmatpush1.msra.mxu0 0.0
    %1573 = vmatprep.subr.mxu0 0.0
    %1574 = vmatpush1.msra.mxu0 0.0
    %1575 = vmatprep.subr.mxu0 0.0
    %1576 = vmatpush1.msra.mxu0 0.0
    %1577 = vmatprep.subr.mxu0 0.0
    %1578 = vmatpush1.msra.mxu0 0.0
    %1579 = vmatprep.subr.mxu0 0.0
    %1580 = vmatpush1.msra.mxu0 0.0
    %1581 = vmatprep.subr.mxu0 0.0
    %1582 = vmatpush1.msra.mxu0 0.0
    %1583 = vmatprep.subr.mxu0 0.0
    %1584 = vmatpush1.msra.mxu0 0.0
    %1585 = vmatprep.subr.mxu0 0.0
    %1586 = vmatpush1.msra.mxu0 0.0
    %1587 = vmatprep.subr.mxu0 0.0
    %1588 = vmatpush1.msra.mxu0 0.0
    %1589 = vmatprep.subr.mxu0 0.0
    %1590 = vmatpush1.msra.mxu0 0.0
    %1591 = vmatprep.mubr.f32.mxu0 0.0
    %1592 = vmatmul.mubr.f32.gmra.mrb[0].mxu0 %v1525
    %v1593 = vpop.f32.mrb[0].mxu0
    %v1594 = vadd.f32 %v541, %v1593
    %v1595 = vpop.f32.mrb[0].mxu0
    %1596 = vdwg.mxu0
    %1597 = vmatprep.subr.mxu0 0.0
    %1598 = vmatpush1.msra.mxu0 %v527
    %1599 = vmatprep.subr.mxu0 0.0
    %1600 = vmatpush1.msra.mxu0 %v528
    %1601 = vmatprep.subr.mxu0 0.0
    %1602 = vmatpush1.msra.mxu0 %v529
    %1603 = vmatprep.subr.mxu0 0.0
    %1604 = vmatpush1.msra.mxu0 %v530
    %1605 = vmatprep.subr.mxu0 0.0
    %1606 = vmatpush1.msra.mxu0 0.0
    %1607 = vmatprep.subr.mxu0 0.0
    %1608 = vmatpush1.msra.mxu0 0.0
    %1609 = vmatprep.subr.mxu0 0.0
    %1610 = vmatpush1.msra.mxu0 0.0
    %1611 = vmatprep.subr.mxu0 0.0
    %1612 = vmatpush1.msra.mxu0 0.0
    %1613 = vmatprep.subr.mxu0 0.0
    %1614 = vmatpush1.msra.mxu0 0.0
    %1615 = vmatprep.subr.mxu0 0.0
    %1616 = vmatpush1.msra.mxu0 0.0
    %1617 = vmatprep.subr.mxu0 0.0
    %1618 = vmatpush1.msra.mxu0 0.0
    %1619 = vmatprep.subr.mxu0 0.0
    %1620 = vmatpush1.msra.mxu0 0.0
    %1621 = vmatprep.subr.mxu0 0.0
    %1622 = vmatpush1.msra.mxu0 0.0
    %1623 = vmatprep.subr.mxu0 0.0
    %1624 = vmatpush1.msra.mxu0 0.0
    %1625 = vmatprep.subr.mxu0 0.0
    %1626 = vmatpush1.msra.mxu0 0.0
    %1627 = vmatprep.subr.mxu0 0.0
    %1628 = vmatpush1.msra.mxu0 0.0
    %1629 = vmatprep.subr.mxu0 0.0
    %1630 = vmatpush1.msra.mxu0 0.0
    %1631 = vmatprep.subr.mxu0 0.0
    %1632 = vmatpush1.msra.mxu0 0.0
    %1633 = vmatprep.subr.mxu0 0.0
    %1634 = vmatpush1.msra.mxu0 0.0
    %1635 = vmatprep.subr.mxu0 0.0
    %1636 = vmatpush1.msra.mxu0 0.0
    %1637 = vmatprep.subr.mxu0 0.0
    %1638 = vmatpush1.msra.mxu0 0.0
    %1639 = vmatprep.subr.mxu0 0.0
    %1640 = vmatpush1.msra.mxu0 0.0
    %1641 = vmatprep.subr.mxu0 0.0
    %1642 = vmatpush1.msra.mxu0 0.0
    %1643 = vmatprep.subr.mxu0 0.0
    %1644 = vmatpush1.msra.mxu0 0.0
    %1645 = vmatprep.subr.mxu0 0.0
    %1646 = vmatpush1.msra.mxu0 0.0
    %1647 = vmatprep.subr.mxu0 0.0
    %1648 = vmatpush1.msra.mxu0 0.0
    %1649 = vmatprep.subr.mxu0 0.0
    %1650 = vmatpush1.msra.mxu0 0.0
    %1651 = vmatprep.subr.mxu0 0.0
    %1652 = vmatpush1.msra.mxu0 0.0
    %1653 = vmatprep.subr.mxu0 0.0
    %1654 = vmatpush1.msra.mxu0 0.0
    %1655 = vmatprep.subr.mxu0 0.0
    %1656 = vmatpush1.msra.mxu0 0.0
    %1657 = vmatprep.subr.mxu0 0.0
    %1658 = vmatpush1.msra.mxu0 0.0
    %1659 = vmatprep.subr.mxu0 0.0
    %1660 = vmatpush1.msra.mxu0 0.0
    %1661 = vmatprep.mubr.f32.mxu0 0.0
    %1662 = vmatmul.mubr.f32.gmra.mrb[0].mxu0 %v1525
    %v1663 = vpop.f32.mrb[0].mxu0
    %v1664 = vadd.f32 %v549, %v1663
    %v1665 = vpop.f32.mrb[0].mxu0
    %1666 = vdwg.mxu0
    %1667 = vmatprep.subr.mxu0 0.0
    %1668 = vmatpush1.msra.mxu0 %v532
    %1669 = vmatprep.subr.mxu0 0.0
    %1670 = vmatpush1.msra.mxu0 %v533
    %1671 = vmatprep.subr.mxu0 0.0
    %1672 = vmatpush1.msra.mxu0 %v534
    %1673 = vmatprep.subr.mxu0 0.0
    %1674 = vmatpush1.msra.mxu0 %v535
    %1675 = vmatprep.subr.mxu0 0.0
    %1676 = vmatpush1.msra.mxu0 0.0
    %1677 = vmatprep.subr.mxu0 0.0
    %1678 = vmatpush1.msra.mxu0 0.0
    %1679 = vmatprep.subr.mxu0 0.0
    %1680 = vmatpush1.msra.mxu0 0.0
    %1681 = vmatprep.subr.mxu0 0.0
    %1682 = vmatpush1.msra.mxu0 0.0
    %1683 = vmatprep.subr.mxu0 0.0
    %1684 = vmatpush1.msra.mxu0 0.0
    %1685 = vmatprep.subr.mxu0 0.0
    %1686 = vmatpush1.msra.mxu0 0.0
    %1687 = vmatprep.subr.mxu0 0.0
    %1688 = vmatpush1.msra.mxu0 0.0
    %1689 = vmatprep.subr.mxu0 0.0
    %1690 = vmatpush1.msra.mxu0 0.0
    %1691 = vmatprep.subr.mxu0 0.0
    %1692 = vmatpush1.msra.mxu0 0.0
    %1693 = vmatprep.subr.mxu0 0.0
    %1694 = vmatpush1.msra.mxu0 0.0
    %1695 = vmatprep.subr.mxu0 0.0
    %1696 = vmatpush1.msra.mxu0 0.0
    %1697 = vmatprep.subr.mxu0 0.0
    %1698 = vmatpush1.msra.mxu0 0.0
    %1699 = vmatprep.subr.mxu0 0.0
    %1700 = vmatpush1.msra.mxu0 0.0
    %1701 = vmatprep.subr.mxu0 0.0
    %1702 = vmatpush1.msra.mxu0 0.0
    %1703 = vmatprep.subr.mxu0 0.0
    %1704 = vmatpush1.msra.mxu0 0.0
    %1705 = vmatprep.subr.mxu0 0.0
    %1706 = vmatpush1.msra.mxu0 0.0
    %1707 = vmatprep.subr.mxu0 0.0
    %1708 = vmatpush1.msra.mxu0 0.0
    %1709 = vmatprep.subr.mxu0 0.0
    %1710 = vmatpush1.msra.mxu0 0.0
    %1711 = vmatprep.subr.mxu0 0.0
    %1712 = vmatpush1.msra.mxu0 0.0
    %1713 = vmatprep.subr.mxu0 0.0
    %1714 = vmatpush1.msra.mxu0 0.0
    %1715 = vmatprep.subr.mxu0 0.0
    %1716 = vmatpush1.msra.mxu0 0.0
    %1717 = vmatprep.subr.mxu0 0.0
    %1718 = vmatpush1.msra.mxu0 0.0
    %1719 = vmatprep.subr.mxu0 0.0
    %1720 = vmatpush1.msra.mxu0 0.0
    %1721 = vmatprep.subr.mxu0 0.0
    %1722 = vmatpush1.msra.mxu0 0.0
    %1723 = vmatprep.subr.mxu0 0.0
    %1724 = vmatpush1.msra.mxu0 0.0
    %1725 = vmatprep.subr.mxu0 0.0
    %1726 = vmatpush1.msra.mxu0 0.0
    %1727 = vmatprep.subr.mxu0 0.0
    %1728 = vmatpush1.msra.mxu0 0.0
    %1729 = vmatprep.subr.mxu0 0.0
    %1730 = vmatpush1.msra.mxu0 0.0
    %1731 = vmatprep.mubr.f32.mxu0 0.0
    %1732 = vmatmul.mubr.f32.gmra.mrb[0].mxu0 %v1525
    %v1733 = vpop.f32.mrb[0].mxu0
    %v1734 = vadd.f32 %v557, %v1733
    %v1735 = vpop.f32.mrb[0].mxu0
    %1736 = vdwg.mxu0
    %s1737 = scalar_lea.vmem [#allocation2], 32
    %v1738 = vld [vmem:[%s1737] sm:$0xff]
    %v1739 = vadd.f32 %v1738, %v1594
    %v1740 = vxor.u32 %v1739, 2147483648
    %v1741 = vmul.f32 %v1740, 1.442695
    %v1742 = vpow.pop %v1741
    %v1743 = vadd.f32 %v1742, 1.0
    %v1744 = vrcp.pop %v1743
    %v1745 = vmul.f32 1.0, %v1744
    %s1746 = scalar_lea.vmem [#allocation3], 32
    %v1747 = vld [vmem:[%s1746] sm:$0xff]
    %v1748 = vadd.f32 %v1747, %v1664
    %v1749 = vxor.u32 %v1748, 2147483648
    %v1750 = vmul.f32 %v1749, 1.442695
    %v1751 = vpow.pop %v1750
    %v1752 = vadd.f32 %v1751, 1.0
    %v1753 = vrcp.pop %v1752
    %v1754 = vmul.f32 1.0, %v1753
    %s1755 = scalar_lea.vmem [#allocation4], 32
    %v1756 = vld [vmem:[%s1755] sm:$0xff]
    %v1757 = vmul.f32 %v1745, %v1734
    %v1758 = vadd.f32 %v1756, %v1757
    %v1759 = vtanh.pop %v1758
    %v1760 = vsub.f32 1.0, %v1754
    %v1761 = vmul.f32 %v1760, %v1759
    %v1762 = vmul.f32 %v1754, %v1521
    %v1763 = vadd.f32 %v1761, %v1762
    %s1764 = scalar_lea.vmem [#allocation5], 32
    %1765 = vst.msk [vmem:[%s1764] sm:$0xff] %vm265, %v1763
    %v1767 = vsel %vm265, %v1763, 0
    %1769 = vmatprep.subr.mxu0 0.0
    %1770 = vmatpush1.msra.mxu0 %v522
    %1771 = vmatprep.subr.mxu0 0.0
    %1772 = vmatpush1.msra.mxu0 %v523
    %1773 = vmatprep.subr.mxu0 0.0
    %1774 = vmatpush1.msra.mxu0 %v524
    %1775 = vmatprep.subr.mxu0 0.0
    %1776 = vmatpush1.msra.mxu0 %v525
    %1777 = vmatprep.subr.mxu0 0.0
    %1778 = vmatpush1.msra.mxu0 0.0
    %1779 = vmatprep.subr.mxu0 0.0
    %1780 = vmatpush1.msra.mxu0 0.0
    %1781 = vmatprep.subr.mxu0 0.0
    %1782 = vmatpush1.msra.mxu0 0.0
    %1783 = vmatprep.subr.mxu0 0.0
    %1784 = vmatpush1.msra.mxu0 0.0
    %1785 = vmatprep.subr.mxu0 0.0
    %1786 = vmatpush1.msra.mxu0 0.0
    %1787 = vmatprep.subr.mxu0 0.0
    %1788 = vmatpush1.msra.mxu0 0.0
    %1789 = vmatprep.subr.mxu0 0.0
    %1790 = vmatpush1.msra.mxu0 0.0
    %1791 = vmatprep.subr.mxu0 0.0
    %1792 = vmatpush1.msra.mxu0 0.0
    %1793 = vmatprep.subr.mxu0 0.0
    %1794 = vmatpush1.msra.mxu0 0.0
    %1795 = vmatprep.subr.mxu0 0.0
    %1796 = vmatpush1.msra.mxu0 0.0
    %1797 = vmatprep.subr.mxu0 0.0
    %1798 = vmatpush1.msra.mxu0 0.0
    %1799 = vmatprep.subr.mxu0 0.0
    %1800 = vmatpush1.msra.mxu0 0.0
    %1801 = vmatprep.subr.mxu0 0.0
    %1802 = vmatpush1.msra.mxu0 0.0
    %1803 = vmatprep.subr.mxu0 0.0
    %1804 = vmatpush1.msra.mxu0 0.0
    %1805 = vmatprep.subr.mxu0 0.0
    %1806 = vmatpush1.msra.mxu0 0.0
    %1807 = vmatprep.subr.mxu0 0.0
    %1808 = vmatpush1.msra.mxu0 0.0
    %1809 = vmatprep.subr.mxu0 0.0
    %1810 = vmatpush1.msra.mxu0 0.0
    %1811 = vmatprep.subr.mxu0 0.0
    %1812 = vmatpush1.msra.mxu0 0.0
    %1813 = vmatprep.subr.mxu0 0.0
    %1814 = vmatpush1.msra.mxu0 0.0
    %1815 = vmatprep.subr.mxu0 0.0
    %1816 = vmatpush1.msra.mxu0 0.0
    %1817 = vmatprep.subr.mxu0 0.0
    %1818 = vmatpush1.msra.mxu0 0.0
    %1819 = vmatprep.subr.mxu0 0.0
    %1820 = vmatpush1.msra.mxu0 0.0
    %1821 = vmatprep.subr.mxu0 0.0
    %1822 = vmatpush1.msra.mxu0 0.0
    %1823 = vmatprep.subr.mxu0 0.0
    %1824 = vmatpush1.msra.mxu0 0.0
    %1825 = vmatprep.subr.mxu0 0.0
    %1826 = vmatpush1.msra.mxu0 0.0
    %1827 = vmatprep.subr.mxu0 0.0
    %1828 = vmatpush1.msra.mxu0 0.0
    %1829 = vmatprep.subr.mxu0 0.0
    %1830 = vmatpush1.msra.mxu0 0.0
    %1831 = vmatprep.subr.mxu0 0.0
    %1832 = vmatpush1.msra.mxu0 0.0
    %1833 = vmatprep.mubr.f32.mxu0 0.0
    %1834 = vmatmul.mubr.f32.gmra.mrb[0].mxu0 %v1767
    %v1835 = vpop.f32.mrb[0].mxu0
    %v1836 = vadd.f32 %v541, %v1835
    %v1837 = vpop.f32.mrb[0].mxu0
    %1838 = vdwg.mxu0
    %1839 = vmatprep.subr.mxu0 0.0
    %1840 = vmatpush1.msra.mxu0 %v527
    %1841 = vmatprep.subr.mxu0 0.0
    %1842 = vmatpush1.msra.mxu0 %v528
    %1843 = vmatprep.subr.mxu0 0.0
    %1844 = vmatpush1.msra.mxu0 %v529
    %1845 = vmatprep.subr.mxu0 0.0
    %1846 = vmatpush1.msra.mxu0 %v530
    %1847 = vmatprep.subr.mxu0 0.0
    %1848 = vmatpush1.msra.mxu0 0.0
    %1849 = vmatprep.subr.mxu0 0.0
    %1850 = vmatpush1.msra.mxu0 0.0
    %1851 = vmatprep.subr.mxu0 0.0
    %1852 = vmatpush1.msra.mxu0 0.0
    %1853 = vmatprep.subr.mxu0 0.0
    %1854 = vmatpush1.msra.mxu0 0.0
    %1855 = vmatprep.subr.mxu0 0.0
    %1856 = vmatpush1.msra.mxu0 0.0
    %1857 = vmatprep.subr.mxu0 0.0
    %1858 = vmatpush1.msra.mxu0 0.0
    %1859 = vmatprep.subr.mxu0 0.0
    %1860 = vmatpush1.msra.mxu0 0.0
    %1861 = vmatprep.subr.mxu0 0.0
    %1862 = vmatpush1.msra.mxu0 0.0
    %1863 = vmatprep.subr.mxu0 0.0
    %1864 = vmatpush1.msra.mxu0 0.0
    %1865 = vmatprep.subr.mxu0 0.0
    %1866 = vmatpush1.msra.mxu0 0.0
    %1867 = vmatprep.subr.mxu0 0.0
    %1868 = vmatpush1.msra.mxu0 0.0
    %1869 = vmatprep.subr.mxu0 0.0
    %1870 = vmatpush1.msra.mxu0 0.0
    %1871 = vmatprep.subr.mxu0 0.0
    %1872 = vmatpush1.msra.mxu0 0.0
    %1873 = vmatprep.subr.mxu0 0.0
    %1874 = vmatpush1.msra.mxu0 0.0
    %1875 = vmatprep.subr.mxu0 0.0
    %1876 = vmatpush1.msra.mxu0 0.0
    %1877 = vmatprep.subr.mxu0 0.0
    %1878 = vmatpush1.msra.mxu0 0.0
    %1879 = vmatprep.subr.mxu0 0.0
    %1880 = vmatpush1.msra.mxu0 0.0
    %1881 = vmatprep.subr.mxu0 0.0
    %1882 = vmatpush1.msra.mxu0 0.0
    %1883 = vmatprep.subr.mxu0 0.0
    %1884 = vmatpush1.msra.mxu0 0.0
    %1885 = vmatprep.subr.mxu0 0.0
    %1886 = vmatpush1.msra.mxu0 0.0
    %1887 = vmatprep.subr.mxu0 0.0
    %1888 = vmatpush1.msra.mxu0 0.0
    %1889 = vmatprep.subr.mxu0 0.0
    %1890 = vmatpush1.msra.mxu0 0.0
    %1891 = vmatprep.subr.mxu0 0.0
    %1892 = vmatpush1.msra.mxu0 0.0
    %1893 = vmatprep.subr.mxu0 0.0
    %1894 = vmatpush1.msra.mxu0 0.0
    %1895 = vmatprep.subr.mxu0 0.0
    %1896 = vmatpush1.msra.mxu0 0.0
    %1897 = vmatprep.subr.mxu0 0.0
    %1898 = vmatpush1.msra.mxu0 0.0
    %1899 = vmatprep.subr.mxu0 0.0
    %1900 = vmatpush1.msra.mxu0 0.0
    %1901 = vmatprep.subr.mxu0 0.0
    %1902 = vmatpush1.msra.mxu0 0.0
    %1903 = vmatprep.mubr.f32.mxu0 0.0
    %1904 = vmatmul.mubr.f32.gmra.mrb[0].mxu0 %v1767
    %v1905 = vpop.f32.mrb[0].mxu0
    %v1906 = vadd.f32 %v549, %v1905
    %v1907 = vpop.f32.mrb[0].mxu0
    %1908 = vdwg.mxu0
    %1909 = vmatprep.subr.mxu0 0.0
    %1910 = vmatpush1.msra.mxu0 %v532
    %1911 = vmatprep.subr.mxu0 0.0
    %1912 = vmatpush1.msra.mxu0 %v533
    %1913 = vmatprep.subr.mxu0 0.0
    %1914 = vmatpush1.msra.mxu0 %v534
    %1915 = vmatprep.subr.mxu0 0.0
    %1916 = vmatpush1.msra.mxu0 %v535
    %1917 = vmatprep.subr.mxu0 0.0
    %1918 = vmatpush1.msra.mxu0 0.0
    %1919 = vmatprep.subr.mxu0 0.0
    %1920 = vmatpush1.msra.mxu0 0.0
    %1921 = vmatprep.subr.mxu0 0.0
    %1922 = vmatpush1.msra.mxu0 0.0
    %1923 = vmatprep.subr.mxu0 0.0
    %1924 = vmatpush1.msra.mxu0 0.0
    %1925 = vmatprep.subr.mxu0 0.0
    %1926 = vmatpush1.msra.mxu0 0.0
    %1927 = vmatprep.subr.mxu0 0.0
    %1928 = vmatpush1.msra.mxu0 0.0
    %1929 = vmatprep.subr.mxu0 0.0
    %1930 = vmatpush1.msra.mxu0 0.0
    %1931 = vmatprep.subr.mxu0 0.0
    %1932 = vmatpush1.msra.mxu0 0.0
    %1933 = vmatprep.subr.mxu0 0.0
    %1934 = vmatpush1.msra.mxu0 0.0
    %1935 = vmatprep.subr.mxu0 0.0
    %1936 = vmatpush1.msra.mxu0 0.0
    %1937 = vmatprep.subr.mxu0 0.0
    %1938 = vmatpush1.msra.mxu0 0.0
    %1939 = vmatprep.subr.mxu0 0.0
    %1940 = vmatpush1.msra.mxu0 0.0
    %1941 = vmatprep.subr.mxu0 0.0
    %1942 = vmatpush1.msra.mxu0 0.0
    %1943 = vmatprep.subr.mxu0 0.0
    %1944 = vmatpush1.msra.mxu0 0.0
    %1945 = vmatprep.subr.mxu0 0.0
    %1946 = vmatpush1.msra.mxu0 0.0
    %1947 = vmatprep.subr.mxu0 0.0
    %1948 = vmatpush1.msra.mxu0 0.0
    %1949 = vmatprep.subr.mxu0 0.0
    %1950 = vmatpush1.msra.mxu0 0.0
    %1951 = vmatprep.subr.mxu0 0.0
    %1952 = vmatpush1.msra.mxu0 0.0
    %1953 = vmatprep.subr.mxu0 0.0
    %1954 = vmatpush1.msra.mxu0 0.0
    %1955 = vmatprep.subr.mxu0 0.0
    %1956 = vmatpush1.msra.mxu0 0.0
    %1957 = vmatprep.subr.mxu0 0.0
    %1958 = vmatpush1.msra.mxu0 0.0
    %1959 = vmatprep.subr.mxu0 0.0
    %1960 = vmatpush1.msra.mxu0 0.0
    %1961 = vmatprep.subr.mxu0 0.0
    %1962 = vmatpush1.msra.mxu0 0.0
    %1963 = vmatprep.subr.mxu0 0.0
    %1964 = vmatpush1.msra.mxu0 0.0
    %1965 = vmatprep.subr.mxu0 0.0
    %1966 = vmatpush1.msra.mxu0 0.0
    %1967 = vmatprep.subr.mxu0 0.0
    %1968 = vmatpush1.msra.mxu0 0.0
    %1969 = vmatprep.subr.mxu0 0.0
    %1970 = vmatpush1.msra.mxu0 0.0
    %1971 = vmatprep.subr.mxu0 0.0
    %1972 = vmatpush1.msra.mxu0 0.0
    %1973 = vmatprep.mubr.f32.mxu0 0.0
    %1974 = vmatmul.mubr.f32.gmra.mrb[0].mxu0 %v1767
    %v1975 = vpop.f32.mrb[0].mxu0
    %v1976 = vadd.f32 %v557, %v1975
    %v1977 = vpop.f32.mrb[0].mxu0
    %1978 = vdwg.mxu0
    %s1979 = scalar_lea.vmem [#allocation2], 40
    %v1980 = vld [vmem:[%s1979] sm:$0xff]
    %v1981 = vadd.f32 %v1980, %v1836
    %v1982 = vxor.u32 %v1981, 2147483648
    %v1983 = vmul.f32 %v1982, 1.442695
    %v1984 = vpow.pop %v1983
    %v1985 = vadd.f32 %v1984, 1.0
    %v1986 = vrcp.pop %v1985
    %v1987 = vmul.f32 1.0, %v1986
    %s1988 = scalar_lea.vmem [#allocation3], 40
    %v1989 = vld [vmem:[%s1988] sm:$0xff]
    %v1990 = vadd.f32 %v1989, %v1906
    %v1991 = vxor.u32 %v1990, 2147483648
    %v1992 = vmul.f32 %v1991, 1.442695
    %v1993 = vpow.pop %v1992
    %v1994 = vadd.f32 %v1993, 1.0
    %v1995 = vrcp.pop %v1994
    %v1996 = vmul.f32 1.0, %v1995
    %s1997 = scalar_lea.vmem [#allocation4], 40
    %v1998 = vld [vmem:[%s1997] sm:$0xff]
    %v1999 = vmul.f32 %v1987, %v1976
    %v2000 = vadd.f32 %v1998, %v1999
    %v2001 = vtanh.pop %v2000
    %v2002 = vsub.f32 1.0, %v1996
    %v2003 = vmul.f32 %v2002, %v2001
    %v2004 = vmul.f32 %v1996, %v1763
    %v2005 = vadd.f32 %v2003, %v2004
    %s2006 = scalar_lea.vmem [#allocation5], 40
    %2007 = vst.msk [vmem:[%s2006] sm:$0xff] %vm265, %v2005
    %v2009 = vsel %vm265, %v2005, 0
    %2011 = vmatprep.subr.mxu0 0.0
    %2012 = vmatpush1.msra.mxu0 %v522
    %2013 = vmatprep.subr.mxu0 0.0
    %2014 = vmatpush1.msra.mxu0 %v523
    %2015 = vmatprep.subr.mxu0 0.0
    %2016 = vmatpush1.msra.mxu0 %v524
    %2017 = vmatprep.subr.mxu0 0.0
    %2018 = vmatpush1.msra.mxu0 %v525
    %2019 = vmatprep.subr.mxu0 0.0
    %2020 = vmatpush1.msra.mxu0 0.0
    %2021 = vmatprep.subr.mxu0 0.0
    %2022 = vmatpush1.msra.mxu0 0.0
    %2023 = vmatprep.subr.mxu0 0.0
    %2024 = vmatpush1.msra.mxu0 0.0
    %2025 = vmatprep.subr.mxu0 0.0
    %2026 = vmatpush1.msra.mxu0 0.0
    %2027 = vmatprep.subr.mxu0 0.0
    %2028 = vmatpush1.msra.mxu0 0.0
    %2029 = vmatprep.subr.mxu0 0.0
    %2030 = vmatpush1.msra.mxu0 0.0
    %2031 = vmatprep.subr.mxu0 0.0
    %2032 = vmatpush1.msra.mxu0 0.0
    %2033 = vmatprep.subr.mxu0 0.0
    %2034 = vmatpush1.msra.mxu0 0.0
    %2035 = vmatprep.subr.mxu0 0.0
    %2036 = vmatpush1.msra.mxu0 0.0
    %2037 = vmatprep.subr.mxu0 0.0
    %2038 = vmatpush1.msra.mxu0 0.0
    %2039 = vmatprep.subr.mxu0 0.0
    %2040 = vmatpush1.msra.mxu0 0.0
    %2041 = vmatprep.subr.mxu0 0.0
    %2042 = vmatpush1.msra.mxu0 0.0
    %2043 = vmatprep.subr.mxu0 0.0
    %2044 = vmatpush1.msra.mxu0 0.0
    %2045 = vmatprep.subr.mxu0 0.0
    %2046 = vmatpush1.msra.mxu0 0.0
    %2047 = vmatprep.subr.mxu0 0.0
    %2048 = vmatpush1.msra.mxu0 0.0
    %2049 = vmatprep.subr.mxu0 0.0
    %2050 = vmatpush1.msra.mxu0 0.0
    %2051 = vmatprep.subr.mxu0 0.0
    %2052 = vmatpush1.msra.mxu0 0.0
    %2053 = vmatprep.subr.mxu0 0.0
    %2054 = vmatpush1.msra.mxu0 0.0
    %2055 = vmatprep.subr.mxu0 0.0
    %2056 = vmatpush1.msra.mxu0 0.0
    %2057 = vmatprep.subr.mxu0 0.0
    %2058 = vmatpush1.msra.mxu0 0.0
    %2059 = vmatprep.subr.mxu0 0.0
    %2060 = vmatpush1.msra.mxu0 0.0
    %2061 = vmatprep.subr.mxu0 0.0
    %2062 = vmatpush1.msra.mxu0 0.0
    %2063 = vmatprep.subr.mxu0 0.0
    %2064 = vmatpush1.msra.mxu0 0.0
    %2065 = vmatprep.subr.mxu0 0.0
    %2066 = vmatpush1.msra.mxu0 0.0
    %2067 = vmatprep.subr.mxu0 0.0
    %2068 = vmatpush1.msra.mxu0 0.0
    %2069 = vmatprep.subr.mxu0 0.0
    %2070 = vmatpush1.msra.mxu0 0.0
    %2071 = vmatprep.subr.mxu0 0.0
    %2072 = vmatpush1.msra.mxu0 0.0
    %2073 = vmatprep.subr.mxu0 0.0
    %2074 = vmatpush1.msra.mxu0 0.0
    %2075 = vmatprep.mubr.f32.mxu0 0.0
    %2076 = vmatmul.mubr.f32.gmra.mrb[0].mxu0 %v2009
    %v2077 = vpop.f32.mrb[0].mxu0
    %v2078 = vadd.f32 %v541, %v2077
    %v2079 = vpop.f32.mrb[0].mxu0
    %2080 = vdwg.mxu0
    %2081 = vmatprep.subr.mxu0 0.0
    %2082 = vmatpush1.msra.mxu0 %v527
    %2083 = vmatprep.subr.mxu0 0.0
    %2084 = vmatpush1.msra.mxu0 %v528
    %2085 = vmatprep.subr.mxu0 0.0
    %2086 = vmatpush1.msra.mxu0 %v529
    %2087 = vmatprep.subr.mxu0 0.0
    %2088 = vmatpush1.msra.mxu0 %v530
    %2089 = vmatprep.subr.mxu0 0.0
    %2090 = vmatpush1.msra.mxu0 0.0
    %2091 = vmatprep.subr.mxu0 0.0
    %2092 = vmatpush1.msra.mxu0 0.0
    %2093 = vmatprep.subr.mxu0 0.0
    %2094 = vmatpush1.msra.mxu0 0.0
    %2095 = vmatprep.subr.mxu0 0.0
    %2096 = vmatpush1.msra.mxu0 0.0
    %2097 = vmatprep.subr.mxu0 0.0
    %2098 = vmatpush1.msra.mxu0 0.0
    %2099 = vmatprep.subr.mxu0 0.0
    %2100 = vmatpush1.msra.mxu0 0.0
    %2101 = vmatprep.subr.mxu0 0.0
    %2102 = vmatpush1.msra.mxu0 0.0
    %2103 = vmatprep.subr.mxu0 0.0
    %2104 = vmatpush1.msra.mxu0 0.0
    %2105 = vmatprep.subr.mxu0 0.0
    %2106 = vmatpush1.msra.mxu0 0.0
    %2107 = vmatprep.subr.mxu0 0.0
    %2108 = vmatpush1.msra.mxu0 0.0
    %2109 = vmatprep.subr.mxu0 0.0
    %2110 = vmatpush1.msra.mxu0 0.0
    %2111 = vmatprep.subr.mxu0 0.0
    %2112 = vmatpush1.msra.mxu0 0.0
    %2113 = vmatprep.subr.mxu0 0.0
    %2114 = vmatpush1.msra.mxu0 0.0
    %2115 = vmatprep.subr.mxu0 0.0
    %2116 = vmatpush1.msra.mxu0 0.0
    %2117 = vmatprep.subr.mxu0 0.0
    %2118 = vmatpush1.msra.mxu0 0.0
    %2119 = vmatprep.subr.mxu0 0.0
    %2120 = vmatpush1.msra.mxu0 0.0
    %2121 = vmatprep.subr.mxu0 0.0
    %2122 = vmatpush1.msra.mxu0 0.0
    %2123 = vmatprep.subr.mxu0 0.0
    %2124 = vmatpush1.msra.mxu0 0.0
    %2125 = vmatprep.subr.mxu0 0.0
    %2126 = vmatpush1.msra.mxu0 0.0
    %2127 = vmatprep.subr.mxu0 0.0
    %2128 = vmatpush1.msra.mxu0 0.0
    %2129 = vmatprep.subr.mxu0 0.0
    %2130 = vmatpush1.msra.mxu0 0.0
    %2131 = vmatprep.subr.mxu0 0.0
    %2132 = vmatpush1.msra.mxu0 0.0
    %2133 = vmatprep.subr.mxu0 0.0
    %2134 = vmatpush1.msra.mxu0 0.0
    %2135 = vmatprep.subr.mxu0 0.0
    %2136 = vmatpush1.msra.mxu0 0.0
    %2137 = vmatprep.subr.mxu0 0.0
    %2138 = vmatpush1.msra.mxu0 0.0
    %2139 = vmatprep.subr.mxu0 0.0
    %2140 = vmatpush1.msra.mxu0 0.0
    %2141 = vmatprep.subr.mxu0 0.0
    %2142 = vmatpush1.msra.mxu0 0.0
    %2143 = vmatprep.subr.mxu0 0.0
    %2144 = vmatpush1.msra.mxu0 0.0
    %2145 = vmatprep.mubr.f32.mxu0 0.0
    %2146 = vmatmul.mubr.f32.gmra.mrb[0].mxu0 %v2009
    %v2147 = vpop.f32.mrb[0].mxu0
    %v2148 = vadd.f32 %v549, %v2147
    %v2149 = vpop.f32.mrb[0].mxu0
    %2150 = vdwg.mxu0
    %2151 = vmatprep.subr.mxu0 0.0
    %2152 = vmatpush1.msra.mxu0 %v532
    %2153 = vmatprep.subr.mxu0 0.0
    %2154 = vmatpush1.msra.mxu0 %v533
    %2155 = vmatprep.subr.mxu0 0.0
    %2156 = vmatpush1.msra.mxu0 %v534
    %2157 = vmatprep.subr.mxu0 0.0
    %2158 = vmatpush1.msra.mxu0 %v535
    %2159 = vmatprep.subr.mxu0 0.0
    %2160 = vmatpush1.msra.mxu0 0.0
    %2161 = vmatprep.subr.mxu0 0.0
    %2162 = vmatpush1.msra.mxu0 0.0
    %2163 = vmatprep.subr.mxu0 0.0
    %2164 = vmatpush1.msra.mxu0 0.0
    %2165 = vmatprep.subr.mxu0 0.0
    %2166 = vmatpush1.msra.mxu0 0.0
    %2167 = vmatprep.subr.mxu0 0.0
    %2168 = vmatpush1.msra.mxu0 0.0
    %2169 = vmatprep.subr.mxu0 0.0
    %2170 = vmatpush1.msra.mxu0 0.0
    %2171 = vmatprep.subr.mxu0 0.0
    %2172 = vmatpush1.msra.mxu0 0.0
    %2173 = vmatprep.subr.mxu0 0.0
    %2174 = vmatpush1.msra.mxu0 0.0
    %2175 = vmatprep.subr.mxu0 0.0
    %2176 = vmatpush1.msra.mxu0 0.0
    %2177 = vmatprep.subr.mxu0 0.0
    %2178 = vmatpush1.msra.mxu0 0.0
    %2179 = vmatprep.subr.mxu0 0.0
    %2180 = vmatpush1.msra.mxu0 0.0
    %2181 = vmatprep.subr.mxu0 0.0
    %2182 = vmatpush1.msra.mxu0 0.0
    %2183 = vmatprep.subr.mxu0 0.0
    %2184 = vmatpush1.msra.mxu0 0.0
    %2185 = vmatprep.subr.mxu0 0.0
    %2186 = vmatpush1.msra.mxu0 0.0
    %2187 = vmatprep.subr.mxu0 0.0
    %2188 = vmatpush1.msra.mxu0 0.0
    %2189 = vmatprep.subr.mxu0 0.0
    %2190 = vmatpush1.msra.mxu0 0.0
    %2191 = vmatprep.subr.mxu0 0.0
    %2192 = vmatpush1.msra.mxu0 0.0
    %2193 = vmatprep.subr.mxu0 0.0
    %2194 = vmatpush1.msra.mxu0 0.0
    %2195 = vmatprep.subr.mxu0 0.0
    %2196 = vmatpush1.msra.mxu0 0.0
    %2197 = vmatprep.subr.mxu0 0.0
    %2198 = vmatpush1.msra.mxu0 0.0
    %2199 = vmatprep.subr.mxu0 0.0
    %2200 = vmatpush1.msra.mxu0 0.0
    %2201 = vmatprep.subr.mxu0 0.0
    %2202 = vmatpush1.msra.mxu0 0.0
    %2203 = vmatprep.subr.mxu0 0.0
    %2204 = vmatpush1.msra.mxu0 0.0
    %2205 = vmatprep.subr.mxu0 0.0
    %2206 = vmatpush1.msra.mxu0 0.0
    %2207 = vmatprep.subr.mxu0 0.0
    %2208 = vmatpush1.msra.mxu0 0.0
    %2209 = vmatprep.subr.mxu0 0.0
    %2210 = vmatpush1.msra.mxu0 0.0
    %2211 = vmatprep.subr.mxu0 0.0
    %2212 = vmatpush1.msra.mxu0 0.0
    %2213 = vmatprep.subr.mxu0 0.0
    %2214 = vmatpush1.msra.mxu0 0.0
    %2215 = vmatprep.mubr.f32.mxu0 0.0
    %2216 = vmatmul.mubr.f32.gmra.mrb[0].mxu0 %v2009
    %v2217 = vpop.f32.mrb[0].mxu0
    %v2218 = vadd.f32 %v557, %v2217
    %v2219 = vpop.f32.mrb[0].mxu0
    %2220 = vdwg.mxu0
    %s2221 = scalar_lea.vmem [#allocation2], 48
    %v2222 = vld [vmem:[%s2221] sm:$0xff]
    %v2223 = vadd.f32 %v2222, %v2078
    %v2224 = vxor.u32 %v2223, 2147483648
    %v2225 = vmul.f32 %v2224, 1.442695
    %v2226 = vpow.pop %v2225
    %v2227 = vadd.f32 %v2226, 1.0
    %v2228 = vrcp.pop %v2227
    %v2229 = vmul.f32 1.0, %v2228
    %s2230 = scalar_lea.vmem [#allocation3], 48
    %v2231 = vld [vmem:[%s2230] sm:$0xff]
    %v2232 = vadd.f32 %v2231, %v2148
    %v2233 = vxor.u32 %v2232, 2147483648
    %v2234 = vmul.f32 %v2233, 1.442695
    %v2235 = vpow.pop %v2234
    %v2236 = vadd.f32 %v2235, 1.0
    %v2237 = vrcp.pop %v2236
    %v2238 = vmul.f32 1.0, %v2237
    %s2239 = scalar_lea.vmem [#allocation4], 48
    %v2240 = vld [vmem:[%s2239] sm:$0xff]
    %v2241 = vmul.f32 %v2229, %v2218
    %v2242 = vadd.f32 %v2240, %v2241
    %v2243 = vtanh.pop %v2242
    %v2244 = vsub.f32 1.0, %v2238
    %v2245 = vmul.f32 %v2244, %v2243
    %v2246 = vmul.f32 %v2238, %v2005
    %v2247 = vadd.f32 %v2245, %v2246
    %s2248 = scalar_lea.vmem [#allocation5], 48
    %2249 = vst.msk [vmem:[%s2248] sm:$0xff] %vm265, %v2247
    %v2251 = vsel %vm265, %v2247, 0
    %2253 = vmatprep.subr.mxu0 0.0
    %2254 = vmatpush1.msra.mxu0 %v522
    %2255 = vmatprep.subr.mxu0 0.0
    %2256 = vmatpush1.msra.mxu0 %v523
    %2257 = vmatprep.subr.mxu0 0.0
    %2258 = vmatpush1.msra.mxu0 %v524
    %2259 = vmatprep.subr.mxu0 0.0
    %2260 = vmatpush1.msra.mxu0 %v525
    %2261 = vmatprep.subr.mxu0 0.0
    %2262 = vmatpush1.msra.mxu0 0.0
    %2263 = vmatprep.subr.mxu0 0.0
    %2264 = vmatpush1.msra.mxu0 0.0
    %2265 = vmatprep.subr.mxu0 0.0
    %2266 = vmatpush1.msra.mxu0 0.0
    %2267 = vmatprep.subr.mxu0 0.0
    %2268 = vmatpush1.msra.mxu0 0.0
    %2269 = vmatprep.subr.mxu0 0.0
    %2270 = vmatpush1.msra.mxu0 0.0
    %2271 = vmatprep.subr.mxu0 0.0
    %2272 = vmatpush1.msra.mxu0 0.0
    %2273 = vmatprep.subr.mxu0 0.0
    %2274 = vmatpush1.msra.mxu0 0.0
    %2275 = vmatprep.subr.mxu0 0.0
    %2276 = vmatpush1.msra.mxu0 0.0
    %2277 = vmatprep.subr.mxu0 0.0
    %2278 = vmatpush1.msra.mxu0 0.0
    %2279 = vmatprep.subr.mxu0 0.0
    %2280 = vmatpush1.msra.mxu0 0.0
    %2281 = vmatprep.subr.mxu0 0.0
    %2282 = vmatpush1.msra.mxu0 0.0
    %2283 = vmatprep.subr.mxu0 0.0
    %2284 = vmatpush1.msra.mxu0 0.0
    %2285 = vmatprep.subr.mxu0 0.0
    %2286 = vmatpush1.msra.mxu0 0.0
    %2287 = vmatprep.subr.mxu0 0.0
    %2288 = vmatpush1.msra.mxu0 0.0
    %2289 = vmatprep.subr.mxu0 0.0
    %2290 = vmatpush1.msra.mxu0 0.0
    %2291 = vmatprep.subr.mxu0 0.0
    %2292 = vmatpush1.msra.mxu0 0.0
    %2293 = vmatprep.subr.mxu0 0.0
    %2294 = vmatpush1.msra.mxu0 0.0
    %2295 = vmatprep.subr.mxu0 0.0
    %2296 = vmatpush1.msra.mxu0 0.0
    %2297 = vmatprep.subr.mxu0 0.0
    %2298 = vmatpush1.msra.mxu0 0.0
    %2299 = vmatprep.subr.mxu0 0.0
    %2300 = vmatpush1.msra.mxu0 0.0
    %2301 = vmatprep.subr.mxu0 0.0
    %2302 = vmatpush1.msra.mxu0 0.0
    %2303 = vmatprep.subr.mxu0 0.0
    %2304 = vmatpush1.msra.mxu0 0.0
    %2305 = vmatprep.subr.mxu0 0.0
    %2306 = vmatpush1.msra.mxu0 0.0
    %2307 = vmatprep.subr.mxu0 0.0
    %2308 = vmatpush1.msra.mxu0 0.0
    %2309 = vmatprep.subr.mxu0 0.0
    %2310 = vmatpush1.msra.mxu0 0.0
    %2311 = vmatprep.subr.mxu0 0.0
    %2312 = vmatpush1.msra.mxu0 0.0
    %2313 = vmatprep.subr.mxu0 0.0
    %2314 = vmatpush1.msra.mxu0 0.0
    %2315 = vmatprep.subr.mxu0 0.0
    %2316 = vmatpush1.msra.mxu0 0.0
    %2317 = vmatprep.mubr.f32.mxu0 0.0
    %2318 = vmatmul.mubr.f32.gmra.mrb[0].mxu0 %v2251
    %v2319 = vpop.f32.mrb[0].mxu0
    %v2320 = vadd.f32 %v541, %v2319
    %v2321 = vpop.f32.mrb[0].mxu0
    %2322 = vdwg.mxu0
    %2323 = vmatprep.subr.mxu0 0.0
    %2324 = vmatpush1.msra.mxu0 %v527
    %2325 = vmatprep.subr.mxu0 0.0
    %2326 = vmatpush1.msra.mxu0 %v528
    %2327 = vmatprep.subr.mxu0 0.0
    %2328 = vmatpush1.msra.mxu0 %v529
    %2329 = vmatprep.subr.mxu0 0.0
    %2330 = vmatpush1.msra.mxu0 %v530
    %2331 = vmatprep.subr.mxu0 0.0
    %2332 = vmatpush1.msra.mxu0 0.0
    %2333 = vmatprep.subr.mxu0 0.0
    %2334 = vmatpush1.msra.mxu0 0.0
    %2335 = vmatprep.subr.mxu0 0.0
    %2336 = vmatpush1.msra.mxu0 0.0
    %2337 = vmatprep.subr.mxu0 0.0
    %2338 = vmatpush1.msra.mxu0 0.0
    %2339 = vmatprep.subr.mxu0 0.0
    %2340 = vmatpush1.msra.mxu0 0.0
    %2341 = vmatprep.subr.mxu0 0.0
    %2342 = vmatpush1.msra.mxu0 0.0
    %2343 = vmatprep.subr.mxu0 0.0
    %2344 = vmatpush1.msra.mxu0 0.0
    %2345 = vmatprep.subr.mxu0 0.0
    %2346 = vmatpush1.msra.mxu0 0.0
    %2347 = vmatprep.subr.mxu0 0.0
    %2348 = vmatpush1.msra.mxu0 0.0
    %2349 = vmatprep.subr.mxu0 0.0
    %2350 = vmatpush1.msra.mxu0 0.0
    %2351 = vmatprep.subr.mxu0 0.0
    %2352 = vmatpush1.msra.mxu0 0.0
    %2353 = vmatprep.subr.mxu0 0.0
    %2354 = vmatpush1.msra.mxu0 0.0
    %2355 = vmatprep.subr.mxu0 0.0
    %2356 = vmatpush1.msra.mxu0 0.0
    %2357 = vmatprep.subr.mxu0 0.0
    %2358 = vmatpush1.msra.mxu0 0.0
    %2359 = vmatprep.subr.mxu0 0.0
    %2360 = vmatpush1.msra.mxu0 0.0
    %2361 = vmatprep.subr.mxu0 0.0
    %2362 = vmatpush1.msra.mxu0 0.0
    %2363 = vmatprep.subr.mxu0 0.0
    %2364 = vmatpush1.msra.mxu0 0.0
    %2365 = vmatprep.subr.mxu0 0.0
    %2366 = vmatpush1.msra.mxu0 0.0
    %2367 = vmatprep.subr.mxu0 0.0
    %2368 = vmatpush1.msra.mxu0 0.0
    %2369 = vmatprep.subr.mxu0 0.0
    %2370 = vmatpush1.msra.mxu0 0.0
    %2371 = vmatprep.subr.mxu0 0.0
    %2372 = vmatpush1.msra.mxu0 0.0
    %2373 = vmatprep.subr.mxu0 0.0
    %2374 = vmatpush1.msra.mxu0 0.0
    %2375 = vmatprep.subr.mxu0 0.0
    %2376 = vmatpush1.msra.mxu0 0.0
    %2377 = vmatprep.subr.mxu0 0.0
    %2378 = vmatpush1.msra.mxu0 0.0
    %2379 = vmatprep.subr.mxu0 0.0
    %2380 = vmatpush1.msra.mxu0 0.0
    %2381 = vmatprep.subr.mxu0 0.0
    %2382 = vmatpush1.msra.mxu0 0.0
    %2383 = vmatprep.subr.mxu0 0.0
    %2384 = vmatpush1.msra.mxu0 0.0
    %2385 = vmatprep.subr.mxu0 0.0
    %2386 = vmatpush1.msra.mxu0 0.0
    %2387 = vmatprep.mubr.f32.mxu0 0.0
    %2388 = vmatmul.mubr.f32.gmra.mrb[0].mxu0 %v2251
    %v2389 = vpop.f32.mrb[0].mxu0
    %v2390 = vadd.f32 %v549, %v2389
    %v2391 = vpop.f32.mrb[0].mxu0
    %2392 = vdwg.mxu0
    %2393 = vmatprep.subr.mxu0 0.0
    %2394 = vmatpush1.msra.mxu0 %v532
    %2395 = vmatprep.subr.mxu0 0.0
    %2396 = vmatpush1.msra.mxu0 %v533
    %2397 = vmatprep.subr.mxu0 0.0
    %2398 = vmatpush1.msra.mxu0 %v534
    %2399 = vmatprep.subr.mxu0 0.0
    %2400 = vmatpush1.msra.mxu0 %v535
    %2401 = vmatprep.subr.mxu0 0.0
    %2402 = vmatpush1.msra.mxu0 0.0
    %2403 = vmatprep.subr.mxu0 0.0
    %2404 = vmatpush1.msra.mxu0 0.0
    %2405 = vmatprep.subr.mxu0 0.0
    %2406 = vmatpush1.msra.mxu0 0.0
    %2407 = vmatprep.subr.mxu0 0.0
    %2408 = vmatpush1.msra.mxu0 0.0
    %2409 = vmatprep.subr.mxu0 0.0
    %2410 = vmatpush1.msra.mxu0 0.0
    %2411 = vmatprep.subr.mxu0 0.0
    %2412 = vmatpush1.msra.mxu0 0.0
    %2413 = vmatprep.subr.mxu0 0.0
    %2414 = vmatpush1.msra.mxu0 0.0
    %2415 = vmatprep.subr.mxu0 0.0
    %2416 = vmatpush1.msra.mxu0 0.0
    %2417 = vmatprep.subr.mxu0 0.0
    %2418 = vmatpush1.msra.mxu0 0.0
    %2419 = vmatprep.subr.mxu0 0.0
    %2420 = vmatpush1.msra.mxu0 0.0
    %2421 = vmatprep.subr.mxu0 0.0
    %2422 = vmatpush1.msra.mxu0 0.0
    %2423 = vmatprep.subr.mxu0 0.0
    %2424 = vmatpush1.msra.mxu0 0.0
    %2425 = vmatprep.subr.mxu0 0.0
    %2426 = vmatpush1.msra.mxu0 0.0
    %2427 = vmatprep.subr.mxu0 0.0
    %2428 = vmatpush1.msra.mxu0 0.0
    %2429 = vmatprep.subr.mxu0 0.0
    %2430 = vmatpush1.msra.mxu0 0.0
    %2431 = vmatprep.subr.mxu0 0.0
    %2432 = vmatpush1.msra.mxu0 0.0
    %2433 = vmatprep.subr.mxu0 0.0
    %2434 = vmatpush1.msra.mxu0 0.0
    %2435 = vmatprep.subr.mxu0 0.0
    %2436 = vmatpush1.msra.mxu0 0.0
    %2437 = vmatprep.subr.mxu0 0.0
    %2438 = vmatpush1.msra.mxu0 0.0
    %2439 = vmatprep.subr.mxu0 0.0
    %2440 = vmatpush1.msra.mxu0 0.0
    %2441 = vmatprep.subr.mxu0 0.0
    %2442 = vmatpush1.msra.mxu0 0.0
    %2443 = vmatprep.subr.mxu0 0.0
    %2444 = vmatpush1.msra.mxu0 0.0
    %2445 = vmatprep.subr.mxu0 0.0
    %2446 = vmatpush1.msra.mxu0 0.0
    %2447 = vmatprep.subr.mxu0 0.0
    %2448 = vmatpush1.msra.mxu0 0.0
    %2449 = vmatprep.subr.mxu0 0.0
    %2450 = vmatpush1.msra.mxu0 0.0
    %2451 = vmatprep.subr.mxu0 0.0
    %2452 = vmatpush1.msra.mxu0 0.0
    %2453 = vmatprep.subr.mxu0 0.0
    %2454 = vmatpush1.msra.mxu0 0.0
    %2455 = vmatprep.subr.mxu0 0.0
    %2456 = vmatpush1.msra.mxu0 0.0
    %2457 = vmatprep.mubr.f32.mxu0 0.0
    %2458 = vmatmul.mubr.f32.gmra.mrb[0].mxu0 %v2251
    %v2459 = vpop.f32.mrb[0].mxu0
    %v2460 = vadd.f32 %v557, %v2459
    %v2461 = vpop.f32.mrb[0].mxu0
    %2462 = vdwg.mxu0
    %s2463 = scalar_lea.vmem [#allocation2], 56
    %v2464 = vld [vmem:[%s2463] sm:$0xff]
    %v2465 = vadd.f32 %v2464, %v2320
    %v2466 = vxor.u32 %v2465, 2147483648
    %v2467 = vmul.f32 %v2466, 1.442695
    %v2468 = vpow.pop %v2467
    %v2469 = vadd.f32 %v2468, 1.0
    %v2470 = vrcp.pop %v2469
    %v2471 = vmul.f32 1.0, %v2470
    %s2472 = scalar_lea.vmem [#allocation3], 56
    %v2473 = vld [vmem:[%s2472] sm:$0xff]
    %v2474 = vadd.f32 %v2473, %v2390
    %v2475 = vxor.u32 %v2474, 2147483648
    %v2476 = vmul.f32 %v2475, 1.442695
    %v2477 = vpow.pop %v2476
    %v2478 = vadd.f32 %v2477, 1.0
    %v2479 = vrcp.pop %v2478
    %v2480 = vmul.f32 1.0, %v2479
    %s2481 = scalar_lea.vmem [#allocation4], 56
    %v2482 = vld [vmem:[%s2481] sm:$0xff]
    %v2483 = vmul.f32 %v2471, %v2460
    %v2484 = vadd.f32 %v2482, %v2483
    %v2485 = vtanh.pop %v2484
    %v2486 = vsub.f32 1.0, %v2480
    %v2487 = vmul.f32 %v2486, %v2485
    %v2488 = vmul.f32 %v2480, %v2247
    %v2489 = vadd.f32 %v2487, %v2488
    %s2490 = scalar_lea.vmem [#allocation5], 56
    %2491 = vst.msk [vmem:[%s2490] sm:$0xff] %vm265, %v2489
    %2492 = vst.msk [vmem:[#allocation15] sm:$0xff] %vm265, %v2489
    %v2493 = vld [vmem:[#allocation5] sm:$0xff]
    %v2494 = vld [vmem:[#allocation5 + $0x8] sm:$0xff]
    %v2495 = vld [vmem:[#allocation5 + $0x10] sm:$0xff]
    %v2496 = vld [vmem:[#allocation5 + $0x18] sm:$0xff]
    %v2497 = vld [vmem:[#allocation5 + $0x20] sm:$0xff]
    %v2498 = vld [vmem:[#allocation5 + $0x28] sm:$0xff]
    %v2499 = vld [vmem:[#allocation5 + $0x30] sm:$0xff]
    %v2500 = vld [vmem:[#allocation5 + $0x38] sm:$0xff]
    %v2501 = vld [vmem:[#allocation12] sm:$0xff]
    %v2502 = vld [vmem:[#allocation12 + $0x8] sm:$0xff]
    %v2503 = vld [vmem:[#allocation12 + $0x10] sm:$0xff]
    %v2504 = vld [vmem:[#allocation12 + $0x18] sm:$0xff]
    %v2505 = vld [vmem:[%s8] sm:$0x1]
    %v2507 = vlaneseq
    %v2508 = vshrl.u32 %v2507, 7
    %v2509 = vsub.s32 0, %v2508
    %v2510 = vrot.slane %v2505, %v2509
    %v2513 = vsel %vm265, %v2493, 0
    %v2516 = vsel %vm265, %v2494, 0
    %v2519 = vsel %vm265, %v2495, 0
    %v2522 = vsel %vm265, %v2496, 0
    %v2525 = vsel %vm265, %v2497, 0
    %v2528 = vsel %vm265, %v2498, 0
    %v2531 = vsel %vm265, %v2499, 0
    %v2534 = vsel %vm265, %v2500, 0
    %2536 = vmatprep.subr.mxu0 0.0
    %2537 = vmatpush1.msra.mxu0 %v2501
    %2538 = vmatprep.subr.mxu0 0.0
    %2539 = vmatpush1.msra.mxu0 %v2502
    %2540 = vmatprep.subr.mxu0 0.0
    %2541 = vmatpush1.msra.mxu0 %v2503
    %2542 = vmatprep.subr.mxu0 0.0
    %2543 = vmatpush1.msra.mxu0 %v2504
    %2544 = vmatprep.subr.mxu0 0.0
    %2545 = vmatpush1.msra.mxu0 0.0
    %2546 = vmatprep.subr.mxu0 0.0
    %2547 = vmatpush1.msra.mxu0 0.0
    %2548 = vmatprep.subr.mxu0 0.0
    %2549 = vmatpush1.msra.mxu0 0.0
    %2550 = vmatprep.subr.mxu0 0.0
    %2551 = vmatpush1.msra.mxu0 0.0
    %2552 = vmatprep.subr.mxu0 0.0
    %2553 = vmatpush1.msra.mxu0 0.0
    %2554 = vmatprep.subr.mxu0 0.0
    %2555 = vmatpush1.msra.mxu0 0.0
    %2556 = vmatprep.subr.mxu0 0.0
    %2557 = vmatpush1.msra.mxu0 0.0
    %2558 = vmatprep.subr.mxu0 0.0
    %2559 = vmatpush1.msra.mxu0 0.0
    %2560 = vmatprep.subr.mxu0 0.0
    %2561 = vmatpush1.msra.mxu0 0.0
    %2562 = vmatprep.subr.mxu0 0.0
    %2563 = vmatpush1.msra.mxu0 0.0
    %2564 = vmatprep.subr.mxu0 0.0
    %2565 = vmatpush1.msra.mxu0 0.0
    %2566 = vmatprep.subr.mxu0 0.0
    %2567 = vmatpush1.msra.mxu0 0.0
    %2568 = vmatprep.subr.mxu0 0.0
    %2569 = vmatpush1.msra.mxu0 0.0
    %2570 = vmatprep.subr.mxu0 0.0
    %2571 = vmatpush1.msra.mxu0 0.0
    %2572 = vmatprep.subr.mxu0 0.0
    %2573 = vmatpush1.msra.mxu0 0.0
    %2574 = vmatprep.subr.mxu0 0.0
    %2575 = vmatpush1.msra.mxu0 0.0
    %2576 = vmatprep.subr.mxu0 0.0
    %2577 = vmatpush1.msra.mxu0 0.0
    %2578 = vmatprep.subr.mxu0 0.0
    %2579 = vmatpush1.msra.mxu0 0.0
    %2580 = vmatprep.subr.mxu0 0.0
    %2581 = vmatpush1.msra.mxu0 0.0
    %2582 = vmatprep.subr.mxu0 0.0
    %2583 = vmatpush1.msra.mxu0 0.0
    %2584 = vmatprep.subr.mxu0 0.0
    %2585 = vmatpush1.msra.mxu0 0.0
    %2586 = vmatprep.subr.mxu0 0.0
    %2587 = vmatpush1.msra.mxu0 0.0
    %2588 = vmatprep.subr.mxu0 0.0
    %2589 = vmatpush1.msra.mxu0 0.0
    %2590 = vmatprep.subr.mxu0 0.0
    %2591 = vmatpush1.msra.mxu0 0.0
    %2592 = vmatprep.subr.mxu0 0.0
    %2593 = vmatpush1.msra.mxu0 0.0
    %2594 = vmatprep.subr.mxu0 0.0
    %2595 = vmatpush1.msra.mxu0 0.0
    %2596 = vmatprep.subr.mxu0 0.0
    %2597 = vmatpush1.msra.mxu0 0.0
    %2598 = vmatprep.subr.mxu0 0.0
    %2599 = vmatpush1.msra.mxu0 0.0
    %2600 = vmatprep.mubr.f32.mxu0 0.0
    %2601 = vmatmul.mubr.f32.gmra.mrb[0].mxu0 %v2513
    %v2602 = vpop.f32.mrb[0].mxu0
    %v2603 = vadd.f32 %v2510, %v2602
    %v2604 = vpop.f32.mrb[0].mxu0
    %2605 = vmatprep.mubr.f32.mxu0 0.0
    %2606 = vmatmul.mubr.f32.gmra.mrb[0].mxu0 %v2516
    %v2607 = vpop.f32.mrb[0].mxu0
    %v2608 = vadd.f32 %v2510, %v2607
    %v2609 = vpop.f32.mrb[0].mxu0
    %2610 = vmatprep.mubr.f32.mxu0 0.0
    %2611 = vmatmul.mubr.f32.gmra.mrb[0].mxu0 %v2519
    %v2612 = vpop.f32.mrb[0].mxu0
    %v2613 = vadd.f32 %v2510, %v2612
    %v2614 = vpop.f32.mrb[0].mxu0
    %2615 = vmatprep.mubr.f32.mxu0 0.0
    %2616 = vmatmul.mubr.f32.gmra.mrb[0].mxu0 %v2522
    %v2617 = vpop.f32.mrb[0].mxu0
    %v2618 = vadd.f32 %v2510, %v2617
    %v2619 = vpop.f32.mrb[0].mxu0
    %2620 = vmatprep.mubr.f32.mxu0 0.0
    %2621 = vmatmul.mubr.f32.gmra.mrb[0].mxu0 %v2525
    %v2622 = vpop.f32.mrb[0].mxu0
    %v2623 = vadd.f32 %v2510, %v2622
    %v2624 = vpop.f32.mrb[0].mxu0
    %2625 = vmatprep.mubr.f32.mxu0 0.0
    %2626 = vmatmul.mubr.f32.gmra.mrb[0].mxu0 %v2528
    %v2627 = vpop.f32.mrb[0].mxu0
    %v2628 = vadd.f32 %v2510, %v2627
    %v2629 = vpop.f32.mrb[0].mxu0
    %2630 = vmatprep.mubr.f32.mxu0 0.0
    %2631 = vmatmul.mubr.f32.gmra.mrb[0].mxu0 %v2531
    %v2632 = vpop.f32.mrb[0].mxu0
    %v2633 = vadd.f32 %v2510, %v2632
    %v2634 = vpop.f32.mrb[0].mxu0
    %2635 = vmatprep.mubr.f32.mxu0 0.0
    %2636 = vmatmul.mubr.f32.gmra.mrb[0].mxu0 %v2534
    %v2637 = vpop.f32.mrb[0].mxu0
    %v2638 = vadd.f32 %v2510, %v2637
    %v2639 = vpop.f32.mrb[0].mxu0
    %2640 = vdwg.mxu0
    %2641 = vst.msk [vmem:[#allocation2] sm:$0xff] %vm265, %v2603
    %2642 = vst.msk [vmem:[#allocation2 + $0x8] sm:$0xff] %vm265, %v2608
    %2643 = vst.msk [vmem:[#allocation2 + $0x10] sm:$0xff] %vm265, %v2613
    %2644 = vst.msk [vmem:[#allocation2 + $0x18] sm:$0xff] %vm265, %v2618
    %2645 = vst.msk [vmem:[#allocation2 + $0x20] sm:$0xff] %vm265, %v2623
    %2646 = vst.msk [vmem:[#allocation2 + $0x28] sm:$0xff] %vm265, %v2628
    %2647 = vst.msk [vmem:[#allocation2 + $0x30] sm:$0xff] %vm265, %v2633
    %2648 = vst.msk [vmem:[#allocation2 + $0x38] sm:$0xff] %vm265, %v2638
    %s2649 = scalar_lea.vmem [#allocation12], 32
    %v2650 = vld [vmem:[%s2649] sm:$0xff]
    %v2651 = vld [vmem:[%s2649 + $0x8] sm:$0xff]
    %v2652 = vld [vmem:[%s2649 + $0x10] sm:$0xff]
    %v2653 = vld [vmem:[%s2649 + $0x18] sm:$0xff]
    %s2654 = scalar_lea.vmem %s8, 1
    %v2655 = vld [vmem:[%s2654] sm:$0x1]
    %v2657 = vlaneseq
    %v2658 = vshrl.u32 %v2657, 7
    %v2659 = vsub.s32 0, %v2658
    %v2660 = vrot.slane %v2655, %v2659
    %2662 = vmatprep.subr.mxu0 0.0
    %2663 = vmatpush1.msra.mxu0 %v2650
    %2664 = vmatprep.subr.mxu0 0.0
    %2665 = vmatpush1.msra.mxu0 %v2651
    %2666 = vmatprep.subr.mxu0 0.0
    %2667 = vmatpush1.msra.mxu0 %v2652
    %2668 = vmatprep.subr.mxu0 0.0
    %2669 = vmatpush1.msra.mxu0 %v2653
    %2670 = vmatprep.subr.mxu0 0.0
    %2671 = vmatpush1.msra.mxu0 0.0
    %2672 = vmatprep.subr.mxu0 0.0
    %2673 = vmatpush1.msra.mxu0 0.0
    %2674 = vmatprep.subr.mxu0 0.0
    %2675 = vmatpush1.msra.mxu0 0.0
    %2676 = vmatprep.subr.mxu0 0.0
    %2677 = vmatpush1.msra.mxu0 0.0
    %2678 = vmatprep.subr.mxu0 0.0
    %2679 = vmatpush1.msra.mxu0 0.0
    %2680 = vmatprep.subr.mxu0 0.0
    %2681 = vmatpush1.msra.mxu0 0.0
    %2682 = vmatprep.subr.mxu0 0.0
    %2683 = vmatpush1.msra.mxu0 0.0
    %2684 = vmatprep.subr.mxu0 0.0
    %2685 = vmatpush1.msra.mxu0 0.0
    %2686 = vmatprep.subr.mxu0 0.0
    %2687 = vmatpush1.msra.mxu0 0.0
    %2688 = vmatprep.subr.mxu0 0.0
    %2689 = vmatpush1.msra.mxu0 0.0
    %2690 = vmatprep.subr.mxu0 0.0
    %2691 = vmatpush1.msra.mxu0 0.0
    %2692 = vmatprep.subr.mxu0 0.0
    %2693 = vmatpush1.msra.mxu0 0.0
    %2694 = vmatprep.subr.mxu0 0.0
    %2695 = vmatpush1.msra.mxu0 0.0
    %2696 = vmatprep.subr.mxu0 0.0
    %2697 = vmatpush1.msra.mxu0 0.0
    %2698 = vmatprep.subr.mxu0 0.0
    %2699 = vmatpush1.msra.mxu0 0.0
    %2700 = vmatprep.subr.mxu0 0.0
    %2701 = vmatpush1.msra.mxu0 0.0
    %2702 = vmatprep.subr.mxu0 0.0
    %2703 = vmatpush1.msra.mxu0 0.0
    %2704 = vmatprep.subr.mxu0 0.0
    %2705 = vmatpush1.msra.mxu0 0.0
    %2706 = vmatprep.subr.mxu0 0.0
    %2707 = vmatpush1.msra.mxu0 0.0
    %2708 = vmatprep.subr.mxu0 0.0
    %2709 = vmatpush1.msra.mxu0 0.0
    %2710 = vmatprep.subr.mxu0 0.0
    %2711 = vmatpush1.msra.mxu0 0.0
    %2712 = vmatprep.subr.mxu0 0.0
    %2713 = vmatpush1.msra.mxu0 0.0
    %2714 = vmatprep.subr.mxu0 0.0
    %2715 = vmatpush1.msra.mxu0 0.0
    %2716 = vmatprep.subr.mxu0 0.0
    %2717 = vmatpush1.msra.mxu0 0.0
    %2718 = vmatprep.subr.mxu0 0.0
    %2719 = vmatpush1.msra.mxu0 0.0
    %2720 = vmatprep.subr.mxu0 0.0
    %2721 = vmatpush1.msra.mxu0 0.0
    %2722 = vmatprep.subr.mxu0 0.0
    %2723 = vmatpush1.msra.mxu0 0.0
    %2724 = vmatprep.subr.mxu0 0.0
    %2725 = vmatpush1.msra.mxu0 0.0
    %2726 = vmatprep.mubr.f32.mxu0 0.0
    %2727 = vmatmul.mubr.f32.gmra.mrb[0].mxu0 %v2513
    %v2728 = vpop.f32.mrb[0].mxu0
    %v2729 = vadd.f32 %v2660, %v2728
    %v2730 = vpop.f32.mrb[0].mxu0
    %2731 = vmatprep.mubr.f32.mxu0 0.0
    %2732 = vmatmul.mubr.f32.gmra.mrb[0].mxu0 %v2516
    %v2733 = vpop.f32.mrb[0].mxu0
    %v2734 = vadd.f32 %v2660, %v2733
    %v2735 = vpop.f32.mrb[0].mxu0
    %2736 = vmatprep.mubr.f32.mxu0 0.0
    %2737 = vmatmul.mubr.f32.gmra.mrb[0].mxu0 %v2519
    %v2738 = vpop.f32.mrb[0].mxu0
    %v2739 = vadd.f32 %v2660, %v2738
    %v2740 = vpop.f32.mrb[0].mxu0
    %2741 = vmatprep.mubr.f32.mxu0 0.0
    %2742 = vmatmul.mubr.f32.gmra.mrb[0].mxu0 %v2522
    %v2743 = vpop.f32.mrb[0].mxu0
    %v2744 = vadd.f32 %v2660, %v2743
    %v2745 = vpop.f32.mrb[0].mxu0
    %2746 = vmatprep.mubr.f32.mxu0 0.0
    %2747 = vmatmul.mubr.f32.gmra.mrb[0].mxu0 %v2525
    %v2748 = vpop.f32.mrb[0].mxu0
    %v2749 = vadd.f32 %v2660, %v2748
    %v2750 = vpop.f32.mrb[0].mxu0
    %2751 = vmatprep.mubr.f32.mxu0 0.0
    %2752 = vmatmul.mubr.f32.gmra.mrb[0].mxu0 %v2528
    %v2753 = vpop.f32.mrb[0].mxu0
    %v2754 = vadd.f32 %v2660, %v2753
    %v2755 = vpop.f32.mrb[0].mxu0
    %2756 = vmatprep.mubr.f32.mxu0 0.0
    %2757 = vmatmul.mubr.f32.gmra.mrb[0].mxu0 %v2531
    %v2758 = vpop.f32.mrb[0].mxu0
    %v2759 = vadd.f32 %v2660, %v2758
    %v2760 = vpop.f32.mrb[0].mxu0
    %2761 = vmatprep.mubr.f32.mxu0 0.0
    %2762 = vmatmul.mubr.f32.gmra.mrb[0].mxu0 %v2534
    %v2763 = vpop.f32.mrb[0].mxu0
    %v2764 = vadd.f32 %v2660, %v2763
    %v2765 = vpop.f32.mrb[0].mxu0
    %2766 = vdwg.mxu0
    %2767 = vst.msk [vmem:[#allocation3] sm:$0xff] %vm265, %v2729
    %2768 = vst.msk [vmem:[#allocation3 + $0x8] sm:$0xff] %vm265, %v2734
    %2769 = vst.msk [vmem:[#allocation3 + $0x10] sm:$0xff] %vm265, %v2739
    %2770 = vst.msk [vmem:[#allocation3 + $0x18] sm:$0xff] %vm265, %v2744
    %2771 = vst.msk [vmem:[#allocation3 + $0x20] sm:$0xff] %vm265, %v2749
    %2772 = vst.msk [vmem:[#allocation3 + $0x28] sm:$0xff] %vm265, %v2754
    %2773 = vst.msk [vmem:[#allocation3 + $0x30] sm:$0xff] %vm265, %v2759
    %2774 = vst.msk [vmem:[#allocation3 + $0x38] sm:$0xff] %vm265, %v2764
    %s2775 = scalar_lea.vmem [#allocation12], 64
    %v2776 = vld [vmem:[%s2775] sm:$0xff]
    %v2777 = vld [vmem:[%s2775 + $0x8] sm:$0xff]
    %v2778 = vld [vmem:[%s2775 + $0x10] sm:$0xff]
    %v2779 = vld [vmem:[%s2775 + $0x18] sm:$0xff]
    %s2780 = scalar_lea.vmem %s8, 2
    %v2781 = vld [vmem:[%s2780] sm:$0x1]
    %v2783 = vlaneseq
    %v2784 = vshrl.u32 %v2783, 7
    %v2785 = vsub.s32 0, %v2784
    %v2786 = vrot.slane %v2781, %v2785
    %2788 = vmatprep.subr.mxu0 0.0
    %2789 = vmatpush1.msra.mxu0 %v2776
    %2790 = vmatprep.subr.mxu0 0.0
    %2791 = vmatpush1.msra.mxu0 %v2777
    %2792 = vmatprep.subr.mxu0 0.0
    %2793 = vmatpush1.msra.mxu0 %v2778
    %2794 = vmatprep.subr.mxu0 0.0
    %2795 = vmatpush1.msra.mxu0 %v2779
    %2796 = vmatprep.subr.mxu0 0.0
    %2797 = vmatpush1.msra.mxu0 0.0
    %2798 = vmatprep.subr.mxu0 0.0
    %2799 = vmatpush1.msra.mxu0 0.0
    %2800 = vmatprep.subr.mxu0 0.0
    %2801 = vmatpush1.msra.mxu0 0.0
    %2802 = vmatprep.subr.mxu0 0.0
    %2803 = vmatpush1.msra.mxu0 0.0
    %2804 = vmatprep.subr.mxu0 0.0
    %2805 = vmatpush1.msra.mxu0 0.0
    %2806 = vmatprep.subr.mxu0 0.0
    %2807 = vmatpush1.msra.mxu0 0.0
    %2808 = vmatprep.subr.mxu0 0.0
    %2809 = vmatpush1.msra.mxu0 0.0
    %2810 = vmatprep.subr.mxu0 0.0
    %2811 = vmatpush1.msra.mxu0 0.0
    %2812 = vmatprep.subr.mxu0 0.0
    %2813 = vmatpush1.msra.mxu0 0.0
    %2814 = vmatprep.subr.mxu0 0.0
    %2815 = vmatpush1.msra.mxu0 0.0
    %2816 = vmatprep.subr.mxu0 0.0
    %2817 = vmatpush1.msra.mxu0 0.0
    %2818 = vmatprep.subr.mxu0 0.0
    %2819 = vmatpush1.msra.mxu0 0.0
    %2820 = vmatprep.subr.mxu0 0.0
    %2821 = vmatpush1.msra.mxu0 0.0
    %2822 = vmatprep.subr.mxu0 0.0
    %2823 = vmatpush1.msra.mxu0 0.0
    %2824 = vmatprep.subr.mxu0 0.0
    %2825 = vmatpush1.msra.mxu0 0.0
    %2826 = vmatprep.subr.mxu0 0.0
    %2827 = vmatpush1.msra.mxu0 0.0
    %2828 = vmatprep.subr.mxu0 0.0
    %2829 = vmatpush1.msra.mxu0 0.0
    %2830 = vmatprep.subr.mxu0 0.0
    %2831 = vmatpush1.msra.mxu0 0.0
    %2832 = vmatprep.subr.mxu0 0.0
    %2833 = vmatpush1.msra.mxu0 0.0
    %2834 = vmatprep.subr.mxu0 0.0
    %2835 = vmatpush1.msra.mxu0 0.0
    %2836 = vmatprep.subr.mxu0 0.0
    %2837 = vmatpush1.msra.mxu0 0.0
    %2838 = vmatprep.subr.mxu0 0.0
    %2839 = vmatpush1.msra.mxu0 0.0
    %2840 = vmatprep.subr.mxu0 0.0
    %2841 = vmatpush1.msra.mxu0 0.0
    %2842 = vmatprep.subr.mxu0 0.0
    %2843 = vmatpush1.msra.mxu0 0.0
    %2844 = vmatprep.subr.mxu0 0.0
    %2845 = vmatpush1.msra.mxu0 0.0
    %2846 = vmatprep.subr.mxu0 0.0
    %2847 = vmatpush1.msra.mxu0 0.0
    %2848 = vmatprep.subr.mxu0 0.0
    %2849 = vmatpush1.msra.mxu0 0.0
    %2850 = vmatprep.subr.mxu0 0.0
    %2851 = vmatpush1.msra.mxu0 0.0
    %2852 = vmatprep.mubr.f32.mxu0 0.0
    %2853 = vmatmul.mubr.f32.gmra.mrb[0].mxu0 %v2513
    %v2854 = vpop.f32.mrb[0].mxu0
    %v2855 = vadd.f32 %v2786, %v2854
    %v2856 = vpop.f32.mrb[0].mxu0
    %2857 = vmatprep.mubr.f32.mxu0 0.0
    %2858 = vmatmul.mubr.f32.gmra.mrb[0].mxu0 %v2516
    %v2859 = vpop.f32.mrb[0].mxu0
    %v2860 = vadd.f32 %v2786, %v2859
    %v2861 = vpop.f32.mrb[0].mxu0
    %2862 = vmatprep.mubr.f32.mxu0 0.0
    %2863 = vmatmul.mubr.f32.gmra.mrb[0].mxu0 %v2519
    %v2864 = vpop.f32.mrb[0].mxu0
    %v2865 = vadd.f32 %v2786, %v2864
    %v2866 = vpop.f32.mrb[0].mxu0
    %2867 = vmatprep.mubr.f32.mxu0 0.0
    %2868 = vmatmul.mubr.f32.gmra.mrb[0].mxu0 %v2522
    %v2869 = vpop.f32.mrb[0].mxu0
    %v2870 = vadd.f32 %v2786, %v2869
    %v2871 = vpop.f32.mrb[0].mxu0
    %2872 = vmatprep.mubr.f32.mxu0 0.0
    %2873 = vmatmul.mubr.f32.gmra.mrb[0].mxu0 %v2525
    %v2874 = vpop.f32.mrb[0].mxu0
    %v2875 = vadd.f32 %v2786, %v2874
    %v2876 = vpop.f32.mrb[0].mxu0
    %2877 = vmatprep.mubr.f32.mxu0 0.0
    %2878 = vmatmul.mubr.f32.gmra.mrb[0].mxu0 %v2528
    %v2879 = vpop.f32.mrb[0].mxu0
    %v2880 = vadd.f32 %v2786, %v2879
    %v2881 = vpop.f32.mrb[0].mxu0
    %2882 = vmatprep.mubr.f32.mxu0 0.0
    %2883 = vmatmul.mubr.f32.gmra.mrb[0].mxu0 %v2531
    %v2884 = vpop.f32.mrb[0].mxu0
    %v2885 = vadd.f32 %v2786, %v2884
    %v2886 = vpop.f32.mrb[0].mxu0
    %2887 = vmatprep.mubr.f32.mxu0 0.0
    %2888 = vmatmul.mubr.f32.gmra.mrb[0].mxu0 %v2534
    %v2889 = vpop.f32.mrb[0].mxu0
    %v2890 = vadd.f32 %v2786, %v2889
    %v2891 = vpop.f32.mrb[0].mxu0
    %2892 = vdwg.mxu0
    %2893 = vst.msk [vmem:[#allocation4] sm:$0xff] %vm265, %v2855
    %2894 = vst.msk [vmem:[#allocation4 + $0x8] sm:$0xff] %vm265, %v2860
    %2895 = vst.msk [vmem:[#allocation4 + $0x10] sm:$0xff] %vm265, %v2865
    %2896 = vst.msk [vmem:[#allocation4 + $0x18] sm:$0xff] %vm265, %v2870
    %2897 = vst.msk [vmem:[#allocation4 + $0x20] sm:$0xff] %vm265, %v2875
    %2898 = vst.msk [vmem:[#allocation4 + $0x28] sm:$0xff] %vm265, %v2880
    %2899 = vst.msk [vmem:[#allocation4 + $0x30] sm:$0xff] %vm265, %v2885
    %2900 = vst.msk [vmem:[#allocation4 + $0x38] sm:$0xff] %vm265, %v2890
    %v2901 = vld [vmem:[#allocation14] sm:$0xff]
    %v2902 = vld [vmem:[#allocation14 + $0x8] sm:$0xff]
    %v2903 = vld [vmem:[#allocation14 + $0x10] sm:$0xff]
    %v2904 = vld [vmem:[#allocation14 + $0x18] sm:$0xff]
    %s2905 = scalar_lea.vmem [#allocation14], 32
    %v2906 = vld [vmem:[%s2905] sm:$0xff]
    %v2907 = vld [vmem:[%s2905 + $0x8] sm:$0xff]
    %v2908 = vld [vmem:[%s2905 + $0x10] sm:$0xff]
    %v2909 = vld [vmem:[%s2905 + $0x18] sm:$0xff]
    %s2910 = scalar_lea.vmem [#allocation14], 64
    %v2911 = vld [vmem:[%s2910] sm:$0xff]
    %v2912 = vld [vmem:[%s2910 + $0x8] sm:$0xff]
    %v2913 = vld [vmem:[%s2910 + $0x10] sm:$0xff]
    %v2914 = vld [vmem:[%s2910 + $0x18] sm:$0xff]
    %v2915 = vld [vmem:[%s9] sm:$0x1]
    %v2917 = vlaneseq
    %v2918 = vshrl.u32 %v2917, 7
    %v2919 = vsub.s32 0, %v2918
    %v2920 = vrot.slane %v2915, %v2919
    %s2922 = scalar_lea.vmem %s9, 1
    %v2923 = vld [vmem:[%s2922] sm:$0x1]
    %v2925 = vlaneseq
    %v2926 = vshrl.u32 %v2925, 7
    %v2927 = vsub.s32 0, %v2926
    %v2928 = vrot.slane %v2923, %v2927
    %s2930 = scalar_lea.vmem %s9, 2
    %v2931 = vld [vmem:[%s2930] sm:$0x1]
    %v2933 = vlaneseq
    %v2934 = vshrl.u32 %v2933, 7
    %v2935 = vsub.s32 0, %v2934
    %v2936 = vrot.slane %v2931, %v2935
    %s2938 = scalar_lea.vmem %s1, 8
    %v2939 = vld [vmem:[%s2938] sm:$0xff]
    %v2941 = vsel %vm265, %v2939, 0
    %2943 = vmatprep.subr.mxu0 0.0
    %2944 = vmatpush1.msra.mxu0 %v2901
    %2945 = vmatprep.subr.mxu0 0.0
    %2946 = vmatpush1.msra.mxu0 %v2902
    %2947 = vmatprep.subr.mxu0 0.0
    %2948 = vmatpush1.msra.mxu0 %v2903
    %2949 = vmatprep.subr.mxu0 0.0
    %2950 = vmatpush1.msra.mxu0 %v2904
    %2951 = vmatprep.subr.mxu0 0.0
    %2952 = vmatpush1.msra.mxu0 0.0
    %2953 = vmatprep.subr.mxu0 0.0
    %2954 = vmatpush1.msra.mxu0 0.0
    %2955 = vmatprep.subr.mxu0 0.0
    %2956 = vmatpush1.msra.mxu0 0.0
    %2957 = vmatprep.subr.mxu0 0.0
    %2958 = vmatpush1.msra.mxu0 0.0
    %2959 = vmatprep.subr.mxu0 0.0
    %2960 = vmatpush1.msra.mxu0 0.0
    %2961 = vmatprep.subr.mxu0 0.0
    %2962 = vmatpush1.msra.mxu0 0.0
    %2963 = vmatprep.subr.mxu0 0.0
    %2964 = vmatpush1.msra.mxu0 0.0
    %2965 = vmatprep.subr.mxu0 0.0
    %2966 = vmatpush1.msra.mxu0 0.0
    %2967 = vmatprep.subr.mxu0 0.0
    %2968 = vmatpush1.msra.mxu0 0.0
    %2969 = vmatprep.subr.mxu0 0.0
    %2970 = vmatpush1.msra.mxu0 0.0
    %2971 = vmatprep.subr.mxu0 0.0
    %2972 = vmatpush1.msra.mxu0 0.0
    %2973 = vmatprep.subr.mxu0 0.0
    %2974 = vmatpush1.msra.mxu0 0.0
    %2975 = vmatprep.subr.mxu0 0.0
    %2976 = vmatpush1.msra.mxu0 0.0
    %2977 = vmatprep.subr.mxu0 0.0
    %2978 = vmatpush1.msra.mxu0 0.0
    %2979 = vmatprep.subr.mxu0 0.0
    %2980 = vmatpush1.msra.mxu0 0.0
    %2981 = vmatprep.subr.mxu0 0.0
    %2982 = vmatpush1.msra.mxu0 0.0
    %2983 = vmatprep.subr.mxu0 0.0
    %2984 = vmatpush1.msra.mxu0 0.0
    %2985 = vmatprep.subr.mxu0 0.0
    %2986 = vmatpush1.msra.mxu0 0.0
    %2987 = vmatprep.subr.mxu0 0.0
    %2988 = vmatpush1.msra.mxu0 0.0
    %2989 = vmatprep.subr.mxu0 0.0
    %2990 = vmatpush1.msra.mxu0 0.0
    %2991 = vmatprep.subr.mxu0 0.0
    %2992 = vmatpush1.msra.mxu0 0.0
    %2993 = vmatprep.subr.mxu0 0.0
    %2994 = vmatpush1.msra.mxu0 0.0
    %2995 = vmatprep.subr.mxu0 0.0
    %2996 = vmatpush1.msra.mxu0 0.0
    %2997 = vmatprep.subr.mxu0 0.0
    %2998 = vmatpush1.msra.mxu0 0.0
    %2999 = vmatprep.subr.mxu0 0.0
    %3000 = vmatpush1.msra.mxu0 0.0
    %3001 = vmatprep.subr.mxu0 0.0
    %3002 = vmatpush1.msra.mxu0 0.0
    %3003 = vmatprep.subr.mxu0 0.0
    %3004 = vmatpush1.msra.mxu0 0.0
    %3005 = vmatprep.subr.mxu0 0.0
    %3006 = vmatpush1.msra.mxu0 0.0
    %3007 = vmatprep.mubr.f32.mxu0 0.0
    %3008 = vmatmul.mubr.f32.gmra.mrb[0].mxu0 %v2941
    %v3009 = vpop.f32.mrb[0].mxu0
    %v3010 = vadd.f32 %v2920, %v3009
    %v3011 = vpop.f32.mrb[0].mxu0
    %3012 = vdwg.mxu0
    %3013 = vmatprep.subr.mxu0 0.0
    %3014 = vmatpush1.msra.mxu0 %v2906
    %3015 = vmatprep.subr.mxu0 0.0
    %3016 = vmatpush1.msra.mxu0 %v2907
    %3017 = vmatprep.subr.mxu0 0.0
    %3018 = vmatpush1.msra.mxu0 %v2908
    %3019 = vmatprep.subr.mxu0 0.0
    %3020 = vmatpush1.msra.mxu0 %v2909
    %3021 = vmatprep.subr.mxu0 0.0
    %3022 = vmatpush1.msra.mxu0 0.0
    %3023 = vmatprep.subr.mxu0 0.0
    %3024 = vmatpush1.msra.mxu0 0.0
    %3025 = vmatprep.subr.mxu0 0.0
    %3026 = vmatpush1.msra.mxu0 0.0
    %3027 = vmatprep.subr.mxu0 0.0
    %3028 = vmatpush1.msra.mxu0 0.0
    %3029 = vmatprep.subr.mxu0 0.0
    %3030 = vmatpush1.msra.mxu0 0.0
    %3031 = vmatprep.subr.mxu0 0.0
    %3032 = vmatpush1.msra.mxu0 0.0
    %3033 = vmatprep.subr.mxu0 0.0
    %3034 = vmatpush1.msra.mxu0 0.0
    %3035 = vmatprep.subr.mxu0 0.0
    %3036 = vmatpush1.msra.mxu0 0.0
    %3037 = vmatprep.subr.mxu0 0.0
    %3038 = vmatpush1.msra.mxu0 0.0
    %3039 = vmatprep.subr.mxu0 0.0
    %3040 = vmatpush1.msra.mxu0 0.0
    %3041 = vmatprep.subr.mxu0 0.0
    %3042 = vmatpush1.msra.mxu0 0.0
    %3043 = vmatprep.subr.mxu0 0.0
    %3044 = vmatpush1.msra.mxu0 0.0
    %3045 = vmatprep.subr.mxu0 0.0
    %3046 = vmatpush1.msra.mxu0 0.0
    %3047 = vmatprep.subr.mxu0 0.0
    %3048 = vmatpush1.msra.mxu0 0.0
    %3049 = vmatprep.subr.mxu0 0.0
    %3050 = vmatpush1.msra.mxu0 0.0
    %3051 = vmatprep.subr.mxu0 0.0
    %3052 = vmatpush1.msra.mxu0 0.0
    %3053 = vmatprep.subr.mxu0 0.0
    %3054 = vmatpush1.msra.mxu0 0.0
    %3055 = vmatprep.subr.mxu0 0.0
    %3056 = vmatpush1.msra.mxu0 0.0
    %3057 = vmatprep.subr.mxu0 0.0
    %3058 = vmatpush1.msra.mxu0 0.0
    %3059 = vmatprep.subr.mxu0 0.0
    %3060 = vmatpush1.msra.mxu0 0.0
    %3061 = vmatprep.subr.mxu0 0.0
    %3062 = vmatpush1.msra.mxu0 0.0
    %3063 = vmatprep.subr.mxu0 0.0
    %3064 = vmatpush1.msra.mxu0 0.0
    %3065 = vmatprep.subr.mxu0 0.0
    %3066 = vmatpush1.msra.mxu0 0.0
    %3067 = vmatprep.subr.mxu0 0.0
    %3068 = vmatpush1.msra.mxu0 0.0
    %3069 = vmatprep.subr.mxu0 0.0
    %3070 = vmatpush1.msra.mxu0 0.0
    %3071 = vmatprep.subr.mxu0 0.0
    %3072 = vmatpush1.msra.mxu0 0.0
    %3073 = vmatprep.subr.mxu0 0.0
    %3074 = vmatpush1.msra.mxu0 0.0
    %3075 = vmatprep.subr.mxu0 0.0
    %3076 = vmatpush1.msra.mxu0 0.0
    %3077 = vmatprep.mubr.f32.mxu0 0.0
    %3078 = vmatmul.mubr.f32.gmra.mrb[0].mxu0 %v2941
    %v3079 = vpop.f32.mrb[0].mxu0
    %v3080 = vadd.f32 %v2928, %v3079
    %v3081 = vpop.f32.mrb[0].mxu0
    %3082 = vdwg.mxu0
    %3083 = vmatprep.subr.mxu0 0.0
    %3084 = vmatpush1.msra.mxu0 %v2911
    %3085 = vmatprep.subr.mxu0 0.0
    %3086 = vmatpush1.msra.mxu0 %v2912
    %3087 = vmatprep.subr.mxu0 0.0
    %3088 = vmatpush1.msra.mxu0 %v2913
    %3089 = vmatprep.subr.mxu0 0.0
    %3090 = vmatpush1.msra.mxu0 %v2914
    %3091 = vmatprep.subr.mxu0 0.0
    %3092 = vmatpush1.msra.mxu0 0.0
    %3093 = vmatprep.subr.mxu0 0.0
    %3094 = vmatpush1.msra.mxu0 0.0
    %3095 = vmatprep.subr.mxu0 0.0
    %3096 = vmatpush1.msra.mxu0 0.0
    %3097 = vmatprep.subr.mxu0 0.0
    %3098 = vmatpush1.msra.mxu0 0.0
    %3099 = vmatprep.subr.mxu0 0.0
    %3100 = vmatpush1.msra.mxu0 0.0
    %3101 = vmatprep.subr.mxu0 0.0
    %3102 = vmatpush1.msra.mxu0 0.0
    %3103 = vmatprep.subr.mxu0 0.0
    %3104 = vmatpush1.msra.mxu0 0.0
    %3105 = vmatprep.subr.mxu0 0.0
    %3106 = vmatpush1.msra.mxu0 0.0
    %3107 = vmatprep.subr.mxu0 0.0
    %3108 = vmatpush1.msra.mxu0 0.0
    %3109 = vmatprep.subr.mxu0 0.0
    %3110 = vmatpush1.msra.mxu0 0.0
    %3111 = vmatprep.subr.mxu0 0.0
    %3112 = vmatpush1.msra.mxu0 0.0
    %3113 = vmatprep.subr.mxu0 0.0
    %3114 = vmatpush1.msra.mxu0 0.0
    %3115 = vmatprep.subr.mxu0 0.0
    %3116 = vmatpush1.msra.mxu0 0.0
    %3117 = vmatprep.subr.mxu0 0.0
    %3118 = vmatpush1.msra.mxu0 0.0
    %3119 = vmatprep.subr.mxu0 0.0
    %3120 = vmatpush1.msra.mxu0 0.0
    %3121 = vmatprep.subr.mxu0 0.0
    %3122 = vmatpush1.msra.mxu0 0.0
    %3123 = vmatprep.subr.mxu0 0.0
    %3124 = vmatpush1.msra.mxu0 0.0
    %3125 = vmatprep.subr.mxu0 0.0
    %3126 = vmatpush1.msra.mxu0 0.0
    %3127 = vmatprep.subr.mxu0 0.0
    %3128 = vmatpush1.msra.mxu0 0.0
    %3129 = vmatprep.subr.mxu0 0.0
    %3130 = vmatpush1.msra.mxu0 0.0
    %3131 = vmatprep.subr.mxu0 0.0
    %3132 = vmatpush1.msra.mxu0 0.0
    %3133 = vmatprep.subr.mxu0 0.0
    %3134 = vmatpush1.msra.mxu0 0.0
    %3135 = vmatprep.subr.mxu0 0.0
    %3136 = vmatpush1.msra.mxu0 0.0
    %3137 = vmatprep.subr.mxu0 0.0
    %3138 = vmatpush1.msra.mxu0 0.0
    %3139 = vmatprep.subr.mxu0 0.0
    %3140 = vmatpush1.msra.mxu0 0.0
    %3141 = vmatprep.subr.mxu0 0.0
    %3142 = vmatpush1.msra.mxu0 0.0
    %3143 = vmatprep.subr.mxu0 0.0
    %3144 = vmatpush1.msra.mxu0 0.0
    %3145 = vmatprep.subr.mxu0 0.0
    %3146 = vmatpush1.msra.mxu0 0.0
    %3147 = vmatprep.mubr.f32.mxu0 0.0
    %3148 = vmatmul.mubr.f32.gmra.mrb[0].mxu0 %v2941
    %v3149 = vpop.f32.mrb[0].mxu0
    %v3150 = vadd.f32 %v2936, %v3149
    %v3151 = vpop.f32.mrb[0].mxu0
    %3152 = vdwg.mxu0
    %v3153 = vld [vmem:[#allocation2] sm:$0xff]
    %v3154 = vadd.f32 %v3153, %v3010
    %v3155 = vxor.u32 %v3154, 2147483648
    %v3156 = vmul.f32 %v3155, 1.442695
    %v3157 = vpow.pop %v3156
    %v3158 = vadd.f32 %v3157, 1.0
    %v3159 = vrcp.pop %v3158
    %v3160 = vmul.f32 1.0, %v3159
    %v3161 = vld [vmem:[#allocation3] sm:$0xff]
    %v3162 = vadd.f32 %v3161, %v3080
    %v3163 = vxor.u32 %v3162, 2147483648
    %v3164 = vmul.f32 %v3163, 1.442695
    %v3165 = vpow.pop %v3164
    %v3166 = vadd.f32 %v3165, 1.0
    %v3167 = vrcp.pop %v3166
    %v3168 = vmul.f32 1.0, %v3167
    %v3169 = vld [vmem:[#allocation4] sm:$0xff]
    %v3170 = vmul.f32 %v3160, %v3150
    %v3171 = vadd.f32 %v3169, %v3170
    %v3172 = vtanh.pop %v3171
    %v3173 = vsub.f32 1.0, %v3168
    %v3174 = vmul.f32 %v3173, %v3172
    %v3175 = vmul.f32 %v3168, %v2939
    %v3176 = vadd.f32 %v3174, %v3175
    %3177 = vst.msk [vmem:[#allocation5] sm:$0xff] %vm265, %v3176
    %v3179 = vsel %vm265, %v3176, 0
    %3181 = vmatprep.subr.mxu0 0.0
    %3182 = vmatpush1.msra.mxu0 %v2901
    %3183 = vmatprep.subr.mxu0 0.0
    %3184 = vmatpush1.msra.mxu0 %v2902
    %3185 = vmatprep.subr.mxu0 0.0
    %3186 = vmatpush1.msra.mxu0 %v2903
    %3187 = vmatprep.subr.mxu0 0.0
    %3188 = vmatpush1.msra.mxu0 %v2904
    %3189 = vmatprep.subr.mxu0 0.0
    %3190 = vmatpush1.msra.mxu0 0.0
    %3191 = vmatprep.subr.mxu0 0.0
    %3192 = vmatpush1.msra.mxu0 0.0
    %3193 = vmatprep.subr.mxu0 0.0
    %3194 = vmatpush1.msra.mxu0 0.0
    %3195 = vmatprep.subr.mxu0 0.0
    %3196 = vmatpush1.msra.mxu0 0.0
    %3197 = vmatprep.subr.mxu0 0.0
    %3198 = vmatpush1.msra.mxu0 0.0
    %3199 = vmatprep.subr.mxu0 0.0
    %3200 = vmatpush1.msra.mxu0 0.0
    %3201 = vmatprep.subr.mxu0 0.0
    %3202 = vmatpush1.msra.mxu0 0.0
    %3203 = vmatprep.subr.mxu0 0.0
    %3204 = vmatpush1.msra.mxu0 0.0
    %3205 = vmatprep.subr.mxu0 0.0
    %3206 = vmatpush1.msra.mxu0 0.0
    %3207 = vmatprep.subr.mxu0 0.0
    %3208 = vmatpush1.msra.mxu0 0.0
    %3209 = vmatprep.subr.mxu0 0.0
    %3210 = vmatpush1.msra.mxu0 0.0
    %3211 = vmatprep.subr.mxu0 0.0
    %3212 = vmatpush1.msra.mxu0 0.0
    %3213 = vmatprep.subr.mxu0 0.0
    %3214 = vmatpush1.msra.mxu0 0.0
    %3215 = vmatprep.subr.mxu0 0.0
    %3216 = vmatpush1.msra.mxu0 0.0
    %3217 = vmatprep.subr.mxu0 0.0
    %3218 = vmatpush1.msra.mxu0 0.0
    %3219 = vmatprep.subr.mxu0 0.0
    %3220 = vmatpush1.msra.mxu0 0.0
    %3221 = vmatprep.subr.mxu0 0.0
    %3222 = vmatpush1.msra.mxu0 0.0
    %3223 = vmatprep.subr.mxu0 0.0
    %3224 = vmatpush1.msra.mxu0 0.0
    %3225 = vmatprep.subr.mxu0 0.0
    %3226 = vmatpush1.msra.mxu0 0.0
    %3227 = vmatprep.subr.mxu0 0.0
    %3228 = vmatpush1.msra.mxu0 0.0
    %3229 = vmatprep.subr.mxu0 0.0
    %3230 = vmatpush1.msra.mxu0 0.0
    %3231 = vmatprep.subr.mxu0 0.0
    %3232 = vmatpush1.msra.mxu0 0.0
    %3233 = vmatprep.subr.mxu0 0.0
    %3234 = vmatpush1.msra.mxu0 0.0
    %3235 = vmatprep.subr.mxu0 0.0
    %3236 = vmatpush1.msra.mxu0 0.0
    %3237 = vmatprep.subr.mxu0 0.0
    %3238 = vmatpush1.msra.mxu0 0.0
    %3239 = vmatprep.subr.mxu0 0.0
    %3240 = vmatpush1.msra.mxu0 0.0
    %3241 = vmatprep.subr.mxu0 0.0
    %3242 = vmatpush1.msra.mxu0 0.0
    %3243 = vmatprep.subr.mxu0 0.0
    %3244 = vmatpush1.msra.mxu0 0.0
    %3245 = vmatprep.mubr.f32.mxu0 0.0
    %3246 = vmatmul.mubr.f32.gmra.mrb[0].mxu0 %v3179
    %v3247 = vpop.f32.mrb[0].mxu0
    %v3248 = vadd.f32 %v2920, %v3247
    %v3249 = vpop.f32.mrb[0].mxu0
    %3250 = vdwg.mxu0
    %3251 = vmatprep.subr.mxu0 0.0
    %3252 = vmatpush1.msra.mxu0 %v2906
    %3253 = vmatprep.subr.mxu0 0.0
    %3254 = vmatpush1.msra.mxu0 %v2907
    %3255 = vmatprep.subr.mxu0 0.0
    %3256 = vmatpush1.msra.mxu0 %v2908
    %3257 = vmatprep.subr.mxu0 0.0
    %3258 = vmatpush1.msra.mxu0 %v2909
    %3259 = vmatprep.subr.mxu0 0.0
    %3260 = vmatpush1.msra.mxu0 0.0
    %3261 = vmatprep.subr.mxu0 0.0
    %3262 = vmatpush1.msra.mxu0 0.0
    %3263 = vmatprep.subr.mxu0 0.0
    %3264 = vmatpush1.msra.mxu0 0.0
    %3265 = vmatprep.subr.mxu0 0.0
    %3266 = vmatpush1.msra.mxu0 0.0
    %3267 = vmatprep.subr.mxu0 0.0
    %3268 = vmatpush1.msra.mxu0 0.0
    %3269 = vmatprep.subr.mxu0 0.0
    %3270 = vmatpush1.msra.mxu0 0.0
    %3271 = vmatprep.subr.mxu0 0.0
    %3272 = vmatpush1.msra.mxu0 0.0
    %3273 = vmatprep.subr.mxu0 0.0
    %3274 = vmatpush1.msra.mxu0 0.0
    %3275 = vmatprep.subr.mxu0 0.0
    %3276 = vmatpush1.msra.mxu0 0.0
    %3277 = vmatprep.subr.mxu0 0.0
    %3278 = vmatpush1.msra.mxu0 0.0
    %3279 = vmatprep.subr.mxu0 0.0
    %3280 = vmatpush1.msra.mxu0 0.0
    %3281 = vmatprep.subr.mxu0 0.0
    %3282 = vmatpush1.msra.mxu0 0.0
    %3283 = vmatprep.subr.mxu0 0.0
    %3284 = vmatpush1.msra.mxu0 0.0
    %3285 = vmatprep.subr.mxu0 0.0
    %3286 = vmatpush1.msra.mxu0 0.0
    %3287 = vmatprep.subr.mxu0 0.0
    %3288 = vmatpush1.msra.mxu0 0.0
    %3289 = vmatprep.subr.mxu0 0.0
    %3290 = vmatpush1.msra.mxu0 0.0
    %3291 = vmatprep.subr.mxu0 0.0
    %3292 = vmatpush1.msra.mxu0 0.0
    %3293 = vmatprep.subr.mxu0 0.0
    %3294 = vmatpush1.msra.mxu0 0.0
    %3295 = vmatprep.subr.mxu0 0.0
    %3296 = vmatpush1.msra.mxu0 0.0
    %3297 = vmatprep.subr.mxu0 0.0
    %3298 = vmatpush1.msra.mxu0 0.0
    %3299 = vmatprep.subr.mxu0 0.0
    %3300 = vmatpush1.msra.mxu0 0.0
    %3301 = vmatprep.subr.mxu0 0.0
    %3302 = vmatpush1.msra.mxu0 0.0
    %3303 = vmatprep.subr.mxu0 0.0
    %3304 = vmatpush1.msra.mxu0 0.0
    %3305 = vmatprep.subr.mxu0 0.0
    %3306 = vmatpush1.msra.mxu0 0.0
    %3307 = vmatprep.subr.mxu0 0.0
    %3308 = vmatpush1.msra.mxu0 0.0
    %3309 = vmatprep.subr.mxu0 0.0
    %3310 = vmatpush1.msra.mxu0 0.0
    %3311 = vmatprep.subr.mxu0 0.0
    %3312 = vmatpush1.msra.mxu0 0.0
    %3313 = vmatprep.subr.mxu0 0.0
    %3314 = vmatpush1.msra.mxu0 0.0
    %3315 = vmatprep.mubr.f32.mxu0 0.0
    %3316 = vmatmul.mubr.f32.gmra.mrb[0].mxu0 %v3179
    %v3317 = vpop.f32.mrb[0].mxu0
    %v3318 = vadd.f32 %v2928, %v3317
    %v3319 = vpop.f32.mrb[0].mxu0
    %3320 = vdwg.mxu0
    %3321 = vmatprep.subr.mxu0 0.0
    %3322 = vmatpush1.msra.mxu0 %v2911
    %3323 = vmatprep.subr.mxu0 0.0
    %3324 = vmatpush1.msra.mxu0 %v2912
    %3325 = vmatprep.subr.mxu0 0.0
    %3326 = vmatpush1.msra.mxu0 %v2913
    %3327 = vmatprep.subr.mxu0 0.0
    %3328 = vmatpush1.msra.mxu0 %v2914
    %3329 = vmatprep.subr.mxu0 0.0
    %3330 = vmatpush1.msra.mxu0 0.0
    %3331 = vmatprep.subr.mxu0 0.0
    %3332 = vmatpush1.msra.mxu0 0.0
    %3333 = vmatprep.subr.mxu0 0.0
    %3334 = vmatpush1.msra.mxu0 0.0
    %3335 = vmatprep.subr.mxu0 0.0
    %3336 = vmatpush1.msra.mxu0 0.0
    %3337 = vmatprep.subr.mxu0 0.0
    %3338 = vmatpush1.msra.mxu0 0.0
    %3339 = vmatprep.subr.mxu0 0.0
    %3340 = vmatpush1.msra.mxu0 0.0
    %3341 = vmatprep.subr.mxu0 0.0
    %3342 = vmatpush1.msra.mxu0 0.0
    %3343 = vmatprep.subr.mxu0 0.0
    %3344 = vmatpush1.msra.mxu0 0.0
    %3345 = vmatprep.subr.mxu0 0.0
    %3346 = vmatpush1.msra.mxu0 0.0
    %3347 = vmatprep.subr.mxu0 0.0
    %3348 = vmatpush1.msra.mxu0 0.0
    %3349 = vmatprep.subr.mxu0 0.0
    %3350 = vmatpush1.msra.mxu0 0.0
    %3351 = vmatprep.subr.mxu0 0.0
    %3352 = vmatpush1.msra.mxu0 0.0
    %3353 = vmatprep.subr.mxu0 0.0
    %3354 = vmatpush1.msra.mxu0 0.0
    %3355 = vmatprep.subr.mxu0 0.0
    %3356 = vmatpush1.msra.mxu0 0.0
    %3357 = vmatprep.subr.mxu0 0.0
    %3358 = vmatpush1.msra.mxu0 0.0
    %3359 = vmatprep.subr.mxu0 0.0
    %3360 = vmatpush1.msra.mxu0 0.0
    %3361 = vmatprep.subr.mxu0 0.0
    %3362 = vmatpush1.msra.mxu0 0.0
    %3363 = vmatprep.subr.mxu0 0.0
    %3364 = vmatpush1.msra.mxu0 0.0
    %3365 = vmatprep.subr.mxu0 0.0
    %3366 = vmatpush1.msra.mxu0 0.0
    %3367 = vmatprep.subr.mxu0 0.0
    %3368 = vmatpush1.msra.mxu0 0.0
    %3369 = vmatprep.subr.mxu0 0.0
    %3370 = vmatpush1.msra.mxu0 0.0
    %3371 = vmatprep.subr.mxu0 0.0
    %3372 = vmatpush1.msra.mxu0 0.0
    %3373 = vmatprep.subr.mxu0 0.0
    %3374 = vmatpush1.msra.mxu0 0.0
    %3375 = vmatprep.subr.mxu0 0.0
    %3376 = vmatpush1.msra.mxu0 0.0
    %3377 = vmatprep.subr.mxu0 0.0
    %3378 = vmatpush1.msra.mxu0 0.0
    %3379 = vmatprep.subr.mxu0 0.0
    %3380 = vmatpush1.msra.mxu0 0.0
    %3381 = vmatprep.subr.mxu0 0.0
    %3382 = vmatpush1.msra.mxu0 0.0
    %3383 = vmatprep.subr.mxu0 0.0
    %3384 = vmatpush1.msra.mxu0 0.0
    %3385 = vmatprep.mubr.f32.mxu0 0.0
    %3386 = vmatmul.mubr.f32.gmra.mrb[0].mxu0 %v3179
    %v3387 = vpop.f32.mrb[0].mxu0
    %v3388 = vadd.f32 %v2936, %v3387
    %v3389 = vpop.f32.mrb[0].mxu0
    %3390 = vdwg.mxu0
    %v3391 = vld [vmem:[%s1011] sm:$0xff]
    %v3392 = vadd.f32 %v3391, %v3248
    %v3393 = vxor.u32 %v3392, 2147483648
    %v3394 = vmul.f32 %v3393, 1.442695
    %v3395 = vpow.pop %v3394
    %v3396 = vadd.f32 %v3395, 1.0
    %v3397 = vrcp.pop %v3396
    %v3398 = vmul.f32 1.0, %v3397
    %v3399 = vld [vmem:[%s1020] sm:$0xff]
    %v3400 = vadd.f32 %v3399, %v3318
    %v3401 = vxor.u32 %v3400, 2147483648
    %v3402 = vmul.f32 %v3401, 1.442695
    %v3403 = vpow.pop %v3402
    %v3404 = vadd.f32 %v3403, 1.0
    %v3405 = vrcp.pop %v3404
    %v3406 = vmul.f32 1.0, %v3405
    %v3407 = vld [vmem:[%s1029] sm:$0xff]
    %v3408 = vmul.f32 %v3398, %v3388
    %v3409 = vadd.f32 %v3407, %v3408
    %v3410 = vtanh.pop %v3409
    %v3411 = vsub.f32 1.0, %v3406
    %v3412 = vmul.f32 %v3411, %v3410
    %v3413 = vmul.f32 %v3406, %v3176
    %v3414 = vadd.f32 %v3412, %v3413
    %3415 = vst.msk [vmem:[%s1038] sm:$0xff] %vm265, %v3414
    %v3417 = vsel %vm265, %v3414, 0
    %3419 = vmatprep.subr.mxu0 0.0
    %3420 = vmatpush1.msra.mxu0 %v2901
    %3421 = vmatprep.subr.mxu0 0.0
    %3422 = vmatpush1.msra.mxu0 %v2902
    %3423 = vmatprep.subr.mxu0 0.0
    %3424 = vmatpush1.msra.mxu0 %v2903
    %3425 = vmatprep.subr.mxu0 0.0
    %3426 = vmatpush1.msra.mxu0 %v2904
    %3427 = vmatprep.subr.mxu0 0.0
    %3428 = vmatpush1.msra.mxu0 0.0
    %3429 = vmatprep.subr.mxu0 0.0
    %3430 = vmatpush1.msra.mxu0 0.0
    %3431 = vmatprep.subr.mxu0 0.0
    %3432 = vmatpush1.msra.mxu0 0.0
    %3433 = vmatprep.subr.mxu0 0.0
    %3434 = vmatpush1.msra.mxu0 0.0
    %3435 = vmatprep.subr.mxu0 0.0
    %3436 = vmatpush1.msra.mxu0 0.0
    %3437 = vmatprep.subr.mxu0 0.0
    %3438 = vmatpush1.msra.mxu0 0.0
    %3439 = vmatprep.subr.mxu0 0.0
    %3440 = vmatpush1.msra.mxu0 0.0
    %3441 = vmatprep.subr.mxu0 0.0
    %3442 = vmatpush1.msra.mxu0 0.0
    %3443 = vmatprep.subr.mxu0 0.0
    %3444 = vmatpush1.msra.mxu0 0.0
    %3445 = vmatprep.subr.mxu0 0.0
    %3446 = vmatpush1.msra.mxu0 0.0
    %3447 = vmatprep.subr.mxu0 0.0
    %3448 = vmatpush1.msra.mxu0 0.0
    %3449 = vmatprep.subr.mxu0 0.0
    %3450 = vmatpush1.msra.mxu0 0.0
    %3451 = vmatprep.subr.mxu0 0.0
    %3452 = vmatpush1.msra.mxu0 0.0
    %3453 = vmatprep.subr.mxu0 0.0
    %3454 = vmatpush1.msra.mxu0 0.0
    %3455 = vmatprep.subr.mxu0 0.0
    %3456 = vmatpush1.msra.mxu0 0.0
    %3457 = vmatprep.subr.mxu0 0.0
    %3458 = vmatpush1.msra.mxu0 0.0
    %3459 = vmatprep.subr.mxu0 0.0
    %3460 = vmatpush1.msra.mxu0 0.0
    %3461 = vmatprep.subr.mxu0 0.0
    %3462 = vmatpush1.msra.mxu0 0.0
    %3463 = vmatprep.subr.mxu0 0.0
    %3464 = vmatpush1.msra.mxu0 0.0
    %3465 = vmatprep.subr.mxu0 0.0
    %3466 = vmatpush1.msra.mxu0 0.0
    %3467 = vmatprep.subr.mxu0 0.0
    %3468 = vmatpush1.msra.mxu0 0.0
    %3469 = vmatprep.subr.mxu0 0.0
    %3470 = vmatpush1.msra.mxu0 0.0
    %3471 = vmatprep.subr.mxu0 0.0
    %3472 = vmatpush1.msra.mxu0 0.0
    %3473 = vmatprep.subr.mxu0 0.0
    %3474 = vmatpush1.msra.mxu0 0.0
    %3475 = vmatprep.subr.mxu0 0.0
    %3476 = vmatpush1.msra.mxu0 0.0
    %3477 = vmatprep.subr.mxu0 0.0
    %3478 = vmatpush1.msra.mxu0 0.0
    %3479 = vmatprep.subr.mxu0 0.0
    %3480 = vmatpush1.msra.mxu0 0.0
    %3481 = vmatprep.subr.mxu0 0.0
    %3482 = vmatpush1.msra.mxu0 0.0
    %3483 = vmatprep.mubr.f32.mxu0 0.0
    %3484 = vmatmul.mubr.f32.gmra.mrb[0].mxu0 %v3417
    %v3485 = vpop.f32.mrb[0].mxu0
    %v3486 = vadd.f32 %v2920, %v3485
    %v3487 = vpop.f32.mrb[0].mxu0
    %3488 = vdwg.mxu0
    %3489 = vmatprep.subr.mxu0 0.0
    %3490 = vmatpush1.msra.mxu0 %v2906
    %3491 = vmatprep.subr.mxu0 0.0
    %3492 = vmatpush1.msra.mxu0 %v2907
    %3493 = vmatprep.subr.mxu0 0.0
    %3494 = vmatpush1.msra.mxu0 %v2908
    %3495 = vmatprep.subr.mxu0 0.0
    %3496 = vmatpush1.msra.mxu0 %v2909
    %3497 = vmatprep.subr.mxu0 0.0
    %3498 = vmatpush1.msra.mxu0 0.0
    %3499 = vmatprep.subr.mxu0 0.0
    %3500 = vmatpush1.msra.mxu0 0.0
    %3501 = vmatprep.subr.mxu0 0.0
    %3502 = vmatpush1.msra.mxu0 0.0
    %3503 = vmatprep.subr.mxu0 0.0
    %3504 = vmatpush1.msra.mxu0 0.0
    %3505 = vmatprep.subr.mxu0 0.0
    %3506 = vmatpush1.msra.mxu0 0.0
    %3507 = vmatprep.subr.mxu0 0.0
    %3508 = vmatpush1.msra.mxu0 0.0
    %3509 = vmatprep.subr.mxu0 0.0
    %3510 = vmatpush1.msra.mxu0 0.0
    %3511 = vmatprep.subr.mxu0 0.0
    %3512 = vmatpush1.msra.mxu0 0.0
    %3513 = vmatprep.subr.mxu0 0.0
    %3514 = vmatpush1.msra.mxu0 0.0
    %3515 = vmatprep.subr.mxu0 0.0
    %3516 = vmatpush1.msra.mxu0 0.0
    %3517 = vmatprep.subr.mxu0 0.0
    %3518 = vmatpush1.msra.mxu0 0.0
    %3519 = vmatprep.subr.mxu0 0.0
    %3520 = vmatpush1.msra.mxu0 0.0
    %3521 = vmatprep.subr.mxu0 0.0
    %3522 = vmatpush1.msra.mxu0 0.0
    %3523 = vmatprep.subr.mxu0 0.0
    %3524 = vmatpush1.msra.mxu0 0.0
    %3525 = vmatprep.subr.mxu0 0.0
    %3526 = vmatpush1.msra.mxu0 0.0
    %3527 = vmatprep.subr.mxu0 0.0
    %3528 = vmatpush1.msra.mxu0 0.0
    %3529 = vmatprep.subr.mxu0 0.0
    %3530 = vmatpush1.msra.mxu0 0.0
    %3531 = vmatprep.subr.mxu0 0.0
    %3532 = vmatpush1.msra.mxu0 0.0
    %3533 = vmatprep.subr.mxu0 0.0
    %3534 = vmatpush1.msra.mxu0 0.0
    %3535 = vmatprep.subr.mxu0 0.0
    %3536 = vmatpush1.msra.mxu0 0.0
    %3537 = vmatprep.subr.mxu0 0.0
    %3538 = vmatpush1.msra.mxu0 0.0
    %3539 = vmatprep.subr.mxu0 0.0
    %3540 = vmatpush1.msra.mxu0 0.0
    %3541 = vmatprep.subr.mxu0 0.0
    %3542 = vmatpush1.msra.mxu0 0.0
    %3543 = vmatprep.subr.mxu0 0.0
    %3544 = vmatpush1.msra.mxu0 0.0
    %3545 = vmatprep.subr.mxu0 0.0
    %3546 = vmatpush1.msra.mxu0 0.0
    %3547 = vmatprep.subr.mxu0 0.0
    %3548 = vmatpush1.msra.mxu0 0.0
    %3549 = vmatprep.subr.mxu0 0.0
    %3550 = vmatpush1.msra.mxu0 0.0
    %3551 = vmatprep.subr.mxu0 0.0
    %3552 = vmatpush1.msra.mxu0 0.0
    %3553 = vmatprep.mubr.f32.mxu0 0.0
    %3554 = vmatmul.mubr.f32.gmra.mrb[0].mxu0 %v3417
    %v3555 = vpop.f32.mrb[0].mxu0
    %v3556 = vadd.f32 %v2928, %v3555
    %v3557 = vpop.f32.mrb[0].mxu0
    %3558 = vdwg.mxu0
    %3559 = vmatprep.subr.mxu0 0.0
    %3560 = vmatpush1.msra.mxu0 %v2911
    %3561 = vmatprep.subr.mxu0 0.0
    %3562 = vmatpush1.msra.mxu0 %v2912
    %3563 = vmatprep.subr.mxu0 0.0
    %3564 = vmatpush1.msra.mxu0 %v2913
    %3565 = vmatprep.subr.mxu0 0.0
    %3566 = vmatpush1.msra.mxu0 %v2914
    %3567 = vmatprep.subr.mxu0 0.0
    %3568 = vmatpush1.msra.mxu0 0.0
    %3569 = vmatprep.subr.mxu0 0.0
    %3570 = vmatpush1.msra.mxu0 0.0
    %3571 = vmatprep.subr.mxu0 0.0
    %3572 = vmatpush1.msra.mxu0 0.0
    %3573 = vmatprep.subr.mxu0 0.0
    %3574 = vmatpush1.msra.mxu0 0.0
    %3575 = vmatprep.subr.mxu0 0.0
    %3576 = vmatpush1.msra.mxu0 0.0
    %3577 = vmatprep.subr.mxu0 0.0
    %3578 = vmatpush1.msra.mxu0 0.0
    %3579 = vmatprep.subr.mxu0 0.0
    %3580 = vmatpush1.msra.mxu0 0.0
    %3581 = vmatprep.subr.mxu0 0.0
    %3582 = vmatpush1.msra.mxu0 0.0
    %3583 = vmatprep.subr.mxu0 0.0
    %3584 = vmatpush1.msra.mxu0 0.0
    %3585 = vmatprep.subr.mxu0 0.0
    %3586 = vmatpush1.msra.mxu0 0.0
    %3587 = vmatprep.subr.mxu0 0.0
    %3588 = vmatpush1.msra.mxu0 0.0
    %3589 = vmatprep.subr.mxu0 0.0
    %3590 = vmatpush1.msra.mxu0 0.0
    %3591 = vmatprep.subr.mxu0 0.0
    %3592 = vmatpush1.msra.mxu0 0.0
    %3593 = vmatprep.subr.mxu0 0.0
    %3594 = vmatpush1.msra.mxu0 0.0
    %3595 = vmatprep.subr.mxu0 0.0
    %3596 = vmatpush1.msra.mxu0 0.0
    %3597 = vmatprep.subr.mxu0 0.0
    %3598 = vmatpush1.msra.mxu0 0.0
    %3599 = vmatprep.subr.mxu0 0.0
    %3600 = vmatpush1.msra.mxu0 0.0
    %3601 = vmatprep.subr.mxu0 0.0
    %3602 = vmatpush1.msra.mxu0 0.0
    %3603 = vmatprep.subr.mxu0 0.0
    %3604 = vmatpush1.msra.mxu0 0.0
    %3605 = vmatprep.subr.mxu0 0.0
    %3606 = vmatpush1.msra.mxu0 0.0
    %3607 = vmatprep.subr.mxu0 0.0
    %3608 = vmatpush1.msra.mxu0 0.0
    %3609 = vmatprep.subr.mxu0 0.0
    %3610 = vmatpush1.msra.mxu0 0.0
    %3611 = vmatprep.subr.mxu0 0.0
    %3612 = vmatpush1.msra.mxu0 0.0
    %3613 = vmatprep.subr.mxu0 0.0
    %3614 = vmatpush1.msra.mxu0 0.0
    %3615 = vmatprep.subr.mxu0 0.0
    %3616 = vmatpush1.msra.mxu0 0.0
    %3617 = vmatprep.subr.mxu0 0.0
    %3618 = vmatpush1.msra.mxu0 0.0
    %3619 = vmatprep.subr.mxu0 0.0
    %3620 = vmatpush1.msra.mxu0 0.0
    %3621 = vmatprep.subr.mxu0 0.0
    %3622 = vmatpush1.msra.mxu0 0.0
    %3623 = vmatprep.mubr.f32.mxu0 0.0
    %3624 = vmatmul.mubr.f32.gmra.mrb[0].mxu0 %v3417
    %v3625 = vpop.f32.mrb[0].mxu0
    %v3626 = vadd.f32 %v2936, %v3625
    %v3627 = vpop.f32.mrb[0].mxu0
    %3628 = vdwg.mxu0
    %v3629 = vld [vmem:[%s1253] sm:$0xff]
    %v3630 = vadd.f32 %v3629, %v3486
    %v3631 = vxor.u32 %v3630, 2147483648
    %v3632 = vmul.f32 %v3631, 1.442695
    %v3633 = vpow.pop %v3632
    %v3634 = vadd.f32 %v3633, 1.0
    %v3635 = vrcp.pop %v3634
    %v3636 = vmul.f32 1.0, %v3635
    %v3637 = vld [vmem:[%s1262] sm:$0xff]
    %v3638 = vadd.f32 %v3637, %v3556
    %v3639 = vxor.u32 %v3638, 2147483648
    %v3640 = vmul.f32 %v3639, 1.442695
    %v3641 = vpow.pop %v3640
    %v3642 = vadd.f32 %v3641, 1.0
    %v3643 = vrcp.pop %v3642
    %v3644 = vmul.f32 1.0, %v3643
    %v3645 = vld [vmem:[%s1271] sm:$0xff]
    %v3646 = vmul.f32 %v3636, %v3626
    %v3647 = vadd.f32 %v3645, %v3646
    %v3648 = vtanh.pop %v3647
    %v3649 = vsub.f32 1.0, %v3644
    %v3650 = vmul.f32 %v3649, %v3648
    %v3651 = vmul.f32 %v3644, %v3414
    %v3652 = vadd.f32 %v3650, %v3651
    %3653 = vst.msk [vmem:[%s1280] sm:$0xff] %vm265, %v3652
    %v3655 = vsel %vm265, %v3652, 0
    %3657 = vmatprep.subr.mxu0 0.0
    %3658 = vmatpush1.msra.mxu0 %v2901
    %3659 = vmatprep.subr.mxu0 0.0
    %3660 = vmatpush1.msra.mxu0 %v2902
    %3661 = vmatprep.subr.mxu0 0.0
    %3662 = vmatpush1.msra.mxu0 %v2903
    %3663 = vmatprep.subr.mxu0 0.0
    %3664 = vmatpush1.msra.mxu0 %v2904
    %3665 = vmatprep.subr.mxu0 0.0
    %3666 = vmatpush1.msra.mxu0 0.0
    %3667 = vmatprep.subr.mxu0 0.0
    %3668 = vmatpush1.msra.mxu0 0.0
    %3669 = vmatprep.subr.mxu0 0.0
    %3670 = vmatpush1.msra.mxu0 0.0
    %3671 = vmatprep.subr.mxu0 0.0
    %3672 = vmatpush1.msra.mxu0 0.0
    %3673 = vmatprep.subr.mxu0 0.0
    %3674 = vmatpush1.msra.mxu0 0.0
    %3675 = vmatprep.subr.mxu0 0.0
    %3676 = vmatpush1.msra.mxu0 0.0
    %3677 = vmatprep.subr.mxu0 0.0
    %3678 = vmatpush1.msra.mxu0 0.0
    %3679 = vmatprep.subr.mxu0 0.0
    %3680 = vmatpush1.msra.mxu0 0.0
    %3681 = vmatprep.subr.mxu0 0.0
    %3682 = vmatpush1.msra.mxu0 0.0
    %3683 = vmatprep.subr.mxu0 0.0
    %3684 = vmatpush1.msra.mxu0 0.0
    %3685 = vmatprep.subr.mxu0 0.0
    %3686 = vmatpush1.msra.mxu0 0.0
    %3687 = vmatprep.subr.mxu0 0.0
    %3688 = vmatpush1.msra.mxu0 0.0
    %3689 = vmatprep.subr.mxu0 0.0
    %3690 = vmatpush1.msra.mxu0 0.0
    %3691 = vmatprep.subr.mxu0 0.0
    %3692 = vmatpush1.msra.mxu0 0.0
    %3693 = vmatprep.subr.mxu0 0.0
    %3694 = vmatpush1.msra.mxu0 0.0
    %3695 = vmatprep.subr.mxu0 0.0
    %3696 = vmatpush1.msra.mxu0 0.0
    %3697 = vmatprep.subr.mxu0 0.0
    %3698 = vmatpush1.msra.mxu0 0.0
    %3699 = vmatprep.subr.mxu0 0.0
    %3700 = vmatpush1.msra.mxu0 0.0
    %3701 = vmatprep.subr.mxu0 0.0
    %3702 = vmatpush1.msra.mxu0 0.0
    %3703 = vmatprep.subr.mxu0 0.0
    %3704 = vmatpush1.msra.mxu0 0.0
    %3705 = vmatprep.subr.mxu0 0.0
    %3706 = vmatpush1.msra.mxu0 0.0
    %3707 = vmatprep.subr.mxu0 0.0
    %3708 = vmatpush1.msra.mxu0 0.0
    %3709 = vmatprep.subr.mxu0 0.0
    %3710 = vmatpush1.msra.mxu0 0.0
    %3711 = vmatprep.subr.mxu0 0.0
    %3712 = vmatpush1.msra.mxu0 0.0
    %3713 = vmatprep.subr.mxu0 0.0
    %3714 = vmatpush1.msra.mxu0 0.0
    %3715 = vmatprep.subr.mxu0 0.0
    %3716 = vmatpush1.msra.mxu0 0.0
    %3717 = vmatprep.subr.mxu0 0.0
    %3718 = vmatpush1.msra.mxu0 0.0
    %3719 = vmatprep.subr.mxu0 0.0
    %3720 = vmatpush1.msra.mxu0 0.0
    %3721 = vmatprep.mubr.f32.mxu0 0.0
    %3722 = vmatmul.mubr.f32.gmra.mrb[0].mxu0 %v3655
    %v3723 = vpop.f32.mrb[0].mxu0
    %v3724 = vadd.f32 %v2920, %v3723
    %v3725 = vpop.f32.mrb[0].mxu0
    %3726 = vdwg.mxu0
    %3727 = vmatprep.subr.mxu0 0.0
    %3728 = vmatpush1.msra.mxu0 %v2906
    %3729 = vmatprep.subr.mxu0 0.0
    %3730 = vmatpush1.msra.mxu0 %v2907
    %3731 = vmatprep.subr.mxu0 0.0
    %3732 = vmatpush1.msra.mxu0 %v2908
    %3733 = vmatprep.subr.mxu0 0.0
    %3734 = vmatpush1.msra.mxu0 %v2909
    %3735 = vmatprep.subr.mxu0 0.0
    %3736 = vmatpush1.msra.mxu0 0.0
    %3737 = vmatprep.subr.mxu0 0.0
    %3738 = vmatpush1.msra.mxu0 0.0
    %3739 = vmatprep.subr.mxu0 0.0
    %3740 = vmatpush1.msra.mxu0 0.0
    %3741 = vmatprep.subr.mxu0 0.0
    %3742 = vmatpush1.msra.mxu0 0.0
    %3743 = vmatprep.subr.mxu0 0.0
    %3744 = vmatpush1.msra.mxu0 0.0
    %3745 = vmatprep.subr.mxu0 0.0
    %3746 = vmatpush1.msra.mxu0 0.0
    %3747 = vmatprep.subr.mxu0 0.0
    %3748 = vmatpush1.msra.mxu0 0.0
    %3749 = vmatprep.subr.mxu0 0.0
    %3750 = vmatpush1.msra.mxu0 0.0
    %3751 = vmatprep.subr.mxu0 0.0
    %3752 = vmatpush1.msra.mxu0 0.0
    %3753 = vmatprep.subr.mxu0 0.0
    %3754 = vmatpush1.msra.mxu0 0.0
    %3755 = vmatprep.subr.mxu0 0.0
    %3756 = vmatpush1.msra.mxu0 0.0
    %3757 = vmatprep.subr.mxu0 0.0
    %3758 = vmatpush1.msra.mxu0 0.0
    %3759 = vmatprep.subr.mxu0 0.0
    %3760 = vmatpush1.msra.mxu0 0.0
    %3761 = vmatprep.subr.mxu0 0.0
    %3762 = vmatpush1.msra.mxu0 0.0
    %3763 = vmatprep.subr.mxu0 0.0
    %3764 = vmatpush1.msra.mxu0 0.0
    %3765 = vmatprep.subr.mxu0 0.0
    %3766 = vmatpush1.msra.mxu0 0.0
    %3767 = vmatprep.subr.mxu0 0.0
    %3768 = vmatpush1.msra.mxu0 0.0
    %3769 = vmatprep.subr.mxu0 0.0
    %3770 = vmatpush1.msra.mxu0 0.0
    %3771 = vmatprep.subr.mxu0 0.0
    %3772 = vmatpush1.msra.mxu0 0.0
    %3773 = vmatprep.subr.mxu0 0.0
    %3774 = vmatpush1.msra.mxu0 0.0
    %3775 = vmatprep.subr.mxu0 0.0
    %3776 = vmatpush1.msra.mxu0 0.0
    %3777 = vmatprep.subr.mxu0 0.0
    %3778 = vmatpush1.msra.mxu0 0.0
    %3779 = vmatprep.subr.mxu0 0.0
    %3780 = vmatpush1.msra.mxu0 0.0
    %3781 = vmatprep.subr.mxu0 0.0
    %3782 = vmatpush1.msra.mxu0 0.0
    %3783 = vmatprep.subr.mxu0 0.0
    %3784 = vmatpush1.msra.mxu0 0.0
    %3785 = vmatprep.subr.mxu0 0.0
    %3786 = vmatpush1.msra.mxu0 0.0
    %3787 = vmatprep.subr.mxu0 0.0
    %3788 = vmatpush1.msra.mxu0 0.0
    %3789 = vmatprep.subr.mxu0 0.0
    %3790 = vmatpush1.msra.mxu0 0.0
    %3791 = vmatprep.mubr.f32.mxu0 0.0
    %3792 = vmatmul.mubr.f32.gmra.mrb[0].mxu0 %v3655
    %v3793 = vpop.f32.mrb[0].mxu0
    %v3794 = vadd.f32 %v2928, %v3793
    %v3795 = vpop.f32.mrb[0].mxu0
    %3796 = vdwg.mxu0
    %3797 = vmatprep.subr.mxu0 0.0
    %3798 = vmatpush1.msra.mxu0 %v2911
    %3799 = vmatprep.subr.mxu0 0.0
    %3800 = vmatpush1.msra.mxu0 %v2912
    %3801 = vmatprep.subr.mxu0 0.0
    %3802 = vmatpush1.msra.mxu0 %v2913
    %3803 = vmatprep.subr.mxu0 0.0
    %3804 = vmatpush1.msra.mxu0 %v2914
    %3805 = vmatprep.subr.mxu0 0.0
    %3806 = vmatpush1.msra.mxu0 0.0
    %3807 = vmatprep.subr.mxu0 0.0
    %3808 = vmatpush1.msra.mxu0 0.0
    %3809 = vmatprep.subr.mxu0 0.0
    %3810 = vmatpush1.msra.mxu0 0.0
    %3811 = vmatprep.subr.mxu0 0.0
    %3812 = vmatpush1.msra.mxu0 0.0
    %3813 = vmatprep.subr.mxu0 0.0
    %3814 = vmatpush1.msra.mxu0 0.0
    %3815 = vmatprep.subr.mxu0 0.0
    %3816 = vmatpush1.msra.mxu0 0.0
    %3817 = vmatprep.subr.mxu0 0.0
    %3818 = vmatpush1.msra.mxu0 0.0
    %3819 = vmatprep.subr.mxu0 0.0
    %3820 = vmatpush1.msra.mxu0 0.0
    %3821 = vmatprep.subr.mxu0 0.0
    %3822 = vmatpush1.msra.mxu0 0.0
    %3823 = vmatprep.subr.mxu0 0.0
    %3824 = vmatpush1.msra.mxu0 0.0
    %3825 = vmatprep.subr.mxu0 0.0
    %3826 = vmatpush1.msra.mxu0 0.0
    %3827 = vmatprep.subr.mxu0 0.0
    %3828 = vmatpush1.msra.mxu0 0.0
    %3829 = vmatprep.subr.mxu0 0.0
    %3830 = vmatpush1.msra.mxu0 0.0
    %3831 = vmatprep.subr.mxu0 0.0
    %3832 = vmatpush1.msra.mxu0 0.0
    %3833 = vmatprep.subr.mxu0 0.0
    %3834 = vmatpush1.msra.mxu0 0.0
    %3835 = vmatprep.subr.mxu0 0.0
    %3836 = vmatpush1.msra.mxu0 0.0
    %3837 = vmatprep.subr.mxu0 0.0
    %3838 = vmatpush1.msra.mxu0 0.0
    %3839 = vmatprep.subr.mxu0 0.0
    %3840 = vmatpush1.msra.mxu0 0.0
    %3841 = vmatprep.subr.mxu0 0.0
    %3842 = vmatpush1.msra.mxu0 0.0
    %3843 = vmatprep.subr.mxu0 0.0
    %3844 = vmatpush1.msra.mxu0 0.0
    %3845 = vmatprep.subr.mxu0 0.0
    %3846 = vmatpush1.msra.mxu0 0.0
    %3847 = vmatprep.subr.mxu0 0.0
    %3848 = vmatpush1.msra.mxu0 0.0
    %3849 = vmatprep.subr.mxu0 0.0
    %3850 = vmatpush1.msra.mxu0 0.0
    %3851 = vmatprep.subr.mxu0 0.0
    %3852 = vmatpush1.msra.mxu0 0.0
    %3853 = vmatprep.subr.mxu0 0.0
    %3854 = vmatpush1.msra.mxu0 0.0
    %3855 = vmatprep.subr.mxu0 0.0
    %3856 = vmatpush1.msra.mxu0 0.0
    %3857 = vmatprep.subr.mxu0 0.0
    %3858 = vmatpush1.msra.mxu0 0.0
    %3859 = vmatprep.subr.mxu0 0.0
    %3860 = vmatpush1.msra.mxu0 0.0
    %3861 = vmatprep.mubr.f32.mxu0 0.0
    %3862 = vmatmul.mubr.f32.gmra.mrb[0].mxu0 %v3655
    %v3863 = vpop.f32.mrb[0].mxu0
    %v3864 = vadd.f32 %v2936, %v3863
    %v3865 = vpop.f32.mrb[0].mxu0
    %3866 = vdwg.mxu0
    %v3867 = vld [vmem:[%s1495] sm:$0xff]
    %v3868 = vadd.f32 %v3867, %v3724
    %v3869 = vxor.u32 %v3868, 2147483648
    %v3870 = vmul.f32 %v3869, 1.442695
    %v3871 = vpow.pop %v3870
    %v3872 = vadd.f32 %v3871, 1.0
    %v3873 = vrcp.pop %v3872
    %v3874 = vmul.f32 1.0, %v3873
    %v3875 = vld [vmem:[%s1504] sm:$0xff]
    %v3876 = vadd.f32 %v3875, %v3794
    %v3877 = vxor.u32 %v3876, 2147483648
    %v3878 = vmul.f32 %v3877, 1.442695
    %v3879 = vpow.pop %v3878
    %v3880 = vadd.f32 %v3879, 1.0
    %v3881 = vrcp.pop %v3880
    %v3882 = vmul.f32 1.0, %v3881
    %v3883 = vld [vmem:[%s1513] sm:$0xff]
    %v3884 = vmul.f32 %v3874, %v3864
    %v3885 = vadd.f32 %v3883, %v3884
    %v3886 = vtanh.pop %v3885
    %v3887 = vsub.f32 1.0, %v3882
    %v3888 = vmul.f32 %v3887, %v3886
    %v3889 = vmul.f32 %v3882, %v3652
    %v3890 = vadd.f32 %v3888, %v3889
    %3891 = vst.msk [vmem:[%s1522] sm:$0xff] %vm265, %v3890
    %v3893 = vsel %vm265, %v3890, 0
    %3895 = vmatprep.subr.mxu0 0.0
    %3896 = vmatpush1.msra.mxu0 %v2901
    %3897 = vmatprep.subr.mxu0 0.0
    %3898 = vmatpush1.msra.mxu0 %v2902
    %3899 = vmatprep.subr.mxu0 0.0
    %3900 = vmatpush1.msra.mxu0 %v2903
    %3901 = vmatprep.subr.mxu0 0.0
    %3902 = vmatpush1.msra.mxu0 %v2904
    %3903 = vmatprep.subr.mxu0 0.0
    %3904 = vmatpush1.msra.mxu0 0.0
    %3905 = vmatprep.subr.mxu0 0.0
    %3906 = vmatpush1.msra.mxu0 0.0
    %3907 = vmatprep.subr.mxu0 0.0
    %3908 = vmatpush1.msra.mxu0 0.0
    %3909 = vmatprep.subr.mxu0 0.0
    %3910 = vmatpush1.msra.mxu0 0.0
    %3911 = vmatprep.subr.mxu0 0.0
    %3912 = vmatpush1.msra.mxu0 0.0
    %3913 = vmatprep.subr.mxu0 0.0
    %3914 = vmatpush1.msra.mxu0 0.0
    %3915 = vmatprep.subr.mxu0 0.0
    %3916 = vmatpush1.msra.mxu0 0.0
    %3917 = vmatprep.subr.mxu0 0.0
    %3918 = vmatpush1.msra.mxu0 0.0
    %3919 = vmatprep.subr.mxu0 0.0
    %3920 = vmatpush1.msra.mxu0 0.0
    %3921 = vmatprep.subr.mxu0 0.0
    %3922 = vmatpush1.msra.mxu0 0.0
    %3923 = vmatprep.subr.mxu0 0.0
    %3924 = vmatpush1.msra.mxu0 0.0
    %3925 = vmatprep.subr.mxu0 0.0
    %3926 = vmatpush1.msra.mxu0 0.0
    %3927 = vmatprep.subr.mxu0 0.0
    %3928 = vmatpush1.msra.mxu0 0.0
    %3929 = vmatprep.subr.mxu0 0.0
    %3930 = vmatpush1.msra.mxu0 0.0
    %3931 = vmatprep.subr.mxu0 0.0
    %3932 = vmatpush1.msra.mxu0 0.0
    %3933 = vmatprep.subr.mxu0 0.0
    %3934 = vmatpush1.msra.mxu0 0.0
    %3935 = vmatprep.subr.mxu0 0.0
    %3936 = vmatpush1.msra.mxu0 0.0
    %3937 = vmatprep.subr.mxu0 0.0
    %3938 = vmatpush1.msra.mxu0 0.0
    %3939 = vmatprep.subr.mxu0 0.0
    %3940 = vmatpush1.msra.mxu0 0.0
    %3941 = vmatprep.subr.mxu0 0.0
    %3942 = vmatpush1.msra.mxu0 0.0
    %3943 = vmatprep.subr.mxu0 0.0
    %3944 = vmatpush1.msra.mxu0 0.0
    %3945 = vmatprep.subr.mxu0 0.0
    %3946 = vmatpush1.msra.mxu0 0.0
    %3947 = vmatprep.subr.mxu0 0.0
    %3948 = vmatpush1.msra.mxu0 0.0
    %3949 = vmatprep.subr.mxu0 0.0
    %3950 = vmatpush1.msra.mxu0 0.0
    %3951 = vmatprep.subr.mxu0 0.0
    %3952 = vmatpush1.msra.mxu0 0.0
    %3953 = vmatprep.subr.mxu0 0.0
    %3954 = vmatpush1.msra.mxu0 0.0
    %3955 = vmatprep.subr.mxu0 0.0
    %3956 = vmatpush1.msra.mxu0 0.0
    %3957 = vmatprep.subr.mxu0 0.0
    %3958 = vmatpush1.msra.mxu0 0.0
    %3959 = vmatprep.mubr.f32.mxu0 0.0
    %3960 = vmatmul.mubr.f32.gmra.mrb[0].mxu0 %v3893
    %v3961 = vpop.f32.mrb[0].mxu0
    %v3962 = vadd.f32 %v2920, %v3961
    %v3963 = vpop.f32.mrb[0].mxu0
    %3964 = vdwg.mxu0
    %3965 = vmatprep.subr.mxu0 0.0
    %3966 = vmatpush1.msra.mxu0 %v2906
    %3967 = vmatprep.subr.mxu0 0.0
    %3968 = vmatpush1.msra.mxu0 %v2907
    %3969 = vmatprep.subr.mxu0 0.0
    %3970 = vmatpush1.msra.mxu0 %v2908
    %3971 = vmatprep.subr.mxu0 0.0
    %3972 = vmatpush1.msra.mxu0 %v2909
    %3973 = vmatprep.subr.mxu0 0.0
    %3974 = vmatpush1.msra.mxu0 0.0
    %3975 = vmatprep.subr.mxu0 0.0
    %3976 = vmatpush1.msra.mxu0 0.0
    %3977 = vmatprep.subr.mxu0 0.0
    %3978 = vmatpush1.msra.mxu0 0.0
    %3979 = vmatprep.subr.mxu0 0.0
    %3980 = vmatpush1.msra.mxu0 0.0
    %3981 = vmatprep.subr.mxu0 0.0
    %3982 = vmatpush1.msra.mxu0 0.0
    %3983 = vmatprep.subr.mxu0 0.0
    %3984 = vmatpush1.msra.mxu0 0.0
    %3985 = vmatprep.subr.mxu0 0.0
    %3986 = vmatpush1.msra.mxu0 0.0
    %3987 = vmatprep.subr.mxu0 0.0
    %3988 = vmatpush1.msra.mxu0 0.0
    %3989 = vmatprep.subr.mxu0 0.0
    %3990 = vmatpush1.msra.mxu0 0.0
    %3991 = vmatprep.subr.mxu0 0.0
    %3992 = vmatpush1.msra.mxu0 0.0
    %3993 = vmatprep.subr.mxu0 0.0
    %3994 = vmatpush1.msra.mxu0 0.0
    %3995 = vmatprep.subr.mxu0 0.0
    %3996 = vmatpush1.msra.mxu0 0.0
    %3997 = vmatprep.subr.mxu0 0.0
    %3998 = vmatpush1.msra.mxu0 0.0
    %3999 = vmatprep.subr.mxu0 0.0
    %4000 = vmatpush1.msra.mxu0 0.0
    %4001 = vmatprep.subr.mxu0 0.0
    %4002 = vmatpush1.msra.mxu0 0.0
    %4003 = vmatprep.subr.mxu0 0.0
    %4004 = vmatpush1.msra.mxu0 0.0
    %4005 = vmatprep.subr.mxu0 0.0
    %4006 = vmatpush1.msra.mxu0 0.0
    %4007 = vmatprep.subr.mxu0 0.0
    %4008 = vmatpush1.msra.mxu0 0.0
    %4009 = vmatprep.subr.mxu0 0.0
    %4010 = vmatpush1.msra.mxu0 0.0
    %4011 = vmatprep.subr.mxu0 0.0
    %4012 = vmatpush1.msra.mxu0 0.0
    %4013 = vmatprep.subr.mxu0 0.0
    %4014 = vmatpush1.msra.mxu0 0.0
    %4015 = vmatprep.subr.mxu0 0.0
    %4016 = vmatpush1.msra.mxu0 0.0
    %4017 = vmatprep.subr.mxu0 0.0
    %4018 = vmatpush1.msra.mxu0 0.0
    %4019 = vmatprep.subr.mxu0 0.0
    %4020 = vmatpush1.msra.mxu0 0.0
    %4021 = vmatprep.subr.mxu0 0.0
    %4022 = vmatpush1.msra.mxu0 0.0
    %4023 = vmatprep.subr.mxu0 0.0
    %4024 = vmatpush1.msra.mxu0 0.0
    %4025 = vmatprep.subr.mxu0 0.0
    %4026 = vmatpush1.msra.mxu0 0.0
    %4027 = vmatprep.subr.mxu0 0.0
    %4028 = vmatpush1.msra.mxu0 0.0
    %4029 = vmatprep.mubr.f32.mxu0 0.0
    %4030 = vmatmul.mubr.f32.gmra.mrb[0].mxu0 %v3893
    %v4031 = vpop.f32.mrb[0].mxu0
    %v4032 = vadd.f32 %v2928, %v4031
    %v4033 = vpop.f32.mrb[0].mxu0
    %4034 = vdwg.mxu0
    %4035 = vmatprep.subr.mxu0 0.0
    %4036 = vmatpush1.msra.mxu0 %v2911
    %4037 = vmatprep.subr.mxu0 0.0
    %4038 = vmatpush1.msra.mxu0 %v2912
    %4039 = vmatprep.subr.mxu0 0.0
    %4040 = vmatpush1.msra.mxu0 %v2913
    %4041 = vmatprep.subr.mxu0 0.0
    %4042 = vmatpush1.msra.mxu0 %v2914
    %4043 = vmatprep.subr.mxu0 0.0
    %4044 = vmatpush1.msra.mxu0 0.0
    %4045 = vmatprep.subr.mxu0 0.0
    %4046 = vmatpush1.msra.mxu0 0.0
    %4047 = vmatprep.subr.mxu0 0.0
    %4048 = vmatpush1.msra.mxu0 0.0
    %4049 = vmatprep.subr.mxu0 0.0
    %4050 = vmatpush1.msra.mxu0 0.0
    %4051 = vmatprep.subr.mxu0 0.0
    %4052 = vmatpush1.msra.mxu0 0.0
    %4053 = vmatprep.subr.mxu0 0.0
    %4054 = vmatpush1.msra.mxu0 0.0
    %4055 = vmatprep.subr.mxu0 0.0
    %4056 = vmatpush1.msra.mxu0 0.0
    %4057 = vmatprep.subr.mxu0 0.0
    %4058 = vmatpush1.msra.mxu0 0.0
    %4059 = vmatprep.subr.mxu0 0.0
    %4060 = vmatpush1.msra.mxu0 0.0
    %4061 = vmatprep.subr.mxu0 0.0
    %4062 = vmatpush1.msra.mxu0 0.0
    %4063 = vmatprep.subr.mxu0 0.0
    %4064 = vmatpush1.msra.mxu0 0.0
    %4065 = vmatprep.subr.mxu0 0.0
    %4066 = vmatpush1.msra.mxu0 0.0
    %4067 = vmatprep.subr.mxu0 0.0
    %4068 = vmatpush1.msra.mxu0 0.0
    %4069 = vmatprep.subr.mxu0 0.0
    %4070 = vmatpush1.msra.mxu0 0.0
    %4071 = vmatprep.subr.mxu0 0.0
    %4072 = vmatpush1.msra.mxu0 0.0
    %4073 = vmatprep.subr.mxu0 0.0
    %4074 = vmatpush1.msra.mxu0 0.0
    %4075 = vmatprep.subr.mxu0 0.0
    %4076 = vmatpush1.msra.mxu0 0.0
    %4077 = vmatprep.subr.mxu0 0.0
    %4078 = vmatpush1.msra.mxu0 0.0
    %4079 = vmatprep.subr.mxu0 0.0
    %4080 = vmatpush1.msra.mxu0 0.0
    %4081 = vmatprep.subr.mxu0 0.0
    %4082 = vmatpush1.msra.mxu0 0.0
    %4083 = vmatprep.subr.mxu0 0.0
    %4084 = vmatpush1.msra.mxu0 0.0
    %4085 = vmatprep.subr.mxu0 0.0
    %4086 = vmatpush1.msra.mxu0 0.0
    %4087 = vmatprep.subr.mxu0 0.0
    %4088 = vmatpush1.msra.mxu0 0.0
    %4089 = vmatprep.subr.mxu0 0.0
    %4090 = vmatpush1.msra.mxu0 0.0
    %4091 = vmatprep.subr.mxu0 0.0
    %4092 = vmatpush1.msra.mxu0 0.0
    %4093 = vmatprep.subr.mxu0 0.0
    %4094 = vmatpush1.msra.mxu0 0.0
    %4095 = vmatprep.subr.mxu0 0.0
    %4096 = vmatpush1.msra.mxu0 0.0
    %4097 = vmatprep.subr.mxu0 0.0
    %4098 = vmatpush1.msra.mxu0 0.0
    %4099 = vmatprep.mubr.f32.mxu0 0.0
    %4100 = vmatmul.mubr.f32.gmra.mrb[0].mxu0 %v3893
    %v4101 = vpop.f32.mrb[0].mxu0
    %v4102 = vadd.f32 %v2936, %v4101
    %v4103 = vpop.f32.mrb[0].mxu0
    %4104 = vdwg.mxu0
    %v4105 = vld [vmem:[%s1737] sm:$0xff]
    %v4106 = vadd.f32 %v4105, %v3962
    %v4107 = vxor.u32 %v4106, 2147483648
    %v4108 = vmul.f32 %v4107, 1.442695
    %v4109 = vpow.pop %v4108
    %v4110 = vadd.f32 %v4109, 1.0
    %v4111 = vrcp.pop %v4110
    %v4112 = vmul.f32 1.0, %v4111
    %v4113 = vld [vmem:[%s1746] sm:$0xff]
    %v4114 = vadd.f32 %v4113, %v4032
    %v4115 = vxor.u32 %v4114, 2147483648
    %v4116 = vmul.f32 %v4115, 1.442695
    %v4117 = vpow.pop %v4116
    %v4118 = vadd.f32 %v4117, 1.0
    %v4119 = vrcp.pop %v4118
    %v4120 = vmul.f32 1.0, %v4119
    %v4121 = vld [vmem:[%s1755] sm:$0xff]
    %v4122 = vmul.f32 %v4112, %v4102
    %v4123 = vadd.f32 %v4121, %v4122
    %v4124 = vtanh.pop %v4123
    %v4125 = vsub.f32 1.0, %v4120
    %v4126 = vmul.f32 %v4125, %v4124
    %v4127 = vmul.f32 %v4120, %v3890
    %v4128 = vadd.f32 %v4126, %v4127
    %4129 = vst.msk [vmem:[%s1764] sm:$0xff] %vm265, %v4128
    %v4131 = vsel %vm265, %v4128, 0
    %4133 = vmatprep.subr.mxu0 0.0
    %4134 = vmatpush1.msra.mxu0 %v2901
    %4135 = vmatprep.subr.mxu0 0.0
    %4136 = vmatpush1.msra.mxu0 %v2902
    %4137 = vmatprep.subr.mxu0 0.0
    %4138 = vmatpush1.msra.mxu0 %v2903
    %4139 = vmatprep.subr.mxu0 0.0
    %4140 = vmatpush1.msra.mxu0 %v2904
    %4141 = vmatprep.subr.mxu0 0.0
    %4142 = vmatpush1.msra.mxu0 0.0
    %4143 = vmatprep.subr.mxu0 0.0
    %4144 = vmatpush1.msra.mxu0 0.0
    %4145 = vmatprep.subr.mxu0 0.0
    %4146 = vmatpush1.msra.mxu0 0.0
    %4147 = vmatprep.subr.mxu0 0.0
    %4148 = vmatpush1.msra.mxu0 0.0
    %4149 = vmatprep.subr.mxu0 0.0
    %4150 = vmatpush1.msra.mxu0 0.0
    %4151 = vmatprep.subr.mxu0 0.0
    %4152 = vmatpush1.msra.mxu0 0.0
    %4153 = vmatprep.subr.mxu0 0.0
    %4154 = vmatpush1.msra.mxu0 0.0
    %4155 = vmatprep.subr.mxu0 0.0
    %4156 = vmatpush1.msra.mxu0 0.0
    %4157 = vmatprep.subr.mxu0 0.0
    %4158 = vmatpush1.msra.mxu0 0.0
    %4159 = vmatprep.subr.mxu0 0.0
    %4160 = vmatpush1.msra.mxu0 0.0
    %4161 = vmatprep.subr.mxu0 0.0
    %4162 = vmatpush1.msra.mxu0 0.0
    %4163 = vmatprep.subr.mxu0 0.0
    %4164 = vmatpush1.msra.mxu0 0.0
    %4165 = vmatprep.subr.mxu0 0.0
    %4166 = vmatpush1.msra.mxu0 0.0
    %4167 = vmatprep.subr.mxu0 0.0
    %4168 = vmatpush1.msra.mxu0 0.0
    %4169 = vmatprep.subr.mxu0 0.0
    %4170 = vmatpush1.msra.mxu0 0.0
    %4171 = vmatprep.subr.mxu0 0.0
    %4172 = vmatpush1.msra.mxu0 0.0
    %4173 = vmatprep.subr.mxu0 0.0
    %4174 = vmatpush1.msra.mxu0 0.0
    %4175 = vmatprep.subr.mxu0 0.0
    %4176 = vmatpush1.msra.mxu0 0.0
    %4177 = vmatprep.subr.mxu0 0.0
    %4178 = vmatpush1.msra.mxu0 0.0
    %4179 = vmatprep.subr.mxu0 0.0
    %4180 = vmatpush1.msra.mxu0 0.0
    %4181 = vmatprep.subr.mxu0 0.0
    %4182 = vmatpush1.msra.mxu0 0.0
    %4183 = vmatprep.subr.mxu0 0.0
    %4184 = vmatpush1.msra.mxu0 0.0
    %4185 = vmatprep.subr.mxu0 0.0
    %4186 = vmatpush1.msra.mxu0 0.0
    %4187 = vmatprep.subr.mxu0 0.0
    %4188 = vmatpush1.msra.mxu0 0.0
    %4189 = vmatprep.subr.mxu0 0.0
    %4190 = vmatpush1.msra.mxu0 0.0
    %4191 = vmatprep.subr.mxu0 0.0
    %4192 = vmatpush1.msra.mxu0 0.0
    %4193 = vmatprep.subr.mxu0 0.0
    %4194 = vmatpush1.msra.mxu0 0.0
    %4195 = vmatprep.subr.mxu0 0.0
    %4196 = vmatpush1.msra.mxu0 0.0
    %4197 = vmatprep.mubr.f32.mxu0 0.0
    %4198 = vmatmul.mubr.f32.gmra.mrb[0].mxu0 %v4131
    %v4199 = vpop.f32.mrb[0].mxu0
    %v4200 = vadd.f32 %v2920, %v4199
    %v4201 = vpop.f32.mrb[0].mxu0
    %4202 = vdwg.mxu0
    %4203 = vmatprep.subr.mxu0 0.0
    %4204 = vmatpush1.msra.mxu0 %v2906
    %4205 = vmatprep.subr.mxu0 0.0
    %4206 = vmatpush1.msra.mxu0 %v2907
    %4207 = vmatprep.subr.mxu0 0.0
    %4208 = vmatpush1.msra.mxu0 %v2908
    %4209 = vmatprep.subr.mxu0 0.0
    %4210 = vmatpush1.msra.mxu0 %v2909
    %4211 = vmatprep.subr.mxu0 0.0
    %4212 = vmatpush1.msra.mxu0 0.0
    %4213 = vmatprep.subr.mxu0 0.0
    %4214 = vmatpush1.msra.mxu0 0.0
    %4215 = vmatprep.subr.mxu0 0.0
    %4216 = vmatpush1.msra.mxu0 0.0
    %4217 = vmatprep.subr.mxu0 0.0
    %4218 = vmatpush1.msra.mxu0 0.0
    %4219 = vmatprep.subr.mxu0 0.0
    %4220 = vmatpush1.msra.mxu0 0.0
    %4221 = vmatprep.subr.mxu0 0.0
    %4222 = vmatpush1.msra.mxu0 0.0
    %4223 = vmatprep.subr.mxu0 0.0
    %4224 = vmatpush1.msra.mxu0 0.0
    %4225 = vmatprep.subr.mxu0 0.0
    %4226 = vmatpush1.msra.mxu0 0.0
    %4227 = vmatprep.subr.mxu0 0.0
    %4228 = vmatpush1.msra.mxu0 0.0
    %4229 = vmatprep.subr.mxu0 0.0
    %4230 = vmatpush1.msra.mxu0 0.0
    %4231 = vmatprep.subr.mxu0 0.0
    %4232 = vmatpush1.msra.mxu0 0.0
    %4233 = vmatprep.subr.mxu0 0.0
    %4234 = vmatpush1.msra.mxu0 0.0
    %4235 = vmatprep.subr.mxu0 0.0
    %4236 = vmatpush1.msra.mxu0 0.0
    %4237 = vmatprep.subr.mxu0 0.0
    %4238 = vmatpush1.msra.mxu0 0.0
    %4239 = vmatprep.subr.mxu0 0.0
    %4240 = vmatpush1.msra.mxu0 0.0
    %4241 = vmatprep.subr.mxu0 0.0
    %4242 = vmatpush1.msra.mxu0 0.0
    %4243 = vmatprep.subr.mxu0 0.0
    %4244 = vmatpush1.msra.mxu0 0.0
    %4245 = vmatprep.subr.mxu0 0.0
    %4246 = vmatpush1.msra.mxu0 0.0
    %4247 = vmatprep.subr.mxu0 0.0
    %4248 = vmatpush1.msra.mxu0 0.0
    %4249 = vmatprep.subr.mxu0 0.0
    %4250 = vmatpush1.msra.mxu0 0.0
    %4251 = vmatprep.subr.mxu0 0.0
    %4252 = vmatpush1.msra.mxu0 0.0
    %4253 = vmatprep.subr.mxu0 0.0
    %4254 = vmatpush1.msra.mxu0 0.0
    %4255 = vmatprep.subr.mxu0 0.0
    %4256 = vmatpush1.msra.mxu0 0.0
    %4257 = vmatprep.subr.mxu0 0.0
    %4258 = vmatpush1.msra.mxu0 0.0
    %4259 = vmatprep.subr.mxu0 0.0
    %4260 = vmatpush1.msra.mxu0 0.0
    %4261 = vmatprep.subr.mxu0 0.0
    %4262 = vmatpush1.msra.mxu0 0.0
    %4263 = vmatprep.subr.mxu0 0.0
    %4264 = vmatpush1.msra.mxu0 0.0
    %4265 = vmatprep.subr.mxu0 0.0
    %4266 = vmatpush1.msra.mxu0 0.0
    %4267 = vmatprep.mubr.f32.mxu0 0.0
    %4268 = vmatmul.mubr.f32.gmra.mrb[0].mxu0 %v4131
    %v4269 = vpop.f32.mrb[0].mxu0
    %v4270 = vadd.f32 %v2928, %v4269
    %v4271 = vpop.f32.mrb[0].mxu0
    %4272 = vdwg.mxu0
    %4273 = vmatprep.subr.mxu0 0.0
    %4274 = vmatpush1.msra.mxu0 %v2911
    %4275 = vmatprep.subr.mxu0 0.0
    %4276 = vmatpush1.msra.mxu0 %v2912
    %4277 = vmatprep.subr.mxu0 0.0
    %4278 = vmatpush1.msra.mxu0 %v2913
    %4279 = vmatprep.subr.mxu0 0.0
    %4280 = vmatpush1.msra.mxu0 %v2914
    %4281 = vmatprep.subr.mxu0 0.0
    %4282 = vmatpush1.msra.mxu0 0.0
    %4283 = vmatprep.subr.mxu0 0.0
    %4284 = vmatpush1.msra.mxu0 0.0
    %4285 = vmatprep.subr.mxu0 0.0
    %4286 = vmatpush1.msra.mxu0 0.0
    %4287 = vmatprep.subr.mxu0 0.0
    %4288 = vmatpush1.msra.mxu0 0.0
    %4289 = vmatprep.subr.mxu0 0.0
    %4290 = vmatpush1.msra.mxu0 0.0
    %4291 = vmatprep.subr.mxu0 0.0
    %4292 = vmatpush1.msra.mxu0 0.0
    %4293 = vmatprep.subr.mxu0 0.0
    %4294 = vmatpush1.msra.mxu0 0.0
    %4295 = vmatprep.subr.mxu0 0.0
    %4296 = vmatpush1.msra.mxu0 0.0
    %4297 = vmatprep.subr.mxu0 0.0
    %4298 = vmatpush1.msra.mxu0 0.0
    %4299 = vmatprep.subr.mxu0 0.0
    %4300 = vmatpush1.msra.mxu0 0.0
    %4301 = vmatprep.subr.mxu0 0.0
    %4302 = vmatpush1.msra.mxu0 0.0
    %4303 = vmatprep.subr.mxu0 0.0
    %4304 = vmatpush1.msra.mxu0 0.0
    %4305 = vmatprep.subr.mxu0 0.0
    %4306 = vmatpush1.msra.mxu0 0.0
    %4307 = vmatprep.subr.mxu0 0.0
    %4308 = vmatpush1.msra.mxu0 0.0
    %4309 = vmatprep.subr.mxu0 0.0
    %4310 = vmatpush1.msra.mxu0 0.0
    %4311 = vmatprep.subr.mxu0 0.0
    %4312 = vmatpush1.msra.mxu0 0.0
    %4313 = vmatprep.subr.mxu0 0.0
    %4314 = vmatpush1.msra.mxu0 0.0
    %4315 = vmatprep.subr.mxu0 0.0
    %4316 = vmatpush1.msra.mxu0 0.0
    %4317 = vmatprep.subr.mxu0 0.0
    %4318 = vmatpush1.msra.mxu0 0.0
    %4319 = vmatprep.subr.mxu0 0.0
    %4320 = vmatpush1.msra.mxu0 0.0
    %4321 = vmatprep.subr.mxu0 0.0
    %4322 = vmatpush1.msra.mxu0 0.0
    %4323 = vmatprep.subr.mxu0 0.0
    %4324 = vmatpush1.msra.mxu0 0.0
    %4325 = vmatprep.subr.mxu0 0.0
    %4326 = vmatpush1.msra.mxu0 0.0
    %4327 = vmatprep.subr.mxu0 0.0
    %4328 = vmatpush1.msra.mxu0 0.0
    %4329 = vmatprep.subr.mxu0 0.0
    %4330 = vmatpush1.msra.mxu0 0.0
    %4331 = vmatprep.subr.mxu0 0.0
    %4332 = vmatpush1.msra.mxu0 0.0
    %4333 = vmatprep.subr.mxu0 0.0
    %4334 = vmatpush1.msra.mxu0 0.0
    %4335 = vmatprep.subr.mxu0 0.0
    %4336 = vmatpush1.msra.mxu0 0.0
    %4337 = vmatprep.mubr.f32.mxu0 0.0
    %4338 = vmatmul.mubr.f32.gmra.mrb[0].mxu0 %v4131
    %v4339 = vpop.f32.mrb[0].mxu0
    %v4340 = vadd.f32 %v2936, %v4339
    %v4341 = vpop.f32.mrb[0].mxu0
    %4342 = vdwg.mxu0
    %v4343 = vld [vmem:[%s1979] sm:$0xff]
    %v4344 = vadd.f32 %v4343, %v4200
    %v4345 = vxor.u32 %v4344, 2147483648
    %v4346 = vmul.f32 %v4345, 1.442695
    %v4347 = vpow.pop %v4346
    %v4348 = vadd.f32 %v4347, 1.0
    %v4349 = vrcp.pop %v4348
    %v4350 = vmul.f32 1.0, %v4349
    %v4351 = vld [vmem:[%s1988] sm:$0xff]
    %v4352 = vadd.f32 %v4351, %v4270
    %v4353 = vxor.u32 %v4352, 2147483648
    %v4354 = vmul.f32 %v4353, 1.442695
    %v4355 = vpow.pop %v4354
    %v4356 = vadd.f32 %v4355, 1.0
    %v4357 = vrcp.pop %v4356
    %v4358 = vmul.f32 1.0, %v4357
    %v4359 = vld [vmem:[%s1997] sm:$0xff]
    %v4360 = vmul.f32 %v4350, %v4340
    %v4361 = vadd.f32 %v4359, %v4360
    %v4362 = vtanh.pop %v4361
    %v4363 = vsub.f32 1.0, %v4358
    %v4364 = vmul.f32 %v4363, %v4362
    %v4365 = vmul.f32 %v4358, %v4128
    %v4366 = vadd.f32 %v4364, %v4365
    %4367 = vst.msk [vmem:[%s2006] sm:$0xff] %vm265, %v4366
    %v4369 = vsel %vm265, %v4366, 0
    %4371 = vmatprep.subr.mxu0 0.0
    %4372 = vmatpush1.msra.mxu0 %v2901
    %4373 = vmatprep.subr.mxu0 0.0
    %4374 = vmatpush1.msra.mxu0 %v2902
    %4375 = vmatprep.subr.mxu0 0.0
    %4376 = vmatpush1.msra.mxu0 %v2903
    %4377 = vmatprep.subr.mxu0 0.0
    %4378 = vmatpush1.msra.mxu0 %v2904
    %4379 = vmatprep.subr.mxu0 0.0
    %4380 = vmatpush1.msra.mxu0 0.0
    %4381 = vmatprep.subr.mxu0 0.0
    %4382 = vmatpush1.msra.mxu0 0.0
    %4383 = vmatprep.subr.mxu0 0.0
    %4384 = vmatpush1.msra.mxu0 0.0
    %4385 = vmatprep.subr.mxu0 0.0
    %4386 = vmatpush1.msra.mxu0 0.0
    %4387 = vmatprep.subr.mxu0 0.0
    %4388 = vmatpush1.msra.mxu0 0.0
    %4389 = vmatprep.subr.mxu0 0.0
    %4390 = vmatpush1.msra.mxu0 0.0
    %4391 = vmatprep.subr.mxu0 0.0
    %4392 = vmatpush1.msra.mxu0 0.0
    %4393 = vmatprep.subr.mxu0 0.0
    %4394 = vmatpush1.msra.mxu0 0.0
    %4395 = vmatprep.subr.mxu0 0.0
    %4396 = vmatpush1.msra.mxu0 0.0
    %4397 = vmatprep.subr.mxu0 0.0
    %4398 = vmatpush1.msra.mxu0 0.0
    %4399 = vmatprep.subr.mxu0 0.0
    %4400 = vmatpush1.msra.mxu0 0.0
    %4401 = vmatprep.subr.mxu0 0.0
    %4402 = vmatpush1.msra.mxu0 0.0
    %4403 = vmatprep.subr.mxu0 0.0
    %4404 = vmatpush1.msra.mxu0 0.0
    %4405 = vmatprep.subr.mxu0 0.0
    %4406 = vmatpush1.msra.mxu0 0.0
    %4407 = vmatprep.subr.mxu0 0.0
    %4408 = vmatpush1.msra.mxu0 0.0
    %4409 = vmatprep.subr.mxu0 0.0
    %4410 = vmatpush1.msra.mxu0 0.0
    %4411 = vmatprep.subr.mxu0 0.0
    %4412 = vmatpush1.msra.mxu0 0.0
    %4413 = vmatprep.subr.mxu0 0.0
    %4414 = vmatpush1.msra.mxu0 0.0
    %4415 = vmatprep.subr.mxu0 0.0
    %4416 = vmatpush1.msra.mxu0 0.0
    %4417 = vmatprep.subr.mxu0 0.0
    %4418 = vmatpush1.msra.mxu0 0.0
    %4419 = vmatprep.subr.mxu0 0.0
    %4420 = vmatpush1.msra.mxu0 0.0
    %4421 = vmatprep.subr.mxu0 0.0
    %4422 = vmatpush1.msra.mxu0 0.0
    %4423 = vmatprep.subr.mxu0 0.0
    %4424 = vmatpush1.msra.mxu0 0.0
    %4425 = vmatprep.subr.mxu0 0.0
    %4426 = vmatpush1.msra.mxu0 0.0
    %4427 = vmatprep.subr.mxu0 0.0
    %4428 = vmatpush1.msra.mxu0 0.0
    %4429 = vmatprep.subr.mxu0 0.0
    %4430 = vmatpush1.msra.mxu0 0.0
    %4431 = vmatprep.subr.mxu0 0.0
    %4432 = vmatpush1.msra.mxu0 0.0
    %4433 = vmatprep.subr.mxu0 0.0
    %4434 = vmatpush1.msra.mxu0 0.0
    %4435 = vmatprep.mubr.f32.mxu0 0.0
    %4436 = vmatmul.mubr.f32.gmra.mrb[0].mxu0 %v4369
    %v4437 = vpop.f32.mrb[0].mxu0
    %v4438 = vadd.f32 %v2920, %v4437
    %v4439 = vpop.f32.mrb[0].mxu0
    %4440 = vdwg.mxu0
    %4441 = vmatprep.subr.mxu0 0.0
    %4442 = vmatpush1.msra.mxu0 %v2906
    %4443 = vmatprep.subr.mxu0 0.0
    %4444 = vmatpush1.msra.mxu0 %v2907
    %4445 = vmatprep.subr.mxu0 0.0
    %4446 = vmatpush1.msra.mxu0 %v2908
    %4447 = vmatprep.subr.mxu0 0.0
    %4448 = vmatpush1.msra.mxu0 %v2909
    %4449 = vmatprep.subr.mxu0 0.0
    %4450 = vmatpush1.msra.mxu0 0.0
    %4451 = vmatprep.subr.mxu0 0.0
    %4452 = vmatpush1.msra.mxu0 0.0
    %4453 = vmatprep.subr.mxu0 0.0
    %4454 = vmatpush1.msra.mxu0 0.0
    %4455 = vmatprep.subr.mxu0 0.0
    %4456 = vmatpush1.msra.mxu0 0.0
    %4457 = vmatprep.subr.mxu0 0.0
    %4458 = vmatpush1.msra.mxu0 0.0
    %4459 = vmatprep.subr.mxu0 0.0
    %4460 = vmatpush1.msra.mxu0 0.0
    %4461 = vmatprep.subr.mxu0 0.0
    %4462 = vmatpush1.msra.mxu0 0.0
    %4463 = vmatprep.subr.mxu0 0.0
    %4464 = vmatpush1.msra.mxu0 0.0
    %4465 = vmatprep.subr.mxu0 0.0
    %4466 = vmatpush1.msra.mxu0 0.0
    %4467 = vmatprep.subr.mxu0 0.0
    %4468 = vmatpush1.msra.mxu0 0.0
    %4469 = vmatprep.subr.mxu0 0.0
    %4470 = vmatpush1.msra.mxu0 0.0
    %4471 = vmatprep.subr.mxu0 0.0
    %4472 = vmatpush1.msra.mxu0 0.0
    %4473 = vmatprep.subr.mxu0 0.0
    %4474 = vmatpush1.msra.mxu0 0.0
    %4475 = vmatprep.subr.mxu0 0.0
    %4476 = vmatpush1.msra.mxu0 0.0
    %4477 = vmatprep.subr.mxu0 0.0
    %4478 = vmatpush1.msra.mxu0 0.0
    %4479 = vmatprep.subr.mxu0 0.0
    %4480 = vmatpush1.msra.mxu0 0.0
    %4481 = vmatprep.subr.mxu0 0.0
    %4482 = vmatpush1.msra.mxu0 0.0
    %4483 = vmatprep.subr.mxu0 0.0
    %4484 = vmatpush1.msra.mxu0 0.0
    %4485 = vmatprep.subr.mxu0 0.0
    %4486 = vmatpush1.msra.mxu0 0.0
    %4487 = vmatprep.subr.mxu0 0.0
    %4488 = vmatpush1.msra.mxu0 0.0
    %4489 = vmatprep.subr.mxu0 0.0
    %4490 = vmatpush1.msra.mxu0 0.0
    %4491 = vmatprep.subr.mxu0 0.0
    %4492 = vmatpush1.msra.mxu0 0.0
    %4493 = vmatprep.subr.mxu0 0.0
    %4494 = vmatpush1.msra.mxu0 0.0
    %4495 = vmatprep.subr.mxu0 0.0
    %4496 = vmatpush1.msra.mxu0 0.0
    %4497 = vmatprep.subr.mxu0 0.0
    %4498 = vmatpush1.msra.mxu0 0.0
    %4499 = vmatprep.subr.mxu0 0.0
    %4500 = vmatpush1.msra.mxu0 0.0
    %4501 = vmatprep.subr.mxu0 0.0
    %4502 = vmatpush1.msra.mxu0 0.0
    %4503 = vmatprep.subr.mxu0 0.0
    %4504 = vmatpush1.msra.mxu0 0.0
    %4505 = vmatprep.mubr.f32.mxu0 0.0
    %4506 = vmatmul.mubr.f32.gmra.mrb[0].mxu0 %v4369
    %v4507 = vpop.f32.mrb[0].mxu0
    %v4508 = vadd.f32 %v2928, %v4507
    %v4509 = vpop.f32.mrb[0].mxu0
    %4510 = vdwg.mxu0
    %4511 = vmatprep.subr.mxu0 0.0
    %4512 = vmatpush1.msra.mxu0 %v2911
    %4513 = vmatprep.subr.mxu0 0.0
    %4514 = vmatpush1.msra.mxu0 %v2912
    %4515 = vmatprep.subr.mxu0 0.0
    %4516 = vmatpush1.msra.mxu0 %v2913
    %4517 = vmatprep.subr.mxu0 0.0
    %4518 = vmatpush1.msra.mxu0 %v2914
    %4519 = vmatprep.subr.mxu0 0.0
    %4520 = vmatpush1.msra.mxu0 0.0
    %4521 = vmatprep.subr.mxu0 0.0
    %4522 = vmatpush1.msra.mxu0 0.0
    %4523 = vmatprep.subr.mxu0 0.0
    %4524 = vmatpush1.msra.mxu0 0.0
    %4525 = vmatprep.subr.mxu0 0.0
    %4526 = vmatpush1.msra.mxu0 0.0
    %4527 = vmatprep.subr.mxu0 0.0
    %4528 = vmatpush1.msra.mxu0 0.0
    %4529 = vmatprep.subr.mxu0 0.0
    %4530 = vmatpush1.msra.mxu0 0.0
    %4531 = vmatprep.subr.mxu0 0.0
    %4532 = vmatpush1.msra.mxu0 0.0
    %4533 = vmatprep.subr.mxu0 0.0
    %4534 = vmatpush1.msra.mxu0 0.0
    %4535 = vmatprep.subr.mxu0 0.0
    %4536 = vmatpush1.msra.mxu0 0.0
    %4537 = vmatprep.subr.mxu0 0.0
    %4538 = vmatpush1.msra.mxu0 0.0
    %4539 = vmatprep.subr.mxu0 0.0
    %4540 = vmatpush1.msra.mxu0 0.0
    %4541 = vmatprep.subr.mxu0 0.0
    %4542 = vmatpush1.msra.mxu0 0.0
    %4543 = vmatprep.subr.mxu0 0.0
    %4544 = vmatpush1.msra.mxu0 0.0
    %4545 = vmatprep.subr.mxu0 0.0
    %4546 = vmatpush1.msra.mxu0 0.0
    %4547 = vmatprep.subr.mxu0 0.0
    %4548 = vmatpush1.msra.mxu0 0.0
    %4549 = vmatprep.subr.mxu0 0.0
    %4550 = vmatpush1.msra.mxu0 0.0
    %4551 = vmatprep.subr.mxu0 0.0
    %4552 = vmatpush1.msra.mxu0 0.0
    %4553 = vmatprep.subr.mxu0 0.0
    %4554 = vmatpush1.msra.mxu0 0.0
    %4555 = vmatprep.subr.mxu0 0.0
    %4556 = vmatpush1.msra.mxu0 0.0
    %4557 = vmatprep.subr.mxu0 0.0
    %4558 = vmatpush1.msra.mxu0 0.0
    %4559 = vmatprep.subr.mxu0 0.0
    %4560 = vmatpush1.msra.mxu0 0.0
    %4561 = vmatprep.subr.mxu0 0.0
    %4562 = vmatpush1.msra.mxu0 0.0
    %4563 = vmatprep.subr.mxu0 0.0
    %4564 = vmatpush1.msra.mxu0 0.0
    %4565 = vmatprep.subr.mxu0 0.0
    %4566 = vmatpush1.msra.mxu0 0.0
    %4567 = vmatprep.subr.mxu0 0.0
    %4568 = vmatpush1.msra.mxu0 0.0
    %4569 = vmatprep.subr.mxu0 0.0
    %4570 = vmatpush1.msra.mxu0 0.0
    %4571 = vmatprep.subr.mxu0 0.0
    %4572 = vmatpush1.msra.mxu0 0.0
    %4573 = vmatprep.subr.mxu0 0.0
    %4574 = vmatpush1.msra.mxu0 0.0
    %4575 = vmatprep.mubr.f32.mxu0 0.0
    %4576 = vmatmul.mubr.f32.gmra.mrb[0].mxu0 %v4369
    %v4577 = vpop.f32.mrb[0].mxu0
    %v4578 = vadd.f32 %v2936, %v4577
    %v4579 = vpop.f32.mrb[0].mxu0
    %4580 = vdwg.mxu0
    %v4581 = vld [vmem:[%s2221] sm:$0xff]
    %v4582 = vadd.f32 %v4581, %v4438
    %v4583 = vxor.u32 %v4582, 2147483648
    %v4584 = vmul.f32 %v4583, 1.442695
    %v4585 = vpow.pop %v4584
    %v4586 = vadd.f32 %v4585, 1.0
    %v4587 = vrcp.pop %v4586
    %v4588 = vmul.f32 1.0, %v4587
    %v4589 = vld [vmem:[%s2230] sm:$0xff]
    %v4590 = vadd.f32 %v4589, %v4508
    %v4591 = vxor.u32 %v4590, 2147483648
    %v4592 = vmul.f32 %v4591, 1.442695
    %v4593 = vpow.pop %v4592
    %v4594 = vadd.f32 %v4593, 1.0
    %v4595 = vrcp.pop %v4594
    %v4596 = vmul.f32 1.0, %v4595
    %v4597 = vld [vmem:[%s2239] sm:$0xff]
    %v4598 = vmul.f32 %v4588, %v4578
    %v4599 = vadd.f32 %v4597, %v4598
    %v4600 = vtanh.pop %v4599
    %v4601 = vsub.f32 1.0, %v4596
    %v4602 = vmul.f32 %v4601, %v4600
    %v4603 = vmul.f32 %v4596, %v4366
    %v4604 = vadd.f32 %v4602, %v4603
    %4605 = vst.msk [vmem:[%s2248] sm:$0xff] %vm265, %v4604
    %v4607 = vsel %vm265, %v4604, 0
    %4609 = vmatprep.subr.mxu0 0.0
    %4610 = vmatpush1.msra.mxu0 %v2901
    %4611 = vmatprep.subr.mxu0 0.0
    %4612 = vmatpush1.msra.mxu0 %v2902
    %4613 = vmatprep.subr.mxu0 0.0
    %4614 = vmatpush1.msra.mxu0 %v2903
    %4615 = vmatprep.subr.mxu0 0.0
    %4616 = vmatpush1.msra.mxu0 %v2904
    %4617 = vmatprep.subr.mxu0 0.0
    %4618 = vmatpush1.msra.mxu0 0.0
    %4619 = vmatprep.subr.mxu0 0.0
    %4620 = vmatpush1.msra.mxu0 0.0
    %4621 = vmatprep.subr.mxu0 0.0
    %4622 = vmatpush1.msra.mxu0 0.0
    %4623 = vmatprep.subr.mxu0 0.0
    %4624 = vmatpush1.msra.mxu0 0.0
    %4625 = vmatprep.subr.mxu0 0.0
    %4626 = vmatpush1.msra.mxu0 0.0
    %4627 = vmatprep.subr.mxu0 0.0
    %4628 = vmatpush1.msra.mxu0 0.0
    %4629 = vmatprep.subr.mxu0 0.0
    %4630 = vmatpush1.msra.mxu0 0.0
    %4631 = vmatprep.subr.mxu0 0.0
    %4632 = vmatpush1.msra.mxu0 0.0
    %4633 = vmatprep.subr.mxu0 0.0
    %4634 = vmatpush1.msra.mxu0 0.0
    %4635 = vmatprep.subr.mxu0 0.0
    %4636 = vmatpush1.msra.mxu0 0.0
    %4637 = vmatprep.subr.mxu0 0.0
    %4638 = vmatpush1.msra.mxu0 0.0
    %4639 = vmatprep.subr.mxu0 0.0
    %4640 = vmatpush1.msra.mxu0 0.0
    %4641 = vmatprep.subr.mxu0 0.0
    %4642 = vmatpush1.msra.mxu0 0.0
    %4643 = vmatprep.subr.mxu0 0.0
    %4644 = vmatpush1.msra.mxu0 0.0
    %4645 = vmatprep.subr.mxu0 0.0
    %4646 = vmatpush1.msra.mxu0 0.0
    %4647 = vmatprep.subr.mxu0 0.0
    %4648 = vmatpush1.msra.mxu0 0.0
    %4649 = vmatprep.subr.mxu0 0.0
    %4650 = vmatpush1.msra.mxu0 0.0
    %4651 = vmatprep.subr.mxu0 0.0
    %4652 = vmatpush1.msra.mxu0 0.0
    %4653 = vmatprep.subr.mxu0 0.0
    %4654 = vmatpush1.msra.mxu0 0.0
    %4655 = vmatprep.subr.mxu0 0.0
    %4656 = vmatpush1.msra.mxu0 0.0
    %4657 = vmatprep.subr.mxu0 0.0
    %4658 = vmatpush1.msra.mxu0 0.0
    %4659 = vmatprep.subr.mxu0 0.0
    %4660 = vmatpush1.msra.mxu0 0.0
    %4661 = vmatprep.subr.mxu0 0.0
    %4662 = vmatpush1.msra.mxu0 0.0
    %4663 = vmatprep.subr.mxu0 0.0
    %4664 = vmatpush1.msra.mxu0 0.0
    %4665 = vmatprep.subr.mxu0 0.0
    %4666 = vmatpush1.msra.mxu0 0.0
    %4667 = vmatprep.subr.mxu0 0.0
    %4668 = vmatpush1.msra.mxu0 0.0
    %4669 = vmatprep.subr.mxu0 0.0
    %4670 = vmatpush1.msra.mxu0 0.0
    %4671 = vmatprep.subr.mxu0 0.0
    %4672 = vmatpush1.msra.mxu0 0.0
    %4673 = vmatprep.mubr.f32.mxu0 0.0
    %4674 = vmatmul.mubr.f32.gmra.mrb[0].mxu0 %v4607
    %v4675 = vpop.f32.mrb[0].mxu0
    %v4676 = vadd.f32 %v2920, %v4675
    %v4677 = vpop.f32.mrb[0].mxu0
    %4678 = vdwg.mxu0
    %4679 = vmatprep.subr.mxu0 0.0
    %4680 = vmatpush1.msra.mxu0 %v2906
    %4681 = vmatprep.subr.mxu0 0.0
    %4682 = vmatpush1.msra.mxu0 %v2907
    %4683 = vmatprep.subr.mxu0 0.0
    %4684 = vmatpush1.msra.mxu0 %v2908
    %4685 = vmatprep.subr.mxu0 0.0
    %4686 = vmatpush1.msra.mxu0 %v2909
    %4687 = vmatprep.subr.mxu0 0.0
    %4688 = vmatpush1.msra.mxu0 0.0
    %4689 = vmatprep.subr.mxu0 0.0
    %4690 = vmatpush1.msra.mxu0 0.0
    %4691 = vmatprep.subr.mxu0 0.0
    %4692 = vmatpush1.msra.mxu0 0.0
    %4693 = vmatprep.subr.mxu0 0.0
    %4694 = vmatpush1.msra.mxu0 0.0
    %4695 = vmatprep.subr.mxu0 0.0
    %4696 = vmatpush1.msra.mxu0 0.0
    %4697 = vmatprep.subr.mxu0 0.0
    %4698 = vmatpush1.msra.mxu0 0.0
    %4699 = vmatprep.subr.mxu0 0.0
    %4700 = vmatpush1.msra.mxu0 0.0
    %4701 = vmatprep.subr.mxu0 0.0
    %4702 = vmatpush1.msra.mxu0 0.0
    %4703 = vmatprep.subr.mxu0 0.0
    %4704 = vmatpush1.msra.mxu0 0.0
    %4705 = vmatprep.subr.mxu0 0.0
    %4706 = vmatpush1.msra.mxu0 0.0
    %4707 = vmatprep.subr.mxu0 0.0
    %4708 = vmatpush1.msra.mxu0 0.0
    %4709 = vmatprep.subr.mxu0 0.0
    %4710 = vmatpush1.msra.mxu0 0.0
    %4711 = vmatprep.subr.mxu0 0.0
    %4712 = vmatpush1.msra.mxu0 0.0
    %4713 = vmatprep.subr.mxu0 0.0
    %4714 = vmatpush1.msra.mxu0 0.0
    %4715 = vmatprep.subr.mxu0 0.0
    %4716 = vmatpush1.msra.mxu0 0.0
    %4717 = vmatprep.subr.mxu0 0.0
    %4718 = vmatpush1.msra.mxu0 0.0
    %4719 = vmatprep.subr.mxu0 0.0
    %4720 = vmatpush1.msra.mxu0 0.0
    %4721 = vmatprep.subr.mxu0 0.0
    %4722 = vmatpush1.msra.mxu0 0.0
    %4723 = vmatprep.subr.mxu0 0.0
    %4724 = vmatpush1.msra.mxu0 0.0
    %4725 = vmatprep.subr.mxu0 0.0
    %4726 = vmatpush1.msra.mxu0 0.0
    %4727 = vmatprep.subr.mxu0 0.0
    %4728 = vmatpush1.msra.mxu0 0.0
    %4729 = vmatprep.subr.mxu0 0.0
    %4730 = vmatpush1.msra.mxu0 0.0
    %4731 = vmatprep.subr.mxu0 0.0
    %4732 = vmatpush1.msra.mxu0 0.0
    %4733 = vmatprep.subr.mxu0 0.0
    %4734 = vmatpush1.msra.mxu0 0.0
    %4735 = vmatprep.subr.mxu0 0.0
    %4736 = vmatpush1.msra.mxu0 0.0
    %4737 = vmatprep.subr.mxu0 0.0
    %4738 = vmatpush1.msra.mxu0 0.0
    %4739 = vmatprep.subr.mxu0 0.0
    %4740 = vmatpush1.msra.mxu0 0.0
    %4741 = vmatprep.subr.mxu0 0.0
    %4742 = vmatpush1.msra.mxu0 0.0
    %4743 = vmatprep.mubr.f32.mxu0 0.0
    %4744 = vmatmul.mubr.f32.gmra.mrb[0].mxu0 %v4607
    %v4745 = vpop.f32.mrb[0].mxu0
    %v4746 = vadd.f32 %v2928, %v4745
    %v4747 = vpop.f32.mrb[0].mxu0
    %4748 = vdwg.mxu0
    %4749 = vmatprep.subr.mxu0 0.0
    %4750 = vmatpush1.msra.mxu0 %v2911
    %4751 = vmatprep.subr.mxu0 0.0
    %4752 = vmatpush1.msra.mxu0 %v2912
    %4753 = vmatprep.subr.mxu0 0.0
    %4754 = vmatpush1.msra.mxu0 %v2913
    %4755 = vmatprep.subr.mxu0 0.0
    %4756 = vmatpush1.msra.mxu0 %v2914
    %4757 = vmatprep.subr.mxu0 0.0
    %4758 = vmatpush1.msra.mxu0 0.0
    %4759 = vmatprep.subr.mxu0 0.0
    %4760 = vmatpush1.msra.mxu0 0.0
    %4761 = vmatprep.subr.mxu0 0.0
    %4762 = vmatpush1.msra.mxu0 0.0
    %4763 = vmatprep.subr.mxu0 0.0
    %4764 = vmatpush1.msra.mxu0 0.0
    %4765 = vmatprep.subr.mxu0 0.0
    %4766 = vmatpush1.msra.mxu0 0.0
    %4767 = vmatprep.subr.mxu0 0.0
    %4768 = vmatpush1.msra.mxu0 0.0
    %4769 = vmatprep.subr.mxu0 0.0
    %4770 = vmatpush1.msra.mxu0 0.0
    %4771 = vmatprep.subr.mxu0 0.0
    %4772 = vmatpush1.msra.mxu0 0.0
    %4773 = vmatprep.subr.mxu0 0.0
    %4774 = vmatpush1.msra.mxu0 0.0
    %4775 = vmatprep.subr.mxu0 0.0
    %4776 = vmatpush1.msra.mxu0 0.0
    %4777 = vmatprep.subr.mxu0 0.0
    %4778 = vmatpush1.msra.mxu0 0.0
    %4779 = vmatprep.subr.mxu0 0.0
    %4780 = vmatpush1.msra.mxu0 0.0
    %4781 = vmatprep.subr.mxu0 0.0
    %4782 = vmatpush1.msra.mxu0 0.0
    %4783 = vmatprep.subr.mxu0 0.0
    %4784 = vmatpush1.msra.mxu0 0.0
    %4785 = vmatprep.subr.mxu0 0.0
    %4786 = vmatpush1.msra.mxu0 0.0
    %4787 = vmatprep.subr.mxu0 0.0
    %4788 = vmatpush1.msra.mxu0 0.0
    %4789 = vmatprep.subr.mxu0 0.0
    %4790 = vmatpush1.msra.mxu0 0.0
    %4791 = vmatprep.subr.mxu0 0.0
    %4792 = vmatpush1.msra.mxu0 0.0
    %4793 = vmatprep.subr.mxu0 0.0
    %4794 = vmatpush1.msra.mxu0 0.0
    %4795 = vmatprep.subr.mxu0 0.0
    %4796 = vmatpush1.msra.mxu0 0.0
    %4797 = vmatprep.subr.mxu0 0.0
    %4798 = vmatpush1.msra.mxu0 0.0
    %4799 = vmatprep.subr.mxu0 0.0
    %4800 = vmatpush1.msra.mxu0 0.0
    %4801 = vmatprep.subr.mxu0 0.0
    %4802 = vmatpush1.msra.mxu0 0.0
    %4803 = vmatprep.subr.mxu0 0.0
    %4804 = vmatpush1.msra.mxu0 0.0
    %4805 = vmatprep.subr.mxu0 0.0
    %4806 = vmatpush1.msra.mxu0 0.0
    %4807 = vmatprep.subr.mxu0 0.0
    %4808 = vmatpush1.msra.mxu0 0.0
    %4809 = vmatprep.subr.mxu0 0.0
    %4810 = vmatpush1.msra.mxu0 0.0
    %4811 = vmatprep.subr.mxu0 0.0
    %4812 = vmatpush1.msra.mxu0 0.0
    %4813 = vmatprep.mubr.f32.mxu0 0.0
    %4814 = vmatmul.mubr.f32.gmra.mrb[0].mxu0 %v4607
    %v4815 = vpop.f32.mrb[0].mxu0
    %v4816 = vadd.f32 %v2936, %v4815
    %v4817 = vpop.f32.mrb[0].mxu0
    %4818 = vdwg.mxu0
    %v4819 = vld [vmem:[%s2463] sm:$0xff]
    %v4820 = vadd.f32 %v4819, %v4676
    %v4821 = vxor.u32 %v4820, 2147483648
    %v4822 = vmul.f32 %v4821, 1.442695
    %v4823 = vpow.pop %v4822
    %v4824 = vadd.f32 %v4823, 1.0
    %v4825 = vrcp.pop %v4824
    %v4826 = vmul.f32 1.0, %v4825
    %v4827 = vld [vmem:[%s2472] sm:$0xff]
    %v4828 = vadd.f32 %v4827, %v4746
    %v4829 = vxor.u32 %v4828, 2147483648
    %v4830 = vmul.f32 %v4829, 1.442695
    %v4831 = vpow.pop %v4830
    %v4832 = vadd.f32 %v4831, 1.0
    %v4833 = vrcp.pop %v4832
    %v4834 = vmul.f32 1.0, %v4833
    %v4835 = vld [vmem:[%s2481] sm:$0xff]
    %v4836 = vmul.f32 %v4826, %v4816
    %v4837 = vadd.f32 %v4835, %v4836
    %v4838 = vtanh.pop %v4837
    %v4839 = vsub.f32 1.0, %v4834
    %v4840 = vmul.f32 %v4839, %v4838
    %v4841 = vmul.f32 %v4834, %v4604
    %v4842 = vadd.f32 %v4840, %v4841
    %4843 = vst.msk [vmem:[%s2490] sm:$0xff] %vm265, %v4842
    %s4844 = scalar_lea.vmem [#allocation15], 8
    %4845 = vst.msk [vmem:[%s4844] sm:$0xff] %vm265, %v4842
    %v4846 = vld [vmem:[#allocation5] sm:$0xff]
    %v4847 = vld [vmem:[#allocation5 + $0x8] sm:$0xff]
    %v4848 = vld [vmem:[#allocation5 + $0x10] sm:$0xff]
    %v4849 = vld [vmem:[#allocation5 + $0x18] sm:$0xff]
    %v4850 = vld [vmem:[#allocation5 + $0x20] sm:$0xff]
    %v4851 = vld [vmem:[#allocation5 + $0x28] sm:$0xff]
    %v4852 = vld [vmem:[#allocation5 + $0x30] sm:$0xff]
    %v4853 = vld [vmem:[#allocation5 + $0x38] sm:$0xff]
    %v4854 = vld [vmem:[%s10] sm:$0xff]
    %v4855 = vld [vmem:[%s10 + $0x8] sm:$0xff]
    %v4856 = vld [vmem:[%s10 + $0x10] sm:$0xff]
    %v4857 = vld [vmem:[%s10 + $0x18] sm:$0xff]
    %v4858 = vld [vmem:[%s11] sm:$0x1]
    %v4860 = vlaneseq
    %v4861 = vshrl.u32 %v4860, 7
    %v4862 = vsub.s32 0, %v4861
    %v4863 = vrot.slane %v4858, %v4862
    %v4866 = vsel %vm265, %v4846, 0
    %v4869 = vsel %vm265, %v4847, 0
    %v4872 = vsel %vm265, %v4848, 0
    %v4875 = vsel %vm265, %v4849, 0
    %v4878 = vsel %vm265, %v4850, 0
    %v4881 = vsel %vm265, %v4851, 0
    %v4884 = vsel %vm265, %v4852, 0
    %v4887 = vsel %vm265, %v4853, 0
    %4889 = vmatprep.subr.mxu0 0.0
    %4890 = vmatpush1.msra.mxu0 %v4854
    %4891 = vmatprep.subr.mxu0 0.0
    %4892 = vmatpush1.msra.mxu0 %v4855
    %4893 = vmatprep.subr.mxu0 0.0
    %4894 = vmatpush1.msra.mxu0 %v4856
    %4895 = vmatprep.subr.mxu0 0.0
    %4896 = vmatpush1.msra.mxu0 %v4857
    %4897 = vmatprep.subr.mxu0 0.0
    %4898 = vmatpush1.msra.mxu0 0.0
    %4899 = vmatprep.subr.mxu0 0.0
    %4900 = vmatpush1.msra.mxu0 0.0
    %4901 = vmatprep.subr.mxu0 0.0
    %4902 = vmatpush1.msra.mxu0 0.0
    %4903 = vmatprep.subr.mxu0 0.0
    %4904 = vmatpush1.msra.mxu0 0.0
    %4905 = vmatprep.subr.mxu0 0.0
    %4906 = vmatpush1.msra.mxu0 0.0
    %4907 = vmatprep.subr.mxu0 0.0
    %4908 = vmatpush1.msra.mxu0 0.0
    %4909 = vmatprep.subr.mxu0 0.0
    %4910 = vmatpush1.msra.mxu0 0.0
    %4911 = vmatprep.subr.mxu0 0.0
    %4912 = vmatpush1.msra.mxu0 0.0
    %4913 = vmatprep.subr.mxu0 0.0
    %4914 = vmatpush1.msra.mxu0 0.0
    %4915 = vmatprep.subr.mxu0 0.0
    %4916 = vmatpush1.msra.mxu0 0.0
    %4917 = vmatprep.subr.mxu0 0.0
    %4918 = vmatpush1.msra.mxu0 0.0
    %4919 = vmatprep.subr.mxu0 0.0
    %4920 = vmatpush1.msra.mxu0 0.0
    %4921 = vmatprep.subr.mxu0 0.0
    %4922 = vmatpush1.msra.mxu0 0.0
    %4923 = vmatprep.subr.mxu0 0.0
    %4924 = vmatpush1.msra.mxu0 0.0
    %4925 = vmatprep.subr.mxu0 0.0
    %4926 = vmatpush1.msra.mxu0 0.0
    %4927 = vmatprep.subr.mxu0 0.0
    %4928 = vmatpush1.msra.mxu0 0.0
    %4929 = vmatprep.subr.mxu0 0.0
    %4930 = vmatpush1.msra.mxu0 0.0
    %4931 = vmatprep.subr.mxu0 0.0
    %4932 = vmatpush1.msra.mxu0 0.0
    %4933 = vmatprep.subr.mxu0 0.0
    %4934 = vmatpush1.msra.mxu0 0.0
    %4935 = vmatprep.subr.mxu0 0.0
    %4936 = vmatpush1.msra.mxu0 0.0
    %4937 = vmatprep.subr.mxu0 0.0
    %4938 = vmatpush1.msra.mxu0 0.0
    %4939 = vmatprep.subr.mxu0 0.0
    %4940 = vmatpush1.msra.mxu0 0.0
    %4941 = vmatprep.subr.mxu0 0.0
    %4942 = vmatpush1.msra.mxu0 0.0
    %4943 = vmatprep.subr.mxu0 0.0
    %4944 = vmatpush1.msra.mxu0 0.0
    %4945 = vmatprep.subr.mxu0 0.0
    %4946 = vmatpush1.msra.mxu0 0.0
    %4947 = vmatprep.subr.mxu0 0.0
    %4948 = vmatpush1.msra.mxu0 0.0
    %4949 = vmatprep.subr.mxu0 0.0
    %4950 = vmatpush1.msra.mxu0 0.0
    %4951 = vmatprep.subr.mxu0 0.0
    %4952 = vmatpush1.msra.mxu0 0.0
    %4953 = vmatprep.mubr.f32.mxu0 0.0
    %4954 = vmatmul.mubr.f32.gmra.mrb[0].mxu0 %v4866
    %v4955 = vpop.f32.mrb[0].mxu0
    %v4956 = vadd.f32 %v4863, %v4955
    %v4957 = vpop.f32.mrb[0].mxu0
    %4958 = vmatprep.mubr.f32.mxu0 0.0
    %4959 = vmatmul.mubr.f32.gmra.mrb[0].mxu0 %v4869
    %v4960 = vpop.f32.mrb[0].mxu0
    %v4961 = vadd.f32 %v4863, %v4960
    %v4962 = vpop.f32.mrb[0].mxu0
    %4963 = vmatprep.mubr.f32.mxu0 0.0
    %4964 = vmatmul.mubr.f32.gmra.mrb[0].mxu0 %v4872
    %v4965 = vpop.f32.mrb[0].mxu0
    %v4966 = vadd.f32 %v4863, %v4965
    %v4967 = vpop.f32.mrb[0].mxu0
    %4968 = vmatprep.mubr.f32.mxu0 0.0
    %4969 = vmatmul.mubr.f32.gmra.mrb[0].mxu0 %v4875
    %v4970 = vpop.f32.mrb[0].mxu0
    %v4971 = vadd.f32 %v4863, %v4970
    %v4972 = vpop.f32.mrb[0].mxu0
    %4973 = vmatprep.mubr.f32.mxu0 0.0
    %4974 = vmatmul.mubr.f32.gmra.mrb[0].mxu0 %v4878
    %v4975 = vpop.f32.mrb[0].mxu0
    %v4976 = vadd.f32 %v4863, %v4975
    %v4977 = vpop.f32.mrb[0].mxu0
    %4978 = vmatprep.mubr.f32.mxu0 0.0
    %4979 = vmatmul.mubr.f32.gmra.mrb[0].mxu0 %v4881
    %v4980 = vpop.f32.mrb[0].mxu0
    %v4981 = vadd.f32 %v4863, %v4980
    %v4982 = vpop.f32.mrb[0].mxu0
    %4983 = vmatprep.mubr.f32.mxu0 0.0
    %4984 = vmatmul.mubr.f32.gmra.mrb[0].mxu0 %v4884
    %v4985 = vpop.f32.mrb[0].mxu0
    %v4986 = vadd.f32 %v4863, %v4985
    %v4987 = vpop.f32.mrb[0].mxu0
    %4988 = vmatprep.mubr.f32.mxu0 0.0
    %4989 = vmatmul.mubr.f32.gmra.mrb[0].mxu0 %v4887
    %v4990 = vpop.f32.mrb[0].mxu0
    %v4991 = vadd.f32 %v4863, %v4990
    %v4992 = vpop.f32.mrb[0].mxu0
    %4993 = vdwg.mxu0
    %v4994 = vmax.f32 %v4956, 0.0
    %v4995 = vmax.f32 %v4961, 0.0
    %v4996 = vmax.f32 %v4966, 0.0
    %v4997 = vmax.f32 %v4971, 0.0
    %v4998 = vmax.f32 %v4976, 0.0
    %v4999 = vmax.f32 %v4981, 0.0
    %v5000 = vmax.f32 %v4986, 0.0
    %v5001 = vmax.f32 %v4991, 0.0
    %v5002 = vld [vmem:[%s12] sm:$0xff]
    %v5003 = vld [vmem:[%s12 + $0x8] sm:$0xff]
    %v5004 = vld [vmem:[%s12 + $0x10] sm:$0xff]
    %v5005 = vld [vmem:[%s12 + $0x18] sm:$0xff]
    %v5006 = vld [vmem:[%s13] sm:$0x1]
    %v5008 = vlaneseq
    %v5009 = vshrl.u32 %v5008, 7
    %v5010 = vsub.s32 0, %v5009
    %v5011 = vrot.slane %v5006, %v5010
    %v5014 = vsel %vm265, %v4994, 0
    %v5017 = vsel %vm265, %v4995, 0
    %v5020 = vsel %vm265, %v4996, 0
    %v5023 = vsel %vm265, %v4997, 0
    %v5026 = vsel %vm265, %v4998, 0
    %v5029 = vsel %vm265, %v4999, 0
    %v5032 = vsel %vm265, %v5000, 0
    %v5035 = vsel %vm265, %v5001, 0
    %5037 = vmatprep.subr.mxu0 0.0
    %5038 = vmatpush1.msra.mxu0 %v5002
    %5039 = vmatprep.subr.mxu0 0.0
    %5040 = vmatpush1.msra.mxu0 %v5003
    %5041 = vmatprep.subr.mxu0 0.0
    %5042 = vmatpush1.msra.mxu0 %v5004
    %5043 = vmatprep.subr.mxu0 0.0
    %5044 = vmatpush1.msra.mxu0 %v5005
    %5045 = vmatprep.subr.mxu0 0.0
    %5046 = vmatpush1.msra.mxu0 0.0
    %5047 = vmatprep.subr.mxu0 0.0
    %5048 = vmatpush1.msra.mxu0 0.0
    %5049 = vmatprep.subr.mxu0 0.0
    %5050 = vmatpush1.msra.mxu0 0.0
    %5051 = vmatprep.subr.mxu0 0.0
    %5052 = vmatpush1.msra.mxu0 0.0
    %5053 = vmatprep.subr.mxu0 0.0
    %5054 = vmatpush1.msra.mxu0 0.0
    %5055 = vmatprep.subr.mxu0 0.0
    %5056 = vmatpush1.msra.mxu0 0.0
    %5057 = vmatprep.subr.mxu0 0.0
    %5058 = vmatpush1.msra.mxu0 0.0
    %5059 = vmatprep.subr.mxu0 0.0
    %5060 = vmatpush1.msra.mxu0 0.0
    %5061 = vmatprep.subr.mxu0 0.0
    %5062 = vmatpush1.msra.mxu0 0.0
    %5063 = vmatprep.subr.mxu0 0.0
    %5064 = vmatpush1.msra.mxu0 0.0
    %5065 = vmatprep.subr.mxu0 0.0
    %5066 = vmatpush1.msra.mxu0 0.0
    %5067 = vmatprep.subr.mxu0 0.0
    %5068 = vmatpush1.msra.mxu0 0.0
    %5069 = vmatprep.subr.mxu0 0.0
    %5070 = vmatpush1.msra.mxu0 0.0
    %5071 = vmatprep.subr.mxu0 0.0
    %5072 = vmatpush1.msra.mxu0 0.0
    %5073 = vmatprep.subr.mxu0 0.0
    %5074 = vmatpush1.msra.mxu0 0.0
    %5075 = vmatprep.subr.mxu0 0.0
    %5076 = vmatpush1.msra.mxu0 0.0
    %5077 = vmatprep.subr.mxu0 0.0
    %5078 = vmatpush1.msra.mxu0 0.0
    %5079 = vmatprep.subr.mxu0 0.0
    %5080 = vmatpush1.msra.mxu0 0.0
    %5081 = vmatprep.subr.mxu0 0.0
    %5082 = vmatpush1.msra.mxu0 0.0
    %5083 = vmatprep.subr.mxu0 0.0
    %5084 = vmatpush1.msra.mxu0 0.0
    %5085 = vmatprep.subr.mxu0 0.0
    %5086 = vmatpush1.msra.mxu0 0.0
    %5087 = vmatprep.subr.mxu0 0.0
    %5088 = vmatpush1.msra.mxu0 0.0
    %5089 = vmatprep.subr.mxu0 0.0
    %5090 = vmatpush1.msra.mxu0 0.0
    %5091 = vmatprep.subr.mxu0 0.0
    %5092 = vmatpush1.msra.mxu0 0.0
    %5093 = vmatprep.subr.mxu0 0.0
    %5094 = vmatpush1.msra.mxu0 0.0
    %5095 = vmatprep.subr.mxu0 0.0
    %5096 = vmatpush1.msra.mxu0 0.0
    %5097 = vmatprep.subr.mxu0 0.0
    %5098 = vmatpush1.msra.mxu0 0.0
    %5099 = vmatprep.subr.mxu0 0.0
    %5100 = vmatpush1.msra.mxu0 0.0
    %5101 = vmatprep.mubr.f32.mxu0 0.0
    %5102 = vmatmul.mubr.f32.gmra.mrb[0].mxu0 %v5014
    %v5103 = vpop.f32.mrb[0].mxu0
    %v5104 = vadd.f32 %v5011, %v5103
    %v5105 = vpop.f32.mrb[0].mxu0
    %5106 = vmatprep.mubr.f32.mxu0 0.0
    %5107 = vmatmul.mubr.f32.gmra.mrb[0].mxu0 %v5017
    %v5108 = vpop.f32.mrb[0].mxu0
    %v5109 = vadd.f32 %v5011, %v5108
    %v5110 = vpop.f32.mrb[0].mxu0
    %5111 = vmatprep.mubr.f32.mxu0 0.0
    %5112 = vmatmul.mubr.f32.gmra.mrb[0].mxu0 %v5020
    %v5113 = vpop.f32.mrb[0].mxu0
    %v5114 = vadd.f32 %v5011, %v5113
    %v5115 = vpop.f32.mrb[0].mxu0
    %5116 = vmatprep.mubr.f32.mxu0 0.0
    %5117 = vmatmul.mubr.f32.gmra.mrb[0].mxu0 %v5023
    %v5118 = vpop.f32.mrb[0].mxu0
    %v5119 = vadd.f32 %v5011, %v5118
    %v5120 = vpop.f32.mrb[0].mxu0
    %5121 = vmatprep.mubr.f32.mxu0 0.0
    %5122 = vmatmul.mubr.f32.gmra.mrb[0].mxu0 %v5026
    %v5123 = vpop.f32.mrb[0].mxu0
    %v5124 = vadd.f32 %v5011, %v5123
    %v5125 = vpop.f32.mrb[0].mxu0
    %5126 = vmatprep.mubr.f32.mxu0 0.0
    %5127 = vmatmul.mubr.f32.gmra.mrb[0].mxu0 %v5029
    %v5128 = vpop.f32.mrb[0].mxu0
    %v5129 = vadd.f32 %v5011, %v5128
    %v5130 = vpop.f32.mrb[0].mxu0
    %5131 = vmatprep.mubr.f32.mxu0 0.0
    %5132 = vmatmul.mubr.f32.gmra.mrb[0].mxu0 %v5032
    %v5133 = vpop.f32.mrb[0].mxu0
    %v5134 = vadd.f32 %v5011, %v5133
    %v5135 = vpop.f32.mrb[0].mxu0
    %5136 = vmatprep.mubr.f32.mxu0 0.0
    %5137 = vmatmul.mubr.f32.gmra.mrb[0].mxu0 %v5035
    %v5138 = vpop.f32.mrb[0].mxu0
    %v5139 = vadd.f32 %v5011, %v5138
    %v5140 = vpop.f32.mrb[0].mxu0
    %5141 = vdwg.mxu0
    %vm5142 = vcmask 31744
    %5143 = vst.msk [vmem:[%s14] sm:$0xff] %vm5142, %v5104
    %5144 = vst.msk [vmem:[%s14 + $0x8] sm:$0xff] %vm5142, %v5109
    %5145 = vst.msk [vmem:[%s14 + $0x10] sm:$0xff] %vm5142, %v5114
    %5146 = vst.msk [vmem:[%s14 + $0x18] sm:$0xff] %vm5142, %v5119
    %5147 = vst.msk [vmem:[%s14 + $0x20] sm:$0xff] %vm5142, %v5124
    %5148 = vst.msk [vmem:[%s14 + $0x28] sm:$0xff] %vm5142, %v5129
    %5149 = vst.msk [vmem:[%s14 + $0x30] sm:$0xff] %vm5142, %v5134
    %5150 = vst.msk [vmem:[%s14 + $0x38] sm:$0xff] %vm5142, %v5139
    // Predicated region
    $region78: #{tpu_custom_call.1} parent=1 // pred_check
      _
    $region79: #{tpu_custom_call.1} parent=1 // pred_check_branch
      %5152 = sbr.rel (0) target = $region81
    $region80: #{tpu_custom_call.1} parent=1 // pred_region
      _
    $region81: #{tpu_custom_call.1} parent=1 // pred_fallthru
      _
    // Predicated region
    $region82: #{tpu_custom_call.1} parent=1 // pred_check
      _
    $region83: #{tpu_custom_call.1} parent=1 // pred_check_branch
      %5154 = sbr.rel (0) target = $region85
    $region84: #{tpu_custom_call.1} parent=1 // pred_region
      %s5156 = ssub.s32 256, 256
      %5157 = vsyncadd [#allocation8], %s5156
      %s5158 = sshll.u32 [#allocation15], 4
      %s5159 = int_to_ptr.vmem [resolvable:$true] %s5158
      %5164 = dma.vmem_to_hbm [thread:$0]  %s5159, 256, %s15, [#allocation8], 128, 128, 8
    $region85: #{tpu_custom_call.1} parent=1 // pred_fallthru
      _
    // Predicated region
    $region86: #{tpu_custom_call.1} parent=1 // pred_check
      _
    $region87: #{tpu_custom_call.1} parent=1 // pred_check_branch
      %5166 = sbr.rel (0) target = $region89
    $region88: #{tpu_custom_call.1} parent=1 // pred_region
      _
    $region89: #{tpu_custom_call.1} parent=1 // pred_fallthru
      _
    // Predicated region
    $region90: #{tpu_custom_call.1} parent=1 // pred_check
      _
    $region91: #{tpu_custom_call.1} parent=1 // pred_check_branch
      %5168 = sbr.rel (0) target = $region93
    $region92: #{tpu_custom_call.1} parent=1 // pred_region
      %5169 = dma.done [#allocation8], 256
    $region93: #{tpu_custom_call.1} parent=1 // pred_fallthru
      _
    %5170 = vsyncpa [#allocation7], 1
    %5171 = vsyncpa [#allocation10], 1
    %5172 = vsyncpa [#allocation13], 1
    %5173 = vsyncpa [#allocation8], 1

</llo_original>
